<compile_context>
chip_gen: v7x
topology: tpu7x:2x2x1
jax: 0.10.0
libtpu: 0.0.40
codegen_flags: <defaults>
</compile_context>

<pallas_src>
import functools

import numpy as np
import jax
import jax.numpy as jnp
from jax.experimental import pallas as pl
from jax.experimental.pallas import tpu as pltpu


# ----------------------------------------------------------------------------
# Static plan (shapes / strides / padded channel dims)
# ----------------------------------------------------------------------------

def _pad128(c):
    return ((c + 127) // 128) * 128


def make_plan(input_channels, layers, blocks_per_layer, seq_len):
    Lc = (seq_len + 2 * 3 - 7) // 2 + 1          # stem conv output length (stride 2, pad 3)
    Pe = (Lc + 1) // 2                           # even conv positions == maxpool output length
    Po = Lc // 2                                 # odd conv positions
    plan = {"stem": {"c_in": input_channels, "c_out": 64,
                     "c_out_pad": _pad128(64), "Lc": Lc, "Pe": Pe, "Po": Po}}
    blocks = []
    in_ch, L = 64, Pe
    strides = [1, 2, 2, 2]
    for li, (out_ch, n_blocks) in enumerate(zip(layers, blocks_per_layer)):
        for b in range(n_blocks):
            s = strides[li] if b == 0 else 1
            L_out = (L - 1) // s + 1             # conv K=3, pad=1, stride=s
            has_down = (b == 0) and (s != 1 or in_ch != out_ch)
            blocks.append(dict(c_in=in_ch, c_out=out_ch,
                               c_in_pad=_pad128(in_ch), c_out_pad=_pad128(out_ch),
                               stride=s, L_in=L, L_out=L_out, down=has_down))
            in_ch, L = out_ch, L_out
    plan["blocks"] = blocks
    plan["L_final"] = L
    plan["c_final"] = in_ch
    plan["c_final_pad"] = _pad128(in_ch)
    return plan


# ----------------------------------------------------------------------------
# Constant 0/1 selection matrices (built on host with numpy, exact row copies)
# ----------------------------------------------------------------------------

def _shift_mat(Bl, L, delta):
    """(Bl*L, Bl*L): out[i] = x[i + delta] within each length-L batch segment, zero outside."""
    M = Bl * L
    S = np.zeros((M, M), np.float32)
    for b in range(Bl):
        for j in range(L):
            src = j + delta
            if 0 <= src < L:
                S[b * L + j, b * L + src] = 1.0
    return S


def _phase_mat(Bl, L_in, L_out, stride, offset):
    """(Bl*L_out, Bl*L_in): out[j] = x[stride*j + offset] within segments (zero == conv pad)."""
    S = np.zeros((Bl * L_out, Bl * L_in), np.float32)
    for b in range(Bl):
        for j in range(L_out):
            src = stride * j + offset
            if 0 <= src < L_in:
                S[b * L_out + j, b * L_in + src] = 1.0
    return S


def _pool_mats(Bl, Pe, Po):
    """MaxPool1d(3,2,1) helpers: pooled[j] = max(ye[j], (Sa@yo)[j], (Sb@yo)[j])."""
    Sa = np.zeros((Bl * Pe, Bl * Pe), np.float32)
    Sb = np.zeros((Bl * Pe, Bl * Pe), np.float32)
    for b in range(Bl):
        for j in range(Po):
            Sa[b * Pe + j, b * Pe + j] = 1.0             # y[2j+1] -> pooled[j]
            if j + 1 < Pe:
                Sb[b * Pe + j + 1, b * Pe + j] = 1.0     # y[2j+1] -> pooled[j+1]
    return Sa, Sb


def _avg_mat(Bl, L, rows):
    """(rows, Bl*L): row b averages batch-b segment (rows >= Bl are zero; keeps MXU M >= 8)."""
    S = np.zeros((rows, Bl * L), np.float32)
    for b in range(Bl):
        S[b, b * L:(b + 1) * L] = 1.0 / L
    return S


# ----------------------------------------------------------------------------
# The single fused kernel
# ----------------------------------------------------------------------------

def _make_kernel(names, plan, fc_acts, Bl):
    blocks = plan["blocks"]

    def kernel(*refs):
        r = dict(zip(names, refs[:-1]))
        out_ref = refs[-1]

        def mm(a, b):
            return jnp.dot(a, b, preferred_element_type=jnp.float32)

        # ---------------- stem: conv7/s2 (+BN+ReLU) fused with MaxPool1d(3,2,1) --------------
        xe = r["stem_in"][0, 0, :, :]            # (Bl*Pe, K*C_in) bf16, even conv positions
        xo = r["stem_in"][0, 1, :, :]            # odd conv positions
        ws = r["stem_w"][...]                    # (K*C_in, 128) bf16, BN scale folded
        sh = r["stem_shift"][...]                # (1, 128) f32
        ye = jnp.maximum(mm(xe, ws) + sh, 0.0)
        yo = jnp.maximum(mm(xo, ws) + sh, 0.0)
        # post-ReLU values are >= 0, so zero rows from the selection act like -inf pool padding
        h = jnp.maximum(ye, jnp.maximum(mm(r["pool_a"][...], yo),
                                        mm(r["pool_b"][...], yo)))     # (Bl*Pe, 128) f32

        # ---------------- residual blocks ----------------------------------------------------
        for i, blk in enumerate(blocks):
            p = f"b{i}_"
            cp = blk["c_out_pad"]
            hb = h.astype(jnp.bfloat16)

            if blk["down"]:
                # stride-s conv1 taps via phase-selection matmuls; centre tap shared with the
                # 1x1 downsample through a concatenated (C_in_pad, 2*C_out_pad) RHS.
                t0 = mm(r[p + "T0"][...], h).astype(jnp.bfloat16)
                t1 = mm(r[p + "T1"][...], h).astype(jnp.bfloat16)
                t2 = mm(r[p + "T2"][...], h).astype(jnp.bfloat16)
                mid = mm(t1, r[p + "w1md"][...])                       # (M_out, 2*cp)
                y1 = (mm(t0, r[p + "w1s"][0]) + mid[:, :cp]
                      + mm(t2, r[p + "w1s"][1]) + r[p + "shift1"][...])
                identity = mid[:, cp:] + r[p + "shift_d"][...]
            else:
                # stride-1 conv1: taps are row shifts (L_in == L_out so U0/U2 are reused)
                t0 = mm(r[p + "U0"][...], h).astype(jnp.bfloat16)
                t2 = mm(r[p + "U2"][...], h).astype(jnp.bfloat16)
                w1 = r[p + "w1"]
                y1 = (mm(t0, w1[0]) + mm(hb, w1[1]) + mm(t2, w1[2]) + r[p + "shift1"][...])
                identity = h
            y1 = jnp.maximum(y1, 0.0)

            # conv2 (K=3, stride 1) + BN shift + residual add + ReLU
            y1b = y1.astype(jnp.bfloat16)
            u0 = mm(r[p + "U0"][...], y1).astype(jnp.bfloat16)
            u2 = mm(r[p + "U2"][...], y1).astype(jnp.bfloat16)
            w2 = r[p + "w2"]
            y2 = (mm(u0, w2[0]) + mm(y1b, w2[1]) + mm(u2, w2[2])
                  + r[p + "shift2"][...] + identity)
            h = jnp.maximum(y2, 0.0)

        # ---------------- global average pool + FC head --------------------------------------
        g = mm(r["pool_avg"][...], h)                                   # (>=8, C) f32
        for li, act in enumerate(fc_acts):
            g = mm(g.astype(jnp.bfloat16), r[f"fc{li}_w"][...]) + r[f"fc{li}_b"][...]
            if act == "relu":
                g = jnp.maximum(g, 0.0)
            elif act == "tanh":
                g = jnp.tanh(g)
            elif act == "sigmoid":
                g = jax.nn.sigmoid(g)
            elif act == "leaky_relu":
                g = jnp.where(g > 0, g, 0.1 * g)   # module uses nn.LeakyReLU(0.1)
        out_ref[0] = g[:Bl, :]

    return kernel


# ----------------------------------------------------------------------------
# Wrapper: stem im2col, argument/spec assembly, single pallas_call
# ----------------------------------------------------------------------------

def _full_spec(shape):
    nd = len(shape)

    def idx(g):
        return (0,) * nd

    return pl.BlockSpec(tuple(shape), idx)


def _build_stem_input(x, c_in, Lc, Pe, Po, G, Bl):
    """(B, L, C_in) -> (G, 2, Bl*Pe, 7*C_in) bf16 phase-ordered im2col for the stem conv."""
    B = x.shape[0]
    xpad = jnp.pad(x, ((0, 0), (3, 3), (0, 0)))
    cols = [xpad[:, k:k + 2 * (Lc - 1) + 1:2, :] for k in range(7)]      # each (B, Lc, C_in)
    xcol = jnp.concatenate(cols, axis=-1)                                # (B, Lc, 7*C_in)
    xe = xcol[:, 0::2, :]                                                # even conv positions
    xo = xcol[:, 1::2, :]                                                # odd conv positions
    if Po < Pe:
        xo = jnp.pad(xo, ((0, 0), (0, Pe - Po), (0, 0)))
    si = jnp.stack([xe, xo], axis=1)                                     # (B, 2, Pe, 7*C_in)
    si = si.reshape(G, Bl, 2, Pe, 7 * c_in).transpose(0, 2, 1, 3, 4)
    return si.reshape(G, 2, Bl * Pe, 7 * c_in).astype(jnp.bfloat16)


def resnet_forward(x, params, plan, fc_acts):
    B = x.shape[0]
    G = 2 if (B >= 2 and B % 2 == 0) else 1      # 2-way parallel axis keeps both v7x TCs busy
    Bl = B // G

    st = plan["stem"]
    stem_in = _build_stem_input(x, st["c_in"], st["Lc"], st["Pe"], st["Po"], G, Bl)

    names, args, specs = [], [], []

    def add(name, arr, spec=None):
        names.append(name)
        args.append(arr)
        specs.append(spec if spec is not None else _full_spec(arr.shape))

    add("stem_in", stem_in,
        pl.BlockSpec((1, 2, Bl * st["Pe"], 7 * st["c_in"]), lambda g: (g, 0, 0, 0)))
    add("stem_w", params["stem"]["w"])
    add("stem_shift", params["stem"]["shift"])
    Sa, Sb = _pool_mats(Bl, st["Pe"], st["Po"])
    add("pool_a", Sa)
    add("pool_b", Sb)

    for i, (blk, bp) in enumerate(zip(plan["blocks"], params["blocks"])):
        p = f"b{i}_"
        add(p + "U0", _shift_mat(Bl, blk["L_out"], -1))
        add(p + "U2", _shift_mat(Bl, blk["L_out"], +1))
        if blk["down"]:
            add(p + "T0", _phase_mat(Bl, blk["L_in"], blk["L_out"], blk["stride"], -1))
            add(p + "T1", _phase_mat(Bl, blk["L_in"], blk["L_out"], blk["stride"], 0))
            add(p + "T2", _phase_mat(Bl, blk["L_in"], blk["L_out"], blk["stride"], +1))
            add(p + "w1s", bp["w1_side"])
            add(p + "w1md", bp["w1mid_down"])
            add(p + "shift1", bp["shift1"])
            add(p + "shift_d", bp["shift_down"])
        else:
            add(p + "w1", bp["w1"])
            add(p + "shift1", bp["shift1"])
        add(p + "w2", bp["w2"])
        add(p + "shift2", bp["shift2"])

    add("pool_avg", _avg_mat(Bl, plan["L_final"], rows=max(8, Bl)))
    for li, f in enumerate(params["fc"]):
        add(f"fc{li}_w", f["w"])
        add(f"fc{li}_b", f["b"])

    n_out = params["fc"][-1]["w"].shape[1]
    kernel = _make_kernel(tuple(names), plan, tuple(fc_acts), Bl)

    out = pl.pallas_call(
        kernel,
        out_shape=jax.ShapeDtypeStruct((G, Bl, n_out), jnp.float32),
        grid=(G,),
        in_specs=specs,
        out_specs=pl.BlockSpec((1, Bl, n_out), lambda g: (g, 0, 0)),
        compiler_params=pltpu.CompilerParams(dimension_semantics=("parallel",)),
    )(*args)
    return out.reshape(B, n_out)


# ----------------------------------------------------------------------------
# Deterministic parameter init (eval-mode BN folded, channels padded to 128 with exact zeros)
# ----------------------------------------------------------------------------

def _fold_bn(key, c_in, c_out, K, eps=1e-5):
    k1, k2, k3, k4, k5 = jax.random.split(key, 5)
    w = jax.random.normal(k1, (K, c_in, c_out), jnp.float32) / np.sqrt(K * c_in)
    gamma = 1.0 + 0.05 * jax.random.normal(k2, (c_out,), jnp.float32)
    beta = 0.05 * jax.random.normal(k3, (c_out,), jnp.float32)
    mean = 0.05 * jax.random.normal(k4, (c_out,), jnp.float32)
    var = 1.0 + 0.1 * jnp.abs(jax.random.normal(k5, (c_out,), jnp.float32))
    scale = gamma / jnp.sqrt(var + eps)
    shift = beta - mean * scale
    return w * scale, shift


def init_params(key, plan, fc_layers):
    kit = iter(jax.random.split(key, 64))
    params = {}

    st = plan["stem"]
    c_in, c_out, cop = st["c_in"], st["c_out"], st["c_out_pad"]
    w, shift = _fold_bn(next(kit), c_in, c_out, 7)
    w_flat = w.reshape(7 * c_in, c_out)
    w_pad = jnp.zeros((7 * c_in, cop), jnp.float32).at[:, :c_out].set(w_flat)
    sh_pad = jnp.zeros((1, cop), jnp.float32).at[0, :c_out].set(shift)
    params["stem"] = {"w": w_pad.astype(jnp.bfloat16), "shift": sh_pad}

    bps = []
    for blk in plan["blocks"]:
        cin, cout = blk["c_in"], blk["c_out"]
        cip, copd = blk["c_in_pad"], blk["c_out_pad"]
        w1, sh1 = _fold_bn(next(kit), cin, cout, 3)
        w2, sh2 = _fold_bn(next(kit), cout, cout, 3)
        w1p = jnp.zeros((3, cip, copd), jnp.float32).at[:, :cin, :cout].set(w1)
        w2p = jnp.zeros((3, copd, copd), jnp.float32).at[:, :cout, :cout].set(w2)
        bp = {"shift1": jnp.zeros((1, copd), jnp.float32).at[0, :cout].set(sh1),
              "shift2": jnp.zeros((1, copd), jnp.float32).at[0, :cout].set(sh2),
              "w2": w2p.astype(jnp.bfloat16)}
        if blk["down"]:
            wd, shd = _fold_bn(next(kit), cin, cout, 1)
            wdp = jnp.zeros((cip, copd), jnp.float32).at[:cin, :cout].set(wd[0])
            bp["w1_side"] = jnp.stack([w1p[0], w1p[2]], axis=0).astype(jnp.bfloat16)
            bp["w1mid_down"] = jnp.concatenate([w1p[1], wdp], axis=-1).astype(jnp.bfloat16)
            bp["shift_down"] = jnp.zeros((1, copd), jnp.float32).at[0, :cout].set(shd)
        else:
            bp["w1"] = w1p.astype(jnp.bfloat16)
        bps.append(bp)
    params["blocks"] = bps

    fcs = []
    cur, cur_pad = plan["c_final"], plan["c_final_pad"]
    for units in fc_layers:
        kw, kb = jax.random.split(next(kit))
        w = jax.random.normal(kw, (cur, units), jnp.float32) / np.sqrt(cur)
        b = 0.01 * jax.random.normal(kb, (units,), jnp.float32)
        w_pad = jnp.zeros((cur_pad, units), jnp.float32).at[:cur, :].set(w)
        fcs.append({"w": w_pad.astype(jnp.bfloat16), "b": b.reshape(1, units)})
        cur, cur_pad = units, units
    params["fc"] = fcs
    return params


# ----------------------------------------------------------------------------
# Main
# ----------------------------------------------------------------------------

if __name__ == "__main__":
    key = jax.random.PRNGKey(0)
    k_x, k_p = jax.random.split(key)

    # (batch, seq_len, features) as in the PyTorch module's forward
    B, SEQ, FEAT = 2, 64, 4
    x = jax.random.normal(k_x, (B, SEQ, FEAT), jnp.float32)

    layers = [64, 64, 128, 128]
    blocks_per_layer = [1, 1, 1, 1]
    fc_layers = [32, 1]
    activations = ["relu", "linear"]          # 'linear' -> no activation on the final layer

    plan = make_plan(FEAT, layers, blocks_per_layer, SEQ)
    params = init_params(k_p, plan, fc_layers)
    fc_acts = tuple(a if a in ("relu", "tanh", "sigmoid", "leaky_relu") else None
                    for a in activations)

    fwd = jax.jit(lambda inp: resnet_forward(inp, params, plan, fc_acts))
    out = fwd(x)
    jax.block_until_ready(out)

    assert out.shape == (B, 1), out.shape
    assert bool(jnp.all(jnp.isfinite(out)))
    print("KERNEL_OK")
</pallas_src>

<mosaic_0001>
module attributes {stable_mosaic.version = 11 : i64} {
  func.func @kernel(%arg0: i32, %arg1: memref<1x2x16x28xbf16, #tpu.memory_space<vmem>>, %arg2: memref<28x128xbf16, #tpu.memory_space<vmem>>, %arg3: memref<1x128xf32, #tpu.memory_space<vmem>>, %arg4: memref<16x16xf32, #tpu.memory_space<vmem>>, %arg5: memref<16x16xf32, #tpu.memory_space<vmem>>, %arg6: memref<16x16xf32, #tpu.memory_space<vmem>>, %arg7: memref<16x16xf32, #tpu.memory_space<vmem>>, %arg8: memref<3x128x128xbf16, #tpu.memory_space<vmem>>, %arg9: memref<1x128xf32, #tpu.memory_space<vmem>>, %arg10: memref<3x128x128xbf16, #tpu.memory_space<vmem>>, %arg11: memref<1x128xf32, #tpu.memory_space<vmem>>, %arg12: memref<8x8xf32, #tpu.memory_space<vmem>>, %arg13: memref<8x8xf32, #tpu.memory_space<vmem>>, %arg14: memref<8x16xf32, #tpu.memory_space<vmem>>, %arg15: memref<8x16xf32, #tpu.memory_space<vmem>>, %arg16: memref<8x16xf32, #tpu.memory_space<vmem>>, %arg17: memref<2x128x128xbf16, #tpu.memory_space<vmem>>, %arg18: memref<128x256xbf16, #tpu.memory_space<vmem>>, %arg19: memref<1x128xf32, #tpu.memory_space<vmem>>, %arg20: memref<1x128xf32, #tpu.memory_space<vmem>>, %arg21: memref<3x128x128xbf16, #tpu.memory_space<vmem>>, %arg22: memref<1x128xf32, #tpu.memory_space<vmem>>, %arg23: memref<4x4xf32, #tpu.memory_space<vmem>>, %arg24: memref<4x4xf32, #tpu.memory_space<vmem>>, %arg25: memref<4x8xf32, #tpu.memory_space<vmem>>, %arg26: memref<4x8xf32, #tpu.memory_space<vmem>>, %arg27: memref<4x8xf32, #tpu.memory_space<vmem>>, %arg28: memref<2x128x128xbf16, #tpu.memory_space<vmem>>, %arg29: memref<128x256xbf16, #tpu.memory_space<vmem>>, %arg30: memref<1x128xf32, #tpu.memory_space<vmem>>, %arg31: memref<1x128xf32, #tpu.memory_space<vmem>>, %arg32: memref<3x128x128xbf16, #tpu.memory_space<vmem>>, %arg33: memref<1x128xf32, #tpu.memory_space<vmem>>, %arg34: memref<2x2xf32, #tpu.memory_space<vmem>>, %arg35: memref<2x2xf32, #tpu.memory_space<vmem>>, %arg36: memref<2x4xf32, #tpu.memory_space<vmem>>, %arg37: memref<2x4xf32, #tpu.memory_space<vmem>>, %arg38: memref<2x4xf32, #tpu.memory_space<vmem>>, %arg39: memref<2x128x128xbf16, #tpu.memory_space<vmem>>, %arg40: memref<128x256xbf16, #tpu.memory_space<vmem>>, %arg41: memref<1x128xf32, #tpu.memory_space<vmem>>, %arg42: memref<1x128xf32, #tpu.memory_space<vmem>>, %arg43: memref<3x128x128xbf16, #tpu.memory_space<vmem>>, %arg44: memref<1x128xf32, #tpu.memory_space<vmem>>, %arg45: memref<8x2xf32, #tpu.memory_space<vmem>>, %arg46: memref<128x32xbf16, #tpu.memory_space<vmem>>, %arg47: memref<1x32xf32, #tpu.memory_space<vmem>>, %arg48: memref<32x1xbf16, #tpu.memory_space<vmem>>, %arg49: memref<1x1xf32, #tpu.memory_space<vmem>>, %arg50: memref<1x1x1xf32, #tpu.memory_space<vmem>>) attributes {dimension_semantics = [#tpu.dimension_semantics<parallel>], iteration_bounds = array<i64: 2>, scalar_prefetch = 0 : i64, scratch_operands = 0 : i64, tpu.core_type = #tpu.core_type<tc>, window_params = [{transform_indices = @transform_0, window_bounds = array<i64: 1, 2, 16, 28>}, {pipeline_mode = #tpu.pipeline_mode<synchronous>, transform_indices = @transform_1, window_bounds = array<i64: 28, 128>}, {pipeline_mode = #tpu.pipeline_mode<synchronous>, transform_indices = @transform_2, window_bounds = array<i64: 1, 128>}, {pipeline_mode = #tpu.pipeline_mode<synchronous>, transform_indices = @transform_3, window_bounds = array<i64: 16, 16>}, {pipeline_mode = #tpu.pipeline_mode<synchronous>, transform_indices = @transform_4, window_bounds = array<i64: 16, 16>}, {pipeline_mode = #tpu.pipeline_mode<synchronous>, transform_indices = @transform_5, window_bounds = array<i64: 16, 16>}, {pipeline_mode = #tpu.pipeline_mode<synchronous>, transform_indices = @transform_6, window_bounds = array<i64: 16, 16>}, {pipeline_mode = #tpu.pipeline_mode<synchronous>, transform_indices = @transform_7, window_bounds = array<i64: 3, 128, 128>}, {pipeline_mode = #tpu.pipeline_mode<synchronous>, transform_indices = @transform_8, window_bounds = array<i64: 1, 128>}, {pipeline_mode = #tpu.pipeline_mode<synchronous>, transform_indices = @transform_9, window_bounds = array<i64: 3, 128, 128>}, {pipeline_mode = #tpu.pipeline_mode<synchronous>, transform_indices = @transform_10, window_bounds = array<i64: 1, 128>}, {pipeline_mode = #tpu.pipeline_mode<synchronous>, transform_indices = @transform_11, window_bounds = array<i64: 8, 8>}, {pipeline_mode = #tpu.pipeline_mode<synchronous>, transform_indices = @transform_12, window_bounds = array<i64: 8, 8>}, {pipeline_mode = #tpu.pipeline_mode<synchronous>, transform_indices = @transform_13, window_bounds = array<i64: 8, 16>}, {pipeline_mode = #tpu.pipeline_mode<synchronous>, transform_indices = @transform_14, window_bounds = array<i64: 8, 16>}, {pipeline_mode = #tpu.pipeline_mode<synchronous>, transform_indices = @transform_15, window_bounds = array<i64: 8, 16>}, {pipeline_mode = #tpu.pipeline_mode<synchronous>, transform_indices = @transform_16, window_bounds = array<i64: 2, 128, 128>}, {pipeline_mode = #tpu.pipeline_mode<synchronous>, transform_indices = @transform_17, window_bounds = array<i64: 128, 256>}, {pipeline_mode = #tpu.pipeline_mode<synchronous>, transform_indices = @transform_18, window_bounds = array<i64: 1, 128>}, {pipeline_mode = #tpu.pipeline_mode<synchronous>, transform_indices = @transform_19, window_bounds = array<i64: 1, 128>}, {pipeline_mode = #tpu.pipeline_mode<synchronous>, transform_indices = @transform_20, window_bounds = array<i64: 3, 128, 128>}, {pipeline_mode = #tpu.pipeline_mode<synchronous>, transform_indices = @transform_21, window_bounds = array<i64: 1, 128>}, {pipeline_mode = #tpu.pipeline_mode<synchronous>, transform_indices = @transform_22, window_bounds = array<i64: 4, 4>}, {pipeline_mode = #tpu.pipeline_mode<synchronous>, transform_indices = @transform_23, window_bounds = array<i64: 4, 4>}, {pipeline_mode = #tpu.pipeline_mode<synchronous>, transform_indices = @transform_24, window_bounds = array<i64: 4, 8>}, {pipeline_mode = #tpu.pipeline_mode<synchronous>, transform_indices = @transform_25, window_bounds = array<i64: 4, 8>}, {pipeline_mode = #tpu.pipeline_mode<synchronous>, transform_indices = @transform_26, window_bounds = array<i64: 4, 8>}, {pipeline_mode = #tpu.pipeline_mode<synchronous>, transform_indices = @transform_27, window_bounds = array<i64: 2, 128, 128>}, {pipeline_mode = #tpu.pipeline_mode<synchronous>, transform_indices = @transform_28, window_bounds = array<i64: 128, 256>}, {pipeline_mode = #tpu.pipeline_mode<synchronous>, transform_indices = @transform_29, window_bounds = array<i64: 1, 128>}, {pipeline_mode = #tpu.pipeline_mode<synchronous>, transform_indices = @transform_30, window_bounds = array<i64: 1, 128>}, {pipeline_mode = #tpu.pipeline_mode<synchronous>, transform_indices = @transform_31, window_bounds = array<i64: 3, 128, 128>}, {pipeline_mode = #tpu.pipeline_mode<synchronous>, transform_indices = @transform_32, window_bounds = array<i64: 1, 128>}, {pipeline_mode = #tpu.pipeline_mode<synchronous>, transform_indices = @transform_33, window_bounds = array<i64: 2, 2>}, {pipeline_mode = #tpu.pipeline_mode<synchronous>, transform_indices = @transform_34, window_bounds = array<i64: 2, 2>}, {pipeline_mode = #tpu.pipeline_mode<synchronous>, transform_indices = @transform_35, window_bounds = array<i64: 2, 4>}, {pipeline_mode = #tpu.pipeline_mode<synchronous>, transform_indices = @transform_36, window_bounds = array<i64: 2, 4>}, {pipeline_mode = #tpu.pipeline_mode<synchronous>, transform_indices = @transform_37, window_bounds = array<i64: 2, 4>}, {pipeline_mode = #tpu.pipeline_mode<synchronous>, transform_indices = @transform_38, window_bounds = array<i64: 2, 128, 128>}, {pipeline_mode = #tpu.pipeline_mode<synchronous>, transform_indices = @transform_39, window_bounds = array<i64: 128, 256>}, {pipeline_mode = #tpu.pipeline_mode<synchronous>, transform_indices = @transform_40, window_bounds = array<i64: 1, 128>}, {pipeline_mode = #tpu.pipeline_mode<synchronous>, transform_indices = @transform_41, window_bounds = array<i64: 1, 128>}, {pipeline_mode = #tpu.pipeline_mode<synchronous>, transform_indices = @transform_42, window_bounds = array<i64: 3, 128, 128>}, {pipeline_mode = #tpu.pipeline_mode<synchronous>, transform_indices = @transform_43, window_bounds = array<i64: 1, 128>}, {pipeline_mode = #tpu.pipeline_mode<synchronous>, transform_indices = @transform_44, window_bounds = array<i64: 8, 2>}, {pipeline_mode = #tpu.pipeline_mode<synchronous>, transform_indices = @transform_45, window_bounds = array<i64: 128, 32>}, {pipeline_mode = #tpu.pipeline_mode<synchronous>, transform_indices = @transform_46, window_bounds = array<i64: 1, 32>}, {pipeline_mode = #tpu.pipeline_mode<synchronous>, transform_indices = @transform_47, window_bounds = array<i64: 32, 1>}, {pipeline_mode = #tpu.pipeline_mode<synchronous>, transform_indices = @transform_48, window_bounds = array<i64: 1, 1>}, {transform_indices = @transform_49, window_bounds = array<i64: 1, 1, 1>}]} {
    %c0 = arith.constant 0 : index
    %c0_0 = arith.constant 0 : index
    %c0_1 = arith.constant 0 : index
    %c0_2 = arith.constant 0 : index
    %0 = vector.load %arg1[%c0, %c0_0, %c0_1, %c0_2] : memref<1x2x16x28xbf16, #tpu.memory_space<vmem>>, vector<1x1x16x28xbf16>
    %1 = vector.shape_cast %0 : vector<1x1x16x28xbf16> to vector<16x28xbf16>
    %c0_3 = arith.constant 0 : index
    %c1 = arith.constant 1 : index
    %c0_4 = arith.constant 0 : index
    %c0_5 = arith.constant 0 : index
    %2 = vector.load %arg1[%c0_3, %c1, %c0_4, %c0_5] : memref<1x2x16x28xbf16, #tpu.memory_space<vmem>>, vector<1x1x16x28xbf16>
    %3 = vector.shape_cast %2 : vector<1x1x16x28xbf16> to vector<16x28xbf16>
    %c0_6 = arith.constant 0 : index
    %c0_7 = arith.constant 0 : index
    %4 = vector.load %arg2[%c0_6, %c0_7] : memref<28x128xbf16, #tpu.memory_space<vmem>>, vector<28x128xbf16>
    %c0_8 = arith.constant 0 : index
    %c0_9 = arith.constant 0 : index
    %5 = vector.load %arg3[%c0_8, %c0_9] : memref<1x128xf32, #tpu.memory_space<vmem>>, vector<1x128xf32>
    %cst = arith.constant dense<0.000000e+00> : vector<16x128xf32>
    %6 = tpu.matmul %1, %4, %cst {dimension_numbers = #tpu.dot_dimension_numbers<[1], [0], [0], [1], [0, 0, 1, 1], [], []>} : vector<16x28xbf16>, vector<28x128xbf16>, vector<16x128xf32> -> vector<16x128xf32>
    %7 = vector.broadcast %5 : vector<1x128xf32> to vector<16x128xf32>
    %8 = arith.addf %6, %7 : vector<16x128xf32>
    %cst_10 = arith.constant 0.000000e+00 : f32
    %9 = vector.broadcast %cst_10 : f32 to vector<16x128xf32>
    %10 = arith.maximumf %8, %9 : vector<16x128xf32>
    %cst_11 = arith.constant dense<0.000000e+00> : vector<16x128xf32>
    %11 = tpu.matmul %3, %4, %cst_11 {dimension_numbers = #tpu.dot_dimension_numbers<[1], [0], [0], [1], [0, 0, 1, 1], [], []>} : vector<16x28xbf16>, vector<28x128xbf16>, vector<16x128xf32> -> vector<16x128xf32>
    %12 = vector.broadcast %5 : vector<1x128xf32> to vector<16x128xf32>
    %13 = arith.addf %11, %12 : vector<16x128xf32>
    %cst_12 = arith.constant 0.000000e+00 : f32
    %14 = vector.broadcast %cst_12 : f32 to vector<16x128xf32>
    %15 = arith.maximumf %13, %14 : vector<16x128xf32>
    %c0_13 = arith.constant 0 : index
    %c0_14 = arith.constant 0 : index
    %16 = vector.load %arg4[%c0_13, %c0_14] : memref<16x16xf32, #tpu.memory_space<vmem>>, vector<16x16xf32>
    %cst_15 = arith.constant dense<0.000000e+00> : vector<16x128xf32>
    %17 = tpu.matmul %16, %15, %cst_15 {dimension_numbers = #tpu.dot_dimension_numbers<[1], [0], [0], [1], [0, 0, 1, 1], [], []>} : vector<16x16xf32>, vector<16x128xf32>, vector<16x128xf32> -> vector<16x128xf32>
    %c0_16 = arith.constant 0 : index
    %c0_17 = arith.constant 0 : index
    %18 = vector.load %arg5[%c0_16, %c0_17] : memref<16x16xf32, #tpu.memory_space<vmem>>, vector<16x16xf32>
    %cst_18 = arith.constant dense<0.000000e+00> : vector<16x128xf32>
    %19 = tpu.matmul %18, %15, %cst_18 {dimension_numbers = #tpu.dot_dimension_numbers<[1], [0], [0], [1], [0, 0, 1, 1], [], []>} : vector<16x16xf32>, vector<16x128xf32>, vector<16x128xf32> -> vector<16x128xf32>
    %20 = arith.maximumf %17, %19 : vector<16x128xf32>
    %21 = arith.maximumf %10, %20 : vector<16x128xf32>
    %22 = arith.truncf %21 : vector<16x128xf32> to vector<16x128xbf16>
    %c0_19 = arith.constant 0 : index
    %c0_20 = arith.constant 0 : index
    %23 = vector.load %arg6[%c0_19, %c0_20] : memref<16x16xf32, #tpu.memory_space<vmem>>, vector<16x16xf32>
    %cst_21 = arith.constant dense<0.000000e+00> : vector<16x128xf32>
    %24 = tpu.matmul %23, %21, %cst_21 {dimension_numbers = #tpu.dot_dimension_numbers<[1], [0], [0], [1], [0, 0, 1, 1], [], []>} : vector<16x16xf32>, vector<16x128xf32>, vector<16x128xf32> -> vector<16x128xf32>
    %25 = arith.truncf %24 : vector<16x128xf32> to vector<16x128xbf16>
    %c0_22 = arith.constant 0 : index
    %c0_23 = arith.constant 0 : index
    %26 = vector.load %arg7[%c0_22, %c0_23] : memref<16x16xf32, #tpu.memory_space<vmem>>, vector<16x16xf32>
    %cst_24 = arith.constant dense<0.000000e+00> : vector<16x128xf32>
    %27 = tpu.matmul %26, %21, %cst_24 {dimension_numbers = #tpu.dot_dimension_numbers<[1], [0], [0], [1], [0, 0, 1, 1], [], []>} : vector<16x16xf32>, vector<16x128xf32>, vector<16x128xf32> -> vector<16x128xf32>
    %28 = arith.truncf %27 : vector<16x128xf32> to vector<16x128xbf16>
    %c0_25 = arith.constant 0 : index
    %c0_26 = arith.constant 0 : index
    %c0_27 = arith.constant 0 : index
    %29 = vector.load %arg8[%c0_25, %c0_26, %c0_27] : memref<3x128x128xbf16, #tpu.memory_space<vmem>>, vector<1x128x128xbf16>
    %30 = vector.shape_cast %29 : vector<1x128x128xbf16> to vector<128x128xbf16>
    %cst_28 = arith.constant dense<0.000000e+00> : vector<16x128xf32>
    %31 = tpu.matmul %25, %30, %cst_28 {dimension_numbers = #tpu.dot_dimension_numbers<[1], [0], [0], [1], [0, 0, 1, 1], [], []>} : vector<16x128xbf16>, vector<128x128xbf16>, vector<16x128xf32> -> vector<16x128xf32>
    %c1_29 = arith.constant 1 : index
    %c0_30 = arith.constant 0 : index
    %c0_31 = arith.constant 0 : index
    %32 = vector.load %arg8[%c1_29, %c0_30, %c0_31] : memref<3x128x128xbf16, #tpu.memory_space<vmem>>, vector<1x128x128xbf16>
    %33 = vector.shape_cast %32 : vector<1x128x128xbf16> to vector<128x128xbf16>
    %cst_32 = arith.constant dense<0.000000e+00> : vector<16x128xf32>
    %34 = tpu.matmul %22, %33, %cst_32 {dimension_numbers = #tpu.dot_dimension_numbers<[1], [0], [0], [1], [0, 0, 1, 1], [], []>} : vector<16x128xbf16>, vector<128x128xbf16>, vector<16x128xf32> -> vector<16x128xf32>
    %35 = arith.addf %31, %34 : vector<16x128xf32>
    %c2 = arith.constant 2 : index
    %c0_33 = arith.constant 0 : index
    %c0_34 = arith.constant 0 : index
    %36 = vector.load %arg8[%c2, %c0_33, %c0_34] : memref<3x128x128xbf16, #tpu.memory_space<vmem>>, vector<1x128x128xbf16>
    %37 = vector.shape_cast %36 : vector<1x128x128xbf16> to vector<128x128xbf16>
    %cst_35 = arith.constant dense<0.000000e+00> : vector<16x128xf32>
    %38 = tpu.matmul %28, %37, %cst_35 {dimension_numbers = #tpu.dot_dimension_numbers<[1], [0], [0], [1], [0, 0, 1, 1], [], []>} : vector<16x128xbf16>, vector<128x128xbf16>, vector<16x128xf32> -> vector<16x128xf32>
    %39 = arith.addf %35, %38 : vector<16x128xf32>
    %c0_36 = arith.constant 0 : index
    %c0_37 = arith.constant 0 : index
    %40 = vector.load %arg9[%c0_36, %c0_37] : memref<1x128xf32, #tpu.memory_space<vmem>>, vector<1x128xf32>
    %41 = vector.broadcast %40 : vector<1x128xf32> to vector<16x128xf32>
    %42 = arith.addf %39, %41 : vector<16x128xf32>
    %cst_38 = arith.constant 0.000000e+00 : f32
    %43 = vector.broadcast %cst_38 : f32 to vector<16x128xf32>
    %44 = arith.maximumf %42, %43 : vector<16x128xf32>
    %45 = arith.truncf %44 : vector<16x128xf32> to vector<16x128xbf16>
    %c0_39 = arith.constant 0 : index
    %c0_40 = arith.constant 0 : index
    %46 = vector.load %arg6[%c0_39, %c0_40] : memref<16x16xf32, #tpu.memory_space<vmem>>, vector<16x16xf32>
    %cst_41 = arith.constant dense<0.000000e+00> : vector<16x128xf32>
    %47 = tpu.matmul %46, %44, %cst_41 {dimension_numbers = #tpu.dot_dimension_numbers<[1], [0], [0], [1], [0, 0, 1, 1], [], []>} : vector<16x16xf32>, vector<16x128xf32>, vector<16x128xf32> -> vector<16x128xf32>
    %48 = arith.truncf %47 : vector<16x128xf32> to vector<16x128xbf16>
    %c0_42 = arith.constant 0 : index
    %c0_43 = arith.constant 0 : index
    %49 = vector.load %arg7[%c0_42, %c0_43] : memref<16x16xf32, #tpu.memory_space<vmem>>, vector<16x16xf32>
    %cst_44 = arith.constant dense<0.000000e+00> : vector<16x128xf32>
    %50 = tpu.matmul %49, %44, %cst_44 {dimension_numbers = #tpu.dot_dimension_numbers<[1], [0], [0], [1], [0, 0, 1, 1], [], []>} : vector<16x16xf32>, vector<16x128xf32>, vector<16x128xf32> -> vector<16x128xf32>
    %51 = arith.truncf %50 : vector<16x128xf32> to vector<16x128xbf16>
    %c0_45 = arith.constant 0 : index
    %c0_46 = arith.constant 0 : index
    %c0_47 = arith.constant 0 : index
    %52 = vector.load %arg10[%c0_45, %c0_46, %c0_47] : memref<3x128x128xbf16, #tpu.memory_space<vmem>>, vector<1x128x128xbf16>
    %53 = vector.shape_cast %52 : vector<1x128x128xbf16> to vector<128x128xbf16>
    %cst_48 = arith.constant dense<0.000000e+00> : vector<16x128xf32>
    %54 = tpu.matmul %48, %53, %cst_48 {dimension_numbers = #tpu.dot_dimension_numbers<[1], [0], [0], [1], [0, 0, 1, 1], [], []>} : vector<16x128xbf16>, vector<128x128xbf16>, vector<16x128xf32> -> vector<16x128xf32>
    %c1_49 = arith.constant 1 : index
    %c0_50 = arith.constant 0 : index
    %c0_51 = arith.constant 0 : index
    %55 = vector.load %arg10[%c1_49, %c0_50, %c0_51] : memref<3x128x128xbf16, #tpu.memory_space<vmem>>, vector<1x128x128xbf16>
    %56 = vector.shape_cast %55 : vector<1x128x128xbf16> to vector<128x128xbf16>
    %cst_52 = arith.constant dense<0.000000e+00> : vector<16x128xf32>
    %57 = tpu.matmul %45, %56, %cst_52 {dimension_numbers = #tpu.dot_dimension_numbers<[1], [0], [0], [1], [0, 0, 1, 1], [], []>} : vector<16x128xbf16>, vector<128x128xbf16>, vector<16x128xf32> -> vector<16x128xf32>
    %58 = arith.addf %54, %57 : vector<16x128xf32>
    %c2_53 = arith.constant 2 : index
    %c0_54 = arith.constant 0 : index
    %c0_55 = arith.constant 0 : index
    %59 = vector.load %arg10[%c2_53, %c0_54, %c0_55] : memref<3x128x128xbf16, #tpu.memory_space<vmem>>, vector<1x128x128xbf16>
    %60 = vector.shape_cast %59 : vector<1x128x128xbf16> to vector<128x128xbf16>
    %cst_56 = arith.constant dense<0.000000e+00> : vector<16x128xf32>
    %61 = tpu.matmul %51, %60, %cst_56 {dimension_numbers = #tpu.dot_dimension_numbers<[1], [0], [0], [1], [0, 0, 1, 1], [], []>} : vector<16x128xbf16>, vector<128x128xbf16>, vector<16x128xf32> -> vector<16x128xf32>
    %62 = arith.addf %58, %61 : vector<16x128xf32>
    %c0_57 = arith.constant 0 : index
    %c0_58 = arith.constant 0 : index
    %63 = vector.load %arg11[%c0_57, %c0_58] : memref<1x128xf32, #tpu.memory_space<vmem>>, vector<1x128xf32>
    %64 = vector.broadcast %63 : vector<1x128xf32> to vector<16x128xf32>
    %65 = arith.addf %62, %64 : vector<16x128xf32>
    %66 = arith.addf %65, %21 : vector<16x128xf32>
    %cst_59 = arith.constant 0.000000e+00 : f32
    %67 = vector.broadcast %cst_59 : f32 to vector<16x128xf32>
    %68 = arith.maximumf %66, %67 : vector<16x128xf32>
    %c0_60 = arith.constant 0 : index
    %c0_61 = arith.constant 0 : index
    %69 = vector.load %arg14[%c0_60, %c0_61] : memref<8x16xf32, #tpu.memory_space<vmem>>, vector<8x16xf32>
    %cst_62 = arith.constant dense<0.000000e+00> : vector<8x128xf32>
    %70 = tpu.matmul %69, %68, %cst_62 {dimension_numbers = #tpu.dot_dimension_numbers<[1], [0], [0], [1], [0, 0, 1, 1], [], []>} : vector<8x16xf32>, vector<16x128xf32>, vector<8x128xf32> -> vector<8x128xf32>
    %71 = arith.truncf %70 : vector<8x128xf32> to vector<8x128xbf16>
    %c0_63 = arith.constant 0 : index
    %c0_64 = arith.constant 0 : index
    %72 = vector.load %arg15[%c0_63, %c0_64] : memref<8x16xf32, #tpu.memory_space<vmem>>, vector<8x16xf32>
    %cst_65 = arith.constant dense<0.000000e+00> : vector<8x128xf32>
    %73 = tpu.matmul %72, %68, %cst_65 {dimension_numbers = #tpu.dot_dimension_numbers<[1], [0], [0], [1], [0, 0, 1, 1], [], []>} : vector<8x16xf32>, vector<16x128xf32>, vector<8x128xf32> -> vector<8x128xf32>
    %74 = arith.truncf %73 : vector<8x128xf32> to vector<8x128xbf16>
    %c0_66 = arith.constant 0 : index
    %c0_67 = arith.constant 0 : index
    %75 = vector.load %arg16[%c0_66, %c0_67] : memref<8x16xf32, #tpu.memory_space<vmem>>, vector<8x16xf32>
    %cst_68 = arith.constant dense<0.000000e+00> : vector<8x128xf32>
    %76 = tpu.matmul %75, %68, %cst_68 {dimension_numbers = #tpu.dot_dimension_numbers<[1], [0], [0], [1], [0, 0, 1, 1], [], []>} : vector<8x16xf32>, vector<16x128xf32>, vector<8x128xf32> -> vector<8x128xf32>
    %77 = arith.truncf %76 : vector<8x128xf32> to vector<8x128xbf16>
    %c0_69 = arith.constant 0 : index
    %c0_70 = arith.constant 0 : index
    %78 = vector.load %arg18[%c0_69, %c0_70] : memref<128x256xbf16, #tpu.memory_space<vmem>>, vector<128x256xbf16>
    %cst_71 = arith.constant dense<0.000000e+00> : vector<8x256xf32>
    %79 = tpu.matmul %74, %78, %cst_71 {dimension_numbers = #tpu.dot_dimension_numbers<[1], [0], [0], [1], [0, 0, 1, 1], [], []>} : vector<8x128xbf16>, vector<128x256xbf16>, vector<8x256xf32> -> vector<8x256xf32>
    %c0_72 = arith.constant 0 : index
    %c0_73 = arith.constant 0 : index
    %c0_74 = arith.constant 0 : index
    %80 = vector.load %arg17[%c0_72, %c0_73, %c0_74] : memref<2x128x128xbf16, #tpu.memory_space<vmem>>, vector<1x128x128xbf16>
    %81 = vector.shape_cast %80 : vector<1x128x128xbf16> to vector<128x128xbf16>
    %cst_75 = arith.constant dense<0.000000e+00> : vector<8x128xf32>
    %82 = tpu.matmul %71, %81, %cst_75 {dimension_numbers = #tpu.dot_dimension_numbers<[1], [0], [0], [1], [0, 0, 1, 1], [], []>} : vector<8x128xbf16>, vector<128x128xbf16>, vector<8x128xf32> -> vector<8x128xf32>
    %83 = vector.extract_strided_slice %79 {offsets = [0, 0], sizes = [8, 128], strides = [1, 1]} : vector<8x256xf32> to vector<8x128xf32>
    %84 = arith.addf %82, %83 : vector<8x128xf32>
    %c1_76 = arith.constant 1 : index
    %c0_77 = arith.constant 0 : index
    %c0_78 = arith.constant 0 : index
    %85 = vector.load %arg17[%c1_76, %c0_77, %c0_78] : memref<2x128x128xbf16, #tpu.memory_space<vmem>>, vector<1x128x128xbf16>
    %86 = vector.shape_cast %85 : vector<1x128x128xbf16> to vector<128x128xbf16>
    %cst_79 = arith.constant dense<0.000000e+00> : vector<8x128xf32>
    %87 = tpu.matmul %77, %86, %cst_79 {dimension_numbers = #tpu.dot_dimension_numbers<[1], [0], [0], [1], [0, 0, 1, 1], [], []>} : vector<8x128xbf16>, vector<128x128xbf16>, vector<8x128xf32> -> vector<8x128xf32>
    %88 = arith.addf %84, %87 : vector<8x128xf32>
    %c0_80 = arith.constant 0 : index
    %c0_81 = arith.constant 0 : index
    %89 = vector.load %arg19[%c0_80, %c0_81] : memref<1x128xf32, #tpu.memory_space<vmem>>, vector<1x128xf32>
    %90 = vector.broadcast %89 : vector<1x128xf32> to vector<8x128xf32>
    %91 = arith.addf %88, %90 : vector<8x128xf32>
    %92 = vector.extract_strided_slice %79 {offsets = [0, 128], sizes = [8, 128], strides = [1, 1]} : vector<8x256xf32> to vector<8x128xf32>
    %c0_82 = arith.constant 0 : index
    %c0_83 = arith.constant 0 : index
    %93 = vector.load %arg20[%c0_82, %c0_83] : memref<1x128xf32, #tpu.memory_space<vmem>>, vector<1x128xf32>
    %94 = vector.broadcast %93 : vector<1x128xf32> to vector<8x128xf32>
    %95 = arith.addf %92, %94 : vector<8x128xf32>
    %cst_84 = arith.constant 0.000000e+00 : f32
    %96 = vector.broadcast %cst_84 : f32 to vector<8x128xf32>
    %97 = arith.maximumf %91, %96 : vector<8x128xf32>
    %98 = arith.truncf %97 : vector<8x128xf32> to vector<8x128xbf16>
    %c0_85 = arith.constant 0 : index
    %c0_86 = arith.constant 0 : index
    %99 = vector.load %arg12[%c0_85, %c0_86] : memref<8x8xf32, #tpu.memory_space<vmem>>, vector<8x8xf32>
    %cst_87 = arith.constant dense<0.000000e+00> : vector<8x128xf32>
    %100 = tpu.matmul %99, %97, %cst_87 {dimension_numbers = #tpu.dot_dimension_numbers<[1], [0], [0], [1], [0, 0, 1, 1], [], []>} : vector<8x8xf32>, vector<8x128xf32>, vector<8x128xf32> -> vector<8x128xf32>
    %101 = arith.truncf %100 : vector<8x128xf32> to vector<8x128xbf16>
    %c0_88 = arith.constant 0 : index
    %c0_89 = arith.constant 0 : index
    %102 = vector.load %arg13[%c0_88, %c0_89] : memref<8x8xf32, #tpu.memory_space<vmem>>, vector<8x8xf32>
    %cst_90 = arith.constant dense<0.000000e+00> : vector<8x128xf32>
    %103 = tpu.matmul %102, %97, %cst_90 {dimension_numbers = #tpu.dot_dimension_numbers<[1], [0], [0], [1], [0, 0, 1, 1], [], []>} : vector<8x8xf32>, vector<8x128xf32>, vector<8x128xf32> -> vector<8x128xf32>
    %104 = arith.truncf %103 : vector<8x128xf32> to vector<8x128xbf16>
    %c0_91 = arith.constant 0 : index
    %c0_92 = arith.constant 0 : index
    %c0_93 = arith.constant 0 : index
    %105 = vector.load %arg21[%c0_91, %c0_92, %c0_93] : memref<3x128x128xbf16, #tpu.memory_space<vmem>>, vector<1x128x128xbf16>
    %106 = vector.shape_cast %105 : vector<1x128x128xbf16> to vector<128x128xbf16>
    %cst_94 = arith.constant dense<0.000000e+00> : vector<8x128xf32>
    %107 = tpu.matmul %101, %106, %cst_94 {dimension_numbers = #tpu.dot_dimension_numbers<[1], [0], [0], [1], [0, 0, 1, 1], [], []>} : vector<8x128xbf16>, vector<128x128xbf16>, vector<8x128xf32> -> vector<8x128xf32>
    %c1_95 = arith.constant 1 : index
    %c0_96 = arith.constant 0 : index
    %c0_97 = arith.constant 0 : index
    %108 = vector.load %arg21[%c1_95, %c0_96, %c0_97] : memref<3x128x128xbf16, #tpu.memory_space<vmem>>, vector<1x128x128xbf16>
    %109 = vector.shape_cast %108 : vector<1x128x128xbf16> to vector<128x128xbf16>
    %cst_98 = arith.constant dense<0.000000e+00> : vector<8x128xf32>
    %110 = tpu.matmul %98, %109, %cst_98 {dimension_numbers = #tpu.dot_dimension_numbers<[1], [0], [0], [1], [0, 0, 1, 1], [], []>} : vector<8x128xbf16>, vector<128x128xbf16>, vector<8x128xf32> -> vector<8x128xf32>
    %111 = arith.addf %107, %110 : vector<8x128xf32>
    %c2_99 = arith.constant 2 : index
    %c0_100 = arith.constant 0 : index
    %c0_101 = arith.constant 0 : index
    %112 = vector.load %arg21[%c2_99, %c0_100, %c0_101] : memref<3x128x128xbf16, #tpu.memory_space<vmem>>, vector<1x128x128xbf16>
    %113 = vector.shape_cast %112 : vector<1x128x128xbf16> to vector<128x128xbf16>
    %cst_102 = arith.constant dense<0.000000e+00> : vector<8x128xf32>
    %114 = tpu.matmul %104, %113, %cst_102 {dimension_numbers = #tpu.dot_dimension_numbers<[1], [0], [0], [1], [0, 0, 1, 1], [], []>} : vector<8x128xbf16>, vector<128x128xbf16>, vector<8x128xf32> -> vector<8x128xf32>
    %115 = arith.addf %111, %114 : vector<8x128xf32>
    %c0_103 = arith.constant 0 : index
    %c0_104 = arith.constant 0 : index
    %116 = vector.load %arg22[%c0_103, %c0_104] : memref<1x128xf32, #tpu.memory_space<vmem>>, vector<1x128xf32>
    %117 = vector.broadcast %116 : vector<1x128xf32> to vector<8x128xf32>
    %118 = arith.addf %115, %117 : vector<8x128xf32>
    %119 = arith.addf %118, %95 : vector<8x128xf32>
    %cst_105 = arith.constant 0.000000e+00 : f32
    %120 = vector.broadcast %cst_105 : f32 to vector<8x128xf32>
    %121 = arith.maximumf %119, %120 : vector<8x128xf32>
    %c0_106 = arith.constant 0 : index
    %c0_107 = arith.constant 0 : index
    %122 = vector.load %arg25[%c0_106, %c0_107] : memref<4x8xf32, #tpu.memory_space<vmem>>, vector<4x8xf32>
    %cst_108 = arith.constant dense<0.000000e+00> : vector<4x128xf32>
    %123 = tpu.matmul %122, %121, %cst_108 {dimension_numbers = #tpu.dot_dimension_numbers<[1], [0], [0], [1], [0, 0, 1, 1], [], []>} : vector<4x8xf32>, vector<8x128xf32>, vector<4x128xf32> -> vector<4x128xf32>
    %124 = arith.truncf %123 : vector<4x128xf32> to vector<4x128xbf16>
    %c0_109 = arith.constant 0 : index
    %c0_110 = arith.constant 0 : index
    %125 = vector.load %arg26[%c0_109, %c0_110] : memref<4x8xf32, #tpu.memory_space<vmem>>, vector<4x8xf32>
    %cst_111 = arith.constant dense<0.000000e+00> : vector<4x128xf32>
    %126 = tpu.matmul %125, %121, %cst_111 {dimension_numbers = #tpu.dot_dimension_numbers<[1], [0], [0], [1], [0, 0, 1, 1], [], []>} : vector<4x8xf32>, vector<8x128xf32>, vector<4x128xf32> -> vector<4x128xf32>
    %127 = arith.truncf %126 : vector<4x128xf32> to vector<4x128xbf16>
    %c0_112 = arith.constant 0 : index
    %c0_113 = arith.constant 0 : index
    %128 = vector.load %arg27[%c0_112, %c0_113] : memref<4x8xf32, #tpu.memory_space<vmem>>, vector<4x8xf32>
    %cst_114 = arith.constant dense<0.000000e+00> : vector<4x128xf32>
    %129 = tpu.matmul %128, %121, %cst_114 {dimension_numbers = #tpu.dot_dimension_numbers<[1], [0], [0], [1], [0, 0, 1, 1], [], []>} : vector<4x8xf32>, vector<8x128xf32>, vector<4x128xf32> -> vector<4x128xf32>
    %130 = arith.truncf %129 : vector<4x128xf32> to vector<4x128xbf16>
    %c0_115 = arith.constant 0 : index
    %c0_116 = arith.constant 0 : index
    %131 = vector.load %arg29[%c0_115, %c0_116] : memref<128x256xbf16, #tpu.memory_space<vmem>>, vector<128x256xbf16>
    %cst_117 = arith.constant dense<0.000000e+00> : vector<4x256xf32>
    %132 = tpu.matmul %127, %131, %cst_117 {dimension_numbers = #tpu.dot_dimension_numbers<[1], [0], [0], [1], [0, 0, 1, 1], [], []>} : vector<4x128xbf16>, vector<128x256xbf16>, vector<4x256xf32> -> vector<4x256xf32>
    %c0_118 = arith.constant 0 : index
    %c0_119 = arith.constant 0 : index
    %c0_120 = arith.constant 0 : index
    %133 = vector.load %arg28[%c0_118, %c0_119, %c0_120] : memref<2x128x128xbf16, #tpu.memory_space<vmem>>, vector<1x128x128xbf16>
    %134 = vector.shape_cast %133 : vector<1x128x128xbf16> to vector<128x128xbf16>
    %cst_121 = arith.constant dense<0.000000e+00> : vector<4x128xf32>
    %135 = tpu.matmul %124, %134, %cst_121 {dimension_numbers = #tpu.dot_dimension_numbers<[1], [0], [0], [1], [0, 0, 1, 1], [], []>} : vector<4x128xbf16>, vector<128x128xbf16>, vector<4x128xf32> -> vector<4x128xf32>
    %136 = vector.extract_strided_slice %132 {offsets = [0, 0], sizes = [4, 128], strides = [1, 1]} : vector<4x256xf32> to vector<4x128xf32>
    %137 = arith.addf %135, %136 : vector<4x128xf32>
    %c1_122 = arith.constant 1 : index
    %c0_123 = arith.constant 0 : index
    %c0_124 = arith.constant 0 : index
    %138 = vector.load %arg28[%c1_122, %c0_123, %c0_124] : memref<2x128x128xbf16, #tpu.memory_space<vmem>>, vector<1x128x128xbf16>
    %139 = vector.shape_cast %138 : vector<1x128x128xbf16> to vector<128x128xbf16>
    %cst_125 = arith.constant dense<0.000000e+00> : vector<4x128xf32>
    %140 = tpu.matmul %130, %139, %cst_125 {dimension_numbers = #tpu.dot_dimension_numbers<[1], [0], [0], [1], [0, 0, 1, 1], [], []>} : vector<4x128xbf16>, vector<128x128xbf16>, vector<4x128xf32> -> vector<4x128xf32>
    %141 = arith.addf %137, %140 : vector<4x128xf32>
    %c0_126 = arith.constant 0 : index
    %c0_127 = arith.constant 0 : index
    %142 = vector.load %arg30[%c0_126, %c0_127] : memref<1x128xf32, #tpu.memory_space<vmem>>, vector<1x128xf32>
    %143 = vector.broadcast %142 : vector<1x128xf32> to vector<4x128xf32>
    %144 = arith.addf %141, %143 : vector<4x128xf32>
    %145 = vector.extract_strided_slice %132 {offsets = [0, 128], sizes = [4, 128], strides = [1, 1]} : vector<4x256xf32> to vector<4x128xf32>
    %c0_128 = arith.constant 0 : index
    %c0_129 = arith.constant 0 : index
    %146 = vector.load %arg31[%c0_128, %c0_129] : memref<1x128xf32, #tpu.memory_space<vmem>>, vector<1x128xf32>
    %147 = vector.broadcast %146 : vector<1x128xf32> to vector<4x128xf32>
    %148 = arith.addf %145, %147 : vector<4x128xf32>
    %cst_130 = arith.constant 0.000000e+00 : f32
    %149 = vector.broadcast %cst_130 : f32 to vector<4x128xf32>
    %150 = arith.maximumf %144, %149 : vector<4x128xf32>
    %151 = arith.truncf %150 : vector<4x128xf32> to vector<4x128xbf16>
    %c0_131 = arith.constant 0 : index
    %c0_132 = arith.constant 0 : index
    %152 = vector.load %arg23[%c0_131, %c0_132] : memref<4x4xf32, #tpu.memory_space<vmem>>, vector<4x4xf32>
    %cst_133 = arith.constant dense<0.000000e+00> : vector<4x128xf32>
    %153 = tpu.matmul %152, %150, %cst_133 {dimension_numbers = #tpu.dot_dimension_numbers<[1], [0], [0], [1], [0, 0, 1, 1], [], []>} : vector<4x4xf32>, vector<4x128xf32>, vector<4x128xf32> -> vector<4x128xf32>
    %154 = arith.truncf %153 : vector<4x128xf32> to vector<4x128xbf16>
    %c0_134 = arith.constant 0 : index
    %c0_135 = arith.constant 0 : index
    %155 = vector.load %arg24[%c0_134, %c0_135] : memref<4x4xf32, #tpu.memory_space<vmem>>, vector<4x4xf32>
    %cst_136 = arith.constant dense<0.000000e+00> : vector<4x128xf32>
    %156 = tpu.matmul %155, %150, %cst_136 {dimension_numbers = #tpu.dot_dimension_numbers<[1], [0], [0], [1], [0, 0, 1, 1], [], []>} : vector<4x4xf32>, vector<4x128xf32>, vector<4x128xf32> -> vector<4x128xf32>
    %157 = arith.truncf %156 : vector<4x128xf32> to vector<4x128xbf16>
    %c0_137 = arith.constant 0 : index
    %c0_138 = arith.constant 0 : index
    %c0_139 = arith.constant 0 : index
    %158 = vector.load %arg32[%c0_137, %c0_138, %c0_139] : memref<3x128x128xbf16, #tpu.memory_space<vmem>>, vector<1x128x128xbf16>
    %159 = vector.shape_cast %158 : vector<1x128x128xbf16> to vector<128x128xbf16>
    %cst_140 = arith.constant dense<0.000000e+00> : vector<4x128xf32>
    %160 = tpu.matmul %154, %159, %cst_140 {dimension_numbers = #tpu.dot_dimension_numbers<[1], [0], [0], [1], [0, 0, 1, 1], [], []>} : vector<4x128xbf16>, vector<128x128xbf16>, vector<4x128xf32> -> vector<4x128xf32>
    %c1_141 = arith.constant 1 : index
    %c0_142 = arith.constant 0 : index
    %c0_143 = arith.constant 0 : index
    %161 = vector.load %arg32[%c1_141, %c0_142, %c0_143] : memref<3x128x128xbf16, #tpu.memory_space<vmem>>, vector<1x128x128xbf16>
    %162 = vector.shape_cast %161 : vector<1x128x128xbf16> to vector<128x128xbf16>
    %cst_144 = arith.constant dense<0.000000e+00> : vector<4x128xf32>
    %163 = tpu.matmul %151, %162, %cst_144 {dimension_numbers = #tpu.dot_dimension_numbers<[1], [0], [0], [1], [0, 0, 1, 1], [], []>} : vector<4x128xbf16>, vector<128x128xbf16>, vector<4x128xf32> -> vector<4x128xf32>
    %164 = arith.addf %160, %163 : vector<4x128xf32>
    %c2_145 = arith.constant 2 : index
    %c0_146 = arith.constant 0 : index
    %c0_147 = arith.constant 0 : index
    %165 = vector.load %arg32[%c2_145, %c0_146, %c0_147] : memref<3x128x128xbf16, #tpu.memory_space<vmem>>, vector<1x128x128xbf16>
    %166 = vector.shape_cast %165 : vector<1x128x128xbf16> to vector<128x128xbf16>
    %cst_148 = arith.constant dense<0.000000e+00> : vector<4x128xf32>
    %167 = tpu.matmul %157, %166, %cst_148 {dimension_numbers = #tpu.dot_dimension_numbers<[1], [0], [0], [1], [0, 0, 1, 1], [], []>} : vector<4x128xbf16>, vector<128x128xbf16>, vector<4x128xf32> -> vector<4x128xf32>
    %168 = arith.addf %164, %167 : vector<4x128xf32>
    %c0_149 = arith.constant 0 : index
    %c0_150 = arith.constant 0 : index
    %169 = vector.load %arg33[%c0_149, %c0_150] : memref<1x128xf32, #tpu.memory_space<vmem>>, vector<1x128xf32>
    %170 = vector.broadcast %169 : vector<1x128xf32> to vector<4x128xf32>
    %171 = arith.addf %168, %170 : vector<4x128xf32>
    %172 = arith.addf %171, %148 : vector<4x128xf32>
    %cst_151 = arith.constant 0.000000e+00 : f32
    %173 = vector.broadcast %cst_151 : f32 to vector<4x128xf32>
    %174 = arith.maximumf %172, %173 : vector<4x128xf32>
    %c0_152 = arith.constant 0 : index
    %c0_153 = arith.constant 0 : index
    %175 = vector.load %arg36[%c0_152, %c0_153] : memref<2x4xf32, #tpu.memory_space<vmem>>, vector<2x4xf32>
    %cst_154 = arith.constant dense<0.000000e+00> : vector<2x128xf32>
    %176 = tpu.matmul %175, %174, %cst_154 {dimension_numbers = #tpu.dot_dimension_numbers<[1], [0], [0], [1], [0, 0, 1, 1], [], []>} : vector<2x4xf32>, vector<4x128xf32>, vector<2x128xf32> -> vector<2x128xf32>
    %177 = arith.truncf %176 : vector<2x128xf32> to vector<2x128xbf16>
    %c0_155 = arith.constant 0 : index
    %c0_156 = arith.constant 0 : index
    %178 = vector.load %arg37[%c0_155, %c0_156] : memref<2x4xf32, #tpu.memory_space<vmem>>, vector<2x4xf32>
    %cst_157 = arith.constant dense<0.000000e+00> : vector<2x128xf32>
    %179 = tpu.matmul %178, %174, %cst_157 {dimension_numbers = #tpu.dot_dimension_numbers<[1], [0], [0], [1], [0, 0, 1, 1], [], []>} : vector<2x4xf32>, vector<4x128xf32>, vector<2x128xf32> -> vector<2x128xf32>
    %180 = arith.truncf %179 : vector<2x128xf32> to vector<2x128xbf16>
    %c0_158 = arith.constant 0 : index
    %c0_159 = arith.constant 0 : index
    %181 = vector.load %arg38[%c0_158, %c0_159] : memref<2x4xf32, #tpu.memory_space<vmem>>, vector<2x4xf32>
    %cst_160 = arith.constant dense<0.000000e+00> : vector<2x128xf32>
    %182 = tpu.matmul %181, %174, %cst_160 {dimension_numbers = #tpu.dot_dimension_numbers<[1], [0], [0], [1], [0, 0, 1, 1], [], []>} : vector<2x4xf32>, vector<4x128xf32>, vector<2x128xf32> -> vector<2x128xf32>
    %183 = arith.truncf %182 : vector<2x128xf32> to vector<2x128xbf16>
    %c0_161 = arith.constant 0 : index
    %c0_162 = arith.constant 0 : index
    %184 = vector.load %arg40[%c0_161, %c0_162] : memref<128x256xbf16, #tpu.memory_space<vmem>>, vector<128x256xbf16>
    %cst_163 = arith.constant dense<0.000000e+00> : vector<2x256xf32>
    %185 = tpu.matmul %180, %184, %cst_163 {dimension_numbers = #tpu.dot_dimension_numbers<[1], [0], [0], [1], [0, 0, 1, 1], [], []>} : vector<2x128xbf16>, vector<128x256xbf16>, vector<2x256xf32> -> vector<2x256xf32>
    %c0_164 = arith.constant 0 : index
    %c0_165 = arith.constant 0 : index
    %c0_166 = arith.constant 0 : index
    %186 = vector.load %arg39[%c0_164, %c0_165, %c0_166] : memref<2x128x128xbf16, #tpu.memory_space<vmem>>, vector<1x128x128xbf16>
    %187 = vector.shape_cast %186 : vector<1x128x128xbf16> to vector<128x128xbf16>
    %cst_167 = arith.constant dense<0.000000e+00> : vector<2x128xf32>
    %188 = tpu.matmul %177, %187, %cst_167 {dimension_numbers = #tpu.dot_dimension_numbers<[1], [0], [0], [1], [0, 0, 1, 1], [], []>} : vector<2x128xbf16>, vector<128x128xbf16>, vector<2x128xf32> -> vector<2x128xf32>
    %189 = vector.extract_strided_slice %185 {offsets = [0, 0], sizes = [2, 128], strides = [1, 1]} : vector<2x256xf32> to vector<2x128xf32>
    %190 = arith.addf %188, %189 : vector<2x128xf32>
    %c1_168 = arith.constant 1 : index
    %c0_169 = arith.constant 0 : index
    %c0_170 = arith.constant 0 : index
    %191 = vector.load %arg39[%c1_168, %c0_169, %c0_170] : memref<2x128x128xbf16, #tpu.memory_space<vmem>>, vector<1x128x128xbf16>
    %192 = vector.shape_cast %191 : vector<1x128x128xbf16> to vector<128x128xbf16>
    %cst_171 = arith.constant dense<0.000000e+00> : vector<2x128xf32>
    %193 = tpu.matmul %183, %192, %cst_171 {dimension_numbers = #tpu.dot_dimension_numbers<[1], [0], [0], [1], [0, 0, 1, 1], [], []>} : vector<2x128xbf16>, vector<128x128xbf16>, vector<2x128xf32> -> vector<2x128xf32>
    %194 = arith.addf %190, %193 : vector<2x128xf32>
    %c0_172 = arith.constant 0 : index
    %c0_173 = arith.constant 0 : index
    %195 = vector.load %arg41[%c0_172, %c0_173] : memref<1x128xf32, #tpu.memory_space<vmem>>, vector<1x128xf32>
    %196 = vector.broadcast %195 : vector<1x128xf32> to vector<2x128xf32>
    %197 = arith.addf %194, %196 : vector<2x128xf32>
    %198 = vector.extract_strided_slice %185 {offsets = [0, 128], sizes = [2, 128], strides = [1, 1]} : vector<2x256xf32> to vector<2x128xf32>
    %c0_174 = arith.constant 0 : index
    %c0_175 = arith.constant 0 : index
    %199 = vector.load %arg42[%c0_174, %c0_175] : memref<1x128xf32, #tpu.memory_space<vmem>>, vector<1x128xf32>
    %200 = vector.broadcast %199 : vector<1x128xf32> to vector<2x128xf32>
    %201 = arith.addf %198, %200 : vector<2x128xf32>
    %cst_176 = arith.constant 0.000000e+00 : f32
    %202 = vector.broadcast %cst_176 : f32 to vector<2x128xf32>
    %203 = arith.maximumf %197, %202 : vector<2x128xf32>
    %204 = arith.truncf %203 : vector<2x128xf32> to vector<2x128xbf16>
    %c0_177 = arith.constant 0 : index
    %c0_178 = arith.constant 0 : index
    %205 = vector.load %arg34[%c0_177, %c0_178] : memref<2x2xf32, #tpu.memory_space<vmem>>, vector<2x2xf32>
    %cst_179 = arith.constant dense<0.000000e+00> : vector<2x128xf32>
    %206 = tpu.matmul %205, %203, %cst_179 {dimension_numbers = #tpu.dot_dimension_numbers<[1], [0], [0], [1], [0, 0, 1, 1], [], []>} : vector<2x2xf32>, vector<2x128xf32>, vector<2x128xf32> -> vector<2x128xf32>
    %207 = arith.truncf %206 : vector<2x128xf32> to vector<2x128xbf16>
    %c0_180 = arith.constant 0 : index
    %c0_181 = arith.constant 0 : index
    %208 = vector.load %arg35[%c0_180, %c0_181] : memref<2x2xf32, #tpu.memory_space<vmem>>, vector<2x2xf32>
    %cst_182 = arith.constant dense<0.000000e+00> : vector<2x128xf32>
    %209 = tpu.matmul %208, %203, %cst_182 {dimension_numbers = #tpu.dot_dimension_numbers<[1], [0], [0], [1], [0, 0, 1, 1], [], []>} : vector<2x2xf32>, vector<2x128xf32>, vector<2x128xf32> -> vector<2x128xf32>
    %210 = arith.truncf %209 : vector<2x128xf32> to vector<2x128xbf16>
    %c0_183 = arith.constant 0 : index
    %c0_184 = arith.constant 0 : index
    %c0_185 = arith.constant 0 : index
    %211 = vector.load %arg43[%c0_183, %c0_184, %c0_185] : memref<3x128x128xbf16, #tpu.memory_space<vmem>>, vector<1x128x128xbf16>
    %212 = vector.shape_cast %211 : vector<1x128x128xbf16> to vector<128x128xbf16>
    %cst_186 = arith.constant dense<0.000000e+00> : vector<2x128xf32>
    %213 = tpu.matmul %207, %212, %cst_186 {dimension_numbers = #tpu.dot_dimension_numbers<[1], [0], [0], [1], [0, 0, 1, 1], [], []>} : vector<2x128xbf16>, vector<128x128xbf16>, vector<2x128xf32> -> vector<2x128xf32>
    %c1_187 = arith.constant 1 : index
    %c0_188 = arith.constant 0 : index
    %c0_189 = arith.constant 0 : index
    %214 = vector.load %arg43[%c1_187, %c0_188, %c0_189] : memref<3x128x128xbf16, #tpu.memory_space<vmem>>, vector<1x128x128xbf16>
    %215 = vector.shape_cast %214 : vector<1x128x128xbf16> to vector<128x128xbf16>
    %cst_190 = arith.constant dense<0.000000e+00> : vector<2x128xf32>
    %216 = tpu.matmul %204, %215, %cst_190 {dimension_numbers = #tpu.dot_dimension_numbers<[1], [0], [0], [1], [0, 0, 1, 1], [], []>} : vector<2x128xbf16>, vector<128x128xbf16>, vector<2x128xf32> -> vector<2x128xf32>
    %217 = arith.addf %213, %216 : vector<2x128xf32>
    %c2_191 = arith.constant 2 : index
    %c0_192 = arith.constant 0 : index
    %c0_193 = arith.constant 0 : index
    %218 = vector.load %arg43[%c2_191, %c0_192, %c0_193] : memref<3x128x128xbf16, #tpu.memory_space<vmem>>, vector<1x128x128xbf16>
    %219 = vector.shape_cast %218 : vector<1x128x128xbf16> to vector<128x128xbf16>
    %cst_194 = arith.constant dense<0.000000e+00> : vector<2x128xf32>
    %220 = tpu.matmul %210, %219, %cst_194 {dimension_numbers = #tpu.dot_dimension_numbers<[1], [0], [0], [1], [0, 0, 1, 1], [], []>} : vector<2x128xbf16>, vector<128x128xbf16>, vector<2x128xf32> -> vector<2x128xf32>
    %221 = arith.addf %217, %220 : vector<2x128xf32>
    %c0_195 = arith.constant 0 : index
    %c0_196 = arith.constant 0 : index
    %222 = vector.load %arg44[%c0_195, %c0_196] : memref<1x128xf32, #tpu.memory_space<vmem>>, vector<1x128xf32>
    %223 = vector.broadcast %222 : vector<1x128xf32> to vector<2x128xf32>
    %224 = arith.addf %221, %223 : vector<2x128xf32>
    %225 = arith.addf %224, %201 : vector<2x128xf32>
    %cst_197 = arith.constant 0.000000e+00 : f32
    %226 = vector.broadcast %cst_197 : f32 to vector<2x128xf32>
    %227 = arith.maximumf %225, %226 : vector<2x128xf32>
    %c0_198 = arith.constant 0 : index
    %c0_199 = arith.constant 0 : index
    %228 = vector.load %arg45[%c0_198, %c0_199] : memref<8x2xf32, #tpu.memory_space<vmem>>, vector<8x2xf32>
    %cst_200 = arith.constant dense<0.000000e+00> : vector<8x128xf32>
    %229 = tpu.matmul %228, %227, %cst_200 {dimension_numbers = #tpu.dot_dimension_numbers<[1], [0], [0], [1], [0, 0, 1, 1], [], []>} : vector<8x2xf32>, vector<2x128xf32>, vector<8x128xf32> -> vector<8x128xf32>
    %230 = arith.truncf %229 : vector<8x128xf32> to vector<8x128xbf16>
    %c0_201 = arith.constant 0 : index
    %c0_202 = arith.constant 0 : index
    %231 = vector.load %arg46[%c0_201, %c0_202] : memref<128x32xbf16, #tpu.memory_space<vmem>>, vector<128x32xbf16>
    %cst_203 = arith.constant dense<0.000000e+00> : vector<8x32xf32>
    %232 = tpu.matmul %230, %231, %cst_203 {dimension_numbers = #tpu.dot_dimension_numbers<[1], [0], [0], [1], [0, 0, 1, 1], [], []>} : vector<8x128xbf16>, vector<128x32xbf16>, vector<8x32xf32> -> vector<8x32xf32>
    %c0_204 = arith.constant 0 : index
    %c0_205 = arith.constant 0 : index
    %233 = vector.load %arg47[%c0_204, %c0_205] : memref<1x32xf32, #tpu.memory_space<vmem>>, vector<1x32xf32>
    %234 = vector.broadcast %233 : vector<1x32xf32> to vector<8x32xf32>
    %235 = arith.addf %232, %234 : vector<8x32xf32>
    %cst_206 = arith.constant 0.000000e+00 : f32
    %236 = vector.broadcast %cst_206 : f32 to vector<8x32xf32>
    %237 = arith.maximumf %235, %236 : vector<8x32xf32>
    %238 = arith.truncf %237 : vector<8x32xf32> to vector<8x32xbf16>
    %c0_207 = arith.constant 0 : index
    %c0_208 = arith.constant 0 : index
    %239 = vector.load %arg48[%c0_207, %c0_208] : memref<32x1xbf16, #tpu.memory_space<vmem>>, vector<32x1xbf16>
    %cst_209 = arith.constant dense<0.000000e+00> : vector<8x1xf32>
    %240 = tpu.matmul %238, %239, %cst_209 {dimension_numbers = #tpu.dot_dimension_numbers<[1], [0], [0], [1], [0, 0, 1, 1], [], []>} : vector<8x32xbf16>, vector<32x1xbf16>, vector<8x1xf32> -> vector<8x1xf32>
    %c0_210 = arith.constant 0 : index
    %c0_211 = arith.constant 0 : index
    %241 = vector.load %arg49[%c0_210, %c0_211] : memref<1x1xf32, #tpu.memory_space<vmem>>, vector<1x1xf32>
    %242 = vector.broadcast %241 : vector<1x1xf32> to vector<8x1xf32>
    %243 = arith.addf %240, %242 : vector<8x1xf32>
    %244 = vector.extract_strided_slice %243 {offsets = [0, 0], sizes = [1, 1], strides = [1, 1]} : vector<8x1xf32> to vector<1x1xf32>
    %c0_212 = arith.constant 0 : index
    %c0_213 = arith.constant 0 : index
    %c0_214 = arith.constant 0 : index
    %245 = vector.load %arg50[%c0_212, %c0_213, %c0_214] : memref<1x1x1xf32, #tpu.memory_space<vmem>>, vector<1x1x1xf32>
    %246 = vector.shape_cast %245 : vector<1x1x1xf32> to vector<1x1xf32>
    %247 = vector.shape_cast %244 : vector<1x1xf32> to vector<1x1x1xf32>
    tpu.vector_store %arg50[%c0_212, %c0_213, %c0_214], %247 {strides = array<i32>} : memref<1x1x1xf32, #tpu.memory_space<vmem>>, vector<1x1x1xf32>,
    return
  }
  func.func @transform_0(%arg0: i32) -> (i32, i32, i32, i32) {
    %c0_i32 = arith.constant 0 : i32
    %c0_i32_0 = arith.constant 0 : i32
    %c0_i32_1 = arith.constant 0 : i32
    %c0_i32_2 = arith.constant 0 : i32
    return %arg0, %c0_i32, %c0_i32_0, %c0_i32_1 : i32, i32, i32, i32
  }
  func.func @transform_1(%arg0: i32) -> (i32, i32) {
    %c0_i32 = arith.constant 0 : i32
    %c0_i32_0 = arith.constant 0 : i32
    %c0_i32_1 = arith.constant 0 : i32
    return %c0_i32, %c0_i32_0 : i32, i32
  }
  func.func @transform_2(%arg0: i32) -> (i32, i32) {
    %c0_i32 = arith.constant 0 : i32
    %c0_i32_0 = arith.constant 0 : i32
    %c0_i32_1 = arith.constant 0 : i32
    return %c0_i32, %c0_i32_0 : i32, i32
  }
  func.func @transform_3(%arg0: i32) -> (i32, i32) {
    %c0_i32 = arith.constant 0 : i32
    %c0_i32_0 = arith.constant 0 : i32
    %c0_i32_1 = arith.constant 0 : i32
    return %c0_i32, %c0_i32_0 : i32, i32
  }
  func.func @transform_4(%arg0: i32) -> (i32, i32) {
    %c0_i32 = arith.constant 0 : i32
    %c0_i32_0 = arith.constant 0 : i32
    %c0_i32_1 = arith.constant 0 : i32
    return %c0_i32, %c0_i32_0 : i32, i32
  }
  func.func @transform_5(%arg0: i32) -> (i32, i32) {
    %c0_i32 = arith.constant 0 : i32
    %c0_i32_0 = arith.constant 0 : i32
    %c0_i32_1 = arith.constant 0 : i32
    return %c0_i32, %c0_i32_0 : i32, i32
  }
  func.func @transform_6(%arg0: i32) -> (i32, i32) {
    %c0_i32 = arith.constant 0 : i32
    %c0_i32_0 = arith.constant 0 : i32
    %c0_i32_1 = arith.constant 0 : i32
    return %c0_i32, %c0_i32_0 : i32, i32
  }
  func.func @transform_7(%arg0: i32) -> (i32, i32, i32) {
    %c0_i32 = arith.constant 0 : i32
    %c0_i32_0 = arith.constant 0 : i32
    %c0_i32_1 = arith.constant 0 : i32
    %c0_i32_2 = arith.constant 0 : i32
    return %c0_i32, %c0_i32_0, %c0_i32_1 : i32, i32, i32
  }
  func.func @transform_8(%arg0: i32) -> (i32, i32) {
    %c0_i32 = arith.constant 0 : i32
    %c0_i32_0 = arith.constant 0 : i32
    %c0_i32_1 = arith.constant 0 : i32
    return %c0_i32, %c0_i32_0 : i32, i32
  }
  func.func @transform_9(%arg0: i32) -> (i32, i32, i32) {
    %c0_i32 = arith.constant 0 : i32
    %c0_i32_0 = arith.constant 0 : i32
    %c0_i32_1 = arith.constant 0 : i32
    %c0_i32_2 = arith.constant 0 : i32
    return %c0_i32, %c0_i32_0, %c0_i32_1 : i32, i32, i32
  }
  func.func @transform_10(%arg0: i32) -> (i32, i32) {
    %c0_i32 = arith.constant 0 : i32
    %c0_i32_0 = arith.constant 0 : i32
    %c0_i32_1 = arith.constant 0 : i32
    return %c0_i32, %c0_i32_0 : i32, i32
  }
  func.func @transform_11(%arg0: i32) -> (i32, i32) {
    %c0_i32 = arith.constant 0 : i32
    %c0_i32_0 = arith.constant 0 : i32
    %c0_i32_1 = arith.constant 0 : i32
    return %c0_i32, %c0_i32_0 : i32, i32
  }
  func.func @transform_12(%arg0: i32) -> (i32, i32) {
    %c0_i32 = arith.constant 0 : i32
    %c0_i32_0 = arith.constant 0 : i32
    %c0_i32_1 = arith.constant 0 : i32
    return %c0_i32, %c0_i32_0 : i32, i32
  }
  func.func @transform_13(%arg0: i32) -> (i32, i32) {
    %c0_i32 = arith.constant 0 : i32
    %c0_i32_0 = arith.constant 0 : i32
    %c0_i32_1 = arith.constant 0 : i32
    return %c0_i32, %c0_i32_0 : i32, i32
  }
  func.func @transform_14(%arg0: i32) -> (i32, i32) {
    %c0_i32 = arith.constant 0 : i32
    %c0_i32_0 = arith.constant 0 : i32
    %c0_i32_1 = arith.constant 0 : i32
    return %c0_i32, %c0_i32_0 : i32, i32
  }
  func.func @transform_15(%arg0: i32) -> (i32, i32) {
    %c0_i32 = arith.constant 0 : i32
    %c0_i32_0 = arith.constant 0 : i32
    %c0_i32_1 = arith.constant 0 : i32
    return %c0_i32, %c0_i32_0 : i32, i32
  }
  func.func @transform_16(%arg0: i32) -> (i32, i32, i32) {
    %c0_i32 = arith.constant 0 : i32
    %c0_i32_0 = arith.constant 0 : i32
    %c0_i32_1 = arith.constant 0 : i32
    %c0_i32_2 = arith.constant 0 : i32
    return %c0_i32, %c0_i32_0, %c0_i32_1 : i32, i32, i32
  }
  func.func @transform_17(%arg0: i32) -> (i32, i32) {
    %c0_i32 = arith.constant 0 : i32
    %c0_i32_0 = arith.constant 0 : i32
    %c0_i32_1 = arith.constant 0 : i32
    return %c0_i32, %c0_i32_0 : i32, i32
  }
  func.func @transform_18(%arg0: i32) -> (i32, i32) {
    %c0_i32 = arith.constant 0 : i32
    %c0_i32_0 = arith.constant 0 : i32
    %c0_i32_1 = arith.constant 0 : i32
    return %c0_i32, %c0_i32_0 : i32, i32
  }
  func.func @transform_19(%arg0: i32) -> (i32, i32) {
    %c0_i32 = arith.constant 0 : i32
    %c0_i32_0 = arith.constant 0 : i32
    %c0_i32_1 = arith.constant 0 : i32
    return %c0_i32, %c0_i32_0 : i32, i32
  }
  func.func @transform_20(%arg0: i32) -> (i32, i32, i32) {
    %c0_i32 = arith.constant 0 : i32
    %c0_i32_0 = arith.constant 0 : i32
    %c0_i32_1 = arith.constant 0 : i32
    %c0_i32_2 = arith.constant 0 : i32
    return %c0_i32, %c0_i32_0, %c0_i32_1 : i32, i32, i32
  }
  func.func @transform_21(%arg0: i32) -> (i32, i32) {
    %c0_i32 = arith.constant 0 : i32
    %c0_i32_0 = arith.constant 0 : i32
    %c0_i32_1 = arith.constant 0 : i32
    return %c0_i32, %c0_i32_0 : i32, i32
  }
  func.func @transform_22(%arg0: i32) -> (i32, i32) {
    %c0_i32 = arith.constant 0 : i32
    %c0_i32_0 = arith.constant 0 : i32
    %c0_i32_1 = arith.constant 0 : i32
    return %c0_i32, %c0_i32_0 : i32, i32
  }
  func.func @transform_23(%arg0: i32) -> (i32, i32) {
    %c0_i32 = arith.constant 0 : i32
    %c0_i32_0 = arith.constant 0 : i32
    %c0_i32_1 = arith.constant 0 : i32
    return %c0_i32, %c0_i32_0 : i32, i32
  }
  func.func @transform_24(%arg0: i32) -> (i32, i32) {
    %c0_i32 = arith.constant 0 : i32
    %c0_i32_0 = arith.constant 0 : i32
    %c0_i32_1 = arith.constant 0 : i32
    return %c0_i32, %c0_i32_0 : i32, i32
  }
  func.func @transform_25(%arg0: i32) -> (i32, i32) {
    %c0_i32 = arith.constant 0 : i32
    %c0_i32_0 = arith.constant 0 : i32
    %c0_i32_1 = arith.constant 0 : i32
    return %c0_i32, %c0_i32_0 : i32, i32
  }
  func.func @transform_26(%arg0: i32) -> (i32, i32) {
    %c0_i32 = arith.constant 0 : i32
    %c0_i32_0 = arith.constant 0 : i32
    %c0_i32_1 = arith.constant 0 : i32
    return %c0_i32, %c0_i32_0 : i32, i32
  }
  func.func @transform_27(%arg0: i32) -> (i32, i32, i32) {
    %c0_i32 = arith.constant 0 : i32
    %c0_i32_0 = arith.constant 0 : i32
    %c0_i32_1 = arith.constant 0 : i32
    %c0_i32_2 = arith.constant 0 : i32
    return %c0_i32, %c0_i32_0, %c0_i32_1 : i32, i32, i32
  }
  func.func @transform_28(%arg0: i32) -> (i32, i32) {
    %c0_i32 = arith.constant 0 : i32
    %c0_i32_0 = arith.constant 0 : i32
    %c0_i32_1 = arith.constant 0 : i32
    return %c0_i32, %c0_i32_0 : i32, i32
  }
  func.func @transform_29(%arg0: i32) -> (i32, i32) {
    %c0_i32 = arith.constant 0 : i32
    %c0_i32_0 = arith.constant 0 : i32
    %c0_i32_1 = arith.constant 0 : i32
    return %c0_i32, %c0_i32_0 : i32, i32
  }
  func.func @transform_30(%arg0: i32) -> (i32, i32) {
    %c0_i32 = arith.constant 0 : i32
    %c0_i32_0 = arith.constant 0 : i32
    %c0_i32_1 = arith.constant 0 : i32
    return %c0_i32, %c0_i32_0 : i32, i32
  }
  func.func @transform_31(%arg0: i32) -> (i32, i32, i32) {
    %c0_i32 = arith.constant 0 : i32
    %c0_i32_0 = arith.constant 0 : i32
    %c0_i32_1 = arith.constant 0 : i32
    %c0_i32_2 = arith.constant 0 : i32
    return %c0_i32, %c0_i32_0, %c0_i32_1 : i32, i32, i32
  }
  func.func @transform_32(%arg0: i32) -> (i32, i32) {
    %c0_i32 = arith.constant 0 : i32
    %c0_i32_0 = arith.constant 0 : i32
    %c0_i32_1 = arith.constant 0 : i32
    return %c0_i32, %c0_i32_0 : i32, i32
  }
  func.func @transform_33(%arg0: i32) -> (i32, i32) {
    %c0_i32 = arith.constant 0 : i32
    %c0_i32_0 = arith.constant 0 : i32
    %c0_i32_1 = arith.constant 0 : i32
    return %c0_i32, %c0_i32_0 : i32, i32
  }
  func.func @transform_34(%arg0: i32) -> (i32, i32) {
    %c0_i32 = arith.constant 0 : i32
    %c0_i32_0 = arith.constant 0 : i32
    %c0_i32_1 = arith.constant 0 : i32
    return %c0_i32, %c0_i32_0 : i32, i32
  }
  func.func @transform_35(%arg0: i32) -> (i32, i32) {
    %c0_i32 = arith.constant 0 : i32
    %c0_i32_0 = arith.constant 0 : i32
    %c0_i32_1 = arith.constant 0 : i32
    return %c0_i32, %c0_i32_0 : i32, i32
  }
  func.func @transform_36(%arg0: i32) -> (i32, i32) {
    %c0_i32 = arith.constant 0 : i32
    %c0_i32_0 = arith.constant 0 : i32
    %c0_i32_1 = arith.constant 0 : i32
    return %c0_i32, %c0_i32_0 : i32, i32
  }
  func.func @transform_37(%arg0: i32) -> (i32, i32) {
    %c0_i32 = arith.constant 0 : i32
    %c0_i32_0 = arith.constant 0 : i32
    %c0_i32_1 = arith.constant 0 : i32
    return %c0_i32, %c0_i32_0 : i32, i32
  }
  func.func @transform_38(%arg0: i32) -> (i32, i32, i32) {
    %c0_i32 = arith.constant 0 : i32
    %c0_i32_0 = arith.constant 0 : i32
    %c0_i32_1 = arith.constant 0 : i32
    %c0_i32_2 = arith.constant 0 : i32
    return %c0_i32, %c0_i32_0, %c0_i32_1 : i32, i32, i32
  }
  func.func @transform_39(%arg0: i32) -> (i32, i32) {
    %c0_i32 = arith.constant 0 : i32
    %c0_i32_0 = arith.constant 0 : i32
    %c0_i32_1 = arith.constant 0 : i32
    return %c0_i32, %c0_i32_0 : i32, i32
  }
  func.func @transform_40(%arg0: i32) -> (i32, i32) {
    %c0_i32 = arith.constant 0 : i32
    %c0_i32_0 = arith.constant 0 : i32
    %c0_i32_1 = arith.constant 0 : i32
    return %c0_i32, %c0_i32_0 : i32, i32
  }
  func.func @transform_41(%arg0: i32) -> (i32, i32) {
    %c0_i32 = arith.constant 0 : i32
    %c0_i32_0 = arith.constant 0 : i32
    %c0_i32_1 = arith.constant 0 : i32
    return %c0_i32, %c0_i32_0 : i32, i32
  }
  func.func @transform_42(%arg0: i32) -> (i32, i32, i32) {
    %c0_i32 = arith.constant 0 : i32
    %c0_i32_0 = arith.constant 0 : i32
    %c0_i32_1 = arith.constant 0 : i32
    %c0_i32_2 = arith.constant 0 : i32
    return %c0_i32, %c0_i32_0, %c0_i32_1 : i32, i32, i32
  }
  func.func @transform_43(%arg0: i32) -> (i32, i32) {
    %c0_i32 = arith.constant 0 : i32
    %c0_i32_0 = arith.constant 0 : i32
    %c0_i32_1 = arith.constant 0 : i32
    return %c0_i32, %c0_i32_0 : i32, i32
  }
  func.func @transform_44(%arg0: i32) -> (i32, i32) {
    %c0_i32 = arith.constant 0 : i32
    %c0_i32_0 = arith.constant 0 : i32
    %c0_i32_1 = arith.constant 0 : i32
    return %c0_i32, %c0_i32_0 : i32, i32
  }
  func.func @transform_45(%arg0: i32) -> (i32, i32) {
    %c0_i32 = arith.constant 0 : i32
    %c0_i32_0 = arith.constant 0 : i32
    %c0_i32_1 = arith.constant 0 : i32
    return %c0_i32, %c0_i32_0 : i32, i32
  }
  func.func @transform_46(%arg0: i32) -> (i32, i32) {
    %c0_i32 = arith.constant 0 : i32
    %c0_i32_0 = arith.constant 0 : i32
    %c0_i32_1 = arith.constant 0 : i32
    return %c0_i32, %c0_i32_0 : i32, i32
  }
  func.func @transform_47(%arg0: i32) -> (i32, i32) {
    %c0_i32 = arith.constant 0 : i32
    %c0_i32_0 = arith.constant 0 : i32
    %c0_i32_1 = arith.constant 0 : i32
    return %c0_i32, %c0_i32_0 : i32, i32
  }
  func.func @transform_48(%arg0: i32) -> (i32, i32) {
    %c0_i32 = arith.constant 0 : i32
    %c0_i32_0 = arith.constant 0 : i32
    %c0_i32_1 = arith.constant 0 : i32
    return %c0_i32, %c0_i32_0 : i32, i32
  }
  func.func @transform_49(%arg0: i32) -> (i32, i32, i32) {
    %c0_i32 = arith.constant 0 : i32
    %c0_i32_0 = arith.constant 0 : i32
    %c0_i32_1 = arith.constant 0 : i32
    return %arg0, %c0_i32, %c0_i32_0 : i32, i32, i32
  }
}

</mosaic_0001>

<llo_original>
// kernel: _lambda_.1
$region0: #{_lambda_.1}
  #allocation0 [shape = 'u32[]', space=smem, size = 0x4, offset = 0x4, fixed_abs, tag = 'smem constant byte address 0x4 - core index']
  #allocation1 [shape = 'u32[144,128]{1,0:T(1,128)}', space=vmem, size = 0x12000, scoped, tag = 'internal scratch']
  #allocation2 [shape = 'f32[1,1]{1,0:T(1,128)S(1)}', space=vmem, size = 0x200, scoped, tag = 'scoped memory for _lambda_.1']
  %s0 = inlined_call_operand.smem [shape: u32[50], index: -1, kind: input, shape index: {}]
  %s1 = sld [smem:[%s0]]
  %s2 = scalar_lea.smem %s0, 1
  %s3 = sld [smem:[%s2]]
  %s4 = scalar_lea.smem %s0, 2
  %s5 = sld [smem:[%s4]]
  %s6 = scalar_lea.smem %s0, 3
  %s7 = sld [smem:[%s6]]
  %s8 = scalar_lea.smem %s0, 4
  %s9 = sld [smem:[%s8]]
  %s10 = scalar_lea.smem %s0, 5
  %s11 = sld [smem:[%s10]]
  %s12 = scalar_lea.smem %s0, 6
  %s13 = sld [smem:[%s12]]
  %s14 = scalar_lea.smem %s0, 7
  %s15 = sld [smem:[%s14]]
  %s16 = scalar_lea.smem %s0, 8
  %s17 = sld [smem:[%s16]]
  %s18 = scalar_lea.smem %s0, 9
  %s19 = sld [smem:[%s18]]
  %s20 = scalar_lea.smem %s0, 10
  %s21 = sld [smem:[%s20]]
  %s22 = scalar_lea.smem %s0, 11
  %s23 = sld [smem:[%s22]]
  %s24 = scalar_lea.smem %s0, 12
  %s25 = sld [smem:[%s24]]
  %s26 = scalar_lea.smem %s0, 13
  %s27 = sld [smem:[%s26]]
  %s28 = scalar_lea.smem %s0, 14
  %s29 = sld [smem:[%s28]]
  %s30 = scalar_lea.smem %s0, 15
  %s31 = sld [smem:[%s30]]
  %s32 = scalar_lea.smem %s0, 16
  %s33 = sld [smem:[%s32]]
  %s34 = scalar_lea.smem %s0, 17
  %s35 = sld [smem:[%s34]]
  %s36 = scalar_lea.smem %s0, 18
  %s37 = sld [smem:[%s36]]
  %s38 = scalar_lea.smem %s0, 19
  %s39 = sld [smem:[%s38]]
  %s40 = scalar_lea.smem %s0, 20
  %s41 = sld [smem:[%s40]]
  %s42 = scalar_lea.smem %s0, 21
  %s43 = sld [smem:[%s42]]
  %s44 = scalar_lea.smem %s0, 22
  %s45 = sld [smem:[%s44]]
  %s46 = scalar_lea.smem %s0, 23
  %s47 = sld [smem:[%s46]]
  %s48 = scalar_lea.smem %s0, 24
  %s49 = sld [smem:[%s48]]
  %s50 = scalar_lea.smem %s0, 25
  %s51 = sld [smem:[%s50]]
  %s52 = scalar_lea.smem %s0, 26
  %s53 = sld [smem:[%s52]]
  %s54 = scalar_lea.smem %s0, 27
  %s55 = sld [smem:[%s54]]
  %s56 = scalar_lea.smem %s0, 28
  %s57 = sld [smem:[%s56]]
  %s58 = scalar_lea.smem %s0, 29
  %s59 = sld [smem:[%s58]]
  %s60 = scalar_lea.smem %s0, 30
  %s61 = sld [smem:[%s60]]
  %s62 = scalar_lea.smem %s0, 31
  %s63 = sld [smem:[%s62]]
  %s64 = scalar_lea.smem %s0, 32
  %s65 = sld [smem:[%s64]]
  %s66 = scalar_lea.smem %s0, 33
  %s67 = sld [smem:[%s66]]
  %s68 = scalar_lea.smem %s0, 34
  %s69 = sld [smem:[%s68]]
  %s70 = scalar_lea.smem %s0, 35
  %s71 = sld [smem:[%s70]]
  %s72 = scalar_lea.smem %s0, 36
  %s73 = sld [smem:[%s72]]
  %s74 = scalar_lea.smem %s0, 37
  %s75 = sld [smem:[%s74]]
  %s76 = scalar_lea.smem %s0, 38
  %s77 = sld [smem:[%s76]]
  %s78 = scalar_lea.smem %s0, 39
  %s79 = sld [smem:[%s78]]
  %s80 = scalar_lea.smem %s0, 40
  %s81 = sld [smem:[%s80]]
  %s82 = scalar_lea.smem %s0, 41
  %s83 = sld [smem:[%s82]]
  %s84 = scalar_lea.smem %s0, 42
  %s85 = sld [smem:[%s84]]
  %s86 = scalar_lea.smem %s0, 43
  %s87 = sld [smem:[%s86]]
  %s88 = scalar_lea.smem %s0, 44
  %s89 = sld [smem:[%s88]]
  %s90 = scalar_lea.smem %s0, 45
  %s91 = sld [smem:[%s90]]
  %s92 = scalar_lea.smem %s0, 46
  %s93 = sld [smem:[%s92]]
  %s94 = scalar_lea.smem %s0, 47
  %s95 = sld [smem:[%s94]]
  %s96 = scalar_lea.smem %s0, 48
  %s97 = sld [smem:[%s96]]
  %s98 = scalar_lea.smem %s0, 49
  %s99 = sld [smem:[%s98]]
  %s100 = sld [smem:[#allocation0]]
  $region265: #{_lambda_.1} parent=0
    _
  %s102 = ssub.s32 1, %s100
  %s103 = scalar_select 0, %s102, %s100
  %v104 = vstv %s97
  %105 = vst [vmem:[#allocation2] sm:$0x1] %v104
  $region1: #{_lambda_.1} parent=0
    #allocation3 [shape = 'u8[8192]{0}', space=vmem, size = 0x2000, scoped, tag = 'input window, operand 1, single buffered']
    #allocation4 [shape = 's32[2]{0}', space=sflag, size = 0x8, scoped, tag = 'scoped memory for _lambda_.1']
    #allocation5 [shape = 'u8[512]{0}', space=vmem, size = 0x400, scoped, tag = 'input window, operand 2, single buffered']
    #allocation6 [shape = 's32[1]{0}', space=sflag, size = 0x4, scoped, tag = 'scoped memory for _lambda_.1']
    #allocation7 [shape = 'u8[8192]{0}', space=vmem, size = 0x2000, scoped, tag = 'input window, operand 3, single buffered']
    #allocation8 [shape = 'u8[512]{0}', space=vmem, size = 0x400, scoped, tag = 'input window, operand 8, single buffered']
    #allocation9 [shape = 's32[1]{0}', space=sflag, size = 0x4, scoped, tag = 'scoped memory for _lambda_.1']
    #allocation10 [shape = 'u8[512]{0}', space=vmem, size = 0x400, scoped, tag = 'input window, operand 10, single buffered']
    #allocation11 [shape = 'u8[4096]{0}', space=vmem, size = 0x1000, scoped, tag = 'input window, operand 11, single buffered']
    #allocation12 [shape = 's32[1]{0}', space=sflag, size = 0x4, scoped, tag = 'scoped memory for _lambda_.1']
    #allocation13 [shape = 'u8[512]{0}', space=vmem, size = 0x400, scoped, tag = 'input window, operand 18, single buffered']
    #allocation14 [shape = 'u8[512]{0}', space=vmem, size = 0x400, scoped, tag = 'input window, operand 19, single buffered']
    #allocation15 [shape = 's32[1]{0}', space=sflag, size = 0x4, scoped, tag = 'scoped memory for _lambda_.1']
    #allocation16 [shape = 'u8[512]{0}', space=vmem, size = 0x400, scoped, tag = 'input window, operand 21, single buffered']
    %106 = vsyncpa [#allocation4], 0
    %107 = vsyncpa [#allocation6], 0
    %108 = vsyncpa [#allocation9], 0
    %109 = vsyncpa [#allocation12], 0
    %110 = vsyncpa [#allocation15], 0
    loop: start=0, step=1, limit=4
    $region2: #{_lambda_.1} parent=1 // loop_pre_header
      _
    $region3: #{_lambda_.1} parent=1 // loop_header
      %s112 = sphi 0, %s116
      %p113 = scmp.ge.s32.totalorder %s112, 4
      %s122 = sphi 0, %s124
      %s125 = sphi 0, %s122
      %s126 = sphi 0, %s125
      %s142 = sphi 0, %s126
      %s146 = sphi 0, %s146
      %s148 = sphi 0, %s146
      %s149 = sphi 0, %s148
      %s163 = sphi 0, %s149
      %s167 = sphi 0, %s167
      %s169 = sphi 0, %s167
      %s170 = sphi 0, %s169
      %s184 = sphi 0, %s170
      %s188 = sphi 0, %s188
      %s190 = sphi 0, %s188
      %s191 = sphi 0, %s190
      %s205 = sphi 0, %s191
      %s209 = sphi 0, %s209
      %s211 = sphi 0, %s209
      %s212 = sphi 0, %s211
      %s226 = sphi 0, %s212
      %s230 = sphi 0, %s230
      %s232 = sphi 0, %s230
      %s233 = sphi 0, %s232
      %s247 = sphi 0, %s233
      %s251 = sphi 0, %s251
      %s253 = sphi 0, %s251
      %s254 = sphi 0, %s253
      %s268 = sphi 0, %s254
      %s272 = sphi 0, %s272
      %s274 = sphi 0, %s272
      %s275 = sphi 0, %s274
      %s289 = sphi 0, %s275
      %s293 = sphi 0, %s293
      %s295 = sphi 0, %s293
      %s296 = sphi 0, %s295
      %s310 = sphi 0, %s296
      %s314 = sphi 0, %s314
      %s316 = sphi 0, %s314
      %s317 = sphi 0, %s316
      %s331 = sphi 0, %s317
      %s335 = sphi 0, %s335
      %s337 = sphi 0, %s335
      %s338 = sphi 0, %s337
      %s352 = sphi 0, %s338
      %s356 = sphi 0, %s356
      %s358 = sphi 0, %s356
      %s359 = sphi 0, %s358
      %s373 = sphi 0, %s359
      %s377 = sphi 0, %s377
      %s379 = sphi 0, %s377
      %s380 = sphi 0, %s379
      %s394 = sphi 0, %s380
      %s398 = sphi 0, %s398
      %s400 = sphi 0, %s398
      %s401 = sphi 0, %s400
      %s415 = sphi 0, %s401
      %s419 = sphi 0, %s419
      %s421 = sphi 0, %s419
      %s422 = sphi 0, %s421
      %s436 = sphi 0, %s422
      %s440 = sphi 0, %s440
      %s442 = sphi 0, %s440
      %s443 = sphi 0, %s442
      %s457 = sphi 0, %s443
      %s461 = sphi 0, %s461
      %s463 = sphi 0, %s461
      %s464 = sphi 0, %s463
      %s478 = sphi 0, %s464
      %s482 = sphi 0, %s482
      %s484 = sphi 0, %s482
      %s485 = sphi 0, %s484
      %s499 = sphi 0, %s485
      %s503 = sphi 0, %s503
      %s505 = sphi 0, %s503
      %s506 = sphi 0, %s505
      %s520 = sphi 0, %s506
      %s524 = sphi 0, %s524
      %s526 = sphi 0, %s524
      %s527 = sphi 0, %s526
      %s541 = sphi 0, %s527
      %s545 = sphi 0, %s545
      %s547 = sphi 0, %s545
      %s548 = sphi 0, %s547
      %s562 = sphi 0, %s548
      %s566 = sphi 0, %s566
      %s568 = sphi 0, %s566
      %s569 = sphi 0, %s568
      %s583 = sphi 0, %s569
      %s587 = sphi 0, %s587
      %s589 = sphi 0, %s587
      %s590 = sphi 0, %s589
      %s604 = sphi 0, %s590
      %s608 = sphi 0, %s608
      %s610 = sphi 0, %s608
      %s611 = sphi 0, %s610
      %s625 = sphi 0, %s611
      %s629 = sphi 0, %s629
      %s631 = sphi 0, %s629
      %s632 = sphi 0, %s631
      %s646 = sphi 0, %s632
      %s650 = sphi 0, %s650
      %s652 = sphi 0, %s650
      %s653 = sphi 0, %s652
      %s667 = sphi 0, %s653
      %s671 = sphi 0, %s671
      %s673 = sphi 0, %s671
      %s674 = sphi 0, %s673
      %s688 = sphi 0, %s674
      %s692 = sphi 0, %s692
      %s694 = sphi 0, %s692
      %s695 = sphi 0, %s694
      %s709 = sphi 0, %s695
      %s713 = sphi 0, %s713
      %s715 = sphi 0, %s713
      %s716 = sphi 0, %s715
      %s730 = sphi 0, %s716
      %s734 = sphi 0, %s734
      %s736 = sphi 0, %s734
      %s737 = sphi 0, %s736
      %s751 = sphi 0, %s737
      %s755 = sphi 0, %s755
      %s757 = sphi 0, %s755
      %s758 = sphi 0, %s757
      %s772 = sphi 0, %s758
      %s776 = sphi 0, %s776
      %s778 = sphi 0, %s776
      %s779 = sphi 0, %s778
      %s793 = sphi 0, %s779
      %s797 = sphi 0, %s797
      %s799 = sphi 0, %s797
      %s800 = sphi 0, %s799
      %s814 = sphi 0, %s800
      %s818 = sphi 0, %s818
      %s820 = sphi 0, %s818
      %s821 = sphi 0, %s820
      %s835 = sphi 0, %s821
      %s839 = sphi 0, %s839
      %s841 = sphi 0, %s839
      %s842 = sphi 0, %s841
      %s856 = sphi 0, %s842
      %s860 = sphi 0, %s860
      %s862 = sphi 0, %s860
      %s863 = sphi 0, %s862
      %s877 = sphi 0, %s863
      %s881 = sphi 0, %s881
      %s883 = sphi 0, %s881
      %s884 = sphi 0, %s883
      %s898 = sphi 0, %s884
      %s902 = sphi 0, %s902
      %s904 = sphi 0, %s902
      %s905 = sphi 0, %s904
      %s919 = sphi 0, %s905
      %s923 = sphi 0, %s923
      %s925 = sphi 0, %s923
      %s926 = sphi 0, %s925
      %s940 = sphi 0, %s926
      %s944 = sphi 0, %s944
      %s946 = sphi 0, %s944
      %s947 = sphi 0, %s946
      %s961 = sphi 0, %s947
      %s965 = sphi 0, %s965
      %s967 = sphi 0, %s965
      %s968 = sphi 0, %s967
      %s982 = sphi 0, %s968
      %s986 = sphi 0, %s986
      %s988 = sphi 0, %s986
      %s989 = sphi 0, %s988
      %s1003 = sphi 0, %s989
      %s1007 = sphi 0, %s1007
      %s1009 = sphi 0, %s1007
      %s1010 = sphi 0, %s1009
      %s1024 = sphi 0, %s1010
      %s1028 = sphi 0, %s1028
      %s1030 = sphi 0, %s1028
      %s1031 = sphi 0, %s1030
      %s1045 = sphi 0, %s1031
      %s1049 = sphi 0, %s1049
      %s1051 = sphi 0, %s1049
      %s1052 = sphi 0, %s1051
      %s1066 = sphi 0, %s1052
      %s1070 = sphi 0, %s1070
      %s1072 = sphi 0, %s1070
      %s1073 = sphi 0, %s1072
      %s1087 = sphi 0, %s1073
      %s1091 = sphi 0, %s1091
      %s1093 = sphi 0, %s1091
      %s1094 = sphi 0, %s1093
      %s1108 = sphi 0, %s1094
      %s1112 = sphi 0, %s1112
      %s1114 = sphi 0, %s1112
      %s1115 = sphi 0, %s1114
      %s1129 = sphi 0, %s1115
      %s1133 = sphi 0, %s1133
      %s1135 = sphi 0, %s1133
      %s1136 = sphi 0, %s1135
      %s1150 = sphi 0, %s1136
      %s1156 = sphi 0, %s1158
      %s1159 = sphi 0, %s1156
      %s1160 = sphi 0, %s1159
      %s1176 = sphi 0, %s1160
    $region4: #{_lambda_.1} parent=1 // loop_header_branch
      %115 = sbr.rel (%p113) target = $region8
    $region5: #{_lambda_.1} parent=1 // loop_body
      %s117 = ssub.s32 %s112, 1
      %s118 = ssub.s32 %s112, 2
      %s119 = sadd.s32 %s112, 1
      %s120 = ssub.s32 %s112, %s119
      %p121 = scmp.eq.s32.totalorder %s120, 0
      %s123 = sadd.s32 %s122, 1
      %s124 = scalar_select %p121, %s122, %s123
      %p127 = pneg %p121
      %p128 = scmp.eq.s32.totalorder %s112, 1
      %p129 = por %p127, %p128
      %p130 = scmp.ne.s32.totalorder %s122, %s125
      %p131 = scmp.eq.s32.totalorder %s112, 0
      %p132 = por %p130, %p131
      %p133 = scmp.ne.s32.totalorder %s122, %s125
      %p134 = scmp.eq.s32.totalorder %s117, 1
      %p135 = por %p133, %p134
      %p136 = scmp.ne.s32.totalorder %s125, %s126
      %p137 = scmp.eq.s32.totalorder %s117, 0
      %p138 = por %p136, %p137
      %p139 = scmp.ne.s32.totalorder %s125, %s126
      %p140 = scmp.eq.s32.totalorder %s118, 1
      %p141 = por %p139, %p140
      %p143 = scmp.ne.s32.totalorder %s126, %s142
      %p144 = scmp.eq.s32.totalorder %s118, 0
      %p145 = por %p143, %p144
      %s147 = sadd.s32 %s146, 1
      %p150 = scmp.eq.s32.totalorder %s112, 1
      %p151 = scmp.ne.s32.totalorder %s146, %s148
      %p152 = scmp.eq.s32.totalorder %s112, 0
      %p153 = por %p151, %p152
      %p154 = scmp.ne.s32.totalorder %s146, %s148
      %p155 = scmp.eq.s32.totalorder %s117, 1
      %p156 = por %p154, %p155
      %p157 = scmp.ne.s32.totalorder %s148, %s149
      %p158 = scmp.eq.s32.totalorder %s117, 0
      %p159 = por %p157, %p158
      %p160 = scmp.ne.s32.totalorder %s148, %s149
      %p161 = scmp.eq.s32.totalorder %s118, 1
      %p162 = por %p160, %p161
      %p164 = scmp.ne.s32.totalorder %s149, %s163
      %p165 = scmp.eq.s32.totalorder %s118, 0
      %p166 = por %p164, %p165
      %s168 = sadd.s32 %s167, 1
      %p171 = scmp.eq.s32.totalorder %s112, 1
      %p172 = scmp.ne.s32.totalorder %s167, %s169
      %p173 = scmp.eq.s32.totalorder %s112, 0
      %p174 = por %p172, %p173
      %p175 = scmp.ne.s32.totalorder %s167, %s169
      %p176 = scmp.eq.s32.totalorder %s117, 1
      %p177 = por %p175, %p176
      %p178 = scmp.ne.s32.totalorder %s169, %s170
      %p179 = scmp.eq.s32.totalorder %s117, 0
      %p180 = por %p178, %p179
      %p181 = scmp.ne.s32.totalorder %s169, %s170
      %p182 = scmp.eq.s32.totalorder %s118, 1
      %p183 = por %p181, %p182
      %p185 = scmp.ne.s32.totalorder %s170, %s184
      %p186 = scmp.eq.s32.totalorder %s118, 0
      %p187 = por %p185, %p186
      %s189 = sadd.s32 %s188, 1
      %p192 = scmp.eq.s32.totalorder %s112, 1
      %p193 = scmp.ne.s32.totalorder %s188, %s190
      %p194 = scmp.eq.s32.totalorder %s112, 0
      %p195 = por %p193, %p194
      %p196 = scmp.ne.s32.totalorder %s188, %s190
      %p197 = scmp.eq.s32.totalorder %s117, 1
      %p198 = por %p196, %p197
      %p199 = scmp.ne.s32.totalorder %s190, %s191
      %p200 = scmp.eq.s32.totalorder %s117, 0
      %p201 = por %p199, %p200
      %p202 = scmp.ne.s32.totalorder %s190, %s191
      %p203 = scmp.eq.s32.totalorder %s118, 1
      %p204 = por %p202, %p203
      %p206 = scmp.ne.s32.totalorder %s191, %s205
      %p207 = scmp.eq.s32.totalorder %s118, 0
      %p208 = por %p206, %p207
      %s210 = sadd.s32 %s209, 1
      %p213 = scmp.eq.s32.totalorder %s112, 1
      %p214 = scmp.ne.s32.totalorder %s209, %s211
      %p215 = scmp.eq.s32.totalorder %s112, 0
      %p216 = por %p214, %p215
      %p217 = scmp.ne.s32.totalorder %s209, %s211
      %p218 = scmp.eq.s32.totalorder %s117, 1
      %p219 = por %p217, %p218
      %p220 = scmp.ne.s32.totalorder %s211, %s212
      %p221 = scmp.eq.s32.totalorder %s117, 0
      %p222 = por %p220, %p221
      %p223 = scmp.ne.s32.totalorder %s211, %s212
      %p224 = scmp.eq.s32.totalorder %s118, 1
      %p225 = por %p223, %p224
      %p227 = scmp.ne.s32.totalorder %s212, %s226
      %p228 = scmp.eq.s32.totalorder %s118, 0
      %p229 = por %p227, %p228
      %s231 = sadd.s32 %s230, 1
      %p234 = scmp.eq.s32.totalorder %s112, 1
      %p235 = scmp.ne.s32.totalorder %s230, %s232
      %p236 = scmp.eq.s32.totalorder %s112, 0
      %p237 = por %p235, %p236
      %p238 = scmp.ne.s32.totalorder %s230, %s232
      %p239 = scmp.eq.s32.totalorder %s117, 1
      %p240 = por %p238, %p239
      %p241 = scmp.ne.s32.totalorder %s232, %s233
      %p242 = scmp.eq.s32.totalorder %s117, 0
      %p243 = por %p241, %p242
      %p244 = scmp.ne.s32.totalorder %s232, %s233
      %p245 = scmp.eq.s32.totalorder %s118, 1
      %p246 = por %p244, %p245
      %p248 = scmp.ne.s32.totalorder %s233, %s247
      %p249 = scmp.eq.s32.totalorder %s118, 0
      %p250 = por %p248, %p249
      %s252 = sadd.s32 %s251, 1
      %p255 = scmp.eq.s32.totalorder %s112, 1
      %p256 = scmp.ne.s32.totalorder %s251, %s253
      %p257 = scmp.eq.s32.totalorder %s112, 0
      %p258 = por %p256, %p257
      %p259 = scmp.ne.s32.totalorder %s251, %s253
      %p260 = scmp.eq.s32.totalorder %s117, 1
      %p261 = por %p259, %p260
      %p262 = scmp.ne.s32.totalorder %s253, %s254
      %p263 = scmp.eq.s32.totalorder %s117, 0
      %p264 = por %p262, %p263
      %p265 = scmp.ne.s32.totalorder %s253, %s254
      %p266 = scmp.eq.s32.totalorder %s118, 1
      %p267 = por %p265, %p266
      %p269 = scmp.ne.s32.totalorder %s254, %s268
      %p270 = scmp.eq.s32.totalorder %s118, 0
      %p271 = por %p269, %p270
      %s273 = sadd.s32 %s272, 1
      %p276 = scmp.eq.s32.totalorder %s112, 1
      %p277 = scmp.ne.s32.totalorder %s272, %s274
      %p278 = scmp.eq.s32.totalorder %s112, 0
      %p279 = por %p277, %p278
      %p280 = scmp.ne.s32.totalorder %s272, %s274
      %p281 = scmp.eq.s32.totalorder %s117, 1
      %p282 = por %p280, %p281
      %p283 = scmp.ne.s32.totalorder %s274, %s275
      %p284 = scmp.eq.s32.totalorder %s117, 0
      %p285 = por %p283, %p284
      %p286 = scmp.ne.s32.totalorder %s274, %s275
      %p287 = scmp.eq.s32.totalorder %s118, 1
      %p288 = por %p286, %p287
      %p290 = scmp.ne.s32.totalorder %s275, %s289
      %p291 = scmp.eq.s32.totalorder %s118, 0
      %p292 = por %p290, %p291
      %s294 = sadd.s32 %s293, 1
      %p297 = scmp.eq.s32.totalorder %s112, 1
      %p298 = scmp.ne.s32.totalorder %s293, %s295
      %p299 = scmp.eq.s32.totalorder %s112, 0
      %p300 = por %p298, %p299
      %p301 = scmp.ne.s32.totalorder %s293, %s295
      %p302 = scmp.eq.s32.totalorder %s117, 1
      %p303 = por %p301, %p302
      %p304 = scmp.ne.s32.totalorder %s295, %s296
      %p305 = scmp.eq.s32.totalorder %s117, 0
      %p306 = por %p304, %p305
      %p307 = scmp.ne.s32.totalorder %s295, %s296
      %p308 = scmp.eq.s32.totalorder %s118, 1
      %p309 = por %p307, %p308
      %p311 = scmp.ne.s32.totalorder %s296, %s310
      %p312 = scmp.eq.s32.totalorder %s118, 0
      %p313 = por %p311, %p312
      %s315 = sadd.s32 %s314, 1
      %p318 = scmp.eq.s32.totalorder %s112, 1
      %p319 = scmp.ne.s32.totalorder %s314, %s316
      %p320 = scmp.eq.s32.totalorder %s112, 0
      %p321 = por %p319, %p320
      %p322 = scmp.ne.s32.totalorder %s314, %s316
      %p323 = scmp.eq.s32.totalorder %s117, 1
      %p324 = por %p322, %p323
      %p325 = scmp.ne.s32.totalorder %s316, %s317
      %p326 = scmp.eq.s32.totalorder %s117, 0
      %p327 = por %p325, %p326
      %p328 = scmp.ne.s32.totalorder %s316, %s317
      %p329 = scmp.eq.s32.totalorder %s118, 1
      %p330 = por %p328, %p329
      %p332 = scmp.ne.s32.totalorder %s317, %s331
      %p333 = scmp.eq.s32.totalorder %s118, 0
      %p334 = por %p332, %p333
      %s336 = sadd.s32 %s335, 1
      %p339 = scmp.eq.s32.totalorder %s112, 1
      %p340 = scmp.ne.s32.totalorder %s335, %s337
      %p341 = scmp.eq.s32.totalorder %s112, 0
      %p342 = por %p340, %p341
      %p343 = scmp.ne.s32.totalorder %s335, %s337
      %p344 = scmp.eq.s32.totalorder %s117, 1
      %p345 = por %p343, %p344
      %p346 = scmp.ne.s32.totalorder %s337, %s338
      %p347 = scmp.eq.s32.totalorder %s117, 0
      %p348 = por %p346, %p347
      %p349 = scmp.ne.s32.totalorder %s337, %s338
      %p350 = scmp.eq.s32.totalorder %s118, 1
      %p351 = por %p349, %p350
      %p353 = scmp.ne.s32.totalorder %s338, %s352
      %p354 = scmp.eq.s32.totalorder %s118, 0
      %p355 = por %p353, %p354
      %s357 = sadd.s32 %s356, 1
      %p360 = scmp.eq.s32.totalorder %s112, 1
      %p361 = scmp.ne.s32.totalorder %s356, %s358
      %p362 = scmp.eq.s32.totalorder %s112, 0
      %p363 = por %p361, %p362
      %p364 = scmp.ne.s32.totalorder %s356, %s358
      %p365 = scmp.eq.s32.totalorder %s117, 1
      %p366 = por %p364, %p365
      %p367 = scmp.ne.s32.totalorder %s358, %s359
      %p368 = scmp.eq.s32.totalorder %s117, 0
      %p369 = por %p367, %p368
      %p370 = scmp.ne.s32.totalorder %s358, %s359
      %p371 = scmp.eq.s32.totalorder %s118, 1
      %p372 = por %p370, %p371
      %p374 = scmp.ne.s32.totalorder %s359, %s373
      %p375 = scmp.eq.s32.totalorder %s118, 0
      %p376 = por %p374, %p375
      %s378 = sadd.s32 %s377, 1
      %p381 = scmp.eq.s32.totalorder %s112, 1
      %p382 = scmp.ne.s32.totalorder %s377, %s379
      %p383 = scmp.eq.s32.totalorder %s112, 0
      %p384 = por %p382, %p383
      %p385 = scmp.ne.s32.totalorder %s377, %s379
      %p386 = scmp.eq.s32.totalorder %s117, 1
      %p387 = por %p385, %p386
      %p388 = scmp.ne.s32.totalorder %s379, %s380
      %p389 = scmp.eq.s32.totalorder %s117, 0
      %p390 = por %p388, %p389
      %p391 = scmp.ne.s32.totalorder %s379, %s380
      %p392 = scmp.eq.s32.totalorder %s118, 1
      %p393 = por %p391, %p392
      %p395 = scmp.ne.s32.totalorder %s380, %s394
      %p396 = scmp.eq.s32.totalorder %s118, 0
      %p397 = por %p395, %p396
      %s399 = sadd.s32 %s398, 1
      %p402 = scmp.eq.s32.totalorder %s112, 1
      %p403 = scmp.ne.s32.totalorder %s398, %s400
      %p404 = scmp.eq.s32.totalorder %s112, 0
      %p405 = por %p403, %p404
      %p406 = scmp.ne.s32.totalorder %s398, %s400
      %p407 = scmp.eq.s32.totalorder %s117, 1
      %p408 = por %p406, %p407
      %p409 = scmp.ne.s32.totalorder %s400, %s401
      %p410 = scmp.eq.s32.totalorder %s117, 0
      %p411 = por %p409, %p410
      %p412 = scmp.ne.s32.totalorder %s400, %s401
      %p413 = scmp.eq.s32.totalorder %s118, 1
      %p414 = por %p412, %p413
      %p416 = scmp.ne.s32.totalorder %s401, %s415
      %p417 = scmp.eq.s32.totalorder %s118, 0
      %p418 = por %p416, %p417
      %s420 = sadd.s32 %s419, 1
      %p423 = scmp.eq.s32.totalorder %s112, 1
      %p424 = scmp.ne.s32.totalorder %s419, %s421
      %p425 = scmp.eq.s32.totalorder %s112, 0
      %p426 = por %p424, %p425
      %p427 = scmp.ne.s32.totalorder %s419, %s421
      %p428 = scmp.eq.s32.totalorder %s117, 1
      %p429 = por %p427, %p428
      %p430 = scmp.ne.s32.totalorder %s421, %s422
      %p431 = scmp.eq.s32.totalorder %s117, 0
      %p432 = por %p430, %p431
      %p433 = scmp.ne.s32.totalorder %s421, %s422
      %p434 = scmp.eq.s32.totalorder %s118, 1
      %p435 = por %p433, %p434
      %p437 = scmp.ne.s32.totalorder %s422, %s436
      %p438 = scmp.eq.s32.totalorder %s118, 0
      %p439 = por %p437, %p438
      %s441 = sadd.s32 %s440, 1
      %p444 = scmp.eq.s32.totalorder %s112, 1
      %p445 = scmp.ne.s32.totalorder %s440, %s442
      %p446 = scmp.eq.s32.totalorder %s112, 0
      %p447 = por %p445, %p446
      %p448 = scmp.ne.s32.totalorder %s440, %s442
      %p449 = scmp.eq.s32.totalorder %s117, 1
      %p450 = por %p448, %p449
      %p451 = scmp.ne.s32.totalorder %s442, %s443
      %p452 = scmp.eq.s32.totalorder %s117, 0
      %p453 = por %p451, %p452
      %p454 = scmp.ne.s32.totalorder %s442, %s443
      %p455 = scmp.eq.s32.totalorder %s118, 1
      %p456 = por %p454, %p455
      %p458 = scmp.ne.s32.totalorder %s443, %s457
      %p459 = scmp.eq.s32.totalorder %s118, 0
      %p460 = por %p458, %p459
      %s462 = sadd.s32 %s461, 1
      %p465 = scmp.eq.s32.totalorder %s112, 1
      %p466 = scmp.ne.s32.totalorder %s461, %s463
      %p467 = scmp.eq.s32.totalorder %s112, 0
      %p468 = por %p466, %p467
      %p469 = scmp.ne.s32.totalorder %s461, %s463
      %p470 = scmp.eq.s32.totalorder %s117, 1
      %p471 = por %p469, %p470
      %p472 = scmp.ne.s32.totalorder %s463, %s464
      %p473 = scmp.eq.s32.totalorder %s117, 0
      %p474 = por %p472, %p473
      %p475 = scmp.ne.s32.totalorder %s463, %s464
      %p476 = scmp.eq.s32.totalorder %s118, 1
      %p477 = por %p475, %p476
      %p479 = scmp.ne.s32.totalorder %s464, %s478
      %p480 = scmp.eq.s32.totalorder %s118, 0
      %p481 = por %p479, %p480
      %s483 = sadd.s32 %s482, 1
      %p486 = scmp.eq.s32.totalorder %s112, 1
      %p487 = scmp.ne.s32.totalorder %s482, %s484
      %p488 = scmp.eq.s32.totalorder %s112, 0
      %p489 = por %p487, %p488
      %p490 = scmp.ne.s32.totalorder %s482, %s484
      %p491 = scmp.eq.s32.totalorder %s117, 1
      %p492 = por %p490, %p491
      %p493 = scmp.ne.s32.totalorder %s484, %s485
      %p494 = scmp.eq.s32.totalorder %s117, 0
      %p495 = por %p493, %p494
      %p496 = scmp.ne.s32.totalorder %s484, %s485
      %p497 = scmp.eq.s32.totalorder %s118, 1
      %p498 = por %p496, %p497
      %p500 = scmp.ne.s32.totalorder %s485, %s499
      %p501 = scmp.eq.s32.totalorder %s118, 0
      %p502 = por %p500, %p501
      %s504 = sadd.s32 %s503, 1
      %p507 = scmp.eq.s32.totalorder %s112, 1
      %p508 = scmp.ne.s32.totalorder %s503, %s505
      %p509 = scmp.eq.s32.totalorder %s112, 0
      %p510 = por %p508, %p509
      %p511 = scmp.ne.s32.totalorder %s503, %s505
      %p512 = scmp.eq.s32.totalorder %s117, 1
      %p513 = por %p511, %p512
      %p514 = scmp.ne.s32.totalorder %s505, %s506
      %p515 = scmp.eq.s32.totalorder %s117, 0
      %p516 = por %p514, %p515
      %p517 = scmp.ne.s32.totalorder %s505, %s506
      %p518 = scmp.eq.s32.totalorder %s118, 1
      %p519 = por %p517, %p518
      %p521 = scmp.ne.s32.totalorder %s506, %s520
      %p522 = scmp.eq.s32.totalorder %s118, 0
      %p523 = por %p521, %p522
      %s525 = sadd.s32 %s524, 1
      %p528 = scmp.eq.s32.totalorder %s112, 1
      %p529 = scmp.ne.s32.totalorder %s524, %s526
      %p530 = scmp.eq.s32.totalorder %s112, 0
      %p531 = por %p529, %p530
      %p532 = scmp.ne.s32.totalorder %s524, %s526
      %p533 = scmp.eq.s32.totalorder %s117, 1
      %p534 = por %p532, %p533
      %p535 = scmp.ne.s32.totalorder %s526, %s527
      %p536 = scmp.eq.s32.totalorder %s117, 0
      %p537 = por %p535, %p536
      %p538 = scmp.ne.s32.totalorder %s526, %s527
      %p539 = scmp.eq.s32.totalorder %s118, 1
      %p540 = por %p538, %p539
      %p542 = scmp.ne.s32.totalorder %s527, %s541
      %p543 = scmp.eq.s32.totalorder %s118, 0
      %p544 = por %p542, %p543
      %s546 = sadd.s32 %s545, 1
      %p549 = scmp.eq.s32.totalorder %s112, 1
      %p550 = scmp.ne.s32.totalorder %s545, %s547
      %p551 = scmp.eq.s32.totalorder %s112, 0
      %p552 = por %p550, %p551
      %p553 = scmp.ne.s32.totalorder %s545, %s547
      %p554 = scmp.eq.s32.totalorder %s117, 1
      %p555 = por %p553, %p554
      %p556 = scmp.ne.s32.totalorder %s547, %s548
      %p557 = scmp.eq.s32.totalorder %s117, 0
      %p558 = por %p556, %p557
      %p559 = scmp.ne.s32.totalorder %s547, %s548
      %p560 = scmp.eq.s32.totalorder %s118, 1
      %p561 = por %p559, %p560
      %p563 = scmp.ne.s32.totalorder %s548, %s562
      %p564 = scmp.eq.s32.totalorder %s118, 0
      %p565 = por %p563, %p564
      %s567 = sadd.s32 %s566, 1
      %p570 = scmp.eq.s32.totalorder %s112, 1
      %p571 = scmp.ne.s32.totalorder %s566, %s568
      %p572 = scmp.eq.s32.totalorder %s112, 0
      %p573 = por %p571, %p572
      %p574 = scmp.ne.s32.totalorder %s566, %s568
      %p575 = scmp.eq.s32.totalorder %s117, 1
      %p576 = por %p574, %p575
      %p577 = scmp.ne.s32.totalorder %s568, %s569
      %p578 = scmp.eq.s32.totalorder %s117, 0
      %p579 = por %p577, %p578
      %p580 = scmp.ne.s32.totalorder %s568, %s569
      %p581 = scmp.eq.s32.totalorder %s118, 1
      %p582 = por %p580, %p581
      %p584 = scmp.ne.s32.totalorder %s569, %s583
      %p585 = scmp.eq.s32.totalorder %s118, 0
      %p586 = por %p584, %p585
      %s588 = sadd.s32 %s587, 1
      %p591 = scmp.eq.s32.totalorder %s112, 1
      %p592 = scmp.ne.s32.totalorder %s587, %s589
      %p593 = scmp.eq.s32.totalorder %s112, 0
      %p594 = por %p592, %p593
      %p595 = scmp.ne.s32.totalorder %s587, %s589
      %p596 = scmp.eq.s32.totalorder %s117, 1
      %p597 = por %p595, %p596
      %p598 = scmp.ne.s32.totalorder %s589, %s590
      %p599 = scmp.eq.s32.totalorder %s117, 0
      %p600 = por %p598, %p599
      %p601 = scmp.ne.s32.totalorder %s589, %s590
      %p602 = scmp.eq.s32.totalorder %s118, 1
      %p603 = por %p601, %p602
      %p605 = scmp.ne.s32.totalorder %s590, %s604
      %p606 = scmp.eq.s32.totalorder %s118, 0
      %p607 = por %p605, %p606
      %s609 = sadd.s32 %s608, 1
      %p612 = scmp.eq.s32.totalorder %s112, 1
      %p613 = scmp.ne.s32.totalorder %s608, %s610
      %p614 = scmp.eq.s32.totalorder %s112, 0
      %p615 = por %p613, %p614
      %p616 = scmp.ne.s32.totalorder %s608, %s610
      %p617 = scmp.eq.s32.totalorder %s117, 1
      %p618 = por %p616, %p617
      %p619 = scmp.ne.s32.totalorder %s610, %s611
      %p620 = scmp.eq.s32.totalorder %s117, 0
      %p621 = por %p619, %p620
      %p622 = scmp.ne.s32.totalorder %s610, %s611
      %p623 = scmp.eq.s32.totalorder %s118, 1
      %p624 = por %p622, %p623
      %p626 = scmp.ne.s32.totalorder %s611, %s625
      %p627 = scmp.eq.s32.totalorder %s118, 0
      %p628 = por %p626, %p627
      %s630 = sadd.s32 %s629, 1
      %p633 = scmp.eq.s32.totalorder %s112, 1
      %p634 = scmp.ne.s32.totalorder %s629, %s631
      %p635 = scmp.eq.s32.totalorder %s112, 0
      %p636 = por %p634, %p635
      %p637 = scmp.ne.s32.totalorder %s629, %s631
      %p638 = scmp.eq.s32.totalorder %s117, 1
      %p639 = por %p637, %p638
      %p640 = scmp.ne.s32.totalorder %s631, %s632
      %p641 = scmp.eq.s32.totalorder %s117, 0
      %p642 = por %p640, %p641
      %p643 = scmp.ne.s32.totalorder %s631, %s632
      %p644 = scmp.eq.s32.totalorder %s118, 1
      %p645 = por %p643, %p644
      %p647 = scmp.ne.s32.totalorder %s632, %s646
      %p648 = scmp.eq.s32.totalorder %s118, 0
      %p649 = por %p647, %p648
      %s651 = sadd.s32 %s650, 1
      %p654 = scmp.eq.s32.totalorder %s112, 1
      %p655 = scmp.ne.s32.totalorder %s650, %s652
      %p656 = scmp.eq.s32.totalorder %s112, 0
      %p657 = por %p655, %p656
      %p658 = scmp.ne.s32.totalorder %s650, %s652
      %p659 = scmp.eq.s32.totalorder %s117, 1
      %p660 = por %p658, %p659
      %p661 = scmp.ne.s32.totalorder %s652, %s653
      %p662 = scmp.eq.s32.totalorder %s117, 0
      %p663 = por %p661, %p662
      %p664 = scmp.ne.s32.totalorder %s652, %s653
      %p665 = scmp.eq.s32.totalorder %s118, 1
      %p666 = por %p664, %p665
      %p668 = scmp.ne.s32.totalorder %s653, %s667
      %p669 = scmp.eq.s32.totalorder %s118, 0
      %p670 = por %p668, %p669
      %s672 = sadd.s32 %s671, 1
      %p675 = scmp.eq.s32.totalorder %s112, 1
      %p676 = scmp.ne.s32.totalorder %s671, %s673
      %p677 = scmp.eq.s32.totalorder %s112, 0
      %p678 = por %p676, %p677
      %p679 = scmp.ne.s32.totalorder %s671, %s673
      %p680 = scmp.eq.s32.totalorder %s117, 1
      %p681 = por %p679, %p680
      %p682 = scmp.ne.s32.totalorder %s673, %s674
      %p683 = scmp.eq.s32.totalorder %s117, 0
      %p684 = por %p682, %p683
      %p685 = scmp.ne.s32.totalorder %s673, %s674
      %p686 = scmp.eq.s32.totalorder %s118, 1
      %p687 = por %p685, %p686
      %p689 = scmp.ne.s32.totalorder %s674, %s688
      %p690 = scmp.eq.s32.totalorder %s118, 0
      %p691 = por %p689, %p690
      %s693 = sadd.s32 %s692, 1
      %p696 = scmp.eq.s32.totalorder %s112, 1
      %p697 = scmp.ne.s32.totalorder %s692, %s694
      %p698 = scmp.eq.s32.totalorder %s112, 0
      %p699 = por %p697, %p698
      %p700 = scmp.ne.s32.totalorder %s692, %s694
      %p701 = scmp.eq.s32.totalorder %s117, 1
      %p702 = por %p700, %p701
      %p703 = scmp.ne.s32.totalorder %s694, %s695
      %p704 = scmp.eq.s32.totalorder %s117, 0
      %p705 = por %p703, %p704
      %p706 = scmp.ne.s32.totalorder %s694, %s695
      %p707 = scmp.eq.s32.totalorder %s118, 1
      %p708 = por %p706, %p707
      %p710 = scmp.ne.s32.totalorder %s695, %s709
      %p711 = scmp.eq.s32.totalorder %s118, 0
      %p712 = por %p710, %p711
      %s714 = sadd.s32 %s713, 1
      %p717 = scmp.eq.s32.totalorder %s112, 1
      %p718 = scmp.ne.s32.totalorder %s713, %s715
      %p719 = scmp.eq.s32.totalorder %s112, 0
      %p720 = por %p718, %p719
      %p721 = scmp.ne.s32.totalorder %s713, %s715
      %p722 = scmp.eq.s32.totalorder %s117, 1
      %p723 = por %p721, %p722
      %p724 = scmp.ne.s32.totalorder %s715, %s716
      %p725 = scmp.eq.s32.totalorder %s117, 0
      %p726 = por %p724, %p725
      %p727 = scmp.ne.s32.totalorder %s715, %s716
      %p728 = scmp.eq.s32.totalorder %s118, 1
      %p729 = por %p727, %p728
      %p731 = scmp.ne.s32.totalorder %s716, %s730
      %p732 = scmp.eq.s32.totalorder %s118, 0
      %p733 = por %p731, %p732
      %s735 = sadd.s32 %s734, 1
      %p738 = scmp.eq.s32.totalorder %s112, 1
      %p739 = scmp.ne.s32.totalorder %s734, %s736
      %p740 = scmp.eq.s32.totalorder %s112, 0
      %p741 = por %p739, %p740
      %p742 = scmp.ne.s32.totalorder %s734, %s736
      %p743 = scmp.eq.s32.totalorder %s117, 1
      %p744 = por %p742, %p743
      %p745 = scmp.ne.s32.totalorder %s736, %s737
      %p746 = scmp.eq.s32.totalorder %s117, 0
      %p747 = por %p745, %p746
      %p748 = scmp.ne.s32.totalorder %s736, %s737
      %p749 = scmp.eq.s32.totalorder %s118, 1
      %p750 = por %p748, %p749
      %p752 = scmp.ne.s32.totalorder %s737, %s751
      %p753 = scmp.eq.s32.totalorder %s118, 0
      %p754 = por %p752, %p753
      %s756 = sadd.s32 %s755, 1
      %p759 = scmp.eq.s32.totalorder %s112, 1
      %p760 = scmp.ne.s32.totalorder %s755, %s757
      %p761 = scmp.eq.s32.totalorder %s112, 0
      %p762 = por %p760, %p761
      %p763 = scmp.ne.s32.totalorder %s755, %s757
      %p764 = scmp.eq.s32.totalorder %s117, 1
      %p765 = por %p763, %p764
      %p766 = scmp.ne.s32.totalorder %s757, %s758
      %p767 = scmp.eq.s32.totalorder %s117, 0
      %p768 = por %p766, %p767
      %p769 = scmp.ne.s32.totalorder %s757, %s758
      %p770 = scmp.eq.s32.totalorder %s118, 1
      %p771 = por %p769, %p770
      %p773 = scmp.ne.s32.totalorder %s758, %s772
      %p774 = scmp.eq.s32.totalorder %s118, 0
      %p775 = por %p773, %p774
      %s777 = sadd.s32 %s776, 1
      %p780 = scmp.eq.s32.totalorder %s112, 1
      %p781 = scmp.ne.s32.totalorder %s776, %s778
      %p782 = scmp.eq.s32.totalorder %s112, 0
      %p783 = por %p781, %p782
      %p784 = scmp.ne.s32.totalorder %s776, %s778
      %p785 = scmp.eq.s32.totalorder %s117, 1
      %p786 = por %p784, %p785
      %p787 = scmp.ne.s32.totalorder %s778, %s779
      %p788 = scmp.eq.s32.totalorder %s117, 0
      %p789 = por %p787, %p788
      %p790 = scmp.ne.s32.totalorder %s778, %s779
      %p791 = scmp.eq.s32.totalorder %s118, 1
      %p792 = por %p790, %p791
      %p794 = scmp.ne.s32.totalorder %s779, %s793
      %p795 = scmp.eq.s32.totalorder %s118, 0
      %p796 = por %p794, %p795
      %s798 = sadd.s32 %s797, 1
      %p801 = scmp.eq.s32.totalorder %s112, 1
      %p802 = scmp.ne.s32.totalorder %s797, %s799
      %p803 = scmp.eq.s32.totalorder %s112, 0
      %p804 = por %p802, %p803
      %p805 = scmp.ne.s32.totalorder %s797, %s799
      %p806 = scmp.eq.s32.totalorder %s117, 1
      %p807 = por %p805, %p806
      %p808 = scmp.ne.s32.totalorder %s799, %s800
      %p809 = scmp.eq.s32.totalorder %s117, 0
      %p810 = por %p808, %p809
      %p811 = scmp.ne.s32.totalorder %s799, %s800
      %p812 = scmp.eq.s32.totalorder %s118, 1
      %p813 = por %p811, %p812
      %p815 = scmp.ne.s32.totalorder %s800, %s814
      %p816 = scmp.eq.s32.totalorder %s118, 0
      %p817 = por %p815, %p816
      %s819 = sadd.s32 %s818, 1
      %p822 = scmp.eq.s32.totalorder %s112, 1
      %p823 = scmp.ne.s32.totalorder %s818, %s820
      %p824 = scmp.eq.s32.totalorder %s112, 0
      %p825 = por %p823, %p824
      %p826 = scmp.ne.s32.totalorder %s818, %s820
      %p827 = scmp.eq.s32.totalorder %s117, 1
      %p828 = por %p826, %p827
      %p829 = scmp.ne.s32.totalorder %s820, %s821
      %p830 = scmp.eq.s32.totalorder %s117, 0
      %p831 = por %p829, %p830
      %p832 = scmp.ne.s32.totalorder %s820, %s821
      %p833 = scmp.eq.s32.totalorder %s118, 1
      %p834 = por %p832, %p833
      %p836 = scmp.ne.s32.totalorder %s821, %s835
      %p837 = scmp.eq.s32.totalorder %s118, 0
      %p838 = por %p836, %p837
      %s840 = sadd.s32 %s839, 1
      %p843 = scmp.eq.s32.totalorder %s112, 1
      %p844 = scmp.ne.s32.totalorder %s839, %s841
      %p845 = scmp.eq.s32.totalorder %s112, 0
      %p846 = por %p844, %p845
      %p847 = scmp.ne.s32.totalorder %s839, %s841
      %p848 = scmp.eq.s32.totalorder %s117, 1
      %p849 = por %p847, %p848
      %p850 = scmp.ne.s32.totalorder %s841, %s842
      %p851 = scmp.eq.s32.totalorder %s117, 0
      %p852 = por %p850, %p851
      %p853 = scmp.ne.s32.totalorder %s841, %s842
      %p854 = scmp.eq.s32.totalorder %s118, 1
      %p855 = por %p853, %p854
      %p857 = scmp.ne.s32.totalorder %s842, %s856
      %p858 = scmp.eq.s32.totalorder %s118, 0
      %p859 = por %p857, %p858
      %s861 = sadd.s32 %s860, 1
      %p864 = scmp.eq.s32.totalorder %s112, 1
      %p865 = scmp.ne.s32.totalorder %s860, %s862
      %p866 = scmp.eq.s32.totalorder %s112, 0
      %p867 = por %p865, %p866
      %p868 = scmp.ne.s32.totalorder %s860, %s862
      %p869 = scmp.eq.s32.totalorder %s117, 1
      %p870 = por %p868, %p869
      %p871 = scmp.ne.s32.totalorder %s862, %s863
      %p872 = scmp.eq.s32.totalorder %s117, 0
      %p873 = por %p871, %p872
      %p874 = scmp.ne.s32.totalorder %s862, %s863
      %p875 = scmp.eq.s32.totalorder %s118, 1
      %p876 = por %p874, %p875
      %p878 = scmp.ne.s32.totalorder %s863, %s877
      %p879 = scmp.eq.s32.totalorder %s118, 0
      %p880 = por %p878, %p879
      %s882 = sadd.s32 %s881, 1
      %p885 = scmp.eq.s32.totalorder %s112, 1
      %p886 = scmp.ne.s32.totalorder %s881, %s883
      %p887 = scmp.eq.s32.totalorder %s112, 0
      %p888 = por %p886, %p887
      %p889 = scmp.ne.s32.totalorder %s881, %s883
      %p890 = scmp.eq.s32.totalorder %s117, 1
      %p891 = por %p889, %p890
      %p892 = scmp.ne.s32.totalorder %s883, %s884
      %p893 = scmp.eq.s32.totalorder %s117, 0
      %p894 = por %p892, %p893
      %p895 = scmp.ne.s32.totalorder %s883, %s884
      %p896 = scmp.eq.s32.totalorder %s118, 1
      %p897 = por %p895, %p896
      %p899 = scmp.ne.s32.totalorder %s884, %s898
      %p900 = scmp.eq.s32.totalorder %s118, 0
      %p901 = por %p899, %p900
      %s903 = sadd.s32 %s902, 1
      %p906 = scmp.eq.s32.totalorder %s112, 1
      %p907 = scmp.ne.s32.totalorder %s902, %s904
      %p908 = scmp.eq.s32.totalorder %s112, 0
      %p909 = por %p907, %p908
      %p910 = scmp.ne.s32.totalorder %s902, %s904
      %p911 = scmp.eq.s32.totalorder %s117, 1
      %p912 = por %p910, %p911
      %p913 = scmp.ne.s32.totalorder %s904, %s905
      %p914 = scmp.eq.s32.totalorder %s117, 0
      %p915 = por %p913, %p914
      %p916 = scmp.ne.s32.totalorder %s904, %s905
      %p917 = scmp.eq.s32.totalorder %s118, 1
      %p918 = por %p916, %p917
      %p920 = scmp.ne.s32.totalorder %s905, %s919
      %p921 = scmp.eq.s32.totalorder %s118, 0
      %p922 = por %p920, %p921
      %s924 = sadd.s32 %s923, 1
      %p927 = scmp.eq.s32.totalorder %s112, 1
      %p928 = scmp.ne.s32.totalorder %s923, %s925
      %p929 = scmp.eq.s32.totalorder %s112, 0
      %p930 = por %p928, %p929
      %p931 = scmp.ne.s32.totalorder %s923, %s925
      %p932 = scmp.eq.s32.totalorder %s117, 1
      %p933 = por %p931, %p932
      %p934 = scmp.ne.s32.totalorder %s925, %s926
      %p935 = scmp.eq.s32.totalorder %s117, 0
      %p936 = por %p934, %p935
      %p937 = scmp.ne.s32.totalorder %s925, %s926
      %p938 = scmp.eq.s32.totalorder %s118, 1
      %p939 = por %p937, %p938
      %p941 = scmp.ne.s32.totalorder %s926, %s940
      %p942 = scmp.eq.s32.totalorder %s118, 0
      %p943 = por %p941, %p942
      %s945 = sadd.s32 %s944, 1
      %p948 = scmp.eq.s32.totalorder %s112, 1
      %p949 = scmp.ne.s32.totalorder %s944, %s946
      %p950 = scmp.eq.s32.totalorder %s112, 0
      %p951 = por %p949, %p950
      %p952 = scmp.ne.s32.totalorder %s944, %s946
      %p953 = scmp.eq.s32.totalorder %s117, 1
      %p954 = por %p952, %p953
      %p955 = scmp.ne.s32.totalorder %s946, %s947
      %p956 = scmp.eq.s32.totalorder %s117, 0
      %p957 = por %p955, %p956
      %p958 = scmp.ne.s32.totalorder %s946, %s947
      %p959 = scmp.eq.s32.totalorder %s118, 1
      %p960 = por %p958, %p959
      %p962 = scmp.ne.s32.totalorder %s947, %s961
      %p963 = scmp.eq.s32.totalorder %s118, 0
      %p964 = por %p962, %p963
      %s966 = sadd.s32 %s965, 1
      %p969 = scmp.eq.s32.totalorder %s112, 1
      %p970 = scmp.ne.s32.totalorder %s965, %s967
      %p971 = scmp.eq.s32.totalorder %s112, 0
      %p972 = por %p970, %p971
      %p973 = scmp.ne.s32.totalorder %s965, %s967
      %p974 = scmp.eq.s32.totalorder %s117, 1
      %p975 = por %p973, %p974
      %p976 = scmp.ne.s32.totalorder %s967, %s968
      %p977 = scmp.eq.s32.totalorder %s117, 0
      %p978 = por %p976, %p977
      %p979 = scmp.ne.s32.totalorder %s967, %s968
      %p980 = scmp.eq.s32.totalorder %s118, 1
      %p981 = por %p979, %p980
      %p983 = scmp.ne.s32.totalorder %s968, %s982
      %p984 = scmp.eq.s32.totalorder %s118, 0
      %p985 = por %p983, %p984
      %s987 = sadd.s32 %s986, 1
      %p990 = scmp.eq.s32.totalorder %s112, 1
      %p991 = scmp.ne.s32.totalorder %s986, %s988
      %p992 = scmp.eq.s32.totalorder %s112, 0
      %p993 = por %p991, %p992
      %p994 = scmp.ne.s32.totalorder %s986, %s988
      %p995 = scmp.eq.s32.totalorder %s117, 1
      %p996 = por %p994, %p995
      %p997 = scmp.ne.s32.totalorder %s988, %s989
      %p998 = scmp.eq.s32.totalorder %s117, 0
      %p999 = por %p997, %p998
      %p1000 = scmp.ne.s32.totalorder %s988, %s989
      %p1001 = scmp.eq.s32.totalorder %s118, 1
      %p1002 = por %p1000, %p1001
      %p1004 = scmp.ne.s32.totalorder %s989, %s1003
      %p1005 = scmp.eq.s32.totalorder %s118, 0
      %p1006 = por %p1004, %p1005
      %s1008 = sadd.s32 %s1007, 1
      %p1011 = scmp.eq.s32.totalorder %s112, 1
      %p1012 = scmp.ne.s32.totalorder %s1007, %s1009
      %p1013 = scmp.eq.s32.totalorder %s112, 0
      %p1014 = por %p1012, %p1013
      %p1015 = scmp.ne.s32.totalorder %s1007, %s1009
      %p1016 = scmp.eq.s32.totalorder %s117, 1
      %p1017 = por %p1015, %p1016
      %p1018 = scmp.ne.s32.totalorder %s1009, %s1010
      %p1019 = scmp.eq.s32.totalorder %s117, 0
      %p1020 = por %p1018, %p1019
      %p1021 = scmp.ne.s32.totalorder %s1009, %s1010
      %p1022 = scmp.eq.s32.totalorder %s118, 1
      %p1023 = por %p1021, %p1022
      %p1025 = scmp.ne.s32.totalorder %s1010, %s1024
      %p1026 = scmp.eq.s32.totalorder %s118, 0
      %p1027 = por %p1025, %p1026
      %s1029 = sadd.s32 %s1028, 1
      %p1032 = scmp.eq.s32.totalorder %s112, 1
      %p1033 = scmp.ne.s32.totalorder %s1028, %s1030
      %p1034 = scmp.eq.s32.totalorder %s112, 0
      %p1035 = por %p1033, %p1034
      %p1036 = scmp.ne.s32.totalorder %s1028, %s1030
      %p1037 = scmp.eq.s32.totalorder %s117, 1
      %p1038 = por %p1036, %p1037
      %p1039 = scmp.ne.s32.totalorder %s1030, %s1031
      %p1040 = scmp.eq.s32.totalorder %s117, 0
      %p1041 = por %p1039, %p1040
      %p1042 = scmp.ne.s32.totalorder %s1030, %s1031
      %p1043 = scmp.eq.s32.totalorder %s118, 1
      %p1044 = por %p1042, %p1043
      %p1046 = scmp.ne.s32.totalorder %s1031, %s1045
      %p1047 = scmp.eq.s32.totalorder %s118, 0
      %p1048 = por %p1046, %p1047
      %s1050 = sadd.s32 %s1049, 1
      %p1053 = scmp.eq.s32.totalorder %s112, 1
      %p1054 = scmp.ne.s32.totalorder %s1049, %s1051
      %p1055 = scmp.eq.s32.totalorder %s112, 0
      %p1056 = por %p1054, %p1055
      %p1057 = scmp.ne.s32.totalorder %s1049, %s1051
      %p1058 = scmp.eq.s32.totalorder %s117, 1
      %p1059 = por %p1057, %p1058
      %p1060 = scmp.ne.s32.totalorder %s1051, %s1052
      %p1061 = scmp.eq.s32.totalorder %s117, 0
      %p1062 = por %p1060, %p1061
      %p1063 = scmp.ne.s32.totalorder %s1051, %s1052
      %p1064 = scmp.eq.s32.totalorder %s118, 1
      %p1065 = por %p1063, %p1064
      %p1067 = scmp.ne.s32.totalorder %s1052, %s1066
      %p1068 = scmp.eq.s32.totalorder %s118, 0
      %p1069 = por %p1067, %p1068
      %s1071 = sadd.s32 %s1070, 1
      %p1074 = scmp.eq.s32.totalorder %s112, 1
      %p1075 = scmp.ne.s32.totalorder %s1070, %s1072
      %p1076 = scmp.eq.s32.totalorder %s112, 0
      %p1077 = por %p1075, %p1076
      %p1078 = scmp.ne.s32.totalorder %s1070, %s1072
      %p1079 = scmp.eq.s32.totalorder %s117, 1
      %p1080 = por %p1078, %p1079
      %p1081 = scmp.ne.s32.totalorder %s1072, %s1073
      %p1082 = scmp.eq.s32.totalorder %s117, 0
      %p1083 = por %p1081, %p1082
      %p1084 = scmp.ne.s32.totalorder %s1072, %s1073
      %p1085 = scmp.eq.s32.totalorder %s118, 1
      %p1086 = por %p1084, %p1085
      %p1088 = scmp.ne.s32.totalorder %s1073, %s1087
      %p1089 = scmp.eq.s32.totalorder %s118, 0
      %p1090 = por %p1088, %p1089
      %s1092 = sadd.s32 %s1091, 1
      %p1095 = scmp.eq.s32.totalorder %s112, 1
      %p1096 = scmp.ne.s32.totalorder %s1091, %s1093
      %p1097 = scmp.eq.s32.totalorder %s112, 0
      %p1098 = por %p1096, %p1097
      %p1099 = scmp.ne.s32.totalorder %s1091, %s1093
      %p1100 = scmp.eq.s32.totalorder %s117, 1
      %p1101 = por %p1099, %p1100
      %p1102 = scmp.ne.s32.totalorder %s1093, %s1094
      %p1103 = scmp.eq.s32.totalorder %s117, 0
      %p1104 = por %p1102, %p1103
      %p1105 = scmp.ne.s32.totalorder %s1093, %s1094
      %p1106 = scmp.eq.s32.totalorder %s118, 1
      %p1107 = por %p1105, %p1106
      %p1109 = scmp.ne.s32.totalorder %s1094, %s1108
      %p1110 = scmp.eq.s32.totalorder %s118, 0
      %p1111 = por %p1109, %p1110
      %s1113 = sadd.s32 %s1112, 1
      %p1116 = scmp.eq.s32.totalorder %s112, 1
      %p1117 = scmp.ne.s32.totalorder %s1112, %s1114
      %p1118 = scmp.eq.s32.totalorder %s112, 0
      %p1119 = por %p1117, %p1118
      %p1120 = scmp.ne.s32.totalorder %s1112, %s1114
      %p1121 = scmp.eq.s32.totalorder %s117, 1
      %p1122 = por %p1120, %p1121
      %p1123 = scmp.ne.s32.totalorder %s1114, %s1115
      %p1124 = scmp.eq.s32.totalorder %s117, 0
      %p1125 = por %p1123, %p1124
      %p1126 = scmp.ne.s32.totalorder %s1114, %s1115
      %p1127 = scmp.eq.s32.totalorder %s118, 1
      %p1128 = por %p1126, %p1127
      %p1130 = scmp.ne.s32.totalorder %s1115, %s1129
      %p1131 = scmp.eq.s32.totalorder %s118, 0
      %p1132 = por %p1130, %p1131
      %s1134 = sadd.s32 %s1133, 1
      %p1137 = scmp.eq.s32.totalorder %s112, 1
      %p1138 = scmp.ne.s32.totalorder %s1133, %s1135
      %p1139 = scmp.eq.s32.totalorder %s112, 0
      %p1140 = por %p1138, %p1139
      %p1141 = scmp.ne.s32.totalorder %s1133, %s1135
      %p1142 = scmp.eq.s32.totalorder %s117, 1
      %p1143 = por %p1141, %p1142
      %p1144 = scmp.ne.s32.totalorder %s1135, %s1136
      %p1145 = scmp.eq.s32.totalorder %s117, 0
      %p1146 = por %p1144, %p1145
      %p1147 = scmp.ne.s32.totalorder %s1135, %s1136
      %p1148 = scmp.eq.s32.totalorder %s118, 1
      %p1149 = por %p1147, %p1148
      %p1151 = scmp.ne.s32.totalorder %s1136, %s1150
      %p1152 = scmp.eq.s32.totalorder %s118, 0
      %p1153 = por %p1151, %p1152
      %s1154 = ssub.s32 %s112, %s119
      %p1155 = scmp.eq.s32.totalorder %s1154, 0
      %s1157 = sadd.s32 %s1156, 1
      %s1158 = scalar_select %p1155, %s1156, %s1157
      %p1161 = pneg %p1155
      %p1162 = scmp.eq.s32.totalorder %s112, 1
      %p1163 = por %p1161, %p1162
      %p1164 = scmp.ne.s32.totalorder %s1156, %s1159
      %p1165 = scmp.eq.s32.totalorder %s112, 0
      %p1166 = por %p1164, %p1165
      %p1167 = scmp.ne.s32.totalorder %s1156, %s1159
      %p1168 = scmp.eq.s32.totalorder %s117, 1
      %p1169 = por %p1167, %p1168
      %p1170 = scmp.ne.s32.totalorder %s1159, %s1160
      %p1171 = scmp.eq.s32.totalorder %s117, 0
      %p1172 = por %p1170, %p1171
      %p1173 = scmp.ne.s32.totalorder %s1159, %s1160
      %p1174 = scmp.eq.s32.totalorder %s118, 1
      %p1175 = por %p1173, %p1174
      %p1177 = scmp.ne.s32.totalorder %s1160, %s1176
      %p1178 = scmp.eq.s32.totalorder %s118, 0
      %p1179 = por %p1177, %p1178
      %p1180 = scmp.le.s32.totalorder 1, %s112
      %p1181 = scmp.lt.s32.totalorder %s112, 3
      %p1182 = pnand %p1180, %p1181
      %p1183 = pneg %p1182
      // Predicated region
      $region9: #{_lambda_.1} parent=5 // pred_check
        _
      $region10: #{_lambda_.1} parent=5 // pred_check_branch
        %1185 = sbr.rel (%p1182) target = $region12
      $region11: #{_lambda_.1} parent=5 // pred_region
        %s1186 = ssub.s32 %s112, 1
        // Predicated region
        $region13: #{_lambda_.1} parent=11 // pred_check
          %p1187 = pneg %p159
        $region14: #{_lambda_.1} parent=11 // pred_check_branch
          %1189 = sbr.rel (%p1187) target = $region16
        $region15: #{_lambda_.1} parent=11 // pred_region
          %s1191 = ssub.s32 256, 256
          %1192 = vsyncadd [#allocation4], %s1191
          %s1193 = sshll.u32 [#allocation3], 4
          %s1194 = int_to_ptr.vmem [resolvable:$true] %s1193
          %1199 = dma.hbm_to_vmem [thread:$0]  %s3, 256, %s1194, [#allocation4], 64, 64, 4
        $region16: #{_lambda_.1} parent=11 // pred_fallthru
          _
        // Predicated region
        $region17: #{_lambda_.1} parent=11 // pred_check
          %p1200 = pneg %p180
        $region18: #{_lambda_.1} parent=11 // pred_check_branch
          %1202 = sbr.rel (%p1200) target = $region20
        $region19: #{_lambda_.1} parent=11 // pred_region
          %s1204 = ssub.s32 16, 16
          %1205 = vsyncadd [#allocation6], %s1204
          %s1207 = sshll.u32 [#allocation5], 4
          %s1208 = int_to_ptr.vmem [resolvable:$true] %s1207
          %1210 = dma.hbm_to_vmem [thread:$0]  %s5, 16, %s1208, [#allocation6]
        $region20: #{_lambda_.1} parent=11 // pred_fallthru
          _
        // Predicated region
        $region21: #{_lambda_.1} parent=11 // pred_check
          %p1211 = pneg %p201
        $region22: #{_lambda_.1} parent=11 // pred_check_branch
          %1213 = sbr.rel (%p1211) target = $region24
        $region23: #{_lambda_.1} parent=11 // pred_region
          %s1215 = ssub.s32 256, 256
          %1216 = vsyncadd [#allocation6], %s1215
          %s1217 = sshll.u32 [#allocation7], 4
          %s1218 = int_to_ptr.vmem [resolvable:$true] %s1217
          %1223 = dma.hbm_to_vmem [thread:$0]  %s7, 256, %s1218, [#allocation6], 128, 128, 8
        $region24: #{_lambda_.1} parent=11 // pred_fallthru
          _
        // Predicated region
        $region25: #{_lambda_.1} parent=11 // pred_check
          %p1224 = pneg %p222
        $region26: #{_lambda_.1} parent=11 // pred_check_branch
          %1226 = sbr.rel (%p1224) target = $region28
        $region27: #{_lambda_.1} parent=11 // pred_region
          _
        $region28: #{_lambda_.1} parent=11 // pred_fallthru
          _
        // Predicated region
        $region29: #{_lambda_.1} parent=11 // pred_check
          %p1227 = pneg %p243
        $region30: #{_lambda_.1} parent=11 // pred_check_branch
          %1229 = sbr.rel (%p1227) target = $region32
        $region31: #{_lambda_.1} parent=11 // pred_region
          _
        $region32: #{_lambda_.1} parent=11 // pred_fallthru
          _
        // Predicated region
        $region33: #{_lambda_.1} parent=11 // pred_check
          %p1230 = pneg %p264
        $region34: #{_lambda_.1} parent=11 // pred_check_branch
          %1232 = sbr.rel (%p1230) target = $region36
        $region35: #{_lambda_.1} parent=11 // pred_region
          _
        $region36: #{_lambda_.1} parent=11 // pred_fallthru
          _
        // Predicated region
        $region37: #{_lambda_.1} parent=11 // pred_check
          %p1233 = pneg %p285
        $region38: #{_lambda_.1} parent=11 // pred_check_branch
          %1235 = sbr.rel (%p1233) target = $region40
        $region39: #{_lambda_.1} parent=11 // pred_region
          _
        $region40: #{_lambda_.1} parent=11 // pred_fallthru
          _
        // Predicated region
        $region41: #{_lambda_.1} parent=11 // pred_check
          %p1236 = pneg %p306
        $region42: #{_lambda_.1} parent=11 // pred_check_branch
          %1238 = sbr.rel (%p1236) target = $region44
        $region43: #{_lambda_.1} parent=11 // pred_region
          %s1240 = ssub.s32 16, 16
          %1241 = vsyncadd [#allocation9], %s1240
          %s1243 = sshll.u32 [#allocation8], 4
          %s1244 = int_to_ptr.vmem [resolvable:$true] %s1243
          %1246 = dma.hbm_to_vmem [thread:$0]  %s17, 16, %s1244, [#allocation9]
        $region44: #{_lambda_.1} parent=11 // pred_fallthru
          _
        // Predicated region
        $region45: #{_lambda_.1} parent=11 // pred_check
          %p1247 = pneg %p327
        $region46: #{_lambda_.1} parent=11 // pred_check_branch
          %1249 = sbr.rel (%p1247) target = $region48
        $region47: #{_lambda_.1} parent=11 // pred_region
          _
        $region48: #{_lambda_.1} parent=11 // pred_fallthru
          _
        // Predicated region
        $region49: #{_lambda_.1} parent=11 // pred_check
          %p1250 = pneg %p348
        $region50: #{_lambda_.1} parent=11 // pred_check_branch
          %1252 = sbr.rel (%p1250) target = $region52
        $region51: #{_lambda_.1} parent=11 // pred_region
          %s1254 = ssub.s32 16, 16
          %1255 = vsyncadd [#allocation9], %s1254
          %s1257 = sshll.u32 [#allocation10], 4
          %s1258 = int_to_ptr.vmem [resolvable:$true] %s1257
          %1260 = dma.hbm_to_vmem [thread:$0]  %s21, 16, %s1258, [#allocation9]
        $region52: #{_lambda_.1} parent=11 // pred_fallthru
          _
        // Predicated region
        $region53: #{_lambda_.1} parent=11 // pred_check
          %p1261 = pneg %p369
        $region54: #{_lambda_.1} parent=11 // pred_check_branch
          %1263 = sbr.rel (%p1261) target = $region56
        $region55: #{_lambda_.1} parent=11 // pred_region
          %s1265 = ssub.s32 128, 128
          %1266 = vsyncadd [#allocation12], %s1265
          %s1268 = sshll.u32 [#allocation11], 4
          %s1269 = int_to_ptr.vmem [resolvable:$true] %s1268
          %1271 = dma.hbm_to_vmem [thread:$0]  %s23, 128, %s1269, [#allocation12]
        $region56: #{_lambda_.1} parent=11 // pred_fallthru
          _
        // Predicated region
        $region57: #{_lambda_.1} parent=11 // pred_check
          %p1272 = pneg %p390
        $region58: #{_lambda_.1} parent=11 // pred_check_branch
          %1274 = sbr.rel (%p1272) target = $region60
        $region59: #{_lambda_.1} parent=11 // pred_region
          _
        $region60: #{_lambda_.1} parent=11 // pred_fallthru
          _
        // Predicated region
        $region61: #{_lambda_.1} parent=11 // pred_check
          %p1275 = pneg %p411
        $region62: #{_lambda_.1} parent=11 // pred_check_branch
          %1277 = sbr.rel (%p1275) target = $region64
        $region63: #{_lambda_.1} parent=11 // pred_region
          _
        $region64: #{_lambda_.1} parent=11 // pred_fallthru
          _
        // Predicated region
        $region65: #{_lambda_.1} parent=11 // pred_check
          %p1278 = pneg %p432
        $region66: #{_lambda_.1} parent=11 // pred_check_branch
          %1280 = sbr.rel (%p1278) target = $region68
        $region67: #{_lambda_.1} parent=11 // pred_region
          _
        $region68: #{_lambda_.1} parent=11 // pred_fallthru
          _
        // Predicated region
        $region69: #{_lambda_.1} parent=11 // pred_check
          %p1281 = pneg %p453
        $region70: #{_lambda_.1} parent=11 // pred_check_branch
          %1283 = sbr.rel (%p1281) target = $region72
        $region71: #{_lambda_.1} parent=11 // pred_region
          _
        $region72: #{_lambda_.1} parent=11 // pred_fallthru
          _
        // Predicated region
        $region73: #{_lambda_.1} parent=11 // pred_check
          %p1284 = pneg %p474
        $region74: #{_lambda_.1} parent=11 // pred_check_branch
          %1286 = sbr.rel (%p1284) target = $region76
        $region75: #{_lambda_.1} parent=11 // pred_region
          _
        $region76: #{_lambda_.1} parent=11 // pred_fallthru
          _
        // Predicated region
        $region77: #{_lambda_.1} parent=11 // pred_check
          %p1287 = pneg %p495
        $region78: #{_lambda_.1} parent=11 // pred_check_branch
          %1289 = sbr.rel (%p1287) target = $region80
        $region79: #{_lambda_.1} parent=11 // pred_region
          _
        $region80: #{_lambda_.1} parent=11 // pred_fallthru
          _
        // Predicated region
        $region81: #{_lambda_.1} parent=11 // pred_check
          %p1290 = pneg %p516
        $region82: #{_lambda_.1} parent=11 // pred_check_branch
          %1292 = sbr.rel (%p1290) target = $region84
        $region83: #{_lambda_.1} parent=11 // pred_region
          %s1294 = ssub.s32 16, 16
          %1295 = vsyncadd [#allocation12], %s1294
          %s1297 = sshll.u32 [#allocation13], 4
          %s1298 = int_to_ptr.vmem [resolvable:$true] %s1297
          %1300 = dma.hbm_to_vmem [thread:$0]  %s37, 16, %s1298, [#allocation12]
        $region84: #{_lambda_.1} parent=11 // pred_fallthru
          _
        // Predicated region
        $region85: #{_lambda_.1} parent=11 // pred_check
          %p1301 = pneg %p537
        $region86: #{_lambda_.1} parent=11 // pred_check_branch
          %1303 = sbr.rel (%p1301) target = $region88
        $region87: #{_lambda_.1} parent=11 // pred_region
          %s1305 = ssub.s32 16, 16
          %1306 = vsyncadd [#allocation15], %s1305
          %s1308 = sshll.u32 [#allocation14], 4
          %s1309 = int_to_ptr.vmem [resolvable:$true] %s1308
          %1311 = dma.hbm_to_vmem [thread:$0]  %s39, 16, %s1309, [#allocation15]
        $region88: #{_lambda_.1} parent=11 // pred_fallthru
          _
        // Predicated region
        $region89: #{_lambda_.1} parent=11 // pred_check
          %p1312 = pneg %p558
        $region90: #{_lambda_.1} parent=11 // pred_check_branch
          %1314 = sbr.rel (%p1312) target = $region92
        $region91: #{_lambda_.1} parent=11 // pred_region
          _
        $region92: #{_lambda_.1} parent=11 // pred_fallthru
          _
        // Predicated region
        $region93: #{_lambda_.1} parent=11 // pred_check
          %p1315 = pneg %p579
        $region94: #{_lambda_.1} parent=11 // pred_check_branch
          %1317 = sbr.rel (%p1315) target = $region96
        $region95: #{_lambda_.1} parent=11 // pred_region
          %s1319 = ssub.s32 16, 16
          %1320 = vsyncadd [#allocation15], %s1319
          %s1322 = sshll.u32 [#allocation16], 4
          %s1323 = int_to_ptr.vmem [resolvable:$true] %s1322
          %1325 = dma.hbm_to_vmem [thread:$0]  %s43, 16, %s1323, [#allocation15]
        $region96: #{_lambda_.1} parent=11 // pred_fallthru
          _
        // Predicated region
        $region97: #{_lambda_.1} parent=11 // pred_check
          %p1326 = pneg %p600
        $region98: #{_lambda_.1} parent=11 // pred_check_branch
          %1328 = sbr.rel (%p1326) target = $region100
        $region99: #{_lambda_.1} parent=11 // pred_region
          _
        $region100: #{_lambda_.1} parent=11 // pred_fallthru
          _
        // Predicated region
        $region101: #{_lambda_.1} parent=11 // pred_check
          %p1329 = pneg %p621
        $region102: #{_lambda_.1} parent=11 // pred_check_branch
          %1331 = sbr.rel (%p1329) target = $region104
        $region103: #{_lambda_.1} parent=11 // pred_region
          _
        $region104: #{_lambda_.1} parent=11 // pred_fallthru
          _
        // Predicated region
        $region105: #{_lambda_.1} parent=11 // pred_check
          %p1332 = pneg %p642
        $region106: #{_lambda_.1} parent=11 // pred_check_branch
          %1334 = sbr.rel (%p1332) target = $region108
        $region107: #{_lambda_.1} parent=11 // pred_region
          _
        $region108: #{_lambda_.1} parent=11 // pred_fallthru
          _
        // Predicated region
        $region109: #{_lambda_.1} parent=11 // pred_check
          %p1335 = pneg %p663
        $region110: #{_lambda_.1} parent=11 // pred_check_branch
          %1337 = sbr.rel (%p1335) target = $region112
        $region111: #{_lambda_.1} parent=11 // pred_region
          _
        $region112: #{_lambda_.1} parent=11 // pred_fallthru
          _
        // Predicated region
        $region113: #{_lambda_.1} parent=11 // pred_check
          %p1338 = pneg %p684
        $region114: #{_lambda_.1} parent=11 // pred_check_branch
          %1340 = sbr.rel (%p1338) target = $region116
        $region115: #{_lambda_.1} parent=11 // pred_region
          _
        $region116: #{_lambda_.1} parent=11 // pred_fallthru
          _
        // Predicated region
        $region117: #{_lambda_.1} parent=11 // pred_check
          %p1341 = pneg %p705
        $region118: #{_lambda_.1} parent=11 // pred_check_branch
          %1343 = sbr.rel (%p1341) target = $region120
        $region119: #{_lambda_.1} parent=11 // pred_region
          _
        $region120: #{_lambda_.1} parent=11 // pred_fallthru
          _
        // Predicated region
        $region121: #{_lambda_.1} parent=11 // pred_check
          %p1344 = pneg %p726
        $region122: #{_lambda_.1} parent=11 // pred_check_branch
          %1346 = sbr.rel (%p1344) target = $region124
        $region123: #{_lambda_.1} parent=11 // pred_region
          _
        $region124: #{_lambda_.1} parent=11 // pred_fallthru
          _
        // Predicated region
        $region125: #{_lambda_.1} parent=11 // pred_check
          %p1347 = pneg %p747
        $region126: #{_lambda_.1} parent=11 // pred_check_branch
          %1349 = sbr.rel (%p1347) target = $region128
        $region127: #{_lambda_.1} parent=11 // pred_region
          _
        $region128: #{_lambda_.1} parent=11 // pred_fallthru
          _
        // Predicated region
        $region129: #{_lambda_.1} parent=11 // pred_check
          %p1350 = pneg %p768
        $region130: #{_lambda_.1} parent=11 // pred_check_branch
          %1352 = sbr.rel (%p1350) target = $region132
        $region131: #{_lambda_.1} parent=11 // pred_region
          _
        $region132: #{_lambda_.1} parent=11 // pred_fallthru
          _
        // Predicated region
        $region133: #{_lambda_.1} parent=11 // pred_check
          %p1353 = pneg %p789
        $region134: #{_lambda_.1} parent=11 // pred_check_branch
          %1355 = sbr.rel (%p1353) target = $region136
        $region135: #{_lambda_.1} parent=11 // pred_region
          _
        $region136: #{_lambda_.1} parent=11 // pred_fallthru
          _
        // Predicated region
        $region137: #{_lambda_.1} parent=11 // pred_check
          %p1356 = pneg %p810
        $region138: #{_lambda_.1} parent=11 // pred_check_branch
          %1358 = sbr.rel (%p1356) target = $region140
        $region139: #{_lambda_.1} parent=11 // pred_region
          _
        $region140: #{_lambda_.1} parent=11 // pred_fallthru
          _
        // Predicated region
        $region141: #{_lambda_.1} parent=11 // pred_check
          %p1359 = pneg %p831
        $region142: #{_lambda_.1} parent=11 // pred_check_branch
          %1361 = sbr.rel (%p1359) target = $region144
        $region143: #{_lambda_.1} parent=11 // pred_region
          _
        $region144: #{_lambda_.1} parent=11 // pred_fallthru
          _
        // Predicated region
        $region145: #{_lambda_.1} parent=11 // pred_check
          %p1362 = pneg %p852
        $region146: #{_lambda_.1} parent=11 // pred_check_branch
          %1364 = sbr.rel (%p1362) target = $region148
        $region147: #{_lambda_.1} parent=11 // pred_region
          _
        $region148: #{_lambda_.1} parent=11 // pred_fallthru
          _
        // Predicated region
        $region149: #{_lambda_.1} parent=11 // pred_check
          %p1365 = pneg %p873
        $region150: #{_lambda_.1} parent=11 // pred_check_branch
          %1367 = sbr.rel (%p1365) target = $region152
        $region151: #{_lambda_.1} parent=11 // pred_region
          _
        $region152: #{_lambda_.1} parent=11 // pred_fallthru
          _
        // Predicated region
        $region153: #{_lambda_.1} parent=11 // pred_check
          %p1368 = pneg %p894
        $region154: #{_lambda_.1} parent=11 // pred_check_branch
          %1370 = sbr.rel (%p1368) target = $region156
        $region155: #{_lambda_.1} parent=11 // pred_region
          _
        $region156: #{_lambda_.1} parent=11 // pred_fallthru
          _
        // Predicated region
        $region157: #{_lambda_.1} parent=11 // pred_check
          %p1371 = pneg %p915
        $region158: #{_lambda_.1} parent=11 // pred_check_branch
          %1373 = sbr.rel (%p1371) target = $region160
        $region159: #{_lambda_.1} parent=11 // pred_region
          _
        $region160: #{_lambda_.1} parent=11 // pred_fallthru
          _
        // Predicated region
        $region161: #{_lambda_.1} parent=11 // pred_check
          %p1374 = pneg %p936
        $region162: #{_lambda_.1} parent=11 // pred_check_branch
          %1376 = sbr.rel (%p1374) target = $region164
        $region163: #{_lambda_.1} parent=11 // pred_region
          _
        $region164: #{_lambda_.1} parent=11 // pred_fallthru
          _
        // Predicated region
        $region165: #{_lambda_.1} parent=11 // pred_check
          %p1377 = pneg %p957
        $region166: #{_lambda_.1} parent=11 // pred_check_branch
          %1379 = sbr.rel (%p1377) target = $region168
        $region167: #{_lambda_.1} parent=11 // pred_region
          _
        $region168: #{_lambda_.1} parent=11 // pred_fallthru
          _
        // Predicated region
        $region169: #{_lambda_.1} parent=11 // pred_check
          %p1380 = pneg %p978
        $region170: #{_lambda_.1} parent=11 // pred_check_branch
          %1382 = sbr.rel (%p1380) target = $region172
        $region171: #{_lambda_.1} parent=11 // pred_region
          _
        $region172: #{_lambda_.1} parent=11 // pred_fallthru
          _
        // Predicated region
        $region173: #{_lambda_.1} parent=11 // pred_check
          %p1383 = pneg %p999
        $region174: #{_lambda_.1} parent=11 // pred_check_branch
          %1385 = sbr.rel (%p1383) target = $region176
        $region175: #{_lambda_.1} parent=11 // pred_region
          _
        $region176: #{_lambda_.1} parent=11 // pred_fallthru
          _
        // Predicated region
        $region177: #{_lambda_.1} parent=11 // pred_check
          %p1386 = pneg %p1020
        $region178: #{_lambda_.1} parent=11 // pred_check_branch
          %1388 = sbr.rel (%p1386) target = $region180
        $region179: #{_lambda_.1} parent=11 // pred_region
          _
        $region180: #{_lambda_.1} parent=11 // pred_fallthru
          _
        // Predicated region
        $region181: #{_lambda_.1} parent=11 // pred_check
          %p1389 = pneg %p1041
        $region182: #{_lambda_.1} parent=11 // pred_check_branch
          %1391 = sbr.rel (%p1389) target = $region184
        $region183: #{_lambda_.1} parent=11 // pred_region
          _
        $region184: #{_lambda_.1} parent=11 // pred_fallthru
          _
        // Predicated region
        $region185: #{_lambda_.1} parent=11 // pred_check
          %p1392 = pneg %p1062
        $region186: #{_lambda_.1} parent=11 // pred_check_branch
          %1394 = sbr.rel (%p1392) target = $region188
        $region187: #{_lambda_.1} parent=11 // pred_region
          _
        $region188: #{_lambda_.1} parent=11 // pred_fallthru
          _
        // Predicated region
        $region189: #{_lambda_.1} parent=11 // pred_check
          %p1395 = pneg %p1083
        $region190: #{_lambda_.1} parent=11 // pred_check_branch
          %1397 = sbr.rel (%p1395) target = $region192
        $region191: #{_lambda_.1} parent=11 // pred_region
          _
        $region192: #{_lambda_.1} parent=11 // pred_fallthru
          _
        // Predicated region
        $region193: #{_lambda_.1} parent=11 // pred_check
          %p1398 = pneg %p1104
        $region194: #{_lambda_.1} parent=11 // pred_check_branch
          %1400 = sbr.rel (%p1398) target = $region196
        $region195: #{_lambda_.1} parent=11 // pred_region
          _
        $region196: #{_lambda_.1} parent=11 // pred_fallthru
          _
        // Predicated region
        $region197: #{_lambda_.1} parent=11 // pred_check
          %p1401 = pneg %p1125
        $region198: #{_lambda_.1} parent=11 // pred_check_branch
          %1403 = sbr.rel (%p1401) target = $region200
        $region199: #{_lambda_.1} parent=11 // pred_region
          _
        $region200: #{_lambda_.1} parent=11 // pred_fallthru
          _
        // Predicated region
        $region201: #{_lambda_.1} parent=11 // pred_check
          %p1404 = pneg %p1146
        $region202: #{_lambda_.1} parent=11 // pred_check_branch
          %1406 = sbr.rel (%p1404) target = $region204
        $region203: #{_lambda_.1} parent=11 // pred_region
          _
        $region204: #{_lambda_.1} parent=11 // pred_fallthru
          _
      $region12: #{_lambda_.1} parent=5 // pred_fallthru
        _
      %p1407 = scmp.lt.s32.totalorder %s112, 2
      // Predicated region
      $region205: #{_lambda_.1} parent=5 // pred_check
        %p1408 = pneg %p1407
      $region206: #{_lambda_.1} parent=5 // pred_check_branch
        %1410 = sbr.rel (%p1408) target = $region208
      $region207: #{_lambda_.1} parent=5 // pred_region
        // Predicated region
        $region209: #{_lambda_.1} parent=207 // pred_check
          %p1411 = pneg %p132
        $region210: #{_lambda_.1} parent=207 // pred_check_branch
          %1413 = sbr.rel (%p1411) target = $region212
        $region211: #{_lambda_.1} parent=207 // pred_region
          %p1414 = scmp.lt.s32.totalorder %s112, 1
          %s1415 = scalar_select %p1414, %s112, 1
          %s1416 = smul.addr %s1415, 4
          %s1417 = smul.addr %s1416, 4
          %s1418 = scalar_lea.vmem %s1, %s1417
        $region212: #{_lambda_.1} parent=207 // pred_fallthru
          _
      $region208: #{_lambda_.1} parent=5 // pred_fallthru
        _
      %p1419 = scmp.le.s32.totalorder 1, %s112
      %p1420 = scmp.lt.s32.totalorder %s112, 3
      %p1421 = pnand %p1419, %p1420
      %p1422 = pneg %p1421
      // Predicated region
      $region213: #{_lambda_.1} parent=5 // pred_check
        _
      $region214: #{_lambda_.1} parent=5 // pred_check_branch
        %1424 = sbr.rel (%p1421) target = $region216
      $region215: #{_lambda_.1} parent=5 // pred_region
        %s1425 = ssub.s32 %s112, 1
        // Predicated region
        $region217: #{_lambda_.1} parent=215 // pred_check
          %p1426 = pneg %p159
        $region218: #{_lambda_.1} parent=215 // pred_check_branch
          %1428 = sbr.rel (%p1426) target = $region220
        $region219: #{_lambda_.1} parent=215 // pred_region
          %1429 = dma.done [#allocation4], 256
        $region220: #{_lambda_.1} parent=215 // pred_fallthru
          _
        // Predicated region
        $region221: #{_lambda_.1} parent=215 // pred_check
          %p1430 = pneg %p180
        $region222: #{_lambda_.1} parent=215 // pred_check_branch
          %1432 = sbr.rel (%p1430) target = $region224
        $region223: #{_lambda_.1} parent=215 // pred_region
          %1433 = dma.done [#allocation6], 16
        $region224: #{_lambda_.1} parent=215 // pred_fallthru
          _
        // Predicated region
        $region225: #{_lambda_.1} parent=215 // pred_check
          %p1434 = pneg %p201
        $region226: #{_lambda_.1} parent=215 // pred_check_branch
          %1436 = sbr.rel (%p1434) target = $region228
        $region227: #{_lambda_.1} parent=215 // pred_region
          %1437 = dma.done [#allocation6], 256
        $region228: #{_lambda_.1} parent=215 // pred_fallthru
          _
        // Predicated region
        $region229: #{_lambda_.1} parent=215 // pred_check
          %p1438 = pneg %p306
        $region230: #{_lambda_.1} parent=215 // pred_check_branch
          %1440 = sbr.rel (%p1438) target = $region232
        $region231: #{_lambda_.1} parent=215 // pred_region
          %1441 = dma.done [#allocation9], 16
        $region232: #{_lambda_.1} parent=215 // pred_fallthru
          _
        // Predicated region
        $region233: #{_lambda_.1} parent=215 // pred_check
          %p1442 = pneg %p348
        $region234: #{_lambda_.1} parent=215 // pred_check_branch
          %1444 = sbr.rel (%p1442) target = $region236
        $region235: #{_lambda_.1} parent=215 // pred_region
          %1445 = dma.done [#allocation9], 16
        $region236: #{_lambda_.1} parent=215 // pred_fallthru
          _
        // Predicated region
        $region237: #{_lambda_.1} parent=215 // pred_check
          %p1446 = pneg %p369
        $region238: #{_lambda_.1} parent=215 // pred_check_branch
          %1448 = sbr.rel (%p1446) target = $region240
        $region239: #{_lambda_.1} parent=215 // pred_region
          %1449 = dma.done [#allocation12], 128
        $region240: #{_lambda_.1} parent=215 // pred_fallthru
          _
        // Predicated region
        $region241: #{_lambda_.1} parent=215 // pred_check
          %p1450 = pneg %p516
        $region242: #{_lambda_.1} parent=215 // pred_check_branch
          %1452 = sbr.rel (%p1450) target = $region244
        $region243: #{_lambda_.1} parent=215 // pred_region
          %1453 = dma.done [#allocation12], 16
        $region244: #{_lambda_.1} parent=215 // pred_fallthru
          _
        // Predicated region
        $region245: #{_lambda_.1} parent=215 // pred_check
          %p1454 = pneg %p537
        $region246: #{_lambda_.1} parent=215 // pred_check_branch
          %1456 = sbr.rel (%p1454) target = $region248
        $region247: #{_lambda_.1} parent=215 // pred_region
          %1457 = dma.done [#allocation15], 16
        $region248: #{_lambda_.1} parent=215 // pred_fallthru
          _
        // Predicated region
        $region249: #{_lambda_.1} parent=215 // pred_check
          %p1458 = pneg %p579
        $region250: #{_lambda_.1} parent=215 // pred_check_branch
          %1460 = sbr.rel (%p1458) target = $region252
        $region251: #{_lambda_.1} parent=215 // pred_region
          %1461 = dma.done [#allocation15], 16
        $region252: #{_lambda_.1} parent=215 // pred_fallthru
          _
        %p1462 = scmp.lt.s32.totalorder %s117, 1
        %s1463 = scalar_select %p1462, %s117, 1
        %s1464 = smul.addr %s1463, 4
        %s1465 = smul.addr %s1464, 4
        %s1466 = scalar_lea.vmem %s1, %s1465
        %p1467 = pneg %p138
        %p1468 = pneg %p135
        %p1469 = pneg %p159
        %p1470 = pneg %p156
        %p1471 = pneg %p180
        %p1472 = pneg %p177
        %p1473 = pneg %p201
        %p1474 = pneg %p198
        %p1475 = pneg %p222
        %p1476 = pneg %p219
        %p1477 = pneg %p243
        %p1478 = pneg %p240
        %p1479 = pneg %p264
        %p1480 = pneg %p261
        %p1481 = pneg %p285
        %p1482 = pneg %p282
        %p1483 = pneg %p306
        %p1484 = pneg %p303
        %p1485 = pneg %p327
        %p1486 = pneg %p324
        %p1487 = pneg %p348
        %p1488 = pneg %p345
        %p1489 = pneg %p369
        %p1490 = pneg %p366
        %p1491 = pneg %p390
        %p1492 = pneg %p387
        %p1493 = pneg %p411
        %p1494 = pneg %p408
        %p1495 = pneg %p432
        %p1496 = pneg %p429
        %p1497 = pneg %p453
        %p1498 = pneg %p450
        %p1499 = pneg %p474
        %p1500 = pneg %p471
        %p1501 = pneg %p495
        %p1502 = pneg %p492
        %p1503 = pneg %p516
        %p1504 = pneg %p513
        %p1505 = pneg %p537
        %p1506 = pneg %p534
        %p1507 = pneg %p558
        %p1508 = pneg %p555
        %p1509 = pneg %p579
        %p1510 = pneg %p576
        %p1511 = pneg %p600
        %p1512 = pneg %p597
        %p1513 = pneg %p621
        %p1514 = pneg %p618
        %p1515 = pneg %p642
        %p1516 = pneg %p639
        %p1517 = pneg %p663
        %p1518 = pneg %p660
        %p1519 = pneg %p684
        %p1520 = pneg %p681
        %p1521 = pneg %p705
        %p1522 = pneg %p702
        %p1523 = pneg %p726
        %p1524 = pneg %p723
        %p1525 = pneg %p747
        %p1526 = pneg %p744
        %p1527 = pneg %p768
        %p1528 = pneg %p765
        %p1529 = pneg %p789
        %p1530 = pneg %p786
        %p1531 = pneg %p810
        %p1532 = pneg %p807
        %p1533 = pneg %p831
        %p1534 = pneg %p828
        %p1535 = pneg %p852
        %p1536 = pneg %p849
        %p1537 = pneg %p873
        %p1538 = pneg %p870
        %p1539 = pneg %p894
        %p1540 = pneg %p891
        %p1541 = pneg %p915
        %p1542 = pneg %p912
        %p1543 = pneg %p936
        %p1544 = pneg %p933
        %p1545 = pneg %p957
        %p1546 = pneg %p954
        %p1547 = pneg %p978
        %p1548 = pneg %p975
        %p1549 = pneg %p999
        %p1550 = pneg %p996
        %p1551 = pneg %p1020
        %p1552 = pneg %p1017
        %p1553 = pneg %p1041
        %p1554 = pneg %p1038
        %p1555 = pneg %p1062
        %p1556 = pneg %p1059
        %p1557 = pneg %p1083
        %p1558 = pneg %p1080
        %p1559 = pneg %p1104
        %p1560 = pneg %p1101
        %p1561 = pneg %p1125
        %p1562 = pneg %p1122
        %p1563 = pneg %p1146
        %p1564 = pneg %p1143
        %p1565 = pneg %p1172
        %p1566 = pneg %p1169
        %p1567 = scmp.lt.s32.totalorder %s117, 1
        %s1568 = scalar_select %p1567, %s117, 1
        %s1569 = scalar_lea.vmem %s99, %s1568
        %p1570 = scmp.lt.s32.totalorder %s117, 1
        %s1571 = scalar_select %p1570, %s117, 1
        %s1572 = smul.addr %s1571, 4
        %s1573 = smul.addr %s1572, 4
        %s1574 = scalar_lea.vmem %s1, %s1573
        %p1575 = scmp.lt.s32.totalorder %s117, 1
        %s1576 = scalar_select %p1575, %s117, 1
        %s1577 = scalar_lea.vmem %s99, %s1576
        %v1579 = vld [vmem:[%s1574] sm:$0xf]
        %v1580 = vld [vmem:[%s1574 + $0x4] sm:$0xf]
        %s1581 = scalar_lea.vmem %s1574, 8
        %v1582 = vld [vmem:[%s1581] sm:$0xf]
        %v1583 = vld [vmem:[%s1581 + $0x4] sm:$0xf]
        %v1584 = vld [vmem:[#allocation3] sm:$0xf]
        %v1585 = vld [vmem:[#allocation3 + $0x4] sm:$0xf]
        %v1586 = vld [vmem:[#allocation3 + $0x8] sm:$0xf]
        %v1587 = vld [vmem:[#allocation3 + $0xc] sm:$0x3]
        %v1588 = vld [vmem:[#allocation5] sm:$0x1]
        %v1590 = vlaneseq
        %v1591 = vshrl.u32 %v1590, 7
        %v1592 = vsub.s32 0, %v1591
        %v1593 = vrot.slane %v1588, %v1592
        %v1597 = vunpack.c.l.b16 %v1579
        %v1598 = vunpack.c.l.b16 %v1580
        %v1599 = vpack.c.b16 %v1598, %v1597
        %v1604 = vunpack.c.l.b16 %v1584
        %v1605 = vunpack.c.l.b16 %v1585
        %v1606 = vunpack.c.l.b16 %v1586
        %v1607 = vunpack.c.l.b16 %v1587
        %v1608 = vpack.c.b16 %v1605, %v1604
        %v1609 = vpack.c.b16 %v1607, %v1606
        %vm1611 = vcmask 228352
        %v1613 = vsel %vm1611, %v1599, 0
        %vm1615 = vcmask 1045504
        %v1617 = vsel %vm1615, %v1609, 0
        %1619 = vmatprep.subr.bf16.mxu0 0
        %1620 = vmatpush1.bf16.msra.mxu0 %v1608
        %1621 = vmatprep.subr.bf16.mxu0 0
        %1622 = vmatpush1.bf16.msra.mxu0 %v1617
        %1623 = vmatprep.subr.bf16.mxu0 0
        %1624 = vmatpush1.bf16.msra.mxu0 0
        %1625 = vmatprep.subr.bf16.mxu0 0
        %1626 = vmatpush1.bf16.msra.mxu0 0
        %1627 = vmatprep.subr.bf16.mxu0 0
        %1628 = vmatpush1.bf16.msra.mxu0 0
        %1629 = vmatprep.subr.bf16.mxu0 0
        %1630 = vmatpush1.bf16.msra.mxu0 0
        %1631 = vmatprep.subr.bf16.mxu0 0
        %1632 = vmatpush1.bf16.msra.mxu0 0
        %1633 = vmatprep.subr.bf16.mxu0 0
        %1634 = vmatpush1.bf16.msra.mxu0 0
        %1635 = vmatprep.subr.bf16.mxu0 0
        %1636 = vmatpush1.bf16.msra.mxu0 0
        %1637 = vmatprep.subr.bf16.mxu0 0
        %1638 = vmatpush1.bf16.msra.mxu0 0
        %1639 = vmatprep.subr.bf16.mxu0 0
        %1640 = vmatpush1.bf16.msra.mxu0 0
        %1641 = vmatprep.subr.bf16.mxu0 0
        %1642 = vmatpush1.bf16.msra.mxu0 0
        %1643 = vmatprep.subr.bf16.mxu0 0
        %1644 = vmatpush1.bf16.msra.mxu0 0
        %1645 = vmatprep.subr.bf16.mxu0 0
        %1646 = vmatpush1.bf16.msra.mxu0 0
        %1647 = vmatprep.subr.bf16.mxu0 0
        %1648 = vmatpush1.bf16.msra.mxu0 0
        %1649 = vmatprep.subr.bf16.mxu0 0
        %1650 = vmatpush1.bf16.msra.mxu0 0
        %1651 = vmatprep.mubr.bf16.mxu0 0
        %1652 = vmatmul.mubr.bf16.gmra.mrb[0].mxu0 %v1613
        %v1653 = vpop.f32.mrb[0].mxu0
        %v1654 = vadd.f32 %v1593, %v1653
        %v1655 = vpop.f32.mrb[0].mxu0
        %v1656 = vpop.f32.mrb[0].mxu0
        %v1657 = vadd.f32 %v1593, %v1656
        %v1658 = vpop.f32.mrb[0].mxu0
        %1659 = vdwg.mxu0
        %v1660 = vmax.f32 %v1654, 0.0
        %v1661 = vmax.f32 %v1657, 0.0
        %v1664 = vunpack.c.l.b16 %v1582
        %v1665 = vunpack.c.l.b16 %v1583
        %v1666 = vpack.c.b16 %v1665, %v1664
        %v1668 = vsel %vm1611, %v1666, 0
        %1670 = vmatprep.subr.bf16.mxu0 0
        %1671 = vmatpush1.bf16.msra.mxu0 %v1608
        %1672 = vmatprep.subr.bf16.mxu0 0
        %1673 = vmatpush1.bf16.msra.mxu0 %v1617
        %1674 = vmatprep.subr.bf16.mxu0 0
        %1675 = vmatpush1.bf16.msra.mxu0 0
        %1676 = vmatprep.subr.bf16.mxu0 0
        %1677 = vmatpush1.bf16.msra.mxu0 0
        %1678 = vmatprep.subr.bf16.mxu0 0
        %1679 = vmatpush1.bf16.msra.mxu0 0
        %1680 = vmatprep.subr.bf16.mxu0 0
        %1681 = vmatpush1.bf16.msra.mxu0 0
        %1682 = vmatprep.subr.bf16.mxu0 0
        %1683 = vmatpush1.bf16.msra.mxu0 0
        %1684 = vmatprep.subr.bf16.mxu0 0
        %1685 = vmatpush1.bf16.msra.mxu0 0
        %1686 = vmatprep.subr.bf16.mxu0 0
        %1687 = vmatpush1.bf16.msra.mxu0 0
        %1688 = vmatprep.subr.bf16.mxu0 0
        %1689 = vmatpush1.bf16.msra.mxu0 0
        %1690 = vmatprep.subr.bf16.mxu0 0
        %1691 = vmatpush1.bf16.msra.mxu0 0
        %1692 = vmatprep.subr.bf16.mxu0 0
        %1693 = vmatpush1.bf16.msra.mxu0 0
        %1694 = vmatprep.subr.bf16.mxu0 0
        %1695 = vmatpush1.bf16.msra.mxu0 0
        %1696 = vmatprep.subr.bf16.mxu0 0
        %1697 = vmatpush1.bf16.msra.mxu0 0
        %1698 = vmatprep.subr.bf16.mxu0 0
        %1699 = vmatpush1.bf16.msra.mxu0 0
        %1700 = vmatprep.subr.bf16.mxu0 0
        %1701 = vmatpush1.bf16.msra.mxu0 0
        %1702 = vmatprep.mubr.bf16.mxu0 0
        %1703 = vmatmul.mubr.bf16.gmra.mrb[0].mxu0 %v1668
        %v1704 = vpop.f32.mrb[0].mxu0
        %v1705 = vadd.f32 %v1593, %v1704
        %v1706 = vpop.f32.mrb[0].mxu0
        %v1707 = vpop.f32.mrb[0].mxu0
        %v1708 = vadd.f32 %v1593, %v1707
        %v1709 = vpop.f32.mrb[0].mxu0
        %1710 = vdwg.mxu0
        %v1711 = vmax.f32 %v1705, 0.0
        %v1712 = vmax.f32 %v1708, 0.0
        %v1713 = vld [vmem:[#allocation7] sm:$0xff]
        %v1714 = vld [vmem:[#allocation7 + $0x8] sm:$0xff]
        %vm1715 = vcmask 130048
        %v1717 = vsel %vm1715, %v1713, 0
        %v1720 = vsel %vm1715, %v1714, 0
        %1722 = vmatprep.subr.mxu0 0.0
        %1723 = vmatpush1.msra.mxu0 %v1711
        %1724 = vmatprep.subr.mxu0 0.0
        %1725 = vmatpush1.msra.mxu0 %v1712
        %1726 = vmatprep.subr.mxu0 0.0
        %1727 = vmatpush1.msra.mxu0 0.0
        %1728 = vmatprep.subr.mxu0 0.0
        %1729 = vmatpush1.msra.mxu0 0.0
        %1730 = vmatprep.subr.mxu0 0.0
        %1731 = vmatpush1.msra.mxu0 0.0
        %1732 = vmatprep.subr.mxu0 0.0
        %1733 = vmatpush1.msra.mxu0 0.0
        %1734 = vmatprep.subr.mxu0 0.0
        %1735 = vmatpush1.msra.mxu0 0.0
        %1736 = vmatprep.subr.mxu0 0.0
        %1737 = vmatpush1.msra.mxu0 0.0
        %1738 = vmatprep.subr.mxu0 0.0
        %1739 = vmatpush1.msra.mxu0 0.0
        %1740 = vmatprep.subr.mxu0 0.0
        %1741 = vmatpush1.msra.mxu0 0.0
        %1742 = vmatprep.subr.mxu0 0.0
        %1743 = vmatpush1.msra.mxu0 0.0
        %1744 = vmatprep.subr.mxu0 0.0
        %1745 = vmatpush1.msra.mxu0 0.0
        %1746 = vmatprep.subr.mxu0 0.0
        %1747 = vmatpush1.msra.mxu0 0.0
        %1748 = vmatprep.subr.mxu0 0.0
        %1749 = vmatpush1.msra.mxu0 0.0
        %1750 = vmatprep.subr.mxu0 0.0
        %1751 = vmatpush1.msra.mxu0 0.0
        %1752 = vmatprep.subr.mxu0 0.0
        %1753 = vmatpush1.msra.mxu0 0.0
        %1754 = vmatprep.subr.mxu0 0.0
        %1755 = vmatpush1.msra.mxu0 0.0
        %1756 = vmatprep.subr.mxu0 0.0
        %1757 = vmatpush1.msra.mxu0 0.0
        %1758 = vmatprep.subr.mxu0 0.0
        %1759 = vmatpush1.msra.mxu0 0.0
        %1760 = vmatprep.subr.mxu0 0.0
        %1761 = vmatpush1.msra.mxu0 0.0
        %1762 = vmatprep.subr.mxu0 0.0
        %1763 = vmatpush1.msra.mxu0 0.0
        %1764 = vmatprep.subr.mxu0 0.0
        %1765 = vmatpush1.msra.mxu0 0.0
        %1766 = vmatprep.subr.mxu0 0.0
        %1767 = vmatpush1.msra.mxu0 0.0
        %1768 = vmatprep.subr.mxu0 0.0
        %1769 = vmatpush1.msra.mxu0 0.0
        %1770 = vmatprep.subr.mxu0 0.0
        %1771 = vmatpush1.msra.mxu0 0.0
        %1772 = vmatprep.subr.mxu0 0.0
        %1773 = vmatpush1.msra.mxu0 0.0
        %1774 = vmatprep.subr.mxu0 0.0
        %1775 = vmatpush1.msra.mxu0 0.0
        %1776 = vmatprep.subr.mxu0 0.0
        %1777 = vmatpush1.msra.mxu0 0.0
        %1778 = vmatprep.subr.mxu0 0.0
        %1779 = vmatpush1.msra.mxu0 0.0
        %1780 = vmatprep.subr.mxu0 0.0
        %1781 = vmatpush1.msra.mxu0 0.0
        %1782 = vmatprep.subr.mxu0 0.0
        %1783 = vmatpush1.msra.mxu0 0.0
        %1784 = vmatprep.subr.mxu0 0.0
        %1785 = vmatpush1.msra.mxu0 0.0
        %1786 = vmatprep.mubr.f32.mxu0 0.0
        %1787 = vmatmul.mubr.f32.gmra.mrb[0].mxu0 %v1717
        %v1788 = vpop.f32.mrb[0].mxu0
        %v1789 = vadd.f32 0.0, %v1788
        %v1790 = vpop.f32.mrb[0].mxu0
        %1791 = vmatprep.mubr.f32.mxu0 0.0
        %1792 = vmatmul.mubr.f32.gmra.mrb[0].mxu0 %v1720
        %v1793 = vpop.f32.mrb[0].mxu0
        %v1794 = vadd.f32 0.0, %v1793
        %v1795 = vpop.f32.mrb[0].mxu0
        %1796 = vdwg.mxu0
        %v1797 = vld [vmem:[%s9] sm:$0xff]
        %v1798 = vld [vmem:[%s9 + $0x8] sm:$0xff]
        %v1800 = vsel %vm1715, %v1797, 0
        %v1803 = vsel %vm1715, %v1798, 0
        %1805 = vmatprep.subr.mxu0 0.0
        %1806 = vmatpush1.msra.mxu0 %v1711
        %1807 = vmatprep.subr.mxu0 0.0
        %1808 = vmatpush1.msra.mxu0 %v1712
        %1809 = vmatprep.subr.mxu0 0.0
        %1810 = vmatpush1.msra.mxu0 0.0
        %1811 = vmatprep.subr.mxu0 0.0
        %1812 = vmatpush1.msra.mxu0 0.0
        %1813 = vmatprep.subr.mxu0 0.0
        %1814 = vmatpush1.msra.mxu0 0.0
        %1815 = vmatprep.subr.mxu0 0.0
        %1816 = vmatpush1.msra.mxu0 0.0
        %1817 = vmatprep.subr.mxu0 0.0
        %1818 = vmatpush1.msra.mxu0 0.0
        %1819 = vmatprep.subr.mxu0 0.0
        %1820 = vmatpush1.msra.mxu0 0.0
        %1821 = vmatprep.subr.mxu0 0.0
        %1822 = vmatpush1.msra.mxu0 0.0
        %1823 = vmatprep.subr.mxu0 0.0
        %1824 = vmatpush1.msra.mxu0 0.0
        %1825 = vmatprep.subr.mxu0 0.0
        %1826 = vmatpush1.msra.mxu0 0.0
        %1827 = vmatprep.subr.mxu0 0.0
        %1828 = vmatpush1.msra.mxu0 0.0
        %1829 = vmatprep.subr.mxu0 0.0
        %1830 = vmatpush1.msra.mxu0 0.0
        %1831 = vmatprep.subr.mxu0 0.0
        %1832 = vmatpush1.msra.mxu0 0.0
        %1833 = vmatprep.subr.mxu0 0.0
        %1834 = vmatpush1.msra.mxu0 0.0
        %1835 = vmatprep.subr.mxu0 0.0
        %1836 = vmatpush1.msra.mxu0 0.0
        %1837 = vmatprep.subr.mxu0 0.0
        %1838 = vmatpush1.msra.mxu0 0.0
        %1839 = vmatprep.subr.mxu0 0.0
        %1840 = vmatpush1.msra.mxu0 0.0
        %1841 = vmatprep.subr.mxu0 0.0
        %1842 = vmatpush1.msra.mxu0 0.0
        %1843 = vmatprep.subr.mxu0 0.0
        %1844 = vmatpush1.msra.mxu0 0.0
        %1845 = vmatprep.subr.mxu0 0.0
        %1846 = vmatpush1.msra.mxu0 0.0
        %1847 = vmatprep.subr.mxu0 0.0
        %1848 = vmatpush1.msra.mxu0 0.0
        %1849 = vmatprep.subr.mxu0 0.0
        %1850 = vmatpush1.msra.mxu0 0.0
        %1851 = vmatprep.subr.mxu0 0.0
        %1852 = vmatpush1.msra.mxu0 0.0
        %1853 = vmatprep.subr.mxu0 0.0
        %1854 = vmatpush1.msra.mxu0 0.0
        %1855 = vmatprep.subr.mxu0 0.0
        %1856 = vmatpush1.msra.mxu0 0.0
        %1857 = vmatprep.subr.mxu0 0.0
        %1858 = vmatpush1.msra.mxu0 0.0
        %1859 = vmatprep.subr.mxu0 0.0
        %1860 = vmatpush1.msra.mxu0 0.0
        %1861 = vmatprep.subr.mxu0 0.0
        %1862 = vmatpush1.msra.mxu0 0.0
        %1863 = vmatprep.subr.mxu0 0.0
        %1864 = vmatpush1.msra.mxu0 0.0
        %1865 = vmatprep.subr.mxu0 0.0
        %1866 = vmatpush1.msra.mxu0 0.0
        %1867 = vmatprep.subr.mxu0 0.0
        %1868 = vmatpush1.msra.mxu0 0.0
        %1869 = vmatprep.mubr.f32.mxu0 0.0
        %1870 = vmatmul.mubr.f32.gmra.mrb[0].mxu0 %v1800
        %v1871 = vpop.f32.mrb[0].mxu0
        %v1872 = vadd.f32 0.0, %v1871
        %v1873 = vpop.f32.mrb[0].mxu0
        %1874 = vmatprep.mubr.f32.mxu0 0.0
        %1875 = vmatmul.mubr.f32.gmra.mrb[0].mxu0 %v1803
        %v1876 = vpop.f32.mrb[0].mxu0
        %v1877 = vadd.f32 0.0, %v1876
        %v1878 = vpop.f32.mrb[0].mxu0
        %1879 = vdwg.mxu0
        %v1880 = vmax.f32 %v1789, %v1872
        %v1881 = vmax.f32 %v1794, %v1877
        %v1882 = vmax.f32 %v1660, %v1880
        %v1883 = vmax.f32 %v1661, %v1881
        %v1884 = vpack.c.bf16 %v1883, %v1882
        %v1885 = vld [vmem:[%s11] sm:$0xff]
        %v1886 = vld [vmem:[%s11 + $0x8] sm:$0xff]
        %v1888 = vsel %vm1715, %v1885, 0
        %v1891 = vsel %vm1715, %v1886, 0
        %1893 = vmatprep.subr.mxu0 0.0
        %1894 = vmatpush1.msra.mxu0 %v1882
        %1895 = vmatprep.subr.mxu0 0.0
        %1896 = vmatpush1.msra.mxu0 %v1883
        %1897 = vmatprep.subr.mxu0 0.0
        %1898 = vmatpush1.msra.mxu0 0.0
        %1899 = vmatprep.subr.mxu0 0.0
        %1900 = vmatpush1.msra.mxu0 0.0
        %1901 = vmatprep.subr.mxu0 0.0
        %1902 = vmatpush1.msra.mxu0 0.0
        %1903 = vmatprep.subr.mxu0 0.0
        %1904 = vmatpush1.msra.mxu0 0.0
        %1905 = vmatprep.subr.mxu0 0.0
        %1906 = vmatpush1.msra.mxu0 0.0
        %1907 = vmatprep.subr.mxu0 0.0
        %1908 = vmatpush1.msra.mxu0 0.0
        %1909 = vmatprep.subr.mxu0 0.0
        %1910 = vmatpush1.msra.mxu0 0.0
        %1911 = vmatprep.subr.mxu0 0.0
        %1912 = vmatpush1.msra.mxu0 0.0
        %1913 = vmatprep.subr.mxu0 0.0
        %1914 = vmatpush1.msra.mxu0 0.0
        %1915 = vmatprep.subr.mxu0 0.0
        %1916 = vmatpush1.msra.mxu0 0.0
        %1917 = vmatprep.subr.mxu0 0.0
        %1918 = vmatpush1.msra.mxu0 0.0
        %1919 = vmatprep.subr.mxu0 0.0
        %1920 = vmatpush1.msra.mxu0 0.0
        %1921 = vmatprep.subr.mxu0 0.0
        %1922 = vmatpush1.msra.mxu0 0.0
        %1923 = vmatprep.subr.mxu0 0.0
        %1924 = vmatpush1.msra.mxu0 0.0
        %1925 = vmatprep.subr.mxu0 0.0
        %1926 = vmatpush1.msra.mxu0 0.0
        %1927 = vmatprep.subr.mxu0 0.0
        %1928 = vmatpush1.msra.mxu0 0.0
        %1929 = vmatprep.subr.mxu0 0.0
        %1930 = vmatpush1.msra.mxu0 0.0
        %1931 = vmatprep.subr.mxu0 0.0
        %1932 = vmatpush1.msra.mxu0 0.0
        %1933 = vmatprep.subr.mxu0 0.0
        %1934 = vmatpush1.msra.mxu0 0.0
        %1935 = vmatprep.subr.mxu0 0.0
        %1936 = vmatpush1.msra.mxu0 0.0
        %1937 = vmatprep.subr.mxu0 0.0
        %1938 = vmatpush1.msra.mxu0 0.0
        %1939 = vmatprep.subr.mxu0 0.0
        %1940 = vmatpush1.msra.mxu0 0.0
        %1941 = vmatprep.subr.mxu0 0.0
        %1942 = vmatpush1.msra.mxu0 0.0
        %1943 = vmatprep.subr.mxu0 0.0
        %1944 = vmatpush1.msra.mxu0 0.0
        %1945 = vmatprep.subr.mxu0 0.0
        %1946 = vmatpush1.msra.mxu0 0.0
        %1947 = vmatprep.subr.mxu0 0.0
        %1948 = vmatpush1.msra.mxu0 0.0
        %1949 = vmatprep.subr.mxu0 0.0
        %1950 = vmatpush1.msra.mxu0 0.0
        %1951 = vmatprep.subr.mxu0 0.0
        %1952 = vmatpush1.msra.mxu0 0.0
        %1953 = vmatprep.subr.mxu0 0.0
        %1954 = vmatpush1.msra.mxu0 0.0
        %1955 = vmatprep.subr.mxu0 0.0
        %1956 = vmatpush1.msra.mxu0 0.0
        %1957 = vmatprep.mubr.f32.mxu0 0.0
        %1958 = vmatmul.mubr.f32.gmra.mrb[0].mxu0 %v1888
        %v1959 = vpop.f32.mrb[0].mxu0
        %v1960 = vadd.f32 0.0, %v1959
        %v1961 = vpop.f32.mrb[0].mxu0
        %1962 = vmatprep.mubr.f32.mxu0 0.0
        %1963 = vmatmul.mubr.f32.gmra.mrb[0].mxu0 %v1891
        %v1964 = vpop.f32.mrb[0].mxu0
        %v1965 = vadd.f32 0.0, %v1964
        %v1966 = vpop.f32.mrb[0].mxu0
        %1967 = vdwg.mxu0
        %v1968 = vpack.c.bf16 %v1965, %v1960
        %v1969 = vld [vmem:[%s13] sm:$0xff]
        %v1970 = vld [vmem:[%s13 + $0x8] sm:$0xff]
        %v1972 = vsel %vm1715, %v1969, 0
        %v1975 = vsel %vm1715, %v1970, 0
        %1977 = vmatprep.subr.mxu0 0.0
        %1978 = vmatpush1.msra.mxu0 %v1882
        %1979 = vmatprep.subr.mxu0 0.0
        %1980 = vmatpush1.msra.mxu0 %v1883
        %1981 = vmatprep.subr.mxu0 0.0
        %1982 = vmatpush1.msra.mxu0 0.0
        %1983 = vmatprep.subr.mxu0 0.0
        %1984 = vmatpush1.msra.mxu0 0.0
        %1985 = vmatprep.subr.mxu0 0.0
        %1986 = vmatpush1.msra.mxu0 0.0
        %1987 = vmatprep.subr.mxu0 0.0
        %1988 = vmatpush1.msra.mxu0 0.0
        %1989 = vmatprep.subr.mxu0 0.0
        %1990 = vmatpush1.msra.mxu0 0.0
        %1991 = vmatprep.subr.mxu0 0.0
        %1992 = vmatpush1.msra.mxu0 0.0
        %1993 = vmatprep.subr.mxu0 0.0
        %1994 = vmatpush1.msra.mxu0 0.0
        %1995 = vmatprep.subr.mxu0 0.0
        %1996 = vmatpush1.msra.mxu0 0.0
        %1997 = vmatprep.subr.mxu0 0.0
        %1998 = vmatpush1.msra.mxu0 0.0
        %1999 = vmatprep.subr.mxu0 0.0
        %2000 = vmatpush1.msra.mxu0 0.0
        %2001 = vmatprep.subr.mxu0 0.0
        %2002 = vmatpush1.msra.mxu0 0.0
        %2003 = vmatprep.subr.mxu0 0.0
        %2004 = vmatpush1.msra.mxu0 0.0
        %2005 = vmatprep.subr.mxu0 0.0
        %2006 = vmatpush1.msra.mxu0 0.0
        %2007 = vmatprep.subr.mxu0 0.0
        %2008 = vmatpush1.msra.mxu0 0.0
        %2009 = vmatprep.subr.mxu0 0.0
        %2010 = vmatpush1.msra.mxu0 0.0
        %2011 = vmatprep.subr.mxu0 0.0
        %2012 = vmatpush1.msra.mxu0 0.0
        %2013 = vmatprep.subr.mxu0 0.0
        %2014 = vmatpush1.msra.mxu0 0.0
        %2015 = vmatprep.subr.mxu0 0.0
        %2016 = vmatpush1.msra.mxu0 0.0
        %2017 = vmatprep.subr.mxu0 0.0
        %2018 = vmatpush1.msra.mxu0 0.0
        %2019 = vmatprep.subr.mxu0 0.0
        %2020 = vmatpush1.msra.mxu0 0.0
        %2021 = vmatprep.subr.mxu0 0.0
        %2022 = vmatpush1.msra.mxu0 0.0
        %2023 = vmatprep.subr.mxu0 0.0
        %2024 = vmatpush1.msra.mxu0 0.0
        %2025 = vmatprep.subr.mxu0 0.0
        %2026 = vmatpush1.msra.mxu0 0.0
        %2027 = vmatprep.subr.mxu0 0.0
        %2028 = vmatpush1.msra.mxu0 0.0
        %2029 = vmatprep.subr.mxu0 0.0
        %2030 = vmatpush1.msra.mxu0 0.0
        %2031 = vmatprep.subr.mxu0 0.0
        %2032 = vmatpush1.msra.mxu0 0.0
        %2033 = vmatprep.subr.mxu0 0.0
        %2034 = vmatpush1.msra.mxu0 0.0
        %2035 = vmatprep.subr.mxu0 0.0
        %2036 = vmatpush1.msra.mxu0 0.0
        %2037 = vmatprep.subr.mxu0 0.0
        %2038 = vmatpush1.msra.mxu0 0.0
        %2039 = vmatprep.subr.mxu0 0.0
        %2040 = vmatpush1.msra.mxu0 0.0
        %2041 = vmatprep.mubr.f32.mxu0 0.0
        %2042 = vmatmul.mubr.f32.gmra.mrb[0].mxu0 %v1972
        %v2043 = vpop.f32.mrb[0].mxu0
        %v2044 = vadd.f32 0.0, %v2043
        %v2045 = vpop.f32.mrb[0].mxu0
        %2046 = vmatprep.mubr.f32.mxu0 0.0
        %2047 = vmatmul.mubr.f32.gmra.mrb[0].mxu0 %v1975
        %v2048 = vpop.f32.mrb[0].mxu0
        %v2049 = vadd.f32 0.0, %v2048
        %v2050 = vpop.f32.mrb[0].mxu0
        %2051 = vdwg.mxu0
        %v2052 = vpack.c.bf16 %v2049, %v2044
        %v2053 = vld [vmem:[%s15] sm:$0xf]
        %v2054 = vld [vmem:[%s15 + $0x4] sm:$0xf]
        %v2055 = vld [vmem:[%s15 + $0x8] sm:$0xf]
        %v2056 = vld [vmem:[%s15 + $0xc] sm:$0xf]
        %v2057 = vld [vmem:[%s15 + $0x10] sm:$0xf]
        %v2058 = vld [vmem:[%s15 + $0x14] sm:$0xf]
        %v2059 = vld [vmem:[%s15 + $0x18] sm:$0xf]
        %v2060 = vld [vmem:[%s15 + $0x1c] sm:$0xf]
        %v2061 = vld [vmem:[%s15 + $0x20] sm:$0xf]
        %v2062 = vld [vmem:[%s15 + $0x24] sm:$0xf]
        %v2063 = vld [vmem:[%s15 + $0x28] sm:$0xf]
        %v2064 = vld [vmem:[%s15 + $0x2c] sm:$0xf]
        %v2065 = vld [vmem:[%s15 + $0x30] sm:$0xf]
        %v2066 = vld [vmem:[%s15 + $0x34] sm:$0xf]
        %v2067 = vld [vmem:[%s15 + $0x38] sm:$0xf]
        %v2068 = vld [vmem:[%s15 + $0x3c] sm:$0xf]
        %s2069 = scalar_lea.vmem %s15, 64
        %v2070 = vld [vmem:[%s2069] sm:$0xf]
        %v2071 = vld [vmem:[%s2069 + $0x4] sm:$0xf]
        %v2072 = vld [vmem:[%s2069 + $0x8] sm:$0xf]
        %v2073 = vld [vmem:[%s2069 + $0xc] sm:$0xf]
        %v2074 = vld [vmem:[%s2069 + $0x10] sm:$0xf]
        %v2075 = vld [vmem:[%s2069 + $0x14] sm:$0xf]
        %v2076 = vld [vmem:[%s2069 + $0x18] sm:$0xf]
        %v2077 = vld [vmem:[%s2069 + $0x1c] sm:$0xf]
        %v2078 = vld [vmem:[%s2069 + $0x20] sm:$0xf]
        %v2079 = vld [vmem:[%s2069 + $0x24] sm:$0xf]
        %v2080 = vld [vmem:[%s2069 + $0x28] sm:$0xf]
        %v2081 = vld [vmem:[%s2069 + $0x2c] sm:$0xf]
        %v2082 = vld [vmem:[%s2069 + $0x30] sm:$0xf]
        %v2083 = vld [vmem:[%s2069 + $0x34] sm:$0xf]
        %v2084 = vld [vmem:[%s2069 + $0x38] sm:$0xf]
        %v2085 = vld [vmem:[%s2069 + $0x3c] sm:$0xf]
        %v2102 = vunpack.c.l.b16 %v2070
        %v2103 = vunpack.c.l.b16 %v2071
        %v2104 = vunpack.c.l.b16 %v2072
        %v2105 = vunpack.c.l.b16 %v2073
        %v2106 = vunpack.c.l.b16 %v2074
        %v2107 = vunpack.c.l.b16 %v2075
        %v2108 = vunpack.c.l.b16 %v2076
        %v2109 = vunpack.c.l.b16 %v2077
        %v2110 = vunpack.c.l.b16 %v2078
        %v2111 = vunpack.c.l.b16 %v2079
        %v2112 = vunpack.c.l.b16 %v2080
        %v2113 = vunpack.c.l.b16 %v2081
        %v2114 = vunpack.c.l.b16 %v2082
        %v2115 = vunpack.c.l.b16 %v2083
        %v2116 = vunpack.c.l.b16 %v2084
        %v2117 = vunpack.c.l.b16 %v2085
        %v2118 = vpack.c.b16 %v2103, %v2102
        %v2119 = vpack.c.b16 %v2105, %v2104
        %v2120 = vpack.c.b16 %v2107, %v2106
        %v2121 = vpack.c.b16 %v2109, %v2108
        %v2122 = vpack.c.b16 %v2111, %v2110
        %v2123 = vpack.c.b16 %v2113, %v2112
        %v2124 = vpack.c.b16 %v2115, %v2114
        %v2125 = vpack.c.b16 %v2117, %v2116
        %2134 = vmatprep.subr.bf16.mxu0 0
        %2135 = vmatpush1.bf16.msra.mxu0 %v2118
        %2136 = vmatprep.subr.bf16.mxu0 0
        %2137 = vmatpush1.bf16.msra.mxu0 %v2119
        %2138 = vmatprep.subr.bf16.mxu0 0
        %2139 = vmatpush1.bf16.msra.mxu0 %v2120
        %2140 = vmatprep.subr.bf16.mxu0 0
        %2141 = vmatpush1.bf16.msra.mxu0 %v2121
        %2142 = vmatprep.subr.bf16.mxu0 0
        %2143 = vmatpush1.bf16.msra.mxu0 %v2122
        %2144 = vmatprep.subr.bf16.mxu0 0
        %2145 = vmatpush1.bf16.msra.mxu0 %v2123
        %2146 = vmatprep.subr.bf16.mxu0 0
        %2147 = vmatpush1.bf16.msra.mxu0 %v2124
        %2148 = vmatprep.subr.bf16.mxu0 0
        %2149 = vmatpush1.bf16.msra.mxu0 %v2125
        %2150 = vmatprep.subr.bf16.mxu0 0
        %2151 = vmatpush1.bf16.msra.mxu0 0
        %2152 = vmatprep.subr.bf16.mxu0 0
        %2153 = vmatpush1.bf16.msra.mxu0 0
        %2154 = vmatprep.subr.bf16.mxu0 0
        %2155 = vmatpush1.bf16.msra.mxu0 0
        %2156 = vmatprep.subr.bf16.mxu0 0
        %2157 = vmatpush1.bf16.msra.mxu0 0
        %2158 = vmatprep.subr.bf16.mxu0 0
        %2159 = vmatpush1.bf16.msra.mxu0 0
        %2160 = vmatprep.subr.bf16.mxu0 0
        %2161 = vmatpush1.bf16.msra.mxu0 0
        %2162 = vmatprep.subr.bf16.mxu0 0
        %2163 = vmatpush1.bf16.msra.mxu0 0
        %2164 = vmatprep.subr.bf16.mxu0 0
        %2165 = vmatpush1.bf16.msra.mxu0 0
        %2166 = vmatprep.mubr.bf16.mxu0 0
        %2167 = vmatmul.mubr.bf16.gmra.mrb[0].mxu0 %v1884
        %v2168 = vpop.f32.mrb[0].mxu0
        %v2169 = vadd.f32 0.0, %v2168
        %v2170 = vpop.f32.mrb[0].mxu0
        %v2171 = vpop.f32.mrb[0].mxu0
        %v2172 = vadd.f32 0.0, %v2171
        %v2173 = vpop.f32.mrb[0].mxu0
        %2174 = vdwg.mxu0
        %v2191 = vunpack.c.l.b16 %v2053
        %v2192 = vunpack.c.l.b16 %v2054
        %v2193 = vunpack.c.l.b16 %v2055
        %v2194 = vunpack.c.l.b16 %v2056
        %v2195 = vunpack.c.l.b16 %v2057
        %v2196 = vunpack.c.l.b16 %v2058
        %v2197 = vunpack.c.l.b16 %v2059
        %v2198 = vunpack.c.l.b16 %v2060
        %v2199 = vunpack.c.l.b16 %v2061
        %v2200 = vunpack.c.l.b16 %v2062
        %v2201 = vunpack.c.l.b16 %v2063
        %v2202 = vunpack.c.l.b16 %v2064
        %v2203 = vunpack.c.l.b16 %v2065
        %v2204 = vunpack.c.l.b16 %v2066
        %v2205 = vunpack.c.l.b16 %v2067
        %v2206 = vunpack.c.l.b16 %v2068
        %v2207 = vpack.c.b16 %v2192, %v2191
        %v2208 = vpack.c.b16 %v2194, %v2193
        %v2209 = vpack.c.b16 %v2196, %v2195
        %v2210 = vpack.c.b16 %v2198, %v2197
        %v2211 = vpack.c.b16 %v2200, %v2199
        %v2212 = vpack.c.b16 %v2202, %v2201
        %v2213 = vpack.c.b16 %v2204, %v2203
        %v2214 = vpack.c.b16 %v2206, %v2205
        %2223 = vmatprep.subr.bf16.mxu0 0
        %2224 = vmatpush1.bf16.msra.mxu0 %v2207
        %2225 = vmatprep.subr.bf16.mxu0 0
        %2226 = vmatpush1.bf16.msra.mxu0 %v2208
        %2227 = vmatprep.subr.bf16.mxu0 0
        %2228 = vmatpush1.bf16.msra.mxu0 %v2209
        %2229 = vmatprep.subr.bf16.mxu0 0
        %2230 = vmatpush1.bf16.msra.mxu0 %v2210
        %2231 = vmatprep.subr.bf16.mxu0 0
        %2232 = vmatpush1.bf16.msra.mxu0 %v2211
        %2233 = vmatprep.subr.bf16.mxu0 0
        %2234 = vmatpush1.bf16.msra.mxu0 %v2212
        %2235 = vmatprep.subr.bf16.mxu0 0
        %2236 = vmatpush1.bf16.msra.mxu0 %v2213
        %2237 = vmatprep.subr.bf16.mxu0 0
        %2238 = vmatpush1.bf16.msra.mxu0 %v2214
        %2239 = vmatprep.subr.bf16.mxu0 0
        %2240 = vmatpush1.bf16.msra.mxu0 0
        %2241 = vmatprep.subr.bf16.mxu0 0
        %2242 = vmatpush1.bf16.msra.mxu0 0
        %2243 = vmatprep.subr.bf16.mxu0 0
        %2244 = vmatpush1.bf16.msra.mxu0 0
        %2245 = vmatprep.subr.bf16.mxu0 0
        %2246 = vmatpush1.bf16.msra.mxu0 0
        %2247 = vmatprep.subr.bf16.mxu0 0
        %2248 = vmatpush1.bf16.msra.mxu0 0
        %2249 = vmatprep.subr.bf16.mxu0 0
        %2250 = vmatpush1.bf16.msra.mxu0 0
        %2251 = vmatprep.subr.bf16.mxu0 0
        %2252 = vmatpush1.bf16.msra.mxu0 0
        %2253 = vmatprep.subr.bf16.mxu0 0
        %2254 = vmatpush1.bf16.msra.mxu0 0
        %2255 = vmatprep.mubr.bf16.mxu0 0
        %2256 = vmatmul.mubr.bf16.gmra.mrb[0].mxu0 %v1968
        %v2257 = vpop.f32.mrb[0].mxu0
        %v2258 = vadd.f32 %v2169, %v2257
        %v2259 = vpop.f32.mrb[0].mxu0
        %v2260 = vpop.f32.mrb[0].mxu0
        %v2261 = vadd.f32 %v2172, %v2260
        %v2262 = vpop.f32.mrb[0].mxu0
        %2263 = vdwg.mxu0
        %s2264 = scalar_lea.vmem %s15, 128
        %v2265 = vld [vmem:[%s2264] sm:$0xf]
        %v2266 = vld [vmem:[%s2264 + $0x4] sm:$0xf]
        %v2267 = vld [vmem:[%s2264 + $0x8] sm:$0xf]
        %v2268 = vld [vmem:[%s2264 + $0xc] sm:$0xf]
        %v2269 = vld [vmem:[%s2264 + $0x10] sm:$0xf]
        %v2270 = vld [vmem:[%s2264 + $0x14] sm:$0xf]
        %v2271 = vld [vmem:[%s2264 + $0x18] sm:$0xf]
        %v2272 = vld [vmem:[%s2264 + $0x1c] sm:$0xf]
        %v2273 = vld [vmem:[%s2264 + $0x20] sm:$0xf]
        %v2274 = vld [vmem:[%s2264 + $0x24] sm:$0xf]
        %v2275 = vld [vmem:[%s2264 + $0x28] sm:$0xf]
        %v2276 = vld [vmem:[%s2264 + $0x2c] sm:$0xf]
        %v2277 = vld [vmem:[%s2264 + $0x30] sm:$0xf]
        %v2278 = vld [vmem:[%s2264 + $0x34] sm:$0xf]
        %v2279 = vld [vmem:[%s2264 + $0x38] sm:$0xf]
        %v2280 = vld [vmem:[%s2264 + $0x3c] sm:$0xf]
        %v2297 = vunpack.c.l.b16 %v2265
        %v2298 = vunpack.c.l.b16 %v2266
        %v2299 = vunpack.c.l.b16 %v2267
        %v2300 = vunpack.c.l.b16 %v2268
        %v2301 = vunpack.c.l.b16 %v2269
        %v2302 = vunpack.c.l.b16 %v2270
        %v2303 = vunpack.c.l.b16 %v2271
        %v2304 = vunpack.c.l.b16 %v2272
        %v2305 = vunpack.c.l.b16 %v2273
        %v2306 = vunpack.c.l.b16 %v2274
        %v2307 = vunpack.c.l.b16 %v2275
        %v2308 = vunpack.c.l.b16 %v2276
        %v2309 = vunpack.c.l.b16 %v2277
        %v2310 = vunpack.c.l.b16 %v2278
        %v2311 = vunpack.c.l.b16 %v2279
        %v2312 = vunpack.c.l.b16 %v2280
        %v2313 = vpack.c.b16 %v2298, %v2297
        %v2314 = vpack.c.b16 %v2300, %v2299
        %v2315 = vpack.c.b16 %v2302, %v2301
        %v2316 = vpack.c.b16 %v2304, %v2303
        %v2317 = vpack.c.b16 %v2306, %v2305
        %v2318 = vpack.c.b16 %v2308, %v2307
        %v2319 = vpack.c.b16 %v2310, %v2309
        %v2320 = vpack.c.b16 %v2312, %v2311
        %2329 = vmatprep.subr.bf16.mxu0 0
        %2330 = vmatpush1.bf16.msra.mxu0 %v2313
        %2331 = vmatprep.subr.bf16.mxu0 0
        %2332 = vmatpush1.bf16.msra.mxu0 %v2314
        %2333 = vmatprep.subr.bf16.mxu0 0
        %2334 = vmatpush1.bf16.msra.mxu0 %v2315
        %2335 = vmatprep.subr.bf16.mxu0 0
        %2336 = vmatpush1.bf16.msra.mxu0 %v2316
        %2337 = vmatprep.subr.bf16.mxu0 0
        %2338 = vmatpush1.bf16.msra.mxu0 %v2317
        %2339 = vmatprep.subr.bf16.mxu0 0
        %2340 = vmatpush1.bf16.msra.mxu0 %v2318
        %2341 = vmatprep.subr.bf16.mxu0 0
        %2342 = vmatpush1.bf16.msra.mxu0 %v2319
        %2343 = vmatprep.subr.bf16.mxu0 0
        %2344 = vmatpush1.bf16.msra.mxu0 %v2320
        %2345 = vmatprep.subr.bf16.mxu0 0
        %2346 = vmatpush1.bf16.msra.mxu0 0
        %2347 = vmatprep.subr.bf16.mxu0 0
        %2348 = vmatpush1.bf16.msra.mxu0 0
        %2349 = vmatprep.subr.bf16.mxu0 0
        %2350 = vmatpush1.bf16.msra.mxu0 0
        %2351 = vmatprep.subr.bf16.mxu0 0
        %2352 = vmatpush1.bf16.msra.mxu0 0
        %2353 = vmatprep.subr.bf16.mxu0 0
        %2354 = vmatpush1.bf16.msra.mxu0 0
        %2355 = vmatprep.subr.bf16.mxu0 0
        %2356 = vmatpush1.bf16.msra.mxu0 0
        %2357 = vmatprep.subr.bf16.mxu0 0
        %2358 = vmatpush1.bf16.msra.mxu0 0
        %2359 = vmatprep.subr.bf16.mxu0 0
        %2360 = vmatpush1.bf16.msra.mxu0 0
        %2361 = vmatprep.mubr.bf16.mxu0 0
        %2362 = vmatmul.mubr.bf16.gmra.mrb[0].mxu0 %v2052
        %v2363 = vpop.f32.mrb[0].mxu0
        %v2364 = vadd.f32 0.0, %v2363
        %v2365 = vpop.f32.mrb[0].mxu0
        %v2366 = vpop.f32.mrb[0].mxu0
        %v2367 = vadd.f32 0.0, %v2366
        %v2368 = vpop.f32.mrb[0].mxu0
        %2369 = vdwg.mxu0
        %v2370 = vadd.f32 %v2258, %v2364
        %v2371 = vadd.f32 %v2261, %v2367
        %v2372 = vld [vmem:[#allocation8] sm:$0x1]
        %v2374 = vlaneseq
        %v2375 = vshrl.u32 %v2374, 7
        %v2376 = vsub.s32 0, %v2375
        %v2377 = vrot.slane %v2372, %v2376
        %v2379 = vadd.f32 %v2370, %v2377
        %v2380 = vadd.f32 %v2371, %v2377
        %v2381 = vmax.f32 %v2379, 0.0
        %v2382 = vmax.f32 %v2380, 0.0
        %v2383 = vpack.c.bf16 %v2382, %v2381
        %2384 = vmatprep.subr.mxu0 0.0
        %2385 = vmatpush1.msra.mxu0 %v2381
        %2386 = vmatprep.subr.mxu0 0.0
        %2387 = vmatpush1.msra.mxu0 %v2382
        %2388 = vmatprep.subr.mxu0 0.0
        %2389 = vmatpush1.msra.mxu0 0.0
        %2390 = vmatprep.subr.mxu0 0.0
        %2391 = vmatpush1.msra.mxu0 0.0
        %2392 = vmatprep.subr.mxu0 0.0
        %2393 = vmatpush1.msra.mxu0 0.0
        %2394 = vmatprep.subr.mxu0 0.0
        %2395 = vmatpush1.msra.mxu0 0.0
        %2396 = vmatprep.subr.mxu0 0.0
        %2397 = vmatpush1.msra.mxu0 0.0
        %2398 = vmatprep.subr.mxu0 0.0
        %2399 = vmatpush1.msra.mxu0 0.0
        %2400 = vmatprep.subr.mxu0 0.0
        %2401 = vmatpush1.msra.mxu0 0.0
        %2402 = vmatprep.subr.mxu0 0.0
        %2403 = vmatpush1.msra.mxu0 0.0
        %2404 = vmatprep.subr.mxu0 0.0
        %2405 = vmatpush1.msra.mxu0 0.0
        %2406 = vmatprep.subr.mxu0 0.0
        %2407 = vmatpush1.msra.mxu0 0.0
        %2408 = vmatprep.subr.mxu0 0.0
        %2409 = vmatpush1.msra.mxu0 0.0
        %2410 = vmatprep.subr.mxu0 0.0
        %2411 = vmatpush1.msra.mxu0 0.0
        %2412 = vmatprep.subr.mxu0 0.0
        %2413 = vmatpush1.msra.mxu0 0.0
        %2414 = vmatprep.subr.mxu0 0.0
        %2415 = vmatpush1.msra.mxu0 0.0
        %2416 = vmatprep.subr.mxu0 0.0
        %2417 = vmatpush1.msra.mxu0 0.0
        %2418 = vmatprep.subr.mxu0 0.0
        %2419 = vmatpush1.msra.mxu0 0.0
        %2420 = vmatprep.subr.mxu0 0.0
        %2421 = vmatpush1.msra.mxu0 0.0
        %2422 = vmatprep.subr.mxu0 0.0
        %2423 = vmatpush1.msra.mxu0 0.0
        %2424 = vmatprep.subr.mxu0 0.0
        %2425 = vmatpush1.msra.mxu0 0.0
        %2426 = vmatprep.subr.mxu0 0.0
        %2427 = vmatpush1.msra.mxu0 0.0
        %2428 = vmatprep.subr.mxu0 0.0
        %2429 = vmatpush1.msra.mxu0 0.0
        %2430 = vmatprep.subr.mxu0 0.0
        %2431 = vmatpush1.msra.mxu0 0.0
        %2432 = vmatprep.subr.mxu0 0.0
        %2433 = vmatpush1.msra.mxu0 0.0
        %2434 = vmatprep.subr.mxu0 0.0
        %2435 = vmatpush1.msra.mxu0 0.0
        %2436 = vmatprep.subr.mxu0 0.0
        %2437 = vmatpush1.msra.mxu0 0.0
        %2438 = vmatprep.subr.mxu0 0.0
        %2439 = vmatpush1.msra.mxu0 0.0
        %2440 = vmatprep.subr.mxu0 0.0
        %2441 = vmatpush1.msra.mxu0 0.0
        %2442 = vmatprep.subr.mxu0 0.0
        %2443 = vmatpush1.msra.mxu0 0.0
        %2444 = vmatprep.subr.mxu0 0.0
        %2445 = vmatpush1.msra.mxu0 0.0
        %2446 = vmatprep.subr.mxu0 0.0
        %2447 = vmatpush1.msra.mxu0 0.0
        %2448 = vmatprep.mubr.f32.mxu0 0.0
        %2449 = vmatmul.mubr.f32.gmra.mrb[0].mxu0 %v1888
        %v2450 = vpop.f32.mrb[0].mxu0
        %v2451 = vadd.f32 0.0, %v2450
        %v2452 = vpop.f32.mrb[0].mxu0
        %2453 = vmatprep.mubr.f32.mxu0 0.0
        %2454 = vmatmul.mubr.f32.gmra.mrb[0].mxu0 %v1891
        %v2455 = vpop.f32.mrb[0].mxu0
        %v2456 = vadd.f32 0.0, %v2455
        %v2457 = vpop.f32.mrb[0].mxu0
        %2458 = vdwg.mxu0
        %v2459 = vpack.c.bf16 %v2456, %v2451
        %2460 = vmatprep.subr.mxu0 0.0
        %2461 = vmatpush1.msra.mxu0 %v2381
        %2462 = vmatprep.subr.mxu0 0.0
        %2463 = vmatpush1.msra.mxu0 %v2382
        %2464 = vmatprep.subr.mxu0 0.0
        %2465 = vmatpush1.msra.mxu0 0.0
        %2466 = vmatprep.subr.mxu0 0.0
        %2467 = vmatpush1.msra.mxu0 0.0
        %2468 = vmatprep.subr.mxu0 0.0
        %2469 = vmatpush1.msra.mxu0 0.0
        %2470 = vmatprep.subr.mxu0 0.0
        %2471 = vmatpush1.msra.mxu0 0.0
        %2472 = vmatprep.subr.mxu0 0.0
        %2473 = vmatpush1.msra.mxu0 0.0
        %2474 = vmatprep.subr.mxu0 0.0
        %2475 = vmatpush1.msra.mxu0 0.0
        %2476 = vmatprep.subr.mxu0 0.0
        %2477 = vmatpush1.msra.mxu0 0.0
        %2478 = vmatprep.subr.mxu0 0.0
        %2479 = vmatpush1.msra.mxu0 0.0
        %2480 = vmatprep.subr.mxu0 0.0
        %2481 = vmatpush1.msra.mxu0 0.0
        %2482 = vmatprep.subr.mxu0 0.0
        %2483 = vmatpush1.msra.mxu0 0.0
        %2484 = vmatprep.subr.mxu0 0.0
        %2485 = vmatpush1.msra.mxu0 0.0
        %2486 = vmatprep.subr.mxu0 0.0
        %2487 = vmatpush1.msra.mxu0 0.0
        %2488 = vmatprep.subr.mxu0 0.0
        %2489 = vmatpush1.msra.mxu0 0.0
        %2490 = vmatprep.subr.mxu0 0.0
        %2491 = vmatpush1.msra.mxu0 0.0
        %2492 = vmatprep.subr.mxu0 0.0
        %2493 = vmatpush1.msra.mxu0 0.0
        %2494 = vmatprep.subr.mxu0 0.0
        %2495 = vmatpush1.msra.mxu0 0.0
        %2496 = vmatprep.subr.mxu0 0.0
        %2497 = vmatpush1.msra.mxu0 0.0
        %2498 = vmatprep.subr.mxu0 0.0
        %2499 = vmatpush1.msra.mxu0 0.0
        %2500 = vmatprep.subr.mxu0 0.0
        %2501 = vmatpush1.msra.mxu0 0.0
        %2502 = vmatprep.subr.mxu0 0.0
        %2503 = vmatpush1.msra.mxu0 0.0
        %2504 = vmatprep.subr.mxu0 0.0
        %2505 = vmatpush1.msra.mxu0 0.0
        %2506 = vmatprep.subr.mxu0 0.0
        %2507 = vmatpush1.msra.mxu0 0.0
        %2508 = vmatprep.subr.mxu0 0.0
        %2509 = vmatpush1.msra.mxu0 0.0
        %2510 = vmatprep.subr.mxu0 0.0
        %2511 = vmatpush1.msra.mxu0 0.0
        %2512 = vmatprep.subr.mxu0 0.0
        %2513 = vmatpush1.msra.mxu0 0.0
        %2514 = vmatprep.subr.mxu0 0.0
        %2515 = vmatpush1.msra.mxu0 0.0
        %2516 = vmatprep.subr.mxu0 0.0
        %2517 = vmatpush1.msra.mxu0 0.0
        %2518 = vmatprep.subr.mxu0 0.0
        %2519 = vmatpush1.msra.mxu0 0.0
        %2520 = vmatprep.subr.mxu0 0.0
        %2521 = vmatpush1.msra.mxu0 0.0
        %2522 = vmatprep.subr.mxu0 0.0
        %2523 = vmatpush1.msra.mxu0 0.0
        %2524 = vmatprep.mubr.f32.mxu0 0.0
        %2525 = vmatmul.mubr.f32.gmra.mrb[0].mxu0 %v1972
        %v2526 = vpop.f32.mrb[0].mxu0
        %v2527 = vadd.f32 0.0, %v2526
        %v2528 = vpop.f32.mrb[0].mxu0
        %2529 = vmatprep.mubr.f32.mxu0 0.0
        %2530 = vmatmul.mubr.f32.gmra.mrb[0].mxu0 %v1975
        %v2531 = vpop.f32.mrb[0].mxu0
        %v2532 = vadd.f32 0.0, %v2531
        %v2533 = vpop.f32.mrb[0].mxu0
        %2534 = vdwg.mxu0
        %v2535 = vpack.c.bf16 %v2532, %v2527
        %v2536 = vld [vmem:[%s19] sm:$0xf]
        %v2537 = vld [vmem:[%s19 + $0x4] sm:$0xf]
        %v2538 = vld [vmem:[%s19 + $0x8] sm:$0xf]
        %v2539 = vld [vmem:[%s19 + $0xc] sm:$0xf]
        %v2540 = vld [vmem:[%s19 + $0x10] sm:$0xf]
        %v2541 = vld [vmem:[%s19 + $0x14] sm:$0xf]
        %v2542 = vld [vmem:[%s19 + $0x18] sm:$0xf]
        %v2543 = vld [vmem:[%s19 + $0x1c] sm:$0xf]
        %v2544 = vld [vmem:[%s19 + $0x20] sm:$0xf]
        %v2545 = vld [vmem:[%s19 + $0x24] sm:$0xf]
        %v2546 = vld [vmem:[%s19 + $0x28] sm:$0xf]
        %v2547 = vld [vmem:[%s19 + $0x2c] sm:$0xf]
        %v2548 = vld [vmem:[%s19 + $0x30] sm:$0xf]
        %v2549 = vld [vmem:[%s19 + $0x34] sm:$0xf]
        %v2550 = vld [vmem:[%s19 + $0x38] sm:$0xf]
        %v2551 = vld [vmem:[%s19 + $0x3c] sm:$0xf]
        %s2552 = scalar_lea.vmem %s19, 64
        %v2553 = vld [vmem:[%s2552] sm:$0xf]
        %v2554 = vld [vmem:[%s2552 + $0x4] sm:$0xf]
        %v2555 = vld [vmem:[%s2552 + $0x8] sm:$0xf]
        %v2556 = vld [vmem:[%s2552 + $0xc] sm:$0xf]
        %v2557 = vld [vmem:[%s2552 + $0x10] sm:$0xf]
        %v2558 = vld [vmem:[%s2552 + $0x14] sm:$0xf]
        %v2559 = vld [vmem:[%s2552 + $0x18] sm:$0xf]
        %v2560 = vld [vmem:[%s2552 + $0x1c] sm:$0xf]
        %v2561 = vld [vmem:[%s2552 + $0x20] sm:$0xf]
        %v2562 = vld [vmem:[%s2552 + $0x24] sm:$0xf]
        %v2563 = vld [vmem:[%s2552 + $0x28] sm:$0xf]
        %v2564 = vld [vmem:[%s2552 + $0x2c] sm:$0xf]
        %v2565 = vld [vmem:[%s2552 + $0x30] sm:$0xf]
        %v2566 = vld [vmem:[%s2552 + $0x34] sm:$0xf]
        %v2567 = vld [vmem:[%s2552 + $0x38] sm:$0xf]
        %v2568 = vld [vmem:[%s2552 + $0x3c] sm:$0xf]
        %v2585 = vunpack.c.l.b16 %v2553
        %v2586 = vunpack.c.l.b16 %v2554
        %v2587 = vunpack.c.l.b16 %v2555
        %v2588 = vunpack.c.l.b16 %v2556
        %v2589 = vunpack.c.l.b16 %v2557
        %v2590 = vunpack.c.l.b16 %v2558
        %v2591 = vunpack.c.l.b16 %v2559
        %v2592 = vunpack.c.l.b16 %v2560
        %v2593 = vunpack.c.l.b16 %v2561
        %v2594 = vunpack.c.l.b16 %v2562
        %v2595 = vunpack.c.l.b16 %v2563
        %v2596 = vunpack.c.l.b16 %v2564
        %v2597 = vunpack.c.l.b16 %v2565
        %v2598 = vunpack.c.l.b16 %v2566
        %v2599 = vunpack.c.l.b16 %v2567
        %v2600 = vunpack.c.l.b16 %v2568
        %v2601 = vpack.c.b16 %v2586, %v2585
        %v2602 = vpack.c.b16 %v2588, %v2587
        %v2603 = vpack.c.b16 %v2590, %v2589
        %v2604 = vpack.c.b16 %v2592, %v2591
        %v2605 = vpack.c.b16 %v2594, %v2593
        %v2606 = vpack.c.b16 %v2596, %v2595
        %v2607 = vpack.c.b16 %v2598, %v2597
        %v2608 = vpack.c.b16 %v2600, %v2599
        %2617 = vmatprep.subr.bf16.mxu0 0
        %2618 = vmatpush1.bf16.msra.mxu0 %v2601
        %2619 = vmatprep.subr.bf16.mxu0 0
        %2620 = vmatpush1.bf16.msra.mxu0 %v2602
        %2621 = vmatprep.subr.bf16.mxu0 0
        %2622 = vmatpush1.bf16.msra.mxu0 %v2603
        %2623 = vmatprep.subr.bf16.mxu0 0
        %2624 = vmatpush1.bf16.msra.mxu0 %v2604
        %2625 = vmatprep.subr.bf16.mxu0 0
        %2626 = vmatpush1.bf16.msra.mxu0 %v2605
        %2627 = vmatprep.subr.bf16.mxu0 0
        %2628 = vmatpush1.bf16.msra.mxu0 %v2606
        %2629 = vmatprep.subr.bf16.mxu0 0
        %2630 = vmatpush1.bf16.msra.mxu0 %v2607
        %2631 = vmatprep.subr.bf16.mxu0 0
        %2632 = vmatpush1.bf16.msra.mxu0 %v2608
        %2633 = vmatprep.subr.bf16.mxu0 0
        %2634 = vmatpush1.bf16.msra.mxu0 0
        %2635 = vmatprep.subr.bf16.mxu0 0
        %2636 = vmatpush1.bf16.msra.mxu0 0
        %2637 = vmatprep.subr.bf16.mxu0 0
        %2638 = vmatpush1.bf16.msra.mxu0 0
        %2639 = vmatprep.subr.bf16.mxu0 0
        %2640 = vmatpush1.bf16.msra.mxu0 0
        %2641 = vmatprep.subr.bf16.mxu0 0
        %2642 = vmatpush1.bf16.msra.mxu0 0
        %2643 = vmatprep.subr.bf16.mxu0 0
        %2644 = vmatpush1.bf16.msra.mxu0 0
        %2645 = vmatprep.subr.bf16.mxu0 0
        %2646 = vmatpush1.bf16.msra.mxu0 0
        %2647 = vmatprep.subr.bf16.mxu0 0
        %2648 = vmatpush1.bf16.msra.mxu0 0
        %2649 = vmatprep.mubr.bf16.mxu0 0
        %2650 = vmatmul.mubr.bf16.gmra.mrb[0].mxu0 %v2383
        %v2651 = vpop.f32.mrb[0].mxu0
        %v2652 = vadd.f32 0.0, %v2651
        %v2653 = vpop.f32.mrb[0].mxu0
        %v2654 = vpop.f32.mrb[0].mxu0
        %v2655 = vadd.f32 0.0, %v2654
        %v2656 = vpop.f32.mrb[0].mxu0
        %2657 = vdwg.mxu0
        %v2674 = vunpack.c.l.b16 %v2536
        %v2675 = vunpack.c.l.b16 %v2537
        %v2676 = vunpack.c.l.b16 %v2538
        %v2677 = vunpack.c.l.b16 %v2539
        %v2678 = vunpack.c.l.b16 %v2540
        %v2679 = vunpack.c.l.b16 %v2541
        %v2680 = vunpack.c.l.b16 %v2542
        %v2681 = vunpack.c.l.b16 %v2543
        %v2682 = vunpack.c.l.b16 %v2544
        %v2683 = vunpack.c.l.b16 %v2545
        %v2684 = vunpack.c.l.b16 %v2546
        %v2685 = vunpack.c.l.b16 %v2547
        %v2686 = vunpack.c.l.b16 %v2548
        %v2687 = vunpack.c.l.b16 %v2549
        %v2688 = vunpack.c.l.b16 %v2550
        %v2689 = vunpack.c.l.b16 %v2551
        %v2690 = vpack.c.b16 %v2675, %v2674
        %v2691 = vpack.c.b16 %v2677, %v2676
        %v2692 = vpack.c.b16 %v2679, %v2678
        %v2693 = vpack.c.b16 %v2681, %v2680
        %v2694 = vpack.c.b16 %v2683, %v2682
        %v2695 = vpack.c.b16 %v2685, %v2684
        %v2696 = vpack.c.b16 %v2687, %v2686
        %v2697 = vpack.c.b16 %v2689, %v2688
        %2706 = vmatprep.subr.bf16.mxu0 0
        %2707 = vmatpush1.bf16.msra.mxu0 %v2690
        %2708 = vmatprep.subr.bf16.mxu0 0
        %2709 = vmatpush1.bf16.msra.mxu0 %v2691
        %2710 = vmatprep.subr.bf16.mxu0 0
        %2711 = vmatpush1.bf16.msra.mxu0 %v2692
        %2712 = vmatprep.subr.bf16.mxu0 0
        %2713 = vmatpush1.bf16.msra.mxu0 %v2693
        %2714 = vmatprep.subr.bf16.mxu0 0
        %2715 = vmatpush1.bf16.msra.mxu0 %v2694
        %2716 = vmatprep.subr.bf16.mxu0 0
        %2717 = vmatpush1.bf16.msra.mxu0 %v2695
        %2718 = vmatprep.subr.bf16.mxu0 0
        %2719 = vmatpush1.bf16.msra.mxu0 %v2696
        %2720 = vmatprep.subr.bf16.mxu0 0
        %2721 = vmatpush1.bf16.msra.mxu0 %v2697
        %2722 = vmatprep.subr.bf16.mxu0 0
        %2723 = vmatpush1.bf16.msra.mxu0 0
        %2724 = vmatprep.subr.bf16.mxu0 0
        %2725 = vmatpush1.bf16.msra.mxu0 0
        %2726 = vmatprep.subr.bf16.mxu0 0
        %2727 = vmatpush1.bf16.msra.mxu0 0
        %2728 = vmatprep.subr.bf16.mxu0 0
        %2729 = vmatpush1.bf16.msra.mxu0 0
        %2730 = vmatprep.subr.bf16.mxu0 0
        %2731 = vmatpush1.bf16.msra.mxu0 0
        %2732 = vmatprep.subr.bf16.mxu0 0
        %2733 = vmatpush1.bf16.msra.mxu0 0
        %2734 = vmatprep.subr.bf16.mxu0 0
        %2735 = vmatpush1.bf16.msra.mxu0 0
        %2736 = vmatprep.subr.bf16.mxu0 0
        %2737 = vmatpush1.bf16.msra.mxu0 0
        %2738 = vmatprep.mubr.bf16.mxu0 0
        %2739 = vmatmul.mubr.bf16.gmra.mrb[0].mxu0 %v2459
        %v2740 = vpop.f32.mrb[0].mxu0
        %v2741 = vadd.f32 %v2652, %v2740
        %v2742 = vpop.f32.mrb[0].mxu0
        %v2743 = vpop.f32.mrb[0].mxu0
        %v2744 = vadd.f32 %v2655, %v2743
        %v2745 = vpop.f32.mrb[0].mxu0
        %2746 = vdwg.mxu0
        %s2747 = scalar_lea.vmem %s19, 128
        %v2748 = vld [vmem:[%s2747] sm:$0xf]
        %v2749 = vld [vmem:[%s2747 + $0x4] sm:$0xf]
        %v2750 = vld [vmem:[%s2747 + $0x8] sm:$0xf]
        %v2751 = vld [vmem:[%s2747 + $0xc] sm:$0xf]
        %v2752 = vld [vmem:[%s2747 + $0x10] sm:$0xf]
        %v2753 = vld [vmem:[%s2747 + $0x14] sm:$0xf]
        %v2754 = vld [vmem:[%s2747 + $0x18] sm:$0xf]
        %v2755 = vld [vmem:[%s2747 + $0x1c] sm:$0xf]
        %v2756 = vld [vmem:[%s2747 + $0x20] sm:$0xf]
        %v2757 = vld [vmem:[%s2747 + $0x24] sm:$0xf]
        %v2758 = vld [vmem:[%s2747 + $0x28] sm:$0xf]
        %v2759 = vld [vmem:[%s2747 + $0x2c] sm:$0xf]
        %v2760 = vld [vmem:[%s2747 + $0x30] sm:$0xf]
        %v2761 = vld [vmem:[%s2747 + $0x34] sm:$0xf]
        %v2762 = vld [vmem:[%s2747 + $0x38] sm:$0xf]
        %v2763 = vld [vmem:[%s2747 + $0x3c] sm:$0xf]
        %v2780 = vunpack.c.l.b16 %v2748
        %v2781 = vunpack.c.l.b16 %v2749
        %v2782 = vunpack.c.l.b16 %v2750
        %v2783 = vunpack.c.l.b16 %v2751
        %v2784 = vunpack.c.l.b16 %v2752
        %v2785 = vunpack.c.l.b16 %v2753
        %v2786 = vunpack.c.l.b16 %v2754
        %v2787 = vunpack.c.l.b16 %v2755
        %v2788 = vunpack.c.l.b16 %v2756
        %v2789 = vunpack.c.l.b16 %v2757
        %v2790 = vunpack.c.l.b16 %v2758
        %v2791 = vunpack.c.l.b16 %v2759
        %v2792 = vunpack.c.l.b16 %v2760
        %v2793 = vunpack.c.l.b16 %v2761
        %v2794 = vunpack.c.l.b16 %v2762
        %v2795 = vunpack.c.l.b16 %v2763
        %v2796 = vpack.c.b16 %v2781, %v2780
        %v2797 = vpack.c.b16 %v2783, %v2782
        %v2798 = vpack.c.b16 %v2785, %v2784
        %v2799 = vpack.c.b16 %v2787, %v2786
        %v2800 = vpack.c.b16 %v2789, %v2788
        %v2801 = vpack.c.b16 %v2791, %v2790
        %v2802 = vpack.c.b16 %v2793, %v2792
        %v2803 = vpack.c.b16 %v2795, %v2794
        %2812 = vmatprep.subr.bf16.mxu0 0
        %2813 = vmatpush1.bf16.msra.mxu0 %v2796
        %2814 = vmatprep.subr.bf16.mxu0 0
        %2815 = vmatpush1.bf16.msra.mxu0 %v2797
        %2816 = vmatprep.subr.bf16.mxu0 0
        %2817 = vmatpush1.bf16.msra.mxu0 %v2798
        %2818 = vmatprep.subr.bf16.mxu0 0
        %2819 = vmatpush1.bf16.msra.mxu0 %v2799
        %2820 = vmatprep.subr.bf16.mxu0 0
        %2821 = vmatpush1.bf16.msra.mxu0 %v2800
        %2822 = vmatprep.subr.bf16.mxu0 0
        %2823 = vmatpush1.bf16.msra.mxu0 %v2801
        %2824 = vmatprep.subr.bf16.mxu0 0
        %2825 = vmatpush1.bf16.msra.mxu0 %v2802
        %2826 = vmatprep.subr.bf16.mxu0 0
        %2827 = vmatpush1.bf16.msra.mxu0 %v2803
        %2828 = vmatprep.subr.bf16.mxu0 0
        %2829 = vmatpush1.bf16.msra.mxu0 0
        %2830 = vmatprep.subr.bf16.mxu0 0
        %2831 = vmatpush1.bf16.msra.mxu0 0
        %2832 = vmatprep.subr.bf16.mxu0 0
        %2833 = vmatpush1.bf16.msra.mxu0 0
        %2834 = vmatprep.subr.bf16.mxu0 0
        %2835 = vmatpush1.bf16.msra.mxu0 0
        %2836 = vmatprep.subr.bf16.mxu0 0
        %2837 = vmatpush1.bf16.msra.mxu0 0
        %2838 = vmatprep.subr.bf16.mxu0 0
        %2839 = vmatpush1.bf16.msra.mxu0 0
        %2840 = vmatprep.subr.bf16.mxu0 0
        %2841 = vmatpush1.bf16.msra.mxu0 0
        %2842 = vmatprep.subr.bf16.mxu0 0
        %2843 = vmatpush1.bf16.msra.mxu0 0
        %2844 = vmatprep.mubr.bf16.mxu0 0
        %2845 = vmatmul.mubr.bf16.gmra.mrb[0].mxu0 %v2535
        %v2846 = vpop.f32.mrb[0].mxu0
        %v2847 = vadd.f32 0.0, %v2846
        %v2848 = vpop.f32.mrb[0].mxu0
        %v2849 = vpop.f32.mrb[0].mxu0
        %v2850 = vadd.f32 0.0, %v2849
        %v2851 = vpop.f32.mrb[0].mxu0
        %2852 = vdwg.mxu0
        %v2853 = vadd.f32 %v2741, %v2847
        %v2854 = vadd.f32 %v2744, %v2850
        %v2855 = vld [vmem:[#allocation10] sm:$0x1]
        %v2857 = vlaneseq
        %v2858 = vshrl.u32 %v2857, 7
        %v2859 = vsub.s32 0, %v2858
        %v2860 = vrot.slane %v2855, %v2859
        %v2862 = vadd.f32 %v2853, %v2860
        %v2863 = vadd.f32 %v2854, %v2860
        %v2864 = vadd.f32 %v2862, %v1882
        %v2865 = vadd.f32 %v2863, %v1883
        %v2866 = vmax.f32 %v2864, 0.0
        %v2867 = vmax.f32 %v2865, 0.0
        %v2868 = vld [vmem:[%s27] sm:$0xff]
        %v2870 = vsel %vm1715, %v2868, 0
        %2872 = vmatprep.subr.mxu0 0.0
        %2873 = vmatpush1.msra.mxu0 %v2866
        %2874 = vmatprep.subr.mxu0 0.0
        %2875 = vmatpush1.msra.mxu0 %v2867
        %2876 = vmatprep.subr.mxu0 0.0
        %2877 = vmatpush1.msra.mxu0 0.0
        %2878 = vmatprep.subr.mxu0 0.0
        %2879 = vmatpush1.msra.mxu0 0.0
        %2880 = vmatprep.subr.mxu0 0.0
        %2881 = vmatpush1.msra.mxu0 0.0
        %2882 = vmatprep.subr.mxu0 0.0
        %2883 = vmatpush1.msra.mxu0 0.0
        %2884 = vmatprep.subr.mxu0 0.0
        %2885 = vmatpush1.msra.mxu0 0.0
        %2886 = vmatprep.subr.mxu0 0.0
        %2887 = vmatpush1.msra.mxu0 0.0
        %2888 = vmatprep.subr.mxu0 0.0
        %2889 = vmatpush1.msra.mxu0 0.0
        %2890 = vmatprep.subr.mxu0 0.0
        %2891 = vmatpush1.msra.mxu0 0.0
        %2892 = vmatprep.subr.mxu0 0.0
        %2893 = vmatpush1.msra.mxu0 0.0
        %2894 = vmatprep.subr.mxu0 0.0
        %2895 = vmatpush1.msra.mxu0 0.0
        %2896 = vmatprep.subr.mxu0 0.0
        %2897 = vmatpush1.msra.mxu0 0.0
        %2898 = vmatprep.subr.mxu0 0.0
        %2899 = vmatpush1.msra.mxu0 0.0
        %2900 = vmatprep.subr.mxu0 0.0
        %2901 = vmatpush1.msra.mxu0 0.0
        %2902 = vmatprep.subr.mxu0 0.0
        %2903 = vmatpush1.msra.mxu0 0.0
        %2904 = vmatprep.subr.mxu0 0.0
        %2905 = vmatpush1.msra.mxu0 0.0
        %2906 = vmatprep.subr.mxu0 0.0
        %2907 = vmatpush1.msra.mxu0 0.0
        %2908 = vmatprep.subr.mxu0 0.0
        %2909 = vmatpush1.msra.mxu0 0.0
        %2910 = vmatprep.subr.mxu0 0.0
        %2911 = vmatpush1.msra.mxu0 0.0
        %2912 = vmatprep.subr.mxu0 0.0
        %2913 = vmatpush1.msra.mxu0 0.0
        %2914 = vmatprep.subr.mxu0 0.0
        %2915 = vmatpush1.msra.mxu0 0.0
        %2916 = vmatprep.subr.mxu0 0.0
        %2917 = vmatpush1.msra.mxu0 0.0
        %2918 = vmatprep.subr.mxu0 0.0
        %2919 = vmatpush1.msra.mxu0 0.0
        %2920 = vmatprep.subr.mxu0 0.0
        %2921 = vmatpush1.msra.mxu0 0.0
        %2922 = vmatprep.subr.mxu0 0.0
        %2923 = vmatpush1.msra.mxu0 0.0
        %2924 = vmatprep.subr.mxu0 0.0
        %2925 = vmatpush1.msra.mxu0 0.0
        %2926 = vmatprep.subr.mxu0 0.0
        %2927 = vmatpush1.msra.mxu0 0.0
        %2928 = vmatprep.subr.mxu0 0.0
        %2929 = vmatpush1.msra.mxu0 0.0
        %2930 = vmatprep.subr.mxu0 0.0
        %2931 = vmatpush1.msra.mxu0 0.0
        %2932 = vmatprep.subr.mxu0 0.0
        %2933 = vmatpush1.msra.mxu0 0.0
        %2934 = vmatprep.subr.mxu0 0.0
        %2935 = vmatpush1.msra.mxu0 0.0
        %2936 = vmatprep.mubr.f32.mxu0 0.0
        %2937 = vmatmul.mubr.f32.gmra.mrb[0].mxu0 %v2870
        %v2938 = vpop.f32.mrb[0].mxu0
        %v2939 = vadd.f32 0.0, %v2938
        %v2940 = vpop.f32.mrb[0].mxu0
        %2941 = vdwg.mxu0
        %v2942 = vpack.c.bf16 %v2939, %v2939
        %v2943 = vld [vmem:[%s29] sm:$0xff]
        %v2945 = vsel %vm1715, %v2943, 0
        %2947 = vmatprep.subr.mxu0 0.0
        %2948 = vmatpush1.msra.mxu0 %v2866
        %2949 = vmatprep.subr.mxu0 0.0
        %2950 = vmatpush1.msra.mxu0 %v2867
        %2951 = vmatprep.subr.mxu0 0.0
        %2952 = vmatpush1.msra.mxu0 0.0
        %2953 = vmatprep.subr.mxu0 0.0
        %2954 = vmatpush1.msra.mxu0 0.0
        %2955 = vmatprep.subr.mxu0 0.0
        %2956 = vmatpush1.msra.mxu0 0.0
        %2957 = vmatprep.subr.mxu0 0.0
        %2958 = vmatpush1.msra.mxu0 0.0
        %2959 = vmatprep.subr.mxu0 0.0
        %2960 = vmatpush1.msra.mxu0 0.0
        %2961 = vmatprep.subr.mxu0 0.0
        %2962 = vmatpush1.msra.mxu0 0.0
        %2963 = vmatprep.subr.mxu0 0.0
        %2964 = vmatpush1.msra.mxu0 0.0
        %2965 = vmatprep.subr.mxu0 0.0
        %2966 = vmatpush1.msra.mxu0 0.0
        %2967 = vmatprep.subr.mxu0 0.0
        %2968 = vmatpush1.msra.mxu0 0.0
        %2969 = vmatprep.subr.mxu0 0.0
        %2970 = vmatpush1.msra.mxu0 0.0
        %2971 = vmatprep.subr.mxu0 0.0
        %2972 = vmatpush1.msra.mxu0 0.0
        %2973 = vmatprep.subr.mxu0 0.0
        %2974 = vmatpush1.msra.mxu0 0.0
        %2975 = vmatprep.subr.mxu0 0.0
        %2976 = vmatpush1.msra.mxu0 0.0
        %2977 = vmatprep.subr.mxu0 0.0
        %2978 = vmatpush1.msra.mxu0 0.0
        %2979 = vmatprep.subr.mxu0 0.0
        %2980 = vmatpush1.msra.mxu0 0.0
        %2981 = vmatprep.subr.mxu0 0.0
        %2982 = vmatpush1.msra.mxu0 0.0
        %2983 = vmatprep.subr.mxu0 0.0
        %2984 = vmatpush1.msra.mxu0 0.0
        %2985 = vmatprep.subr.mxu0 0.0
        %2986 = vmatpush1.msra.mxu0 0.0
        %2987 = vmatprep.subr.mxu0 0.0
        %2988 = vmatpush1.msra.mxu0 0.0
        %2989 = vmatprep.subr.mxu0 0.0
        %2990 = vmatpush1.msra.mxu0 0.0
        %2991 = vmatprep.subr.mxu0 0.0
        %2992 = vmatpush1.msra.mxu0 0.0
        %2993 = vmatprep.subr.mxu0 0.0
        %2994 = vmatpush1.msra.mxu0 0.0
        %2995 = vmatprep.subr.mxu0 0.0
        %2996 = vmatpush1.msra.mxu0 0.0
        %2997 = vmatprep.subr.mxu0 0.0
        %2998 = vmatpush1.msra.mxu0 0.0
        %2999 = vmatprep.subr.mxu0 0.0
        %3000 = vmatpush1.msra.mxu0 0.0
        %3001 = vmatprep.subr.mxu0 0.0
        %3002 = vmatpush1.msra.mxu0 0.0
        %3003 = vmatprep.subr.mxu0 0.0
        %3004 = vmatpush1.msra.mxu0 0.0
        %3005 = vmatprep.subr.mxu0 0.0
        %3006 = vmatpush1.msra.mxu0 0.0
        %3007 = vmatprep.subr.mxu0 0.0
        %3008 = vmatpush1.msra.mxu0 0.0
        %3009 = vmatprep.subr.mxu0 0.0
        %3010 = vmatpush1.msra.mxu0 0.0
        %3011 = vmatprep.mubr.f32.mxu0 0.0
        %3012 = vmatmul.mubr.f32.gmra.mrb[0].mxu0 %v2945
        %v3013 = vpop.f32.mrb[0].mxu0
        %v3014 = vadd.f32 0.0, %v3013
        %v3015 = vpop.f32.mrb[0].mxu0
        %3016 = vdwg.mxu0
        %v3017 = vpack.c.bf16 %v3014, %v3014
        %v3018 = vld [vmem:[%s31] sm:$0xff]
        %v3020 = vsel %vm1715, %v3018, 0
        %3022 = vmatprep.subr.mxu0 0.0
        %3023 = vmatpush1.msra.mxu0 %v2866
        %3024 = vmatprep.subr.mxu0 0.0
        %3025 = vmatpush1.msra.mxu0 %v2867
        %3026 = vmatprep.subr.mxu0 0.0
        %3027 = vmatpush1.msra.mxu0 0.0
        %3028 = vmatprep.subr.mxu0 0.0
        %3029 = vmatpush1.msra.mxu0 0.0
        %3030 = vmatprep.subr.mxu0 0.0
        %3031 = vmatpush1.msra.mxu0 0.0
        %3032 = vmatprep.subr.mxu0 0.0
        %3033 = vmatpush1.msra.mxu0 0.0
        %3034 = vmatprep.subr.mxu0 0.0
        %3035 = vmatpush1.msra.mxu0 0.0
        %3036 = vmatprep.subr.mxu0 0.0
        %3037 = vmatpush1.msra.mxu0 0.0
        %3038 = vmatprep.subr.mxu0 0.0
        %3039 = vmatpush1.msra.mxu0 0.0
        %3040 = vmatprep.subr.mxu0 0.0
        %3041 = vmatpush1.msra.mxu0 0.0
        %3042 = vmatprep.subr.mxu0 0.0
        %3043 = vmatpush1.msra.mxu0 0.0
        %3044 = vmatprep.subr.mxu0 0.0
        %3045 = vmatpush1.msra.mxu0 0.0
        %3046 = vmatprep.subr.mxu0 0.0
        %3047 = vmatpush1.msra.mxu0 0.0
        %3048 = vmatprep.subr.mxu0 0.0
        %3049 = vmatpush1.msra.mxu0 0.0
        %3050 = vmatprep.subr.mxu0 0.0
        %3051 = vmatpush1.msra.mxu0 0.0
        %3052 = vmatprep.subr.mxu0 0.0
        %3053 = vmatpush1.msra.mxu0 0.0
        %3054 = vmatprep.subr.mxu0 0.0
        %3055 = vmatpush1.msra.mxu0 0.0
        %3056 = vmatprep.subr.mxu0 0.0
        %3057 = vmatpush1.msra.mxu0 0.0
        %3058 = vmatprep.subr.mxu0 0.0
        %3059 = vmatpush1.msra.mxu0 0.0
        %3060 = vmatprep.subr.mxu0 0.0
        %3061 = vmatpush1.msra.mxu0 0.0
        %3062 = vmatprep.subr.mxu0 0.0
        %3063 = vmatpush1.msra.mxu0 0.0
        %3064 = vmatprep.subr.mxu0 0.0
        %3065 = vmatpush1.msra.mxu0 0.0
        %3066 = vmatprep.subr.mxu0 0.0
        %3067 = vmatpush1.msra.mxu0 0.0
        %3068 = vmatprep.subr.mxu0 0.0
        %3069 = vmatpush1.msra.mxu0 0.0
        %3070 = vmatprep.subr.mxu0 0.0
        %3071 = vmatpush1.msra.mxu0 0.0
        %3072 = vmatprep.subr.mxu0 0.0
        %3073 = vmatpush1.msra.mxu0 0.0
        %3074 = vmatprep.subr.mxu0 0.0
        %3075 = vmatpush1.msra.mxu0 0.0
        %3076 = vmatprep.subr.mxu0 0.0
        %3077 = vmatpush1.msra.mxu0 0.0
        %3078 = vmatprep.subr.mxu0 0.0
        %3079 = vmatpush1.msra.mxu0 0.0
        %3080 = vmatprep.subr.mxu0 0.0
        %3081 = vmatpush1.msra.mxu0 0.0
        %3082 = vmatprep.subr.mxu0 0.0
        %3083 = vmatpush1.msra.mxu0 0.0
        %3084 = vmatprep.subr.mxu0 0.0
        %3085 = vmatpush1.msra.mxu0 0.0
        %3086 = vmatprep.mubr.f32.mxu0 0.0
        %3087 = vmatmul.mubr.f32.gmra.mrb[0].mxu0 %v3020
        %v3088 = vpop.f32.mrb[0].mxu0
        %v3089 = vadd.f32 0.0, %v3088
        %v3090 = vpop.f32.mrb[0].mxu0
        %3091 = vdwg.mxu0
        %v3092 = vpack.c.bf16 %v3089, %v3089
        %v3093 = vld [vmem:[%s35] sm:$0xff]
        %v3094 = vld [vmem:[%s35 + $0x8] sm:$0xff]
        %v3095 = vld [vmem:[%s35 + $0x10] sm:$0xff]
        %v3096 = vld [vmem:[%s35 + $0x18] sm:$0xff]
        %v3097 = vld [vmem:[%s35 + $0x20] sm:$0xff]
        %v3098 = vld [vmem:[%s35 + $0x28] sm:$0xff]
        %v3099 = vld [vmem:[%s35 + $0x30] sm:$0xff]
        %v3100 = vld [vmem:[%s35 + $0x38] sm:$0xff]
        %v3101 = vld [vmem:[%s35 + $0x40] sm:$0xff]
        %v3102 = vld [vmem:[%s35 + $0x48] sm:$0xff]
        %v3103 = vld [vmem:[%s35 + $0x50] sm:$0xff]
        %v3104 = vld [vmem:[%s35 + $0x58] sm:$0xff]
        %v3105 = vld [vmem:[%s35 + $0x60] sm:$0xff]
        %v3106 = vld [vmem:[%s35 + $0x68] sm:$0xff]
        %v3107 = vld [vmem:[%s35 + $0x70] sm:$0xff]
        %v3108 = vld [vmem:[%s35 + $0x78] sm:$0xff]
        %v3125 = vunpack.c.l.b16 %v3093
        %v3126 = vunpack.c.h.b16 %v3093
        %v3127 = vunpack.c.l.b16 %v3094
        %v3128 = vunpack.c.h.b16 %v3094
        %v3129 = vunpack.c.l.b16 %v3095
        %v3130 = vunpack.c.h.b16 %v3095
        %v3131 = vunpack.c.l.b16 %v3096
        %v3132 = vunpack.c.h.b16 %v3096
        %v3133 = vunpack.c.l.b16 %v3097
        %v3134 = vunpack.c.h.b16 %v3097
        %v3135 = vunpack.c.l.b16 %v3098
        %v3136 = vunpack.c.h.b16 %v3098
        %v3137 = vunpack.c.l.b16 %v3099
        %v3138 = vunpack.c.h.b16 %v3099
        %v3139 = vunpack.c.l.b16 %v3100
        %v3140 = vunpack.c.h.b16 %v3100
        %v3141 = vunpack.c.l.b16 %v3101
        %v3142 = vunpack.c.h.b16 %v3101
        %v3143 = vunpack.c.l.b16 %v3102
        %v3144 = vunpack.c.h.b16 %v3102
        %v3145 = vunpack.c.l.b16 %v3103
        %v3146 = vunpack.c.h.b16 %v3103
        %v3147 = vunpack.c.l.b16 %v3104
        %v3148 = vunpack.c.h.b16 %v3104
        %v3149 = vunpack.c.l.b16 %v3105
        %v3150 = vunpack.c.h.b16 %v3105
        %v3151 = vunpack.c.l.b16 %v3106
        %v3152 = vunpack.c.h.b16 %v3106
        %v3153 = vunpack.c.l.b16 %v3107
        %v3154 = vunpack.c.h.b16 %v3107
        %v3155 = vunpack.c.l.b16 %v3108
        %v3156 = vunpack.c.h.b16 %v3108
        %v3157 = vpack.c.b16 %v3127, %v3125
        %v3158 = vpack.c.b16 %v3128, %v3126
        %v3159 = vpack.c.b16 %v3131, %v3129
        %v3160 = vpack.c.b16 %v3132, %v3130
        %v3161 = vpack.c.b16 %v3135, %v3133
        %v3162 = vpack.c.b16 %v3136, %v3134
        %v3163 = vpack.c.b16 %v3139, %v3137
        %v3164 = vpack.c.b16 %v3140, %v3138
        %v3165 = vpack.c.b16 %v3143, %v3141
        %v3166 = vpack.c.b16 %v3144, %v3142
        %v3167 = vpack.c.b16 %v3147, %v3145
        %v3168 = vpack.c.b16 %v3148, %v3146
        %v3169 = vpack.c.b16 %v3151, %v3149
        %v3170 = vpack.c.b16 %v3152, %v3150
        %v3171 = vpack.c.b16 %v3155, %v3153
        %v3172 = vpack.c.b16 %v3156, %v3154
        %3189 = vmatprep.subr.bf16.mxu0 %v3158
        %3190 = vmatpush1.bf16.msra.mxu0 %v3157
        %3191 = vmatprep.subr.bf16.mxu0 %v3160
        %3192 = vmatpush1.bf16.msra.mxu0 %v3159
        %3193 = vmatprep.subr.bf16.mxu0 %v3162
        %3194 = vmatpush1.bf16.msra.mxu0 %v3161
        %3195 = vmatprep.subr.bf16.mxu0 %v3164
        %3196 = vmatpush1.bf16.msra.mxu0 %v3163
        %3197 = vmatprep.subr.bf16.mxu0 %v3166
        %3198 = vmatpush1.bf16.msra.mxu0 %v3165
        %3199 = vmatprep.subr.bf16.mxu0 %v3168
        %3200 = vmatpush1.bf16.msra.mxu0 %v3167
        %3201 = vmatprep.subr.bf16.mxu0 %v3170
        %3202 = vmatpush1.bf16.msra.mxu0 %v3169
        %3203 = vmatprep.subr.bf16.mxu0 %v3172
        %3204 = vmatpush1.bf16.msra.mxu0 %v3171
        %3205 = vmatprep.subr.bf16.mxu0 0
        %3206 = vmatpush1.bf16.msra.mxu0 0
        %3207 = vmatprep.subr.bf16.mxu0 0
        %3208 = vmatpush1.bf16.msra.mxu0 0
        %3209 = vmatprep.subr.bf16.mxu0 0
        %3210 = vmatpush1.bf16.msra.mxu0 0
        %3211 = vmatprep.subr.bf16.mxu0 0
        %3212 = vmatpush1.bf16.msra.mxu0 0
        %3213 = vmatprep.subr.bf16.mxu0 0
        %3214 = vmatpush1.bf16.msra.mxu0 0
        %3215 = vmatprep.subr.bf16.mxu0 0
        %3216 = vmatpush1.bf16.msra.mxu0 0
        %3217 = vmatprep.subr.bf16.mxu0 0
        %3218 = vmatpush1.bf16.msra.mxu0 0
        %3219 = vmatprep.subr.bf16.mxu0 0
        %3220 = vmatpush1.bf16.msra.mxu0 0
        %3221 = vmatprep.mubr.bf16.mxu0 0
        %3222 = vmatmul.mubr.bf16.gmra.mrb[0].mxu0 %v3017
        %v3223 = vpop.f32.mrb[0].mxu0
        %v3224 = vadd.f32 0.0, %v3223
        %v3225 = vpop.f32.mrb[0].mxu0
        %v3226 = vadd.f32 0.0, %v3225
        %v3227 = vpop.f32.mrb[0].mxu0
        %v3228 = vpop.f32.mrb[0].mxu0
        %3229 = vdwg.mxu0
        %v3230 = vld [vmem:[%s33] sm:$0xf]
        %v3231 = vld [vmem:[%s33 + $0x4] sm:$0xf]
        %v3232 = vld [vmem:[%s33 + $0x8] sm:$0xf]
        %v3233 = vld [vmem:[%s33 + $0xc] sm:$0xf]
        %v3234 = vld [vmem:[%s33 + $0x10] sm:$0xf]
        %v3235 = vld [vmem:[%s33 + $0x14] sm:$0xf]
        %v3236 = vld [vmem:[%s33 + $0x18] sm:$0xf]
        %v3237 = vld [vmem:[%s33 + $0x1c] sm:$0xf]
        %v3238 = vld [vmem:[%s33 + $0x20] sm:$0xf]
        %v3239 = vld [vmem:[%s33 + $0x24] sm:$0xf]
        %v3240 = vld [vmem:[%s33 + $0x28] sm:$0xf]
        %v3241 = vld [vmem:[%s33 + $0x2c] sm:$0xf]
        %v3242 = vld [vmem:[%s33 + $0x30] sm:$0xf]
        %v3243 = vld [vmem:[%s33 + $0x34] sm:$0xf]
        %v3244 = vld [vmem:[%s33 + $0x38] sm:$0xf]
        %v3245 = vld [vmem:[%s33 + $0x3c] sm:$0xf]
        %v3262 = vunpack.c.l.b16 %v3230
        %v3263 = vunpack.c.l.b16 %v3231
        %v3264 = vunpack.c.l.b16 %v3232
        %v3265 = vunpack.c.l.b16 %v3233
        %v3266 = vunpack.c.l.b16 %v3234
        %v3267 = vunpack.c.l.b16 %v3235
        %v3268 = vunpack.c.l.b16 %v3236
        %v3269 = vunpack.c.l.b16 %v3237
        %v3270 = vunpack.c.l.b16 %v3238
        %v3271 = vunpack.c.l.b16 %v3239
        %v3272 = vunpack.c.l.b16 %v3240
        %v3273 = vunpack.c.l.b16 %v3241
        %v3274 = vunpack.c.l.b16 %v3242
        %v3275 = vunpack.c.l.b16 %v3243
        %v3276 = vunpack.c.l.b16 %v3244
        %v3277 = vunpack.c.l.b16 %v3245
        %v3278 = vpack.c.b16 %v3263, %v3262
        %v3279 = vpack.c.b16 %v3265, %v3264
        %v3280 = vpack.c.b16 %v3267, %v3266
        %v3281 = vpack.c.b16 %v3269, %v3268
        %v3282 = vpack.c.b16 %v3271, %v3270
        %v3283 = vpack.c.b16 %v3273, %v3272
        %v3284 = vpack.c.b16 %v3275, %v3274
        %v3285 = vpack.c.b16 %v3277, %v3276
        %3294 = vmatprep.subr.bf16.mxu0 0
        %3295 = vmatpush1.bf16.msra.mxu0 %v3278
        %3296 = vmatprep.subr.bf16.mxu0 0
        %3297 = vmatpush1.bf16.msra.mxu0 %v3279
        %3298 = vmatprep.subr.bf16.mxu0 0
        %3299 = vmatpush1.bf16.msra.mxu0 %v3280
        %3300 = vmatprep.subr.bf16.mxu0 0
        %3301 = vmatpush1.bf16.msra.mxu0 %v3281
        %3302 = vmatprep.subr.bf16.mxu0 0
        %3303 = vmatpush1.bf16.msra.mxu0 %v3282
        %3304 = vmatprep.subr.bf16.mxu0 0
        %3305 = vmatpush1.bf16.msra.mxu0 %v3283
        %3306 = vmatprep.subr.bf16.mxu0 0
        %3307 = vmatpush1.bf16.msra.mxu0 %v3284
        %3308 = vmatprep.subr.bf16.mxu0 0
        %3309 = vmatpush1.bf16.msra.mxu0 %v3285
        %3310 = vmatprep.subr.bf16.mxu0 0
        %3311 = vmatpush1.bf16.msra.mxu0 0
        %3312 = vmatprep.subr.bf16.mxu0 0
        %3313 = vmatpush1.bf16.msra.mxu0 0
        %3314 = vmatprep.subr.bf16.mxu0 0
        %3315 = vmatpush1.bf16.msra.mxu0 0
        %3316 = vmatprep.subr.bf16.mxu0 0
        %3317 = vmatpush1.bf16.msra.mxu0 0
        %3318 = vmatprep.subr.bf16.mxu0 0
        %3319 = vmatpush1.bf16.msra.mxu0 0
        %3320 = vmatprep.subr.bf16.mxu0 0
        %3321 = vmatpush1.bf16.msra.mxu0 0
        %3322 = vmatprep.subr.bf16.mxu0 0
        %3323 = vmatpush1.bf16.msra.mxu0 0
        %3324 = vmatprep.subr.bf16.mxu0 0
        %3325 = vmatpush1.bf16.msra.mxu0 0
        %3326 = vmatprep.mubr.bf16.mxu0 0
        %3327 = vmatmul.mubr.bf16.gmra.mrb[0].mxu0 %v2942
        %v3328 = vpop.f32.mrb[0].mxu0
        %v3329 = vadd.f32 %v3224, %v3328
        %v3330 = vpop.f32.mrb[0].mxu0
        %v3331 = vpop.f32.mrb[0].mxu0
        %v3332 = vpop.f32.mrb[0].mxu0
        %3333 = vdwg.mxu0
        %s3334 = scalar_lea.vmem %s33, 64
        %v3335 = vld [vmem:[%s3334] sm:$0xf]
        %v3336 = vld [vmem:[%s3334 + $0x4] sm:$0xf]
        %v3337 = vld [vmem:[%s3334 + $0x8] sm:$0xf]
        %v3338 = vld [vmem:[%s3334 + $0xc] sm:$0xf]
        %v3339 = vld [vmem:[%s3334 + $0x10] sm:$0xf]
        %v3340 = vld [vmem:[%s3334 + $0x14] sm:$0xf]
        %v3341 = vld [vmem:[%s3334 + $0x18] sm:$0xf]
        %v3342 = vld [vmem:[%s3334 + $0x1c] sm:$0xf]
        %v3343 = vld [vmem:[%s3334 + $0x20] sm:$0xf]
        %v3344 = vld [vmem:[%s3334 + $0x24] sm:$0xf]
        %v3345 = vld [vmem:[%s3334 + $0x28] sm:$0xf]
        %v3346 = vld [vmem:[%s3334 + $0x2c] sm:$0xf]
        %v3347 = vld [vmem:[%s3334 + $0x30] sm:$0xf]
        %v3348 = vld [vmem:[%s3334 + $0x34] sm:$0xf]
        %v3349 = vld [vmem:[%s3334 + $0x38] sm:$0xf]
        %v3350 = vld [vmem:[%s3334 + $0x3c] sm:$0xf]
        %v3367 = vunpack.c.l.b16 %v3335
        %v3368 = vunpack.c.l.b16 %v3336
        %v3369 = vunpack.c.l.b16 %v3337
        %v3370 = vunpack.c.l.b16 %v3338
        %v3371 = vunpack.c.l.b16 %v3339
        %v3372 = vunpack.c.l.b16 %v3340
        %v3373 = vunpack.c.l.b16 %v3341
        %v3374 = vunpack.c.l.b16 %v3342
        %v3375 = vunpack.c.l.b16 %v3343
        %v3376 = vunpack.c.l.b16 %v3344
        %v3377 = vunpack.c.l.b16 %v3345
        %v3378 = vunpack.c.l.b16 %v3346
        %v3379 = vunpack.c.l.b16 %v3347
        %v3380 = vunpack.c.l.b16 %v3348
        %v3381 = vunpack.c.l.b16 %v3349
        %v3382 = vunpack.c.l.b16 %v3350
        %v3383 = vpack.c.b16 %v3368, %v3367
        %v3384 = vpack.c.b16 %v3370, %v3369
        %v3385 = vpack.c.b16 %v3372, %v3371
        %v3386 = vpack.c.b16 %v3374, %v3373
        %v3387 = vpack.c.b16 %v3376, %v3375
        %v3388 = vpack.c.b16 %v3378, %v3377
        %v3389 = vpack.c.b16 %v3380, %v3379
        %v3390 = vpack.c.b16 %v3382, %v3381
        %3399 = vmatprep.subr.bf16.mxu0 0
        %3400 = vmatpush1.bf16.msra.mxu0 %v3383
        %3401 = vmatprep.subr.bf16.mxu0 0
        %3402 = vmatpush1.bf16.msra.mxu0 %v3384
        %3403 = vmatprep.subr.bf16.mxu0 0
        %3404 = vmatpush1.bf16.msra.mxu0 %v3385
        %3405 = vmatprep.subr.bf16.mxu0 0
        %3406 = vmatpush1.bf16.msra.mxu0 %v3386
        %3407 = vmatprep.subr.bf16.mxu0 0
        %3408 = vmatpush1.bf16.msra.mxu0 %v3387
        %3409 = vmatprep.subr.bf16.mxu0 0
        %3410 = vmatpush1.bf16.msra.mxu0 %v3388
        %3411 = vmatprep.subr.bf16.mxu0 0
        %3412 = vmatpush1.bf16.msra.mxu0 %v3389
        %3413 = vmatprep.subr.bf16.mxu0 0
        %3414 = vmatpush1.bf16.msra.mxu0 %v3390
        %3415 = vmatprep.subr.bf16.mxu0 0
        %3416 = vmatpush1.bf16.msra.mxu0 0
        %3417 = vmatprep.subr.bf16.mxu0 0
        %3418 = vmatpush1.bf16.msra.mxu0 0
        %3419 = vmatprep.subr.bf16.mxu0 0
        %3420 = vmatpush1.bf16.msra.mxu0 0
        %3421 = vmatprep.subr.bf16.mxu0 0
        %3422 = vmatpush1.bf16.msra.mxu0 0
        %3423 = vmatprep.subr.bf16.mxu0 0
        %3424 = vmatpush1.bf16.msra.mxu0 0
        %3425 = vmatprep.subr.bf16.mxu0 0
        %3426 = vmatpush1.bf16.msra.mxu0 0
        %3427 = vmatprep.subr.bf16.mxu0 0
        %3428 = vmatpush1.bf16.msra.mxu0 0
        %3429 = vmatprep.subr.bf16.mxu0 0
        %3430 = vmatpush1.bf16.msra.mxu0 0
        %3431 = vmatprep.mubr.bf16.mxu0 0
        %3432 = vmatmul.mubr.bf16.gmra.mrb[0].mxu0 %v3092
        %v3433 = vpop.f32.mrb[0].mxu0
        %v3434 = vadd.f32 0.0, %v3433
        %v3435 = vpop.f32.mrb[0].mxu0
        %v3436 = vpop.f32.mrb[0].mxu0
        %v3437 = vpop.f32.mrb[0].mxu0
        %3438 = vdwg.mxu0
        %v3439 = vadd.f32 %v3329, %v3434
        %v3440 = vld [vmem:[#allocation13] sm:$0x1]
        %v3442 = vlaneseq
        %v3443 = vshrl.u32 %v3442, 7
        %v3444 = vsub.s32 0, %v3443
        %v3445 = vrot.slane %v3440, %v3444
        %v3447 = vadd.f32 %v3439, %v3445
        %v3448 = vld [vmem:[#allocation14] sm:$0x1]
        %v3450 = vlaneseq
        %v3451 = vshrl.u32 %v3450, 7
        %v3452 = vsub.s32 0, %v3451
        %v3453 = vrot.slane %v3448, %v3452
        %v3455 = vadd.f32 %v3226, %v3453
        %v3456 = vmax.f32 %v3447, 0.0
        %v3457 = vpack.c.bf16 %v3456, %v3456
        %v3458 = vld [vmem:[#allocation11] sm:$0xff]
        %vm3459 = vcmask 64512
        %v3461 = vsel %vm3459, %v3458, 0
        %3463 = vmatprep.subr.mxu0 0.0
        %3464 = vmatpush1.msra.mxu0 %v3456
        %3465 = vmatprep.subr.mxu0 0.0
        %3466 = vmatpush1.msra.mxu0 0.0
        %3467 = vmatprep.subr.mxu0 0.0
        %3468 = vmatpush1.msra.mxu0 0.0
        %3469 = vmatprep.subr.mxu0 0.0
        %3470 = vmatpush1.msra.mxu0 0.0
        %3471 = vmatprep.subr.mxu0 0.0
        %3472 = vmatpush1.msra.mxu0 0.0
        %3473 = vmatprep.subr.mxu0 0.0
        %3474 = vmatpush1.msra.mxu0 0.0
        %3475 = vmatprep.subr.mxu0 0.0
        %3476 = vmatpush1.msra.mxu0 0.0
        %3477 = vmatprep.subr.mxu0 0.0
        %3478 = vmatpush1.msra.mxu0 0.0
        %3479 = vmatprep.subr.mxu0 0.0
        %3480 = vmatpush1.msra.mxu0 0.0
        %3481 = vmatprep.subr.mxu0 0.0
        %3482 = vmatpush1.msra.mxu0 0.0
        %3483 = vmatprep.subr.mxu0 0.0
        %3484 = vmatpush1.msra.mxu0 0.0
        %3485 = vmatprep.subr.mxu0 0.0
        %3486 = vmatpush1.msra.mxu0 0.0
        %3487 = vmatprep.subr.mxu0 0.0
        %3488 = vmatpush1.msra.mxu0 0.0
        %3489 = vmatprep.subr.mxu0 0.0
        %3490 = vmatpush1.msra.mxu0 0.0
        %3491 = vmatprep.subr.mxu0 0.0
        %3492 = vmatpush1.msra.mxu0 0.0
        %3493 = vmatprep.subr.mxu0 0.0
        %3494 = vmatpush1.msra.mxu0 0.0
        %3495 = vmatprep.subr.mxu0 0.0
        %3496 = vmatpush1.msra.mxu0 0.0
        %3497 = vmatprep.subr.mxu0 0.0
        %3498 = vmatpush1.msra.mxu0 0.0
        %3499 = vmatprep.subr.mxu0 0.0
        %3500 = vmatpush1.msra.mxu0 0.0
        %3501 = vmatprep.subr.mxu0 0.0
        %3502 = vmatpush1.msra.mxu0 0.0
        %3503 = vmatprep.subr.mxu0 0.0
        %3504 = vmatpush1.msra.mxu0 0.0
        %3505 = vmatprep.subr.mxu0 0.0
        %3506 = vmatpush1.msra.mxu0 0.0
        %3507 = vmatprep.subr.mxu0 0.0
        %3508 = vmatpush1.msra.mxu0 0.0
        %3509 = vmatprep.subr.mxu0 0.0
        %3510 = vmatpush1.msra.mxu0 0.0
        %3511 = vmatprep.subr.mxu0 0.0
        %3512 = vmatpush1.msra.mxu0 0.0
        %3513 = vmatprep.subr.mxu0 0.0
        %3514 = vmatpush1.msra.mxu0 0.0
        %3515 = vmatprep.subr.mxu0 0.0
        %3516 = vmatpush1.msra.mxu0 0.0
        %3517 = vmatprep.subr.mxu0 0.0
        %3518 = vmatpush1.msra.mxu0 0.0
        %3519 = vmatprep.subr.mxu0 0.0
        %3520 = vmatpush1.msra.mxu0 0.0
        %3521 = vmatprep.subr.mxu0 0.0
        %3522 = vmatpush1.msra.mxu0 0.0
        %3523 = vmatprep.subr.mxu0 0.0
        %3524 = vmatpush1.msra.mxu0 0.0
        %3525 = vmatprep.subr.mxu0 0.0
        %3526 = vmatpush1.msra.mxu0 0.0
        %3527 = vmatprep.mubr.f32.mxu0 0.0
        %3528 = vmatmul.mubr.f32.gmra.mrb[0].mxu0 %v3461
        %v3529 = vpop.f32.mrb[0].mxu0
        %v3530 = vadd.f32 0.0, %v3529
        %v3531 = vpop.f32.mrb[0].mxu0
        %3532 = vdwg.mxu0
        %v3533 = vpack.c.bf16 %v3530, %v3530
        %v3534 = vld [vmem:[%s25] sm:$0xff]
        %v3536 = vsel %vm3459, %v3534, 0
        %3538 = vmatprep.subr.mxu0 0.0
        %3539 = vmatpush1.msra.mxu0 %v3456
        %3540 = vmatprep.subr.mxu0 0.0
        %3541 = vmatpush1.msra.mxu0 0.0
        %3542 = vmatprep.subr.mxu0 0.0
        %3543 = vmatpush1.msra.mxu0 0.0
        %3544 = vmatprep.subr.mxu0 0.0
        %3545 = vmatpush1.msra.mxu0 0.0
        %3546 = vmatprep.subr.mxu0 0.0
        %3547 = vmatpush1.msra.mxu0 0.0
        %3548 = vmatprep.subr.mxu0 0.0
        %3549 = vmatpush1.msra.mxu0 0.0
        %3550 = vmatprep.subr.mxu0 0.0
        %3551 = vmatpush1.msra.mxu0 0.0
        %3552 = vmatprep.subr.mxu0 0.0
        %3553 = vmatpush1.msra.mxu0 0.0
        %3554 = vmatprep.subr.mxu0 0.0
        %3555 = vmatpush1.msra.mxu0 0.0
        %3556 = vmatprep.subr.mxu0 0.0
        %3557 = vmatpush1.msra.mxu0 0.0
        %3558 = vmatprep.subr.mxu0 0.0
        %3559 = vmatpush1.msra.mxu0 0.0
        %3560 = vmatprep.subr.mxu0 0.0
        %3561 = vmatpush1.msra.mxu0 0.0
        %3562 = vmatprep.subr.mxu0 0.0
        %3563 = vmatpush1.msra.mxu0 0.0
        %3564 = vmatprep.subr.mxu0 0.0
        %3565 = vmatpush1.msra.mxu0 0.0
        %3566 = vmatprep.subr.mxu0 0.0
        %3567 = vmatpush1.msra.mxu0 0.0
        %3568 = vmatprep.subr.mxu0 0.0
        %3569 = vmatpush1.msra.mxu0 0.0
        %3570 = vmatprep.subr.mxu0 0.0
        %3571 = vmatpush1.msra.mxu0 0.0
        %3572 = vmatprep.subr.mxu0 0.0
        %3573 = vmatpush1.msra.mxu0 0.0
        %3574 = vmatprep.subr.mxu0 0.0
        %3575 = vmatpush1.msra.mxu0 0.0
        %3576 = vmatprep.subr.mxu0 0.0
        %3577 = vmatpush1.msra.mxu0 0.0
        %3578 = vmatprep.subr.mxu0 0.0
        %3579 = vmatpush1.msra.mxu0 0.0
        %3580 = vmatprep.subr.mxu0 0.0
        %3581 = vmatpush1.msra.mxu0 0.0
        %3582 = vmatprep.subr.mxu0 0.0
        %3583 = vmatpush1.msra.mxu0 0.0
        %3584 = vmatprep.subr.mxu0 0.0
        %3585 = vmatpush1.msra.mxu0 0.0
        %3586 = vmatprep.subr.mxu0 0.0
        %3587 = vmatpush1.msra.mxu0 0.0
        %3588 = vmatprep.subr.mxu0 0.0
        %3589 = vmatpush1.msra.mxu0 0.0
        %3590 = vmatprep.subr.mxu0 0.0
        %3591 = vmatpush1.msra.mxu0 0.0
        %3592 = vmatprep.subr.mxu0 0.0
        %3593 = vmatpush1.msra.mxu0 0.0
        %3594 = vmatprep.subr.mxu0 0.0
        %3595 = vmatpush1.msra.mxu0 0.0
        %3596 = vmatprep.subr.mxu0 0.0
        %3597 = vmatpush1.msra.mxu0 0.0
        %3598 = vmatprep.subr.mxu0 0.0
        %3599 = vmatpush1.msra.mxu0 0.0
        %3600 = vmatprep.subr.mxu0 0.0
        %3601 = vmatpush1.msra.mxu0 0.0
        %3602 = vmatprep.mubr.f32.mxu0 0.0
        %3603 = vmatmul.mubr.f32.gmra.mrb[0].mxu0 %v3536
        %v3604 = vpop.f32.mrb[0].mxu0
        %v3605 = vadd.f32 0.0, %v3604
        %v3606 = vpop.f32.mrb[0].mxu0
        %3607 = vdwg.mxu0
        %v3608 = vpack.c.bf16 %v3605, %v3605
        %v3609 = vld [vmem:[%s41] sm:$0xf]
        %v3610 = vld [vmem:[%s41 + $0x4] sm:$0xf]
        %v3611 = vld [vmem:[%s41 + $0x8] sm:$0xf]
        %v3612 = vld [vmem:[%s41 + $0xc] sm:$0xf]
        %v3613 = vld [vmem:[%s41 + $0x10] sm:$0xf]
        %v3614 = vld [vmem:[%s41 + $0x14] sm:$0xf]
        %v3615 = vld [vmem:[%s41 + $0x18] sm:$0xf]
        %v3616 = vld [vmem:[%s41 + $0x1c] sm:$0xf]
        %v3617 = vld [vmem:[%s41 + $0x20] sm:$0xf]
        %v3618 = vld [vmem:[%s41 + $0x24] sm:$0xf]
        %v3619 = vld [vmem:[%s41 + $0x28] sm:$0xf]
        %v3620 = vld [vmem:[%s41 + $0x2c] sm:$0xf]
        %v3621 = vld [vmem:[%s41 + $0x30] sm:$0xf]
        %v3622 = vld [vmem:[%s41 + $0x34] sm:$0xf]
        %v3623 = vld [vmem:[%s41 + $0x38] sm:$0xf]
        %v3624 = vld [vmem:[%s41 + $0x3c] sm:$0xf]
        %s3625 = scalar_lea.vmem %s41, 64
        %v3626 = vld [vmem:[%s3625] sm:$0xf]
        %v3627 = vld [vmem:[%s3625 + $0x4] sm:$0xf]
        %v3628 = vld [vmem:[%s3625 + $0x8] sm:$0xf]
        %v3629 = vld [vmem:[%s3625 + $0xc] sm:$0xf]
        %v3630 = vld [vmem:[%s3625 + $0x10] sm:$0xf]
        %v3631 = vld [vmem:[%s3625 + $0x14] sm:$0xf]
        %v3632 = vld [vmem:[%s3625 + $0x18] sm:$0xf]
        %v3633 = vld [vmem:[%s3625 + $0x1c] sm:$0xf]
        %v3634 = vld [vmem:[%s3625 + $0x20] sm:$0xf]
        %v3635 = vld [vmem:[%s3625 + $0x24] sm:$0xf]
        %v3636 = vld [vmem:[%s3625 + $0x28] sm:$0xf]
        %v3637 = vld [vmem:[%s3625 + $0x2c] sm:$0xf]
        %v3638 = vld [vmem:[%s3625 + $0x30] sm:$0xf]
        %v3639 = vld [vmem:[%s3625 + $0x34] sm:$0xf]
        %v3640 = vld [vmem:[%s3625 + $0x38] sm:$0xf]
        %v3641 = vld [vmem:[%s3625 + $0x3c] sm:$0xf]
        %v3658 = vunpack.c.l.b16 %v3626
        %v3659 = vunpack.c.l.b16 %v3627
        %v3660 = vunpack.c.l.b16 %v3628
        %v3661 = vunpack.c.l.b16 %v3629
        %v3662 = vunpack.c.l.b16 %v3630
        %v3663 = vunpack.c.l.b16 %v3631
        %v3664 = vunpack.c.l.b16 %v3632
        %v3665 = vunpack.c.l.b16 %v3633
        %v3666 = vunpack.c.l.b16 %v3634
        %v3667 = vunpack.c.l.b16 %v3635
        %v3668 = vunpack.c.l.b16 %v3636
        %v3669 = vunpack.c.l.b16 %v3637
        %v3670 = vunpack.c.l.b16 %v3638
        %v3671 = vunpack.c.l.b16 %v3639
        %v3672 = vunpack.c.l.b16 %v3640
        %v3673 = vunpack.c.l.b16 %v3641
        %v3674 = vpack.c.b16 %v3659, %v3658
        %v3675 = vpack.c.b16 %v3661, %v3660
        %v3676 = vpack.c.b16 %v3663, %v3662
        %v3677 = vpack.c.b16 %v3665, %v3664
        %v3678 = vpack.c.b16 %v3667, %v3666
        %v3679 = vpack.c.b16 %v3669, %v3668
        %v3680 = vpack.c.b16 %v3671, %v3670
        %v3681 = vpack.c.b16 %v3673, %v3672
        %3690 = vmatprep.subr.bf16.mxu0 0
        %3691 = vmatpush1.bf16.msra.mxu0 %v3674
        %3692 = vmatprep.subr.bf16.mxu0 0
        %3693 = vmatpush1.bf16.msra.mxu0 %v3675
        %3694 = vmatprep.subr.bf16.mxu0 0
        %3695 = vmatpush1.bf16.msra.mxu0 %v3676
        %3696 = vmatprep.subr.bf16.mxu0 0
        %3697 = vmatpush1.bf16.msra.mxu0 %v3677
        %3698 = vmatprep.subr.bf16.mxu0 0
        %3699 = vmatpush1.bf16.msra.mxu0 %v3678
        %3700 = vmatprep.subr.bf16.mxu0 0
        %3701 = vmatpush1.bf16.msra.mxu0 %v3679
        %3702 = vmatprep.subr.bf16.mxu0 0
        %3703 = vmatpush1.bf16.msra.mxu0 %v3680
        %3704 = vmatprep.subr.bf16.mxu0 0
        %3705 = vmatpush1.bf16.msra.mxu0 %v3681
        %3706 = vmatprep.subr.bf16.mxu0 0
        %3707 = vmatpush1.bf16.msra.mxu0 0
        %3708 = vmatprep.subr.bf16.mxu0 0
        %3709 = vmatpush1.bf16.msra.mxu0 0
        %3710 = vmatprep.subr.bf16.mxu0 0
        %3711 = vmatpush1.bf16.msra.mxu0 0
        %3712 = vmatprep.subr.bf16.mxu0 0
        %3713 = vmatpush1.bf16.msra.mxu0 0
        %3714 = vmatprep.subr.bf16.mxu0 0
        %3715 = vmatpush1.bf16.msra.mxu0 0
        %3716 = vmatprep.subr.bf16.mxu0 0
        %3717 = vmatpush1.bf16.msra.mxu0 0
        %3718 = vmatprep.subr.bf16.mxu0 0
        %3719 = vmatpush1.bf16.msra.mxu0 0
        %3720 = vmatprep.subr.bf16.mxu0 0
        %3721 = vmatpush1.bf16.msra.mxu0 0
        %3722 = vmatprep.mubr.bf16.mxu0 0
        %3723 = vmatmul.mubr.bf16.gmra.mrb[0].mxu0 %v3457
        %v3724 = vpop.f32.mrb[0].mxu0
        %v3725 = vadd.f32 0.0, %v3724
        %v3726 = vpop.f32.mrb[0].mxu0
        %v3727 = vpop.f32.mrb[0].mxu0
        %v3728 = vpop.f32.mrb[0].mxu0
        %3729 = vdwg.mxu0
        %v3746 = vunpack.c.l.b16 %v3609
        %v3747 = vunpack.c.l.b16 %v3610
        %v3748 = vunpack.c.l.b16 %v3611
        %v3749 = vunpack.c.l.b16 %v3612
        %v3750 = vunpack.c.l.b16 %v3613
        %v3751 = vunpack.c.l.b16 %v3614
        %v3752 = vunpack.c.l.b16 %v3615
        %v3753 = vunpack.c.l.b16 %v3616
        %v3754 = vunpack.c.l.b16 %v3617
        %v3755 = vunpack.c.l.b16 %v3618
        %v3756 = vunpack.c.l.b16 %v3619
        %v3757 = vunpack.c.l.b16 %v3620
        %v3758 = vunpack.c.l.b16 %v3621
        %v3759 = vunpack.c.l.b16 %v3622
        %v3760 = vunpack.c.l.b16 %v3623
        %v3761 = vunpack.c.l.b16 %v3624
        %v3762 = vpack.c.b16 %v3747, %v3746
        %v3763 = vpack.c.b16 %v3749, %v3748
        %v3764 = vpack.c.b16 %v3751, %v3750
        %v3765 = vpack.c.b16 %v3753, %v3752
        %v3766 = vpack.c.b16 %v3755, %v3754
        %v3767 = vpack.c.b16 %v3757, %v3756
        %v3768 = vpack.c.b16 %v3759, %v3758
        %v3769 = vpack.c.b16 %v3761, %v3760
        %3778 = vmatprep.subr.bf16.mxu0 0
        %3779 = vmatpush1.bf16.msra.mxu0 %v3762
        %3780 = vmatprep.subr.bf16.mxu0 0
        %3781 = vmatpush1.bf16.msra.mxu0 %v3763
        %3782 = vmatprep.subr.bf16.mxu0 0
        %3783 = vmatpush1.bf16.msra.mxu0 %v3764
        %3784 = vmatprep.subr.bf16.mxu0 0
        %3785 = vmatpush1.bf16.msra.mxu0 %v3765
        %3786 = vmatprep.subr.bf16.mxu0 0
        %3787 = vmatpush1.bf16.msra.mxu0 %v3766
        %3788 = vmatprep.subr.bf16.mxu0 0
        %3789 = vmatpush1.bf16.msra.mxu0 %v3767
        %3790 = vmatprep.subr.bf16.mxu0 0
        %3791 = vmatpush1.bf16.msra.mxu0 %v3768
        %3792 = vmatprep.subr.bf16.mxu0 0
        %3793 = vmatpush1.bf16.msra.mxu0 %v3769
        %3794 = vmatprep.subr.bf16.mxu0 0
        %3795 = vmatpush1.bf16.msra.mxu0 0
        %3796 = vmatprep.subr.bf16.mxu0 0
        %3797 = vmatpush1.bf16.msra.mxu0 0
        %3798 = vmatprep.subr.bf16.mxu0 0
        %3799 = vmatpush1.bf16.msra.mxu0 0
        %3800 = vmatprep.subr.bf16.mxu0 0
        %3801 = vmatpush1.bf16.msra.mxu0 0
        %3802 = vmatprep.subr.bf16.mxu0 0
        %3803 = vmatpush1.bf16.msra.mxu0 0
        %3804 = vmatprep.subr.bf16.mxu0 0
        %3805 = vmatpush1.bf16.msra.mxu0 0
        %3806 = vmatprep.subr.bf16.mxu0 0
        %3807 = vmatpush1.bf16.msra.mxu0 0
        %3808 = vmatprep.subr.bf16.mxu0 0
        %3809 = vmatpush1.bf16.msra.mxu0 0
        %3810 = vmatprep.mubr.bf16.mxu0 0
        %3811 = vmatmul.mubr.bf16.gmra.mrb[0].mxu0 %v3533
        %v3812 = vpop.f32.mrb[0].mxu0
        %v3813 = vadd.f32 %v3725, %v3812
        %v3814 = vpop.f32.mrb[0].mxu0
        %v3815 = vpop.f32.mrb[0].mxu0
        %v3816 = vpop.f32.mrb[0].mxu0
        %3817 = vdwg.mxu0
        %s3818 = scalar_lea.vmem %s41, 128
        %v3819 = vld [vmem:[%s3818] sm:$0xf]
        %v3820 = vld [vmem:[%s3818 + $0x4] sm:$0xf]
        %v3821 = vld [vmem:[%s3818 + $0x8] sm:$0xf]
        %v3822 = vld [vmem:[%s3818 + $0xc] sm:$0xf]
        %v3823 = vld [vmem:[%s3818 + $0x10] sm:$0xf]
        %v3824 = vld [vmem:[%s3818 + $0x14] sm:$0xf]
        %v3825 = vld [vmem:[%s3818 + $0x18] sm:$0xf]
        %v3826 = vld [vmem:[%s3818 + $0x1c] sm:$0xf]
        %v3827 = vld [vmem:[%s3818 + $0x20] sm:$0xf]
        %v3828 = vld [vmem:[%s3818 + $0x24] sm:$0xf]
        %v3829 = vld [vmem:[%s3818 + $0x28] sm:$0xf]
        %v3830 = vld [vmem:[%s3818 + $0x2c] sm:$0xf]
        %v3831 = vld [vmem:[%s3818 + $0x30] sm:$0xf]
        %v3832 = vld [vmem:[%s3818 + $0x34] sm:$0xf]
        %v3833 = vld [vmem:[%s3818 + $0x38] sm:$0xf]
        %v3834 = vld [vmem:[%s3818 + $0x3c] sm:$0xf]
        %v3851 = vunpack.c.l.b16 %v3819
        %v3852 = vunpack.c.l.b16 %v3820
        %v3853 = vunpack.c.l.b16 %v3821
        %v3854 = vunpack.c.l.b16 %v3822
        %v3855 = vunpack.c.l.b16 %v3823
        %v3856 = vunpack.c.l.b16 %v3824
        %v3857 = vunpack.c.l.b16 %v3825
        %v3858 = vunpack.c.l.b16 %v3826
        %v3859 = vunpack.c.l.b16 %v3827
        %v3860 = vunpack.c.l.b16 %v3828
        %v3861 = vunpack.c.l.b16 %v3829
        %v3862 = vunpack.c.l.b16 %v3830
        %v3863 = vunpack.c.l.b16 %v3831
        %v3864 = vunpack.c.l.b16 %v3832
        %v3865 = vunpack.c.l.b16 %v3833
        %v3866 = vunpack.c.l.b16 %v3834
        %v3867 = vpack.c.b16 %v3852, %v3851
        %v3868 = vpack.c.b16 %v3854, %v3853
        %v3869 = vpack.c.b16 %v3856, %v3855
        %v3870 = vpack.c.b16 %v3858, %v3857
        %v3871 = vpack.c.b16 %v3860, %v3859
        %v3872 = vpack.c.b16 %v3862, %v3861
        %v3873 = vpack.c.b16 %v3864, %v3863
        %v3874 = vpack.c.b16 %v3866, %v3865
        %3883 = vmatprep.subr.bf16.mxu0 0
        %3884 = vmatpush1.bf16.msra.mxu0 %v3867
        %3885 = vmatprep.subr.bf16.mxu0 0
        %3886 = vmatpush1.bf16.msra.mxu0 %v3868
        %3887 = vmatprep.subr.bf16.mxu0 0
        %3888 = vmatpush1.bf16.msra.mxu0 %v3869
        %3889 = vmatprep.subr.bf16.mxu0 0
        %3890 = vmatpush1.bf16.msra.mxu0 %v3870
        %3891 = vmatprep.subr.bf16.mxu0 0
        %3892 = vmatpush1.bf16.msra.mxu0 %v3871
        %3893 = vmatprep.subr.bf16.mxu0 0
        %3894 = vmatpush1.bf16.msra.mxu0 %v3872
        %3895 = vmatprep.subr.bf16.mxu0 0
        %3896 = vmatpush1.bf16.msra.mxu0 %v3873
        %3897 = vmatprep.subr.bf16.mxu0 0
        %3898 = vmatpush1.bf16.msra.mxu0 %v3874
        %3899 = vmatprep.subr.bf16.mxu0 0
        %3900 = vmatpush1.bf16.msra.mxu0 0
        %3901 = vmatprep.subr.bf16.mxu0 0
        %3902 = vmatpush1.bf16.msra.mxu0 0
        %3903 = vmatprep.subr.bf16.mxu0 0
        %3904 = vmatpush1.bf16.msra.mxu0 0
        %3905 = vmatprep.subr.bf16.mxu0 0
        %3906 = vmatpush1.bf16.msra.mxu0 0
        %3907 = vmatprep.subr.bf16.mxu0 0
        %3908 = vmatpush1.bf16.msra.mxu0 0
        %3909 = vmatprep.subr.bf16.mxu0 0
        %3910 = vmatpush1.bf16.msra.mxu0 0
        %3911 = vmatprep.subr.bf16.mxu0 0
        %3912 = vmatpush1.bf16.msra.mxu0 0
        %3913 = vmatprep.subr.bf16.mxu0 0
        %3914 = vmatpush1.bf16.msra.mxu0 0
        %3915 = vmatprep.mubr.bf16.mxu0 0
        %3916 = vmatmul.mubr.bf16.gmra.mrb[0].mxu0 %v3608
        %v3917 = vpop.f32.mrb[0].mxu0
        %v3918 = vadd.f32 0.0, %v3917
        %v3919 = vpop.f32.mrb[0].mxu0
        %v3920 = vpop.f32.mrb[0].mxu0
        %v3921 = vpop.f32.mrb[0].mxu0
        %3922 = vdwg.mxu0
        %v3923 = vadd.f32 %v3813, %v3918
        %v3924 = vld [vmem:[#allocation16] sm:$0x1]
        %v3926 = vlaneseq
        %v3927 = vshrl.u32 %v3926, 7
        %v3928 = vsub.s32 0, %v3927
        %v3929 = vrot.slane %v3924, %v3928
        %v3931 = vadd.f32 %v3923, %v3929
        %v3932 = vadd.f32 %v3931, %v3455
        %v3933 = vmax.f32 %v3932, 0.0
        %v3934 = vld [vmem:[%s49] sm:$0xf]
        %v3936 = vsel %vm3459, %v3934, 0
        %3938 = vmatprep.subr.mxu0 0.0
        %3939 = vmatpush1.msra.mxu0 %v3933
        %3940 = vmatprep.subr.mxu0 0.0
        %3941 = vmatpush1.msra.mxu0 0.0
        %3942 = vmatprep.subr.mxu0 0.0
        %3943 = vmatpush1.msra.mxu0 0.0
        %3944 = vmatprep.subr.mxu0 0.0
        %3945 = vmatpush1.msra.mxu0 0.0
        %3946 = vmatprep.subr.mxu0 0.0
        %3947 = vmatpush1.msra.mxu0 0.0
        %3948 = vmatprep.subr.mxu0 0.0
        %3949 = vmatpush1.msra.mxu0 0.0
        %3950 = vmatprep.subr.mxu0 0.0
        %3951 = vmatpush1.msra.mxu0 0.0
        %3952 = vmatprep.subr.mxu0 0.0
        %3953 = vmatpush1.msra.mxu0 0.0
        %3954 = vmatprep.subr.mxu0 0.0
        %3955 = vmatpush1.msra.mxu0 0.0
        %3956 = vmatprep.subr.mxu0 0.0
        %3957 = vmatpush1.msra.mxu0 0.0
        %3958 = vmatprep.subr.mxu0 0.0
        %3959 = vmatpush1.msra.mxu0 0.0
        %3960 = vmatprep.subr.mxu0 0.0
        %3961 = vmatpush1.msra.mxu0 0.0
        %3962 = vmatprep.subr.mxu0 0.0
        %3963 = vmatpush1.msra.mxu0 0.0
        %3964 = vmatprep.subr.mxu0 0.0
        %3965 = vmatpush1.msra.mxu0 0.0
        %3966 = vmatprep.subr.mxu0 0.0
        %3967 = vmatpush1.msra.mxu0 0.0
        %3968 = vmatprep.subr.mxu0 0.0
        %3969 = vmatpush1.msra.mxu0 0.0
        %3970 = vmatprep.subr.mxu0 0.0
        %3971 = vmatpush1.msra.mxu0 0.0
        %3972 = vmatprep.subr.mxu0 0.0
        %3973 = vmatpush1.msra.mxu0 0.0
        %3974 = vmatprep.subr.mxu0 0.0
        %3975 = vmatpush1.msra.mxu0 0.0
        %3976 = vmatprep.subr.mxu0 0.0
        %3977 = vmatpush1.msra.mxu0 0.0
        %3978 = vmatprep.subr.mxu0 0.0
        %3979 = vmatpush1.msra.mxu0 0.0
        %3980 = vmatprep.subr.mxu0 0.0
        %3981 = vmatpush1.msra.mxu0 0.0
        %3982 = vmatprep.subr.mxu0 0.0
        %3983 = vmatpush1.msra.mxu0 0.0
        %3984 = vmatprep.subr.mxu0 0.0
        %3985 = vmatpush1.msra.mxu0 0.0
        %3986 = vmatprep.subr.mxu0 0.0
        %3987 = vmatpush1.msra.mxu0 0.0
        %3988 = vmatprep.subr.mxu0 0.0
        %3989 = vmatpush1.msra.mxu0 0.0
        %3990 = vmatprep.subr.mxu0 0.0
        %3991 = vmatpush1.msra.mxu0 0.0
        %3992 = vmatprep.subr.mxu0 0.0
        %3993 = vmatpush1.msra.mxu0 0.0
        %3994 = vmatprep.subr.mxu0 0.0
        %3995 = vmatpush1.msra.mxu0 0.0
        %3996 = vmatprep.subr.mxu0 0.0
        %3997 = vmatpush1.msra.mxu0 0.0
        %3998 = vmatprep.subr.mxu0 0.0
        %3999 = vmatpush1.msra.mxu0 0.0
        %4000 = vmatprep.subr.mxu0 0.0
        %4001 = vmatpush1.msra.mxu0 0.0
        %4002 = vmatprep.mubr.f32.mxu0 0.0
        %4003 = vmatmul.mubr.f32.gmra.mrb[0].mxu0 %v3936
        %v4004 = vpop.f32.mrb[0].mxu0
        %v4005 = vadd.f32 0.0, %v4004
        %v4006 = vpop.f32.mrb[0].mxu0
        %4007 = vdwg.mxu0
        %v4008 = vpack.c.bf16 %v4005, %v4005
        %v4009 = vld [vmem:[%s51] sm:$0xf]
        %v4011 = vsel %vm3459, %v4009, 0
        %4013 = vmatprep.subr.mxu0 0.0
        %4014 = vmatpush1.msra.mxu0 %v3933
        %4015 = vmatprep.subr.mxu0 0.0
        %4016 = vmatpush1.msra.mxu0 0.0
        %4017 = vmatprep.subr.mxu0 0.0
        %4018 = vmatpush1.msra.mxu0 0.0
        %4019 = vmatprep.subr.mxu0 0.0
        %4020 = vmatpush1.msra.mxu0 0.0
        %4021 = vmatprep.subr.mxu0 0.0
        %4022 = vmatpush1.msra.mxu0 0.0
        %4023 = vmatprep.subr.mxu0 0.0
        %4024 = vmatpush1.msra.mxu0 0.0
        %4025 = vmatprep.subr.mxu0 0.0
        %4026 = vmatpush1.msra.mxu0 0.0
        %4027 = vmatprep.subr.mxu0 0.0
        %4028 = vmatpush1.msra.mxu0 0.0
        %4029 = vmatprep.subr.mxu0 0.0
        %4030 = vmatpush1.msra.mxu0 0.0
        %4031 = vmatprep.subr.mxu0 0.0
        %4032 = vmatpush1.msra.mxu0 0.0
        %4033 = vmatprep.subr.mxu0 0.0
        %4034 = vmatpush1.msra.mxu0 0.0
        %4035 = vmatprep.subr.mxu0 0.0
        %4036 = vmatpush1.msra.mxu0 0.0
        %4037 = vmatprep.subr.mxu0 0.0
        %4038 = vmatpush1.msra.mxu0 0.0
        %4039 = vmatprep.subr.mxu0 0.0
        %4040 = vmatpush1.msra.mxu0 0.0
        %4041 = vmatprep.subr.mxu0 0.0
        %4042 = vmatpush1.msra.mxu0 0.0
        %4043 = vmatprep.subr.mxu0 0.0
        %4044 = vmatpush1.msra.mxu0 0.0
        %4045 = vmatprep.subr.mxu0 0.0
        %4046 = vmatpush1.msra.mxu0 0.0
        %4047 = vmatprep.subr.mxu0 0.0
        %4048 = vmatpush1.msra.mxu0 0.0
        %4049 = vmatprep.subr.mxu0 0.0
        %4050 = vmatpush1.msra.mxu0 0.0
        %4051 = vmatprep.subr.mxu0 0.0
        %4052 = vmatpush1.msra.mxu0 0.0
        %4053 = vmatprep.subr.mxu0 0.0
        %4054 = vmatpush1.msra.mxu0 0.0
        %4055 = vmatprep.subr.mxu0 0.0
        %4056 = vmatpush1.msra.mxu0 0.0
        %4057 = vmatprep.subr.mxu0 0.0
        %4058 = vmatpush1.msra.mxu0 0.0
        %4059 = vmatprep.subr.mxu0 0.0
        %4060 = vmatpush1.msra.mxu0 0.0
        %4061 = vmatprep.subr.mxu0 0.0
        %4062 = vmatpush1.msra.mxu0 0.0
        %4063 = vmatprep.subr.mxu0 0.0
        %4064 = vmatpush1.msra.mxu0 0.0
        %4065 = vmatprep.subr.mxu0 0.0
        %4066 = vmatpush1.msra.mxu0 0.0
        %4067 = vmatprep.subr.mxu0 0.0
        %4068 = vmatpush1.msra.mxu0 0.0
        %4069 = vmatprep.subr.mxu0 0.0
        %4070 = vmatpush1.msra.mxu0 0.0
        %4071 = vmatprep.subr.mxu0 0.0
        %4072 = vmatpush1.msra.mxu0 0.0
        %4073 = vmatprep.subr.mxu0 0.0
        %4074 = vmatpush1.msra.mxu0 0.0
        %4075 = vmatprep.subr.mxu0 0.0
        %4076 = vmatpush1.msra.mxu0 0.0
        %4077 = vmatprep.mubr.f32.mxu0 0.0
        %4078 = vmatmul.mubr.f32.gmra.mrb[0].mxu0 %v4011
        %v4079 = vpop.f32.mrb[0].mxu0
        %v4080 = vadd.f32 0.0, %v4079
        %v4081 = vpop.f32.mrb[0].mxu0
        %4082 = vdwg.mxu0
        %v4083 = vpack.c.bf16 %v4080, %v4080
        %v4084 = vld [vmem:[%s53] sm:$0xf]
        %v4086 = vsel %vm3459, %v4084, 0
        %4088 = vmatprep.subr.mxu0 0.0
        %4089 = vmatpush1.msra.mxu0 %v3933
        %4090 = vmatprep.subr.mxu0 0.0
        %4091 = vmatpush1.msra.mxu0 0.0
        %4092 = vmatprep.subr.mxu0 0.0
        %4093 = vmatpush1.msra.mxu0 0.0
        %4094 = vmatprep.subr.mxu0 0.0
        %4095 = vmatpush1.msra.mxu0 0.0
        %4096 = vmatprep.subr.mxu0 0.0
        %4097 = vmatpush1.msra.mxu0 0.0
        %4098 = vmatprep.subr.mxu0 0.0
        %4099 = vmatpush1.msra.mxu0 0.0
        %4100 = vmatprep.subr.mxu0 0.0
        %4101 = vmatpush1.msra.mxu0 0.0
        %4102 = vmatprep.subr.mxu0 0.0
        %4103 = vmatpush1.msra.mxu0 0.0
        %4104 = vmatprep.subr.mxu0 0.0
        %4105 = vmatpush1.msra.mxu0 0.0
        %4106 = vmatprep.subr.mxu0 0.0
        %4107 = vmatpush1.msra.mxu0 0.0
        %4108 = vmatprep.subr.mxu0 0.0
        %4109 = vmatpush1.msra.mxu0 0.0
        %4110 = vmatprep.subr.mxu0 0.0
        %4111 = vmatpush1.msra.mxu0 0.0
        %4112 = vmatprep.subr.mxu0 0.0
        %4113 = vmatpush1.msra.mxu0 0.0
        %4114 = vmatprep.subr.mxu0 0.0
        %4115 = vmatpush1.msra.mxu0 0.0
        %4116 = vmatprep.subr.mxu0 0.0
        %4117 = vmatpush1.msra.mxu0 0.0
        %4118 = vmatprep.subr.mxu0 0.0
        %4119 = vmatpush1.msra.mxu0 0.0
        %4120 = vmatprep.subr.mxu0 0.0
        %4121 = vmatpush1.msra.mxu0 0.0
        %4122 = vmatprep.subr.mxu0 0.0
        %4123 = vmatpush1.msra.mxu0 0.0
        %4124 = vmatprep.subr.mxu0 0.0
        %4125 = vmatpush1.msra.mxu0 0.0
        %4126 = vmatprep.subr.mxu0 0.0
        %4127 = vmatpush1.msra.mxu0 0.0
        %4128 = vmatprep.subr.mxu0 0.0
        %4129 = vmatpush1.msra.mxu0 0.0
        %4130 = vmatprep.subr.mxu0 0.0
        %4131 = vmatpush1.msra.mxu0 0.0
        %4132 = vmatprep.subr.mxu0 0.0
        %4133 = vmatpush1.msra.mxu0 0.0
        %4134 = vmatprep.subr.mxu0 0.0
        %4135 = vmatpush1.msra.mxu0 0.0
        %4136 = vmatprep.subr.mxu0 0.0
        %4137 = vmatpush1.msra.mxu0 0.0
        %4138 = vmatprep.subr.mxu0 0.0
        %4139 = vmatpush1.msra.mxu0 0.0
        %4140 = vmatprep.subr.mxu0 0.0
        %4141 = vmatpush1.msra.mxu0 0.0
        %4142 = vmatprep.subr.mxu0 0.0
        %4143 = vmatpush1.msra.mxu0 0.0
        %4144 = vmatprep.subr.mxu0 0.0
        %4145 = vmatpush1.msra.mxu0 0.0
        %4146 = vmatprep.subr.mxu0 0.0
        %4147 = vmatpush1.msra.mxu0 0.0
        %4148 = vmatprep.subr.mxu0 0.0
        %4149 = vmatpush1.msra.mxu0 0.0
        %4150 = vmatprep.subr.mxu0 0.0
        %4151 = vmatpush1.msra.mxu0 0.0
        %4152 = vmatprep.mubr.f32.mxu0 0.0
        %4153 = vmatmul.mubr.f32.gmra.mrb[0].mxu0 %v4086
        %v4154 = vpop.f32.mrb[0].mxu0
        %v4155 = vadd.f32 0.0, %v4154
        %v4156 = vpop.f32.mrb[0].mxu0
        %4157 = vdwg.mxu0
        %v4158 = vpack.c.bf16 %v4155, %v4155
        %v4159 = vld [vmem:[%s57] sm:$0xff]
        %v4160 = vld [vmem:[%s57 + $0x8] sm:$0xff]
        %v4161 = vld [vmem:[%s57 + $0x10] sm:$0xff]
        %v4162 = vld [vmem:[%s57 + $0x18] sm:$0xff]
        %v4163 = vld [vmem:[%s57 + $0x20] sm:$0xff]
        %v4164 = vld [vmem:[%s57 + $0x28] sm:$0xff]
        %v4165 = vld [vmem:[%s57 + $0x30] sm:$0xff]
        %v4166 = vld [vmem:[%s57 + $0x38] sm:$0xff]
        %v4167 = vld [vmem:[%s57 + $0x40] sm:$0xff]
        %v4168 = vld [vmem:[%s57 + $0x48] sm:$0xff]
        %v4169 = vld [vmem:[%s57 + $0x50] sm:$0xff]
        %v4170 = vld [vmem:[%s57 + $0x58] sm:$0xff]
        %v4171 = vld [vmem:[%s57 + $0x60] sm:$0xff]
        %v4172 = vld [vmem:[%s57 + $0x68] sm:$0xff]
        %v4173 = vld [vmem:[%s57 + $0x70] sm:$0xff]
        %v4174 = vld [vmem:[%s57 + $0x78] sm:$0xff]
        %v4191 = vunpack.c.l.b16 %v4159
        %v4192 = vunpack.c.h.b16 %v4159
        %v4193 = vunpack.c.l.b16 %v4160
        %v4194 = vunpack.c.h.b16 %v4160
        %v4195 = vunpack.c.l.b16 %v4161
        %v4196 = vunpack.c.h.b16 %v4161
        %v4197 = vunpack.c.l.b16 %v4162
        %v4198 = vunpack.c.h.b16 %v4162
        %v4199 = vunpack.c.l.b16 %v4163
        %v4200 = vunpack.c.h.b16 %v4163
        %v4201 = vunpack.c.l.b16 %v4164
        %v4202 = vunpack.c.h.b16 %v4164
        %v4203 = vunpack.c.l.b16 %v4165
        %v4204 = vunpack.c.h.b16 %v4165
        %v4205 = vunpack.c.l.b16 %v4166
        %v4206 = vunpack.c.h.b16 %v4166
        %v4207 = vunpack.c.l.b16 %v4167
        %v4208 = vunpack.c.h.b16 %v4167
        %v4209 = vunpack.c.l.b16 %v4168
        %v4210 = vunpack.c.h.b16 %v4168
        %v4211 = vunpack.c.l.b16 %v4169
        %v4212 = vunpack.c.h.b16 %v4169
        %v4213 = vunpack.c.l.b16 %v4170
        %v4214 = vunpack.c.h.b16 %v4170
        %v4215 = vunpack.c.l.b16 %v4171
        %v4216 = vunpack.c.h.b16 %v4171
        %v4217 = vunpack.c.l.b16 %v4172
        %v4218 = vunpack.c.h.b16 %v4172
        %v4219 = vunpack.c.l.b16 %v4173
        %v4220 = vunpack.c.h.b16 %v4173
        %v4221 = vunpack.c.l.b16 %v4174
        %v4222 = vunpack.c.h.b16 %v4174
        %v4223 = vpack.c.b16 %v4193, %v4191
        %v4224 = vpack.c.b16 %v4194, %v4192
        %v4225 = vpack.c.b16 %v4197, %v4195
        %v4226 = vpack.c.b16 %v4198, %v4196
        %v4227 = vpack.c.b16 %v4201, %v4199
        %v4228 = vpack.c.b16 %v4202, %v4200
        %v4229 = vpack.c.b16 %v4205, %v4203
        %v4230 = vpack.c.b16 %v4206, %v4204
        %v4231 = vpack.c.b16 %v4209, %v4207
        %v4232 = vpack.c.b16 %v4210, %v4208
        %v4233 = vpack.c.b16 %v4213, %v4211
        %v4234 = vpack.c.b16 %v4214, %v4212
        %v4235 = vpack.c.b16 %v4217, %v4215
        %v4236 = vpack.c.b16 %v4218, %v4216
        %v4237 = vpack.c.b16 %v4221, %v4219
        %v4238 = vpack.c.b16 %v4222, %v4220
        %4255 = vmatprep.subr.bf16.mxu0 %v4224
        %4256 = vmatpush1.bf16.msra.mxu0 %v4223
        %4257 = vmatprep.subr.bf16.mxu0 %v4226
        %4258 = vmatpush1.bf16.msra.mxu0 %v4225
        %4259 = vmatprep.subr.bf16.mxu0 %v4228
        %4260 = vmatpush1.bf16.msra.mxu0 %v4227
        %4261 = vmatprep.subr.bf16.mxu0 %v4230
        %4262 = vmatpush1.bf16.msra.mxu0 %v4229
        %4263 = vmatprep.subr.bf16.mxu0 %v4232
        %4264 = vmatpush1.bf16.msra.mxu0 %v4231
        %4265 = vmatprep.subr.bf16.mxu0 %v4234
        %4266 = vmatpush1.bf16.msra.mxu0 %v4233
        %4267 = vmatprep.subr.bf16.mxu0 %v4236
        %4268 = vmatpush1.bf16.msra.mxu0 %v4235
        %4269 = vmatprep.subr.bf16.mxu0 %v4238
        %4270 = vmatpush1.bf16.msra.mxu0 %v4237
        %4271 = vmatprep.subr.bf16.mxu0 0
        %4272 = vmatpush1.bf16.msra.mxu0 0
        %4273 = vmatprep.subr.bf16.mxu0 0
        %4274 = vmatpush1.bf16.msra.mxu0 0
        %4275 = vmatprep.subr.bf16.mxu0 0
        %4276 = vmatpush1.bf16.msra.mxu0 0
        %4277 = vmatprep.subr.bf16.mxu0 0
        %4278 = vmatpush1.bf16.msra.mxu0 0
        %4279 = vmatprep.subr.bf16.mxu0 0
        %4280 = vmatpush1.bf16.msra.mxu0 0
        %4281 = vmatprep.subr.bf16.mxu0 0
        %4282 = vmatpush1.bf16.msra.mxu0 0
        %4283 = vmatprep.subr.bf16.mxu0 0
        %4284 = vmatpush1.bf16.msra.mxu0 0
        %4285 = vmatprep.subr.bf16.mxu0 0
        %4286 = vmatpush1.bf16.msra.mxu0 0
        %4287 = vmatprep.mubr.bf16.mxu0 0
        %4288 = vmatmul.mubr.bf16.gmra.mrb[0].mxu0 %v4083
        %v4289 = vpop.f32.mrb[0].mxu0
        %v4290 = vadd.f32 0.0, %v4289
        %v4291 = vpop.f32.mrb[0].mxu0
        %v4292 = vadd.f32 0.0, %v4291
        %v4293 = vpop.f32.mrb[0].mxu0
        %v4294 = vpop.f32.mrb[0].mxu0
        %4295 = vdwg.mxu0
        %v4296 = vld [vmem:[%s55] sm:$0xf]
        %v4297 = vld [vmem:[%s55 + $0x4] sm:$0xf]
        %v4298 = vld [vmem:[%s55 + $0x8] sm:$0xf]
        %v4299 = vld [vmem:[%s55 + $0xc] sm:$0xf]
        %v4300 = vld [vmem:[%s55 + $0x10] sm:$0xf]
        %v4301 = vld [vmem:[%s55 + $0x14] sm:$0xf]
        %v4302 = vld [vmem:[%s55 + $0x18] sm:$0xf]
        %v4303 = vld [vmem:[%s55 + $0x1c] sm:$0xf]
        %v4304 = vld [vmem:[%s55 + $0x20] sm:$0xf]
        %v4305 = vld [vmem:[%s55 + $0x24] sm:$0xf]
        %v4306 = vld [vmem:[%s55 + $0x28] sm:$0xf]
        %v4307 = vld [vmem:[%s55 + $0x2c] sm:$0xf]
        %v4308 = vld [vmem:[%s55 + $0x30] sm:$0xf]
        %v4309 = vld [vmem:[%s55 + $0x34] sm:$0xf]
        %v4310 = vld [vmem:[%s55 + $0x38] sm:$0xf]
        %v4311 = vld [vmem:[%s55 + $0x3c] sm:$0xf]
        %v4328 = vunpack.c.l.b16 %v4296
        %v4329 = vunpack.c.l.b16 %v4297
        %v4330 = vunpack.c.l.b16 %v4298
        %v4331 = vunpack.c.l.b16 %v4299
        %v4332 = vunpack.c.l.b16 %v4300
        %v4333 = vunpack.c.l.b16 %v4301
        %v4334 = vunpack.c.l.b16 %v4302
        %v4335 = vunpack.c.l.b16 %v4303
        %v4336 = vunpack.c.l.b16 %v4304
        %v4337 = vunpack.c.l.b16 %v4305
        %v4338 = vunpack.c.l.b16 %v4306
        %v4339 = vunpack.c.l.b16 %v4307
        %v4340 = vunpack.c.l.b16 %v4308
        %v4341 = vunpack.c.l.b16 %v4309
        %v4342 = vunpack.c.l.b16 %v4310
        %v4343 = vunpack.c.l.b16 %v4311
        %v4344 = vpack.c.b16 %v4329, %v4328
        %v4345 = vpack.c.b16 %v4331, %v4330
        %v4346 = vpack.c.b16 %v4333, %v4332
        %v4347 = vpack.c.b16 %v4335, %v4334
        %v4348 = vpack.c.b16 %v4337, %v4336
        %v4349 = vpack.c.b16 %v4339, %v4338
        %v4350 = vpack.c.b16 %v4341, %v4340
        %v4351 = vpack.c.b16 %v4343, %v4342
        %4360 = vmatprep.subr.bf16.mxu0 0
        %4361 = vmatpush1.bf16.msra.mxu0 %v4344
        %4362 = vmatprep.subr.bf16.mxu0 0
        %4363 = vmatpush1.bf16.msra.mxu0 %v4345
        %4364 = vmatprep.subr.bf16.mxu0 0
        %4365 = vmatpush1.bf16.msra.mxu0 %v4346
        %4366 = vmatprep.subr.bf16.mxu0 0
        %4367 = vmatpush1.bf16.msra.mxu0 %v4347
        %4368 = vmatprep.subr.bf16.mxu0 0
        %4369 = vmatpush1.bf16.msra.mxu0 %v4348
        %4370 = vmatprep.subr.bf16.mxu0 0
        %4371 = vmatpush1.bf16.msra.mxu0 %v4349
        %4372 = vmatprep.subr.bf16.mxu0 0
        %4373 = vmatpush1.bf16.msra.mxu0 %v4350
        %4374 = vmatprep.subr.bf16.mxu0 0
        %4375 = vmatpush1.bf16.msra.mxu0 %v4351
        %4376 = vmatprep.subr.bf16.mxu0 0
        %4377 = vmatpush1.bf16.msra.mxu0 0
        %4378 = vmatprep.subr.bf16.mxu0 0
        %4379 = vmatpush1.bf16.msra.mxu0 0
        %4380 = vmatprep.subr.bf16.mxu0 0
        %4381 = vmatpush1.bf16.msra.mxu0 0
        %4382 = vmatprep.subr.bf16.mxu0 0
        %4383 = vmatpush1.bf16.msra.mxu0 0
        %4384 = vmatprep.subr.bf16.mxu0 0
        %4385 = vmatpush1.bf16.msra.mxu0 0
        %4386 = vmatprep.subr.bf16.mxu0 0
        %4387 = vmatpush1.bf16.msra.mxu0 0
        %4388 = vmatprep.subr.bf16.mxu0 0
        %4389 = vmatpush1.bf16.msra.mxu0 0
        %4390 = vmatprep.subr.bf16.mxu0 0
        %4391 = vmatpush1.bf16.msra.mxu0 0
        %4392 = vmatprep.mubr.bf16.mxu0 0
        %4393 = vmatmul.mubr.bf16.gmra.mrb[0].mxu0 %v4008
        %v4394 = vpop.f32.mrb[0].mxu0
        %v4395 = vadd.f32 %v4290, %v4394
        %v4396 = vpop.f32.mrb[0].mxu0
        %v4397 = vpop.f32.mrb[0].mxu0
        %v4398 = vpop.f32.mrb[0].mxu0
        %4399 = vdwg.mxu0
        %s4400 = scalar_lea.vmem %s55, 64
        %v4401 = vld [vmem:[%s4400] sm:$0xf]
        %v4402 = vld [vmem:[%s4400 + $0x4] sm:$0xf]
        %v4403 = vld [vmem:[%s4400 + $0x8] sm:$0xf]
        %v4404 = vld [vmem:[%s4400 + $0xc] sm:$0xf]
        %v4405 = vld [vmem:[%s4400 + $0x10] sm:$0xf]
        %v4406 = vld [vmem:[%s4400 + $0x14] sm:$0xf]
        %v4407 = vld [vmem:[%s4400 + $0x18] sm:$0xf]
        %v4408 = vld [vmem:[%s4400 + $0x1c] sm:$0xf]
        %v4409 = vld [vmem:[%s4400 + $0x20] sm:$0xf]
        %v4410 = vld [vmem:[%s4400 + $0x24] sm:$0xf]
        %v4411 = vld [vmem:[%s4400 + $0x28] sm:$0xf]
        %v4412 = vld [vmem:[%s4400 + $0x2c] sm:$0xf]
        %v4413 = vld [vmem:[%s4400 + $0x30] sm:$0xf]
        %v4414 = vld [vmem:[%s4400 + $0x34] sm:$0xf]
        %v4415 = vld [vmem:[%s4400 + $0x38] sm:$0xf]
        %v4416 = vld [vmem:[%s4400 + $0x3c] sm:$0xf]
        %v4433 = vunpack.c.l.b16 %v4401
        %v4434 = vunpack.c.l.b16 %v4402
        %v4435 = vunpack.c.l.b16 %v4403
        %v4436 = vunpack.c.l.b16 %v4404
        %v4437 = vunpack.c.l.b16 %v4405
        %v4438 = vunpack.c.l.b16 %v4406
        %v4439 = vunpack.c.l.b16 %v4407
        %v4440 = vunpack.c.l.b16 %v4408
        %v4441 = vunpack.c.l.b16 %v4409
        %v4442 = vunpack.c.l.b16 %v4410
        %v4443 = vunpack.c.l.b16 %v4411
        %v4444 = vunpack.c.l.b16 %v4412
        %v4445 = vunpack.c.l.b16 %v4413
        %v4446 = vunpack.c.l.b16 %v4414
        %v4447 = vunpack.c.l.b16 %v4415
        %v4448 = vunpack.c.l.b16 %v4416
        %v4449 = vpack.c.b16 %v4434, %v4433
        %v4450 = vpack.c.b16 %v4436, %v4435
        %v4451 = vpack.c.b16 %v4438, %v4437
        %v4452 = vpack.c.b16 %v4440, %v4439
        %v4453 = vpack.c.b16 %v4442, %v4441
        %v4454 = vpack.c.b16 %v4444, %v4443
        %v4455 = vpack.c.b16 %v4446, %v4445
        %v4456 = vpack.c.b16 %v4448, %v4447
        %4465 = vmatprep.subr.bf16.mxu0 0
        %4466 = vmatpush1.bf16.msra.mxu0 %v4449
        %4467 = vmatprep.subr.bf16.mxu0 0
        %4468 = vmatpush1.bf16.msra.mxu0 %v4450
        %4469 = vmatprep.subr.bf16.mxu0 0
        %4470 = vmatpush1.bf16.msra.mxu0 %v4451
        %4471 = vmatprep.subr.bf16.mxu0 0
        %4472 = vmatpush1.bf16.msra.mxu0 %v4452
        %4473 = vmatprep.subr.bf16.mxu0 0
        %4474 = vmatpush1.bf16.msra.mxu0 %v4453
        %4475 = vmatprep.subr.bf16.mxu0 0
        %4476 = vmatpush1.bf16.msra.mxu0 %v4454
        %4477 = vmatprep.subr.bf16.mxu0 0
        %4478 = vmatpush1.bf16.msra.mxu0 %v4455
        %4479 = vmatprep.subr.bf16.mxu0 0
        %4480 = vmatpush1.bf16.msra.mxu0 %v4456
        %4481 = vmatprep.subr.bf16.mxu0 0
        %4482 = vmatpush1.bf16.msra.mxu0 0
        %4483 = vmatprep.subr.bf16.mxu0 0
        %4484 = vmatpush1.bf16.msra.mxu0 0
        %4485 = vmatprep.subr.bf16.mxu0 0
        %4486 = vmatpush1.bf16.msra.mxu0 0
        %4487 = vmatprep.subr.bf16.mxu0 0
        %4488 = vmatpush1.bf16.msra.mxu0 0
        %4489 = vmatprep.subr.bf16.mxu0 0
        %4490 = vmatpush1.bf16.msra.mxu0 0
        %4491 = vmatprep.subr.bf16.mxu0 0
        %4492 = vmatpush1.bf16.msra.mxu0 0
        %4493 = vmatprep.subr.bf16.mxu0 0
        %4494 = vmatpush1.bf16.msra.mxu0 0
        %4495 = vmatprep.subr.bf16.mxu0 0
        %4496 = vmatpush1.bf16.msra.mxu0 0
        %4497 = vmatprep.mubr.bf16.mxu0 0
        %4498 = vmatmul.mubr.bf16.gmra.mrb[0].mxu0 %v4158
        %v4499 = vpop.f32.mrb[0].mxu0
        %v4500 = vadd.f32 0.0, %v4499
        %v4501 = vpop.f32.mrb[0].mxu0
        %v4502 = vpop.f32.mrb[0].mxu0
        %v4503 = vpop.f32.mrb[0].mxu0
        %4504 = vdwg.mxu0
        %v4505 = vadd.f32 %v4395, %v4500
        %v4506 = vld [vmem:[%s59] sm:$0x1]
        %v4508 = vlaneseq
        %v4509 = vshrl.u32 %v4508, 7
        %v4510 = vsub.s32 0, %v4509
        %v4511 = vrot.slane %v4506, %v4510
        %v4513 = vadd.f32 %v4505, %v4511
        %v4514 = vld [vmem:[%s61] sm:$0x1]
        %v4516 = vlaneseq
        %v4517 = vshrl.u32 %v4516, 7
        %v4518 = vsub.s32 0, %v4517
        %v4519 = vrot.slane %v4514, %v4518
        %v4521 = vadd.f32 %v4292, %v4519
        %v4522 = vmax.f32 %v4513, 0.0
        %v4523 = vpack.c.bf16 %v4522, %v4522
        %v4524 = vld [vmem:[%s45] sm:$0xf]
        %vm4525 = vcmask 31744
        %v4527 = vsel %vm4525, %v4524, 0
        %vm4529 = vcmask 1043456
        %v4531 = vsel %vm4529, %v4522, 0
        %4533 = vmatprep.subr.mxu0 0.0
        %4534 = vmatpush1.msra.mxu0 %v4531
        %4535 = vmatprep.subr.mxu0 0.0
        %4536 = vmatpush1.msra.mxu0 0.0
        %4537 = vmatprep.subr.mxu0 0.0
        %4538 = vmatpush1.msra.mxu0 0.0
        %4539 = vmatprep.subr.mxu0 0.0
        %4540 = vmatpush1.msra.mxu0 0.0
        %4541 = vmatprep.subr.mxu0 0.0
        %4542 = vmatpush1.msra.mxu0 0.0
        %4543 = vmatprep.subr.mxu0 0.0
        %4544 = vmatpush1.msra.mxu0 0.0
        %4545 = vmatprep.subr.mxu0 0.0
        %4546 = vmatpush1.msra.mxu0 0.0
        %4547 = vmatprep.subr.mxu0 0.0
        %4548 = vmatpush1.msra.mxu0 0.0
        %4549 = vmatprep.subr.mxu0 0.0
        %4550 = vmatpush1.msra.mxu0 0.0
        %4551 = vmatprep.subr.mxu0 0.0
        %4552 = vmatpush1.msra.mxu0 0.0
        %4553 = vmatprep.subr.mxu0 0.0
        %4554 = vmatpush1.msra.mxu0 0.0
        %4555 = vmatprep.subr.mxu0 0.0
        %4556 = vmatpush1.msra.mxu0 0.0
        %4557 = vmatprep.subr.mxu0 0.0
        %4558 = vmatpush1.msra.mxu0 0.0
        %4559 = vmatprep.subr.mxu0 0.0
        %4560 = vmatpush1.msra.mxu0 0.0
        %4561 = vmatprep.subr.mxu0 0.0
        %4562 = vmatpush1.msra.mxu0 0.0
        %4563 = vmatprep.subr.mxu0 0.0
        %4564 = vmatpush1.msra.mxu0 0.0
        %4565 = vmatprep.subr.mxu0 0.0
        %4566 = vmatpush1.msra.mxu0 0.0
        %4567 = vmatprep.subr.mxu0 0.0
        %4568 = vmatpush1.msra.mxu0 0.0
        %4569 = vmatprep.subr.mxu0 0.0
        %4570 = vmatpush1.msra.mxu0 0.0
        %4571 = vmatprep.subr.mxu0 0.0
        %4572 = vmatpush1.msra.mxu0 0.0
        %4573 = vmatprep.subr.mxu0 0.0
        %4574 = vmatpush1.msra.mxu0 0.0
        %4575 = vmatprep.subr.mxu0 0.0
        %4576 = vmatpush1.msra.mxu0 0.0
        %4577 = vmatprep.subr.mxu0 0.0
        %4578 = vmatpush1.msra.mxu0 0.0
        %4579 = vmatprep.subr.mxu0 0.0
        %4580 = vmatpush1.msra.mxu0 0.0
        %4581 = vmatprep.subr.mxu0 0.0
        %4582 = vmatpush1.msra.mxu0 0.0
        %4583 = vmatprep.subr.mxu0 0.0
        %4584 = vmatpush1.msra.mxu0 0.0
        %4585 = vmatprep.subr.mxu0 0.0
        %4586 = vmatpush1.msra.mxu0 0.0
        %4587 = vmatprep.subr.mxu0 0.0
        %4588 = vmatpush1.msra.mxu0 0.0
        %4589 = vmatprep.subr.mxu0 0.0
        %4590 = vmatpush1.msra.mxu0 0.0
        %4591 = vmatprep.subr.mxu0 0.0
        %4592 = vmatpush1.msra.mxu0 0.0
        %4593 = vmatprep.subr.mxu0 0.0
        %4594 = vmatpush1.msra.mxu0 0.0
        %4595 = vmatprep.subr.mxu0 0.0
        %4596 = vmatpush1.msra.mxu0 0.0
        %4597 = vmatprep.mubr.f32.mxu0 0.0
        %4598 = vmatmul.mubr.f32.gmra.mrb[0].mxu0 %v4527
        %v4599 = vpop.f32.mrb[0].mxu0
        %v4600 = vadd.f32 0.0, %v4599
        %v4601 = vpop.f32.mrb[0].mxu0
        %4602 = vdwg.mxu0
        %v4603 = vpack.c.bf16 %v4600, %v4600
        %v4604 = vld [vmem:[%s47] sm:$0xf]
        %v4606 = vsel %vm4525, %v4604, 0
        %4608 = vmatprep.subr.mxu0 0.0
        %4609 = vmatpush1.msra.mxu0 %v4531
        %4610 = vmatprep.subr.mxu0 0.0
        %4611 = vmatpush1.msra.mxu0 0.0
        %4612 = vmatprep.subr.mxu0 0.0
        %4613 = vmatpush1.msra.mxu0 0.0
        %4614 = vmatprep.subr.mxu0 0.0
        %4615 = vmatpush1.msra.mxu0 0.0
        %4616 = vmatprep.subr.mxu0 0.0
        %4617 = vmatpush1.msra.mxu0 0.0
        %4618 = vmatprep.subr.mxu0 0.0
        %4619 = vmatpush1.msra.mxu0 0.0
        %4620 = vmatprep.subr.mxu0 0.0
        %4621 = vmatpush1.msra.mxu0 0.0
        %4622 = vmatprep.subr.mxu0 0.0
        %4623 = vmatpush1.msra.mxu0 0.0
        %4624 = vmatprep.subr.mxu0 0.0
        %4625 = vmatpush1.msra.mxu0 0.0
        %4626 = vmatprep.subr.mxu0 0.0
        %4627 = vmatpush1.msra.mxu0 0.0
        %4628 = vmatprep.subr.mxu0 0.0
        %4629 = vmatpush1.msra.mxu0 0.0
        %4630 = vmatprep.subr.mxu0 0.0
        %4631 = vmatpush1.msra.mxu0 0.0
        %4632 = vmatprep.subr.mxu0 0.0
        %4633 = vmatpush1.msra.mxu0 0.0
        %4634 = vmatprep.subr.mxu0 0.0
        %4635 = vmatpush1.msra.mxu0 0.0
        %4636 = vmatprep.subr.mxu0 0.0
        %4637 = vmatpush1.msra.mxu0 0.0
        %4638 = vmatprep.subr.mxu0 0.0
        %4639 = vmatpush1.msra.mxu0 0.0
        %4640 = vmatprep.subr.mxu0 0.0
        %4641 = vmatpush1.msra.mxu0 0.0
        %4642 = vmatprep.subr.mxu0 0.0
        %4643 = vmatpush1.msra.mxu0 0.0
        %4644 = vmatprep.subr.mxu0 0.0
        %4645 = vmatpush1.msra.mxu0 0.0
        %4646 = vmatprep.subr.mxu0 0.0
        %4647 = vmatpush1.msra.mxu0 0.0
        %4648 = vmatprep.subr.mxu0 0.0
        %4649 = vmatpush1.msra.mxu0 0.0
        %4650 = vmatprep.subr.mxu0 0.0
        %4651 = vmatpush1.msra.mxu0 0.0
        %4652 = vmatprep.subr.mxu0 0.0
        %4653 = vmatpush1.msra.mxu0 0.0
        %4654 = vmatprep.subr.mxu0 0.0
        %4655 = vmatpush1.msra.mxu0 0.0
        %4656 = vmatprep.subr.mxu0 0.0
        %4657 = vmatpush1.msra.mxu0 0.0
        %4658 = vmatprep.subr.mxu0 0.0
        %4659 = vmatpush1.msra.mxu0 0.0
        %4660 = vmatprep.subr.mxu0 0.0
        %4661 = vmatpush1.msra.mxu0 0.0
        %4662 = vmatprep.subr.mxu0 0.0
        %4663 = vmatpush1.msra.mxu0 0.0
        %4664 = vmatprep.subr.mxu0 0.0
        %4665 = vmatpush1.msra.mxu0 0.0
        %4666 = vmatprep.subr.mxu0 0.0
        %4667 = vmatpush1.msra.mxu0 0.0
        %4668 = vmatprep.subr.mxu0 0.0
        %4669 = vmatpush1.msra.mxu0 0.0
        %4670 = vmatprep.subr.mxu0 0.0
        %4671 = vmatpush1.msra.mxu0 0.0
        %4672 = vmatprep.mubr.f32.mxu0 0.0
        %4673 = vmatmul.mubr.f32.gmra.mrb[0].mxu0 %v4606
        %v4674 = vpop.f32.mrb[0].mxu0
        %v4675 = vadd.f32 0.0, %v4674
        %v4676 = vpop.f32.mrb[0].mxu0
        %4677 = vdwg.mxu0
        %v4678 = vpack.c.bf16 %v4675, %v4675
        %v4679 = vld [vmem:[%s63] sm:$0xf]
        %v4680 = vld [vmem:[%s63 + $0x4] sm:$0xf]
        %v4681 = vld [vmem:[%s63 + $0x8] sm:$0xf]
        %v4682 = vld [vmem:[%s63 + $0xc] sm:$0xf]
        %v4683 = vld [vmem:[%s63 + $0x10] sm:$0xf]
        %v4684 = vld [vmem:[%s63 + $0x14] sm:$0xf]
        %v4685 = vld [vmem:[%s63 + $0x18] sm:$0xf]
        %v4686 = vld [vmem:[%s63 + $0x1c] sm:$0xf]
        %v4687 = vld [vmem:[%s63 + $0x20] sm:$0xf]
        %v4688 = vld [vmem:[%s63 + $0x24] sm:$0xf]
        %v4689 = vld [vmem:[%s63 + $0x28] sm:$0xf]
        %v4690 = vld [vmem:[%s63 + $0x2c] sm:$0xf]
        %v4691 = vld [vmem:[%s63 + $0x30] sm:$0xf]
        %v4692 = vld [vmem:[%s63 + $0x34] sm:$0xf]
        %v4693 = vld [vmem:[%s63 + $0x38] sm:$0xf]
        %v4694 = vld [vmem:[%s63 + $0x3c] sm:$0xf]
        %s4695 = scalar_lea.vmem %s63, 64
        %v4696 = vld [vmem:[%s4695] sm:$0xf]
        %v4697 = vld [vmem:[%s4695 + $0x4] sm:$0xf]
        %v4698 = vld [vmem:[%s4695 + $0x8] sm:$0xf]
        %v4699 = vld [vmem:[%s4695 + $0xc] sm:$0xf]
        %v4700 = vld [vmem:[%s4695 + $0x10] sm:$0xf]
        %v4701 = vld [vmem:[%s4695 + $0x14] sm:$0xf]
        %v4702 = vld [vmem:[%s4695 + $0x18] sm:$0xf]
        %v4703 = vld [vmem:[%s4695 + $0x1c] sm:$0xf]
        %v4704 = vld [vmem:[%s4695 + $0x20] sm:$0xf]
        %v4705 = vld [vmem:[%s4695 + $0x24] sm:$0xf]
        %v4706 = vld [vmem:[%s4695 + $0x28] sm:$0xf]
        %v4707 = vld [vmem:[%s4695 + $0x2c] sm:$0xf]
        %v4708 = vld [vmem:[%s4695 + $0x30] sm:$0xf]
        %v4709 = vld [vmem:[%s4695 + $0x34] sm:$0xf]
        %v4710 = vld [vmem:[%s4695 + $0x38] sm:$0xf]
        %v4711 = vld [vmem:[%s4695 + $0x3c] sm:$0xf]
        %v4728 = vunpack.c.l.b16 %v4696
        %v4729 = vunpack.c.l.b16 %v4697
        %v4730 = vunpack.c.l.b16 %v4698
        %v4731 = vunpack.c.l.b16 %v4699
        %v4732 = vunpack.c.l.b16 %v4700
        %v4733 = vunpack.c.l.b16 %v4701
        %v4734 = vunpack.c.l.b16 %v4702
        %v4735 = vunpack.c.l.b16 %v4703
        %v4736 = vunpack.c.l.b16 %v4704
        %v4737 = vunpack.c.l.b16 %v4705
        %v4738 = vunpack.c.l.b16 %v4706
        %v4739 = vunpack.c.l.b16 %v4707
        %v4740 = vunpack.c.l.b16 %v4708
        %v4741 = vunpack.c.l.b16 %v4709
        %v4742 = vunpack.c.l.b16 %v4710
        %v4743 = vunpack.c.l.b16 %v4711
        %v4744 = vpack.c.b16 %v4729, %v4728
        %v4745 = vpack.c.b16 %v4731, %v4730
        %v4746 = vpack.c.b16 %v4733, %v4732
        %v4747 = vpack.c.b16 %v4735, %v4734
        %v4748 = vpack.c.b16 %v4737, %v4736
        %v4749 = vpack.c.b16 %v4739, %v4738
        %v4750 = vpack.c.b16 %v4741, %v4740
        %v4751 = vpack.c.b16 %v4743, %v4742
        %4760 = vmatprep.subr.bf16.mxu0 0
        %4761 = vmatpush1.bf16.msra.mxu0 %v4744
        %4762 = vmatprep.subr.bf16.mxu0 0
        %4763 = vmatpush1.bf16.msra.mxu0 %v4745
        %4764 = vmatprep.subr.bf16.mxu0 0
        %4765 = vmatpush1.bf16.msra.mxu0 %v4746
        %4766 = vmatprep.subr.bf16.mxu0 0
        %4767 = vmatpush1.bf16.msra.mxu0 %v4747
        %4768 = vmatprep.subr.bf16.mxu0 0
        %4769 = vmatpush1.bf16.msra.mxu0 %v4748
        %4770 = vmatprep.subr.bf16.mxu0 0
        %4771 = vmatpush1.bf16.msra.mxu0 %v4749
        %4772 = vmatprep.subr.bf16.mxu0 0
        %4773 = vmatpush1.bf16.msra.mxu0 %v4750
        %4774 = vmatprep.subr.bf16.mxu0 0
        %4775 = vmatpush1.bf16.msra.mxu0 %v4751
        %4776 = vmatprep.subr.bf16.mxu0 0
        %4777 = vmatpush1.bf16.msra.mxu0 0
        %4778 = vmatprep.subr.bf16.mxu0 0
        %4779 = vmatpush1.bf16.msra.mxu0 0
        %4780 = vmatprep.subr.bf16.mxu0 0
        %4781 = vmatpush1.bf16.msra.mxu0 0
        %4782 = vmatprep.subr.bf16.mxu0 0
        %4783 = vmatpush1.bf16.msra.mxu0 0
        %4784 = vmatprep.subr.bf16.mxu0 0
        %4785 = vmatpush1.bf16.msra.mxu0 0
        %4786 = vmatprep.subr.bf16.mxu0 0
        %4787 = vmatpush1.bf16.msra.mxu0 0
        %4788 = vmatprep.subr.bf16.mxu0 0
        %4789 = vmatpush1.bf16.msra.mxu0 0
        %4790 = vmatprep.subr.bf16.mxu0 0
        %4791 = vmatpush1.bf16.msra.mxu0 0
        %4792 = vmatprep.mubr.bf16.mxu0 0
        %4793 = vmatmul.mubr.bf16.gmra.mrb[0].mxu0 %v4523
        %v4794 = vpop.f32.mrb[0].mxu0
        %v4795 = vadd.f32 0.0, %v4794
        %v4796 = vpop.f32.mrb[0].mxu0
        %v4797 = vpop.f32.mrb[0].mxu0
        %v4798 = vpop.f32.mrb[0].mxu0
        %4799 = vdwg.mxu0
        %v4816 = vunpack.c.l.b16 %v4679
        %v4817 = vunpack.c.l.b16 %v4680
        %v4818 = vunpack.c.l.b16 %v4681
        %v4819 = vunpack.c.l.b16 %v4682
        %v4820 = vunpack.c.l.b16 %v4683
        %v4821 = vunpack.c.l.b16 %v4684
        %v4822 = vunpack.c.l.b16 %v4685
        %v4823 = vunpack.c.l.b16 %v4686
        %v4824 = vunpack.c.l.b16 %v4687
        %v4825 = vunpack.c.l.b16 %v4688
        %v4826 = vunpack.c.l.b16 %v4689
        %v4827 = vunpack.c.l.b16 %v4690
        %v4828 = vunpack.c.l.b16 %v4691
        %v4829 = vunpack.c.l.b16 %v4692
        %v4830 = vunpack.c.l.b16 %v4693
        %v4831 = vunpack.c.l.b16 %v4694
        %v4832 = vpack.c.b16 %v4817, %v4816
        %v4833 = vpack.c.b16 %v4819, %v4818
        %v4834 = vpack.c.b16 %v4821, %v4820
        %v4835 = vpack.c.b16 %v4823, %v4822
        %v4836 = vpack.c.b16 %v4825, %v4824
        %v4837 = vpack.c.b16 %v4827, %v4826
        %v4838 = vpack.c.b16 %v4829, %v4828
        %v4839 = vpack.c.b16 %v4831, %v4830
        %4848 = vmatprep.subr.bf16.mxu0 0
        %4849 = vmatpush1.bf16.msra.mxu0 %v4832
        %4850 = vmatprep.subr.bf16.mxu0 0
        %4851 = vmatpush1.bf16.msra.mxu0 %v4833
        %4852 = vmatprep.subr.bf16.mxu0 0
        %4853 = vmatpush1.bf16.msra.mxu0 %v4834
        %4854 = vmatprep.subr.bf16.mxu0 0
        %4855 = vmatpush1.bf16.msra.mxu0 %v4835
        %4856 = vmatprep.subr.bf16.mxu0 0
        %4857 = vmatpush1.bf16.msra.mxu0 %v4836
        %4858 = vmatprep.subr.bf16.mxu0 0
        %4859 = vmatpush1.bf16.msra.mxu0 %v4837
        %4860 = vmatprep.subr.bf16.mxu0 0
        %4861 = vmatpush1.bf16.msra.mxu0 %v4838
        %4862 = vmatprep.subr.bf16.mxu0 0
        %4863 = vmatpush1.bf16.msra.mxu0 %v4839
        %4864 = vmatprep.subr.bf16.mxu0 0
        %4865 = vmatpush1.bf16.msra.mxu0 0
        %4866 = vmatprep.subr.bf16.mxu0 0
        %4867 = vmatpush1.bf16.msra.mxu0 0
        %4868 = vmatprep.subr.bf16.mxu0 0
        %4869 = vmatpush1.bf16.msra.mxu0 0
        %4870 = vmatprep.subr.bf16.mxu0 0
        %4871 = vmatpush1.bf16.msra.mxu0 0
        %4872 = vmatprep.subr.bf16.mxu0 0
        %4873 = vmatpush1.bf16.msra.mxu0 0
        %4874 = vmatprep.subr.bf16.mxu0 0
        %4875 = vmatpush1.bf16.msra.mxu0 0
        %4876 = vmatprep.subr.bf16.mxu0 0
        %4877 = vmatpush1.bf16.msra.mxu0 0
        %4878 = vmatprep.subr.bf16.mxu0 0
        %4879 = vmatpush1.bf16.msra.mxu0 0
        %4880 = vmatprep.mubr.bf16.mxu0 0
        %4881 = vmatmul.mubr.bf16.gmra.mrb[0].mxu0 %v4603
        %v4882 = vpop.f32.mrb[0].mxu0
        %v4883 = vadd.f32 %v4795, %v4882
        %v4884 = vpop.f32.mrb[0].mxu0
        %v4885 = vpop.f32.mrb[0].mxu0
        %v4886 = vpop.f32.mrb[0].mxu0
        %4887 = vdwg.mxu0
        %s4888 = scalar_lea.vmem %s63, 128
        %v4889 = vld [vmem:[%s4888] sm:$0xf]
        %v4890 = vld [vmem:[%s4888 + $0x4] sm:$0xf]
        %v4891 = vld [vmem:[%s4888 + $0x8] sm:$0xf]
        %v4892 = vld [vmem:[%s4888 + $0xc] sm:$0xf]
        %v4893 = vld [vmem:[%s4888 + $0x10] sm:$0xf]
        %v4894 = vld [vmem:[%s4888 + $0x14] sm:$0xf]
        %v4895 = vld [vmem:[%s4888 + $0x18] sm:$0xf]
        %v4896 = vld [vmem:[%s4888 + $0x1c] sm:$0xf]
        %v4897 = vld [vmem:[%s4888 + $0x20] sm:$0xf]
        %v4898 = vld [vmem:[%s4888 + $0x24] sm:$0xf]
        %v4899 = vld [vmem:[%s4888 + $0x28] sm:$0xf]
        %v4900 = vld [vmem:[%s4888 + $0x2c] sm:$0xf]
        %v4901 = vld [vmem:[%s4888 + $0x30] sm:$0xf]
        %v4902 = vld [vmem:[%s4888 + $0x34] sm:$0xf]
        %v4903 = vld [vmem:[%s4888 + $0x38] sm:$0xf]
        %v4904 = vld [vmem:[%s4888 + $0x3c] sm:$0xf]
        %v4921 = vunpack.c.l.b16 %v4889
        %v4922 = vunpack.c.l.b16 %v4890
        %v4923 = vunpack.c.l.b16 %v4891
        %v4924 = vunpack.c.l.b16 %v4892
        %v4925 = vunpack.c.l.b16 %v4893
        %v4926 = vunpack.c.l.b16 %v4894
        %v4927 = vunpack.c.l.b16 %v4895
        %v4928 = vunpack.c.l.b16 %v4896
        %v4929 = vunpack.c.l.b16 %v4897
        %v4930 = vunpack.c.l.b16 %v4898
        %v4931 = vunpack.c.l.b16 %v4899
        %v4932 = vunpack.c.l.b16 %v4900
        %v4933 = vunpack.c.l.b16 %v4901
        %v4934 = vunpack.c.l.b16 %v4902
        %v4935 = vunpack.c.l.b16 %v4903
        %v4936 = vunpack.c.l.b16 %v4904
        %v4937 = vpack.c.b16 %v4922, %v4921
        %v4938 = vpack.c.b16 %v4924, %v4923
        %v4939 = vpack.c.b16 %v4926, %v4925
        %v4940 = vpack.c.b16 %v4928, %v4927
        %v4941 = vpack.c.b16 %v4930, %v4929
        %v4942 = vpack.c.b16 %v4932, %v4931
        %v4943 = vpack.c.b16 %v4934, %v4933
        %v4944 = vpack.c.b16 %v4936, %v4935
        %4953 = vmatprep.subr.bf16.mxu0 0
        %4954 = vmatpush1.bf16.msra.mxu0 %v4937
        %4955 = vmatprep.subr.bf16.mxu0 0
        %4956 = vmatpush1.bf16.msra.mxu0 %v4938
        %4957 = vmatprep.subr.bf16.mxu0 0
        %4958 = vmatpush1.bf16.msra.mxu0 %v4939
        %4959 = vmatprep.subr.bf16.mxu0 0
        %4960 = vmatpush1.bf16.msra.mxu0 %v4940
        %4961 = vmatprep.subr.bf16.mxu0 0
        %4962 = vmatpush1.bf16.msra.mxu0 %v4941
        %4963 = vmatprep.subr.bf16.mxu0 0
        %4964 = vmatpush1.bf16.msra.mxu0 %v4942
        %4965 = vmatprep.subr.bf16.mxu0 0
        %4966 = vmatpush1.bf16.msra.mxu0 %v4943
        %4967 = vmatprep.subr.bf16.mxu0 0
        %4968 = vmatpush1.bf16.msra.mxu0 %v4944
        %4969 = vmatprep.subr.bf16.mxu0 0
        %4970 = vmatpush1.bf16.msra.mxu0 0
        %4971 = vmatprep.subr.bf16.mxu0 0
        %4972 = vmatpush1.bf16.msra.mxu0 0
        %4973 = vmatprep.subr.bf16.mxu0 0
        %4974 = vmatpush1.bf16.msra.mxu0 0
        %4975 = vmatprep.subr.bf16.mxu0 0
        %4976 = vmatpush1.bf16.msra.mxu0 0
        %4977 = vmatprep.subr.bf16.mxu0 0
        %4978 = vmatpush1.bf16.msra.mxu0 0
        %4979 = vmatprep.subr.bf16.mxu0 0
        %4980 = vmatpush1.bf16.msra.mxu0 0
        %4981 = vmatprep.subr.bf16.mxu0 0
        %4982 = vmatpush1.bf16.msra.mxu0 0
        %4983 = vmatprep.subr.bf16.mxu0 0
        %4984 = vmatpush1.bf16.msra.mxu0 0
        %4985 = vmatprep.mubr.bf16.mxu0 0
        %4986 = vmatmul.mubr.bf16.gmra.mrb[0].mxu0 %v4678
        %v4987 = vpop.f32.mrb[0].mxu0
        %v4988 = vadd.f32 0.0, %v4987
        %v4989 = vpop.f32.mrb[0].mxu0
        %v4990 = vpop.f32.mrb[0].mxu0
        %v4991 = vpop.f32.mrb[0].mxu0
        %4992 = vdwg.mxu0
        %v4993 = vadd.f32 %v4883, %v4988
        %v4994 = vld [vmem:[%s65] sm:$0x1]
        %v4996 = vlaneseq
        %v4997 = vshrl.u32 %v4996, 7
        %v4998 = vsub.s32 0, %v4997
        %v4999 = vrot.slane %v4994, %v4998
        %v5001 = vadd.f32 %v4993, %v4999
        %v5002 = vadd.f32 %v5001, %v4521
        %v5003 = vmax.f32 %v5002, 0.0
        %v5004 = vld [vmem:[%s71] sm:$0x3]
        %v5006 = vsel %vm4525, %v5004, 0
        %v5009 = vsel %vm4529, %v5003, 0
        %5011 = vmatprep.subr.mxu0 0.0
        %5012 = vmatpush1.msra.mxu0 %v5009
        %5013 = vmatprep.subr.mxu0 0.0
        %5014 = vmatpush1.msra.mxu0 0.0
        %5015 = vmatprep.subr.mxu0 0.0
        %5016 = vmatpush1.msra.mxu0 0.0
        %5017 = vmatprep.subr.mxu0 0.0
        %5018 = vmatpush1.msra.mxu0 0.0
        %5019 = vmatprep.subr.mxu0 0.0
        %5020 = vmatpush1.msra.mxu0 0.0
        %5021 = vmatprep.subr.mxu0 0.0
        %5022 = vmatpush1.msra.mxu0 0.0
        %5023 = vmatprep.subr.mxu0 0.0
        %5024 = vmatpush1.msra.mxu0 0.0
        %5025 = vmatprep.subr.mxu0 0.0
        %5026 = vmatpush1.msra.mxu0 0.0
        %5027 = vmatprep.subr.mxu0 0.0
        %5028 = vmatpush1.msra.mxu0 0.0
        %5029 = vmatprep.subr.mxu0 0.0
        %5030 = vmatpush1.msra.mxu0 0.0
        %5031 = vmatprep.subr.mxu0 0.0
        %5032 = vmatpush1.msra.mxu0 0.0
        %5033 = vmatprep.subr.mxu0 0.0
        %5034 = vmatpush1.msra.mxu0 0.0
        %5035 = vmatprep.subr.mxu0 0.0
        %5036 = vmatpush1.msra.mxu0 0.0
        %5037 = vmatprep.subr.mxu0 0.0
        %5038 = vmatpush1.msra.mxu0 0.0
        %5039 = vmatprep.subr.mxu0 0.0
        %5040 = vmatpush1.msra.mxu0 0.0
        %5041 = vmatprep.subr.mxu0 0.0
        %5042 = vmatpush1.msra.mxu0 0.0
        %5043 = vmatprep.subr.mxu0 0.0
        %5044 = vmatpush1.msra.mxu0 0.0
        %5045 = vmatprep.subr.mxu0 0.0
        %5046 = vmatpush1.msra.mxu0 0.0
        %5047 = vmatprep.subr.mxu0 0.0
        %5048 = vmatpush1.msra.mxu0 0.0
        %5049 = vmatprep.subr.mxu0 0.0
        %5050 = vmatpush1.msra.mxu0 0.0
        %5051 = vmatprep.subr.mxu0 0.0
        %5052 = vmatpush1.msra.mxu0 0.0
        %5053 = vmatprep.subr.mxu0 0.0
        %5054 = vmatpush1.msra.mxu0 0.0
        %5055 = vmatprep.subr.mxu0 0.0
        %5056 = vmatpush1.msra.mxu0 0.0
        %5057 = vmatprep.subr.mxu0 0.0
        %5058 = vmatpush1.msra.mxu0 0.0
        %5059 = vmatprep.subr.mxu0 0.0
        %5060 = vmatpush1.msra.mxu0 0.0
        %5061 = vmatprep.subr.mxu0 0.0
        %5062 = vmatpush1.msra.mxu0 0.0
        %5063 = vmatprep.subr.mxu0 0.0
        %5064 = vmatpush1.msra.mxu0 0.0
        %5065 = vmatprep.subr.mxu0 0.0
        %5066 = vmatpush1.msra.mxu0 0.0
        %5067 = vmatprep.subr.mxu0 0.0
        %5068 = vmatpush1.msra.mxu0 0.0
        %5069 = vmatprep.subr.mxu0 0.0
        %5070 = vmatpush1.msra.mxu0 0.0
        %5071 = vmatprep.subr.mxu0 0.0
        %5072 = vmatpush1.msra.mxu0 0.0
        %5073 = vmatprep.subr.mxu0 0.0
        %5074 = vmatpush1.msra.mxu0 0.0
        %5075 = vmatprep.mubr.f32.mxu0 0.0
        %5076 = vmatmul.mubr.f32.gmra.mrb[0].mxu0 %v5006
        %v5077 = vpop.f32.mrb[0].mxu0
        %v5078 = vadd.f32 0.0, %v5077
        %v5079 = vpop.f32.mrb[0].mxu0
        %5080 = vdwg.mxu0
        %v5081 = vpack.c.bf16 %v5078, %v5078
        %v5082 = vld [vmem:[%s73] sm:$0x3]
        %v5084 = vsel %vm4525, %v5082, 0
        %5086 = vmatprep.subr.mxu0 0.0
        %5087 = vmatpush1.msra.mxu0 %v5009
        %5088 = vmatprep.subr.mxu0 0.0
        %5089 = vmatpush1.msra.mxu0 0.0
        %5090 = vmatprep.subr.mxu0 0.0
        %5091 = vmatpush1.msra.mxu0 0.0
        %5092 = vmatprep.subr.mxu0 0.0
        %5093 = vmatpush1.msra.mxu0 0.0
        %5094 = vmatprep.subr.mxu0 0.0
        %5095 = vmatpush1.msra.mxu0 0.0
        %5096 = vmatprep.subr.mxu0 0.0
        %5097 = vmatpush1.msra.mxu0 0.0
        %5098 = vmatprep.subr.mxu0 0.0
        %5099 = vmatpush1.msra.mxu0 0.0
        %5100 = vmatprep.subr.mxu0 0.0
        %5101 = vmatpush1.msra.mxu0 0.0
        %5102 = vmatprep.subr.mxu0 0.0
        %5103 = vmatpush1.msra.mxu0 0.0
        %5104 = vmatprep.subr.mxu0 0.0
        %5105 = vmatpush1.msra.mxu0 0.0
        %5106 = vmatprep.subr.mxu0 0.0
        %5107 = vmatpush1.msra.mxu0 0.0
        %5108 = vmatprep.subr.mxu0 0.0
        %5109 = vmatpush1.msra.mxu0 0.0
        %5110 = vmatprep.subr.mxu0 0.0
        %5111 = vmatpush1.msra.mxu0 0.0
        %5112 = vmatprep.subr.mxu0 0.0
        %5113 = vmatpush1.msra.mxu0 0.0
        %5114 = vmatprep.subr.mxu0 0.0
        %5115 = vmatpush1.msra.mxu0 0.0
        %5116 = vmatprep.subr.mxu0 0.0
        %5117 = vmatpush1.msra.mxu0 0.0
        %5118 = vmatprep.subr.mxu0 0.0
        %5119 = vmatpush1.msra.mxu0 0.0
        %5120 = vmatprep.subr.mxu0 0.0
        %5121 = vmatpush1.msra.mxu0 0.0
        %5122 = vmatprep.subr.mxu0 0.0
        %5123 = vmatpush1.msra.mxu0 0.0
        %5124 = vmatprep.subr.mxu0 0.0
        %5125 = vmatpush1.msra.mxu0 0.0
        %5126 = vmatprep.subr.mxu0 0.0
        %5127 = vmatpush1.msra.mxu0 0.0
        %5128 = vmatprep.subr.mxu0 0.0
        %5129 = vmatpush1.msra.mxu0 0.0
        %5130 = vmatprep.subr.mxu0 0.0
        %5131 = vmatpush1.msra.mxu0 0.0
        %5132 = vmatprep.subr.mxu0 0.0
        %5133 = vmatpush1.msra.mxu0 0.0
        %5134 = vmatprep.subr.mxu0 0.0
        %5135 = vmatpush1.msra.mxu0 0.0
        %5136 = vmatprep.subr.mxu0 0.0
        %5137 = vmatpush1.msra.mxu0 0.0
        %5138 = vmatprep.subr.mxu0 0.0
        %5139 = vmatpush1.msra.mxu0 0.0
        %5140 = vmatprep.subr.mxu0 0.0
        %5141 = vmatpush1.msra.mxu0 0.0
        %5142 = vmatprep.subr.mxu0 0.0
        %5143 = vmatpush1.msra.mxu0 0.0
        %5144 = vmatprep.subr.mxu0 0.0
        %5145 = vmatpush1.msra.mxu0 0.0
        %5146 = vmatprep.subr.mxu0 0.0
        %5147 = vmatpush1.msra.mxu0 0.0
        %5148 = vmatprep.subr.mxu0 0.0
        %5149 = vmatpush1.msra.mxu0 0.0
        %5150 = vmatprep.mubr.f32.mxu0 0.0
        %5151 = vmatmul.mubr.f32.gmra.mrb[0].mxu0 %v5084
        %v5152 = vpop.f32.mrb[0].mxu0
        %v5153 = vadd.f32 0.0, %v5152
        %v5154 = vpop.f32.mrb[0].mxu0
        %5155 = vdwg.mxu0
        %v5156 = vpack.c.bf16 %v5153, %v5153
        %v5157 = vld [vmem:[%s75] sm:$0x3]
        %v5159 = vsel %vm4525, %v5157, 0
        %5161 = vmatprep.subr.mxu0 0.0
        %5162 = vmatpush1.msra.mxu0 %v5009
        %5163 = vmatprep.subr.mxu0 0.0
        %5164 = vmatpush1.msra.mxu0 0.0
        %5165 = vmatprep.subr.mxu0 0.0
        %5166 = vmatpush1.msra.mxu0 0.0
        %5167 = vmatprep.subr.mxu0 0.0
        %5168 = vmatpush1.msra.mxu0 0.0
        %5169 = vmatprep.subr.mxu0 0.0
        %5170 = vmatpush1.msra.mxu0 0.0
        %5171 = vmatprep.subr.mxu0 0.0
        %5172 = vmatpush1.msra.mxu0 0.0
        %5173 = vmatprep.subr.mxu0 0.0
        %5174 = vmatpush1.msra.mxu0 0.0
        %5175 = vmatprep.subr.mxu0 0.0
        %5176 = vmatpush1.msra.mxu0 0.0
        %5177 = vmatprep.subr.mxu0 0.0
        %5178 = vmatpush1.msra.mxu0 0.0
        %5179 = vmatprep.subr.mxu0 0.0
        %5180 = vmatpush1.msra.mxu0 0.0
        %5181 = vmatprep.subr.mxu0 0.0
        %5182 = vmatpush1.msra.mxu0 0.0
        %5183 = vmatprep.subr.mxu0 0.0
        %5184 = vmatpush1.msra.mxu0 0.0
        %5185 = vmatprep.subr.mxu0 0.0
        %5186 = vmatpush1.msra.mxu0 0.0
        %5187 = vmatprep.subr.mxu0 0.0
        %5188 = vmatpush1.msra.mxu0 0.0
        %5189 = vmatprep.subr.mxu0 0.0
        %5190 = vmatpush1.msra.mxu0 0.0
        %5191 = vmatprep.subr.mxu0 0.0
        %5192 = vmatpush1.msra.mxu0 0.0
        %5193 = vmatprep.subr.mxu0 0.0
        %5194 = vmatpush1.msra.mxu0 0.0
        %5195 = vmatprep.subr.mxu0 0.0
        %5196 = vmatpush1.msra.mxu0 0.0
        %5197 = vmatprep.subr.mxu0 0.0
        %5198 = vmatpush1.msra.mxu0 0.0
        %5199 = vmatprep.subr.mxu0 0.0
        %5200 = vmatpush1.msra.mxu0 0.0
        %5201 = vmatprep.subr.mxu0 0.0
        %5202 = vmatpush1.msra.mxu0 0.0
        %5203 = vmatprep.subr.mxu0 0.0
        %5204 = vmatpush1.msra.mxu0 0.0
        %5205 = vmatprep.subr.mxu0 0.0
        %5206 = vmatpush1.msra.mxu0 0.0
        %5207 = vmatprep.subr.mxu0 0.0
        %5208 = vmatpush1.msra.mxu0 0.0
        %5209 = vmatprep.subr.mxu0 0.0
        %5210 = vmatpush1.msra.mxu0 0.0
        %5211 = vmatprep.subr.mxu0 0.0
        %5212 = vmatpush1.msra.mxu0 0.0
        %5213 = vmatprep.subr.mxu0 0.0
        %5214 = vmatpush1.msra.mxu0 0.0
        %5215 = vmatprep.subr.mxu0 0.0
        %5216 = vmatpush1.msra.mxu0 0.0
        %5217 = vmatprep.subr.mxu0 0.0
        %5218 = vmatpush1.msra.mxu0 0.0
        %5219 = vmatprep.subr.mxu0 0.0
        %5220 = vmatpush1.msra.mxu0 0.0
        %5221 = vmatprep.subr.mxu0 0.0
        %5222 = vmatpush1.msra.mxu0 0.0
        %5223 = vmatprep.subr.mxu0 0.0
        %5224 = vmatpush1.msra.mxu0 0.0
        %5225 = vmatprep.mubr.f32.mxu0 0.0
        %5226 = vmatmul.mubr.f32.gmra.mrb[0].mxu0 %v5159
        %v5227 = vpop.f32.mrb[0].mxu0
        %v5228 = vadd.f32 0.0, %v5227
        %v5229 = vpop.f32.mrb[0].mxu0
        %5230 = vdwg.mxu0
        %v5231 = vpack.c.bf16 %v5228, %v5228
        %v5232 = vld [vmem:[%s79] sm:$0xff]
        %v5233 = vld [vmem:[%s79 + $0x8] sm:$0xff]
        %v5234 = vld [vmem:[%s79 + $0x10] sm:$0xff]
        %v5235 = vld [vmem:[%s79 + $0x18] sm:$0xff]
        %v5236 = vld [vmem:[%s79 + $0x20] sm:$0xff]
        %v5237 = vld [vmem:[%s79 + $0x28] sm:$0xff]
        %v5238 = vld [vmem:[%s79 + $0x30] sm:$0xff]
        %v5239 = vld [vmem:[%s79 + $0x38] sm:$0xff]
        %v5240 = vld [vmem:[%s79 + $0x40] sm:$0xff]
        %v5241 = vld [vmem:[%s79 + $0x48] sm:$0xff]
        %v5242 = vld [vmem:[%s79 + $0x50] sm:$0xff]
        %v5243 = vld [vmem:[%s79 + $0x58] sm:$0xff]
        %v5244 = vld [vmem:[%s79 + $0x60] sm:$0xff]
        %v5245 = vld [vmem:[%s79 + $0x68] sm:$0xff]
        %v5246 = vld [vmem:[%s79 + $0x70] sm:$0xff]
        %v5247 = vld [vmem:[%s79 + $0x78] sm:$0xff]
        %v5264 = vunpack.c.l.b16 %v5232
        %v5265 = vunpack.c.h.b16 %v5232
        %v5266 = vunpack.c.l.b16 %v5233
        %v5267 = vunpack.c.h.b16 %v5233
        %v5268 = vunpack.c.l.b16 %v5234
        %v5269 = vunpack.c.h.b16 %v5234
        %v5270 = vunpack.c.l.b16 %v5235
        %v5271 = vunpack.c.h.b16 %v5235
        %v5272 = vunpack.c.l.b16 %v5236
        %v5273 = vunpack.c.h.b16 %v5236
        %v5274 = vunpack.c.l.b16 %v5237
        %v5275 = vunpack.c.h.b16 %v5237
        %v5276 = vunpack.c.l.b16 %v5238
        %v5277 = vunpack.c.h.b16 %v5238
        %v5278 = vunpack.c.l.b16 %v5239
        %v5279 = vunpack.c.h.b16 %v5239
        %v5280 = vunpack.c.l.b16 %v5240
        %v5281 = vunpack.c.h.b16 %v5240
        %v5282 = vunpack.c.l.b16 %v5241
        %v5283 = vunpack.c.h.b16 %v5241
        %v5284 = vunpack.c.l.b16 %v5242
        %v5285 = vunpack.c.h.b16 %v5242
        %v5286 = vunpack.c.l.b16 %v5243
        %v5287 = vunpack.c.h.b16 %v5243
        %v5288 = vunpack.c.l.b16 %v5244
        %v5289 = vunpack.c.h.b16 %v5244
        %v5290 = vunpack.c.l.b16 %v5245
        %v5291 = vunpack.c.h.b16 %v5245
        %v5292 = vunpack.c.l.b16 %v5246
        %v5293 = vunpack.c.h.b16 %v5246
        %v5294 = vunpack.c.l.b16 %v5247
        %v5295 = vunpack.c.h.b16 %v5247
        %v5296 = vpack.c.b16 %v5266, %v5264
        %v5297 = vpack.c.b16 %v5267, %v5265
        %v5298 = vpack.c.b16 %v5270, %v5268
        %v5299 = vpack.c.b16 %v5271, %v5269
        %v5300 = vpack.c.b16 %v5274, %v5272
        %v5301 = vpack.c.b16 %v5275, %v5273
        %v5302 = vpack.c.b16 %v5278, %v5276
        %v5303 = vpack.c.b16 %v5279, %v5277
        %v5304 = vpack.c.b16 %v5282, %v5280
        %v5305 = vpack.c.b16 %v5283, %v5281
        %v5306 = vpack.c.b16 %v5286, %v5284
        %v5307 = vpack.c.b16 %v5287, %v5285
        %v5308 = vpack.c.b16 %v5290, %v5288
        %v5309 = vpack.c.b16 %v5291, %v5289
        %v5310 = vpack.c.b16 %v5294, %v5292
        %v5311 = vpack.c.b16 %v5295, %v5293
        %5328 = vmatprep.subr.bf16.mxu0 %v5297
        %5329 = vmatpush1.bf16.msra.mxu0 %v5296
        %5330 = vmatprep.subr.bf16.mxu0 %v5299
        %5331 = vmatpush1.bf16.msra.mxu0 %v5298
        %5332 = vmatprep.subr.bf16.mxu0 %v5301
        %5333 = vmatpush1.bf16.msra.mxu0 %v5300
        %5334 = vmatprep.subr.bf16.mxu0 %v5303
        %5335 = vmatpush1.bf16.msra.mxu0 %v5302
        %5336 = vmatprep.subr.bf16.mxu0 %v5305
        %5337 = vmatpush1.bf16.msra.mxu0 %v5304
        %5338 = vmatprep.subr.bf16.mxu0 %v5307
        %5339 = vmatpush1.bf16.msra.mxu0 %v5306
        %5340 = vmatprep.subr.bf16.mxu0 %v5309
        %5341 = vmatpush1.bf16.msra.mxu0 %v5308
        %5342 = vmatprep.subr.bf16.mxu0 %v5311
        %5343 = vmatpush1.bf16.msra.mxu0 %v5310
        %5344 = vmatprep.subr.bf16.mxu0 0
        %5345 = vmatpush1.bf16.msra.mxu0 0
        %5346 = vmatprep.subr.bf16.mxu0 0
        %5347 = vmatpush1.bf16.msra.mxu0 0
        %5348 = vmatprep.subr.bf16.mxu0 0
        %5349 = vmatpush1.bf16.msra.mxu0 0
        %5350 = vmatprep.subr.bf16.mxu0 0
        %5351 = vmatpush1.bf16.msra.mxu0 0
        %5352 = vmatprep.subr.bf16.mxu0 0
        %5353 = vmatpush1.bf16.msra.mxu0 0
        %5354 = vmatprep.subr.bf16.mxu0 0
        %5355 = vmatpush1.bf16.msra.mxu0 0
        %5356 = vmatprep.subr.bf16.mxu0 0
        %5357 = vmatpush1.bf16.msra.mxu0 0
        %5358 = vmatprep.subr.bf16.mxu0 0
        %5359 = vmatpush1.bf16.msra.mxu0 0
        %5360 = vmatprep.mubr.bf16.mxu0 0
        %5361 = vmatmul.mubr.bf16.gmra.mrb[0].mxu0 %v5156
        %v5362 = vpop.f32.mrb[0].mxu0
        %v5363 = vadd.f32 0.0, %v5362
        %v5364 = vpop.f32.mrb[0].mxu0
        %v5365 = vadd.f32 0.0, %v5364
        %v5366 = vpop.f32.mrb[0].mxu0
        %v5367 = vpop.f32.mrb[0].mxu0
        %5368 = vdwg.mxu0
        %v5369 = vld [vmem:[%s77] sm:$0xf]
        %v5370 = vld [vmem:[%s77 + $0x4] sm:$0xf]
        %v5371 = vld [vmem:[%s77 + $0x8] sm:$0xf]
        %v5372 = vld [vmem:[%s77 + $0xc] sm:$0xf]
        %v5373 = vld [vmem:[%s77 + $0x10] sm:$0xf]
        %v5374 = vld [vmem:[%s77 + $0x14] sm:$0xf]
        %v5375 = vld [vmem:[%s77 + $0x18] sm:$0xf]
        %v5376 = vld [vmem:[%s77 + $0x1c] sm:$0xf]
        %v5377 = vld [vmem:[%s77 + $0x20] sm:$0xf]
        %v5378 = vld [vmem:[%s77 + $0x24] sm:$0xf]
        %v5379 = vld [vmem:[%s77 + $0x28] sm:$0xf]
        %v5380 = vld [vmem:[%s77 + $0x2c] sm:$0xf]
        %v5381 = vld [vmem:[%s77 + $0x30] sm:$0xf]
        %v5382 = vld [vmem:[%s77 + $0x34] sm:$0xf]
        %v5383 = vld [vmem:[%s77 + $0x38] sm:$0xf]
        %v5384 = vld [vmem:[%s77 + $0x3c] sm:$0xf]
        %v5401 = vunpack.c.l.b16 %v5369
        %v5402 = vunpack.c.l.b16 %v5370
        %v5403 = vunpack.c.l.b16 %v5371
        %v5404 = vunpack.c.l.b16 %v5372
        %v5405 = vunpack.c.l.b16 %v5373
        %v5406 = vunpack.c.l.b16 %v5374
        %v5407 = vunpack.c.l.b16 %v5375
        %v5408 = vunpack.c.l.b16 %v5376
        %v5409 = vunpack.c.l.b16 %v5377
        %v5410 = vunpack.c.l.b16 %v5378
        %v5411 = vunpack.c.l.b16 %v5379
        %v5412 = vunpack.c.l.b16 %v5380
        %v5413 = vunpack.c.l.b16 %v5381
        %v5414 = vunpack.c.l.b16 %v5382
        %v5415 = vunpack.c.l.b16 %v5383
        %v5416 = vunpack.c.l.b16 %v5384
        %v5417 = vpack.c.b16 %v5402, %v5401
        %v5418 = vpack.c.b16 %v5404, %v5403
        %v5419 = vpack.c.b16 %v5406, %v5405
        %v5420 = vpack.c.b16 %v5408, %v5407
        %v5421 = vpack.c.b16 %v5410, %v5409
        %v5422 = vpack.c.b16 %v5412, %v5411
        %v5423 = vpack.c.b16 %v5414, %v5413
        %v5424 = vpack.c.b16 %v5416, %v5415
        %5433 = vmatprep.subr.bf16.mxu0 0
        %5434 = vmatpush1.bf16.msra.mxu0 %v5417
        %5435 = vmatprep.subr.bf16.mxu0 0
        %5436 = vmatpush1.bf16.msra.mxu0 %v5418
        %5437 = vmatprep.subr.bf16.mxu0 0
        %5438 = vmatpush1.bf16.msra.mxu0 %v5419
        %5439 = vmatprep.subr.bf16.mxu0 0
        %5440 = vmatpush1.bf16.msra.mxu0 %v5420
        %5441 = vmatprep.subr.bf16.mxu0 0
        %5442 = vmatpush1.bf16.msra.mxu0 %v5421
        %5443 = vmatprep.subr.bf16.mxu0 0
        %5444 = vmatpush1.bf16.msra.mxu0 %v5422
        %5445 = vmatprep.subr.bf16.mxu0 0
        %5446 = vmatpush1.bf16.msra.mxu0 %v5423
        %5447 = vmatprep.subr.bf16.mxu0 0
        %5448 = vmatpush1.bf16.msra.mxu0 %v5424
        %5449 = vmatprep.subr.bf16.mxu0 0
        %5450 = vmatpush1.bf16.msra.mxu0 0
        %5451 = vmatprep.subr.bf16.mxu0 0
        %5452 = vmatpush1.bf16.msra.mxu0 0
        %5453 = vmatprep.subr.bf16.mxu0 0
        %5454 = vmatpush1.bf16.msra.mxu0 0
        %5455 = vmatprep.subr.bf16.mxu0 0
        %5456 = vmatpush1.bf16.msra.mxu0 0
        %5457 = vmatprep.subr.bf16.mxu0 0
        %5458 = vmatpush1.bf16.msra.mxu0 0
        %5459 = vmatprep.subr.bf16.mxu0 0
        %5460 = vmatpush1.bf16.msra.mxu0 0
        %5461 = vmatprep.subr.bf16.mxu0 0
        %5462 = vmatpush1.bf16.msra.mxu0 0
        %5463 = vmatprep.subr.bf16.mxu0 0
        %5464 = vmatpush1.bf16.msra.mxu0 0
        %5465 = vmatprep.mubr.bf16.mxu0 0
        %5466 = vmatmul.mubr.bf16.gmra.mrb[0].mxu0 %v5081
        %v5467 = vpop.f32.mrb[0].mxu0
        %v5468 = vadd.f32 %v5363, %v5467
        %v5469 = vpop.f32.mrb[0].mxu0
        %v5470 = vpop.f32.mrb[0].mxu0
        %v5471 = vpop.f32.mrb[0].mxu0
        %5472 = vdwg.mxu0
        %s5473 = scalar_lea.vmem %s77, 64
        %v5474 = vld [vmem:[%s5473] sm:$0xf]
        %v5475 = vld [vmem:[%s5473 + $0x4] sm:$0xf]
        %v5476 = vld [vmem:[%s5473 + $0x8] sm:$0xf]
        %v5477 = vld [vmem:[%s5473 + $0xc] sm:$0xf]
        %v5478 = vld [vmem:[%s5473 + $0x10] sm:$0xf]
        %v5479 = vld [vmem:[%s5473 + $0x14] sm:$0xf]
        %v5480 = vld [vmem:[%s5473 + $0x18] sm:$0xf]
        %v5481 = vld [vmem:[%s5473 + $0x1c] sm:$0xf]
        %v5482 = vld [vmem:[%s5473 + $0x20] sm:$0xf]
        %v5483 = vld [vmem:[%s5473 + $0x24] sm:$0xf]
        %v5484 = vld [vmem:[%s5473 + $0x28] sm:$0xf]
        %v5485 = vld [vmem:[%s5473 + $0x2c] sm:$0xf]
        %v5486 = vld [vmem:[%s5473 + $0x30] sm:$0xf]
        %v5487 = vld [vmem:[%s5473 + $0x34] sm:$0xf]
        %v5488 = vld [vmem:[%s5473 + $0x38] sm:$0xf]
        %v5489 = vld [vmem:[%s5473 + $0x3c] sm:$0xf]
        %v5506 = vunpack.c.l.b16 %v5474
        %v5507 = vunpack.c.l.b16 %v5475
        %v5508 = vunpack.c.l.b16 %v5476
        %v5509 = vunpack.c.l.b16 %v5477
        %v5510 = vunpack.c.l.b16 %v5478
        %v5511 = vunpack.c.l.b16 %v5479
        %v5512 = vunpack.c.l.b16 %v5480
        %v5513 = vunpack.c.l.b16 %v5481
        %v5514 = vunpack.c.l.b16 %v5482
        %v5515 = vunpack.c.l.b16 %v5483
        %v5516 = vunpack.c.l.b16 %v5484
        %v5517 = vunpack.c.l.b16 %v5485
        %v5518 = vunpack.c.l.b16 %v5486
        %v5519 = vunpack.c.l.b16 %v5487
        %v5520 = vunpack.c.l.b16 %v5488
        %v5521 = vunpack.c.l.b16 %v5489
        %v5522 = vpack.c.b16 %v5507, %v5506
        %v5523 = vpack.c.b16 %v5509, %v5508
        %v5524 = vpack.c.b16 %v5511, %v5510
        %v5525 = vpack.c.b16 %v5513, %v5512
        %v5526 = vpack.c.b16 %v5515, %v5514
        %v5527 = vpack.c.b16 %v5517, %v5516
        %v5528 = vpack.c.b16 %v5519, %v5518
        %v5529 = vpack.c.b16 %v5521, %v5520
        %5538 = vmatprep.subr.bf16.mxu0 0
        %5539 = vmatpush1.bf16.msra.mxu0 %v5522
        %5540 = vmatprep.subr.bf16.mxu0 0
        %5541 = vmatpush1.bf16.msra.mxu0 %v5523
        %5542 = vmatprep.subr.bf16.mxu0 0
        %5543 = vmatpush1.bf16.msra.mxu0 %v5524
        %5544 = vmatprep.subr.bf16.mxu0 0
        %5545 = vmatpush1.bf16.msra.mxu0 %v5525
        %5546 = vmatprep.subr.bf16.mxu0 0
        %5547 = vmatpush1.bf16.msra.mxu0 %v5526
        %5548 = vmatprep.subr.bf16.mxu0 0
        %5549 = vmatpush1.bf16.msra.mxu0 %v5527
        %5550 = vmatprep.subr.bf16.mxu0 0
        %5551 = vmatpush1.bf16.msra.mxu0 %v5528
        %5552 = vmatprep.subr.bf16.mxu0 0
        %5553 = vmatpush1.bf16.msra.mxu0 %v5529
        %5554 = vmatprep.subr.bf16.mxu0 0
        %5555 = vmatpush1.bf16.msra.mxu0 0
        %5556 = vmatprep.subr.bf16.mxu0 0
        %5557 = vmatpush1.bf16.msra.mxu0 0
        %5558 = vmatprep.subr.bf16.mxu0 0
        %5559 = vmatpush1.bf16.msra.mxu0 0
        %5560 = vmatprep.subr.bf16.mxu0 0
        %5561 = vmatpush1.bf16.msra.mxu0 0
        %5562 = vmatprep.subr.bf16.mxu0 0
        %5563 = vmatpush1.bf16.msra.mxu0 0
        %5564 = vmatprep.subr.bf16.mxu0 0
        %5565 = vmatpush1.bf16.msra.mxu0 0
        %5566 = vmatprep.subr.bf16.mxu0 0
        %5567 = vmatpush1.bf16.msra.mxu0 0
        %5568 = vmatprep.subr.bf16.mxu0 0
        %5569 = vmatpush1.bf16.msra.mxu0 0
        %5570 = vmatprep.mubr.bf16.mxu0 0
        %5571 = vmatmul.mubr.bf16.gmra.mrb[0].mxu0 %v5231
        %v5572 = vpop.f32.mrb[0].mxu0
        %v5573 = vadd.f32 0.0, %v5572
        %v5574 = vpop.f32.mrb[0].mxu0
        %v5575 = vpop.f32.mrb[0].mxu0
        %v5576 = vpop.f32.mrb[0].mxu0
        %5577 = vdwg.mxu0
        %v5578 = vadd.f32 %v5468, %v5573
        %v5579 = vld [vmem:[%s81] sm:$0x1]
        %v5581 = vlaneseq
        %v5582 = vshrl.u32 %v5581, 7
        %v5583 = vsub.s32 0, %v5582
        %v5584 = vrot.slane %v5579, %v5583
        %v5586 = vadd.f32 %v5578, %v5584
        %v5587 = vld [vmem:[%s83] sm:$0x1]
        %v5589 = vlaneseq
        %v5590 = vshrl.u32 %v5589, 7
        %v5591 = vsub.s32 0, %v5590
        %v5592 = vrot.slane %v5587, %v5591
        %v5594 = vadd.f32 %v5365, %v5592
        %v5595 = vmax.f32 %v5586, 0.0
        %v5596 = vpack.c.bf16 %v5595, %v5595
        %v5597 = vld [vmem:[%s67] sm:$0x3]
        %vm5598 = vcmask 15360
        %v5600 = vsel %vm5598, %v5597, 0
        %vm5602 = vcmask 1041408
        %v5604 = vsel %vm5602, %v5595, 0
        %5606 = vmatprep.subr.mxu0 0.0
        %5607 = vmatpush1.msra.mxu0 %v5604
        %5608 = vmatprep.subr.mxu0 0.0
        %5609 = vmatpush1.msra.mxu0 0.0
        %5610 = vmatprep.subr.mxu0 0.0
        %5611 = vmatpush1.msra.mxu0 0.0
        %5612 = vmatprep.subr.mxu0 0.0
        %5613 = vmatpush1.msra.mxu0 0.0
        %5614 = vmatprep.subr.mxu0 0.0
        %5615 = vmatpush1.msra.mxu0 0.0
        %5616 = vmatprep.subr.mxu0 0.0
        %5617 = vmatpush1.msra.mxu0 0.0
        %5618 = vmatprep.subr.mxu0 0.0
        %5619 = vmatpush1.msra.mxu0 0.0
        %5620 = vmatprep.subr.mxu0 0.0
        %5621 = vmatpush1.msra.mxu0 0.0
        %5622 = vmatprep.subr.mxu0 0.0
        %5623 = vmatpush1.msra.mxu0 0.0
        %5624 = vmatprep.subr.mxu0 0.0
        %5625 = vmatpush1.msra.mxu0 0.0
        %5626 = vmatprep.subr.mxu0 0.0
        %5627 = vmatpush1.msra.mxu0 0.0
        %5628 = vmatprep.subr.mxu0 0.0
        %5629 = vmatpush1.msra.mxu0 0.0
        %5630 = vmatprep.subr.mxu0 0.0
        %5631 = vmatpush1.msra.mxu0 0.0
        %5632 = vmatprep.subr.mxu0 0.0
        %5633 = vmatpush1.msra.mxu0 0.0
        %5634 = vmatprep.subr.mxu0 0.0
        %5635 = vmatpush1.msra.mxu0 0.0
        %5636 = vmatprep.subr.mxu0 0.0
        %5637 = vmatpush1.msra.mxu0 0.0
        %5638 = vmatprep.subr.mxu0 0.0
        %5639 = vmatpush1.msra.mxu0 0.0
        %5640 = vmatprep.subr.mxu0 0.0
        %5641 = vmatpush1.msra.mxu0 0.0
        %5642 = vmatprep.subr.mxu0 0.0
        %5643 = vmatpush1.msra.mxu0 0.0
        %5644 = vmatprep.subr.mxu0 0.0
        %5645 = vmatpush1.msra.mxu0 0.0
        %5646 = vmatprep.subr.mxu0 0.0
        %5647 = vmatpush1.msra.mxu0 0.0
        %5648 = vmatprep.subr.mxu0 0.0
        %5649 = vmatpush1.msra.mxu0 0.0
        %5650 = vmatprep.subr.mxu0 0.0
        %5651 = vmatpush1.msra.mxu0 0.0
        %5652 = vmatprep.subr.mxu0 0.0
        %5653 = vmatpush1.msra.mxu0 0.0
        %5654 = vmatprep.subr.mxu0 0.0
        %5655 = vmatpush1.msra.mxu0 0.0
        %5656 = vmatprep.subr.mxu0 0.0
        %5657 = vmatpush1.msra.mxu0 0.0
        %5658 = vmatprep.subr.mxu0 0.0
        %5659 = vmatpush1.msra.mxu0 0.0
        %5660 = vmatprep.subr.mxu0 0.0
        %5661 = vmatpush1.msra.mxu0 0.0
        %5662 = vmatprep.subr.mxu0 0.0
        %5663 = vmatpush1.msra.mxu0 0.0
        %5664 = vmatprep.subr.mxu0 0.0
        %5665 = vmatpush1.msra.mxu0 0.0
        %5666 = vmatprep.subr.mxu0 0.0
        %5667 = vmatpush1.msra.mxu0 0.0
        %5668 = vmatprep.subr.mxu0 0.0
        %5669 = vmatpush1.msra.mxu0 0.0
        %5670 = vmatprep.mubr.f32.mxu0 0.0
        %5671 = vmatmul.mubr.f32.gmra.mrb[0].mxu0 %v5600
        %v5672 = vpop.f32.mrb[0].mxu0
        %v5673 = vadd.f32 0.0, %v5672
        %v5674 = vpop.f32.mrb[0].mxu0
        %5675 = vdwg.mxu0
        %v5676 = vpack.c.bf16 %v5673, %v5673
        %v5677 = vld [vmem:[%s69] sm:$0x3]
        %v5679 = vsel %vm5598, %v5677, 0
        %5681 = vmatprep.subr.mxu0 0.0
        %5682 = vmatpush1.msra.mxu0 %v5604
        %5683 = vmatprep.subr.mxu0 0.0
        %5684 = vmatpush1.msra.mxu0 0.0
        %5685 = vmatprep.subr.mxu0 0.0
        %5686 = vmatpush1.msra.mxu0 0.0
        %5687 = vmatprep.subr.mxu0 0.0
        %5688 = vmatpush1.msra.mxu0 0.0
        %5689 = vmatprep.subr.mxu0 0.0
        %5690 = vmatpush1.msra.mxu0 0.0
        %5691 = vmatprep.subr.mxu0 0.0
        %5692 = vmatpush1.msra.mxu0 0.0
        %5693 = vmatprep.subr.mxu0 0.0
        %5694 = vmatpush1.msra.mxu0 0.0
        %5695 = vmatprep.subr.mxu0 0.0
        %5696 = vmatpush1.msra.mxu0 0.0
        %5697 = vmatprep.subr.mxu0 0.0
        %5698 = vmatpush1.msra.mxu0 0.0
        %5699 = vmatprep.subr.mxu0 0.0
        %5700 = vmatpush1.msra.mxu0 0.0
        %5701 = vmatprep.subr.mxu0 0.0
        %5702 = vmatpush1.msra.mxu0 0.0
        %5703 = vmatprep.subr.mxu0 0.0
        %5704 = vmatpush1.msra.mxu0 0.0
        %5705 = vmatprep.subr.mxu0 0.0
        %5706 = vmatpush1.msra.mxu0 0.0
        %5707 = vmatprep.subr.mxu0 0.0
        %5708 = vmatpush1.msra.mxu0 0.0
        %5709 = vmatprep.subr.mxu0 0.0
        %5710 = vmatpush1.msra.mxu0 0.0
        %5711 = vmatprep.subr.mxu0 0.0
        %5712 = vmatpush1.msra.mxu0 0.0
        %5713 = vmatprep.subr.mxu0 0.0
        %5714 = vmatpush1.msra.mxu0 0.0
        %5715 = vmatprep.subr.mxu0 0.0
        %5716 = vmatpush1.msra.mxu0 0.0
        %5717 = vmatprep.subr.mxu0 0.0
        %5718 = vmatpush1.msra.mxu0 0.0
        %5719 = vmatprep.subr.mxu0 0.0
        %5720 = vmatpush1.msra.mxu0 0.0
        %5721 = vmatprep.subr.mxu0 0.0
        %5722 = vmatpush1.msra.mxu0 0.0
        %5723 = vmatprep.subr.mxu0 0.0
        %5724 = vmatpush1.msra.mxu0 0.0
        %5725 = vmatprep.subr.mxu0 0.0
        %5726 = vmatpush1.msra.mxu0 0.0
        %5727 = vmatprep.subr.mxu0 0.0
        %5728 = vmatpush1.msra.mxu0 0.0
        %5729 = vmatprep.subr.mxu0 0.0
        %5730 = vmatpush1.msra.mxu0 0.0
        %5731 = vmatprep.subr.mxu0 0.0
        %5732 = vmatpush1.msra.mxu0 0.0
        %5733 = vmatprep.subr.mxu0 0.0
        %5734 = vmatpush1.msra.mxu0 0.0
        %5735 = vmatprep.subr.mxu0 0.0
        %5736 = vmatpush1.msra.mxu0 0.0
        %5737 = vmatprep.subr.mxu0 0.0
        %5738 = vmatpush1.msra.mxu0 0.0
        %5739 = vmatprep.subr.mxu0 0.0
        %5740 = vmatpush1.msra.mxu0 0.0
        %5741 = vmatprep.subr.mxu0 0.0
        %5742 = vmatpush1.msra.mxu0 0.0
        %5743 = vmatprep.subr.mxu0 0.0
        %5744 = vmatpush1.msra.mxu0 0.0
        %5745 = vmatprep.mubr.f32.mxu0 0.0
        %5746 = vmatmul.mubr.f32.gmra.mrb[0].mxu0 %v5679
        %v5747 = vpop.f32.mrb[0].mxu0
        %v5748 = vadd.f32 0.0, %v5747
        %v5749 = vpop.f32.mrb[0].mxu0
        %5750 = vdwg.mxu0
        %v5751 = vpack.c.bf16 %v5748, %v5748
        %v5752 = vld [vmem:[%s85] sm:$0xf]
        %v5753 = vld [vmem:[%s85 + $0x4] sm:$0xf]
        %v5754 = vld [vmem:[%s85 + $0x8] sm:$0xf]
        %v5755 = vld [vmem:[%s85 + $0xc] sm:$0xf]
        %v5756 = vld [vmem:[%s85 + $0x10] sm:$0xf]
        %v5757 = vld [vmem:[%s85 + $0x14] sm:$0xf]
        %v5758 = vld [vmem:[%s85 + $0x18] sm:$0xf]
        %v5759 = vld [vmem:[%s85 + $0x1c] sm:$0xf]
        %v5760 = vld [vmem:[%s85 + $0x20] sm:$0xf]
        %v5761 = vld [vmem:[%s85 + $0x24] sm:$0xf]
        %v5762 = vld [vmem:[%s85 + $0x28] sm:$0xf]
        %v5763 = vld [vmem:[%s85 + $0x2c] sm:$0xf]
        %v5764 = vld [vmem:[%s85 + $0x30] sm:$0xf]
        %v5765 = vld [vmem:[%s85 + $0x34] sm:$0xf]
        %v5766 = vld [vmem:[%s85 + $0x38] sm:$0xf]
        %v5767 = vld [vmem:[%s85 + $0x3c] sm:$0xf]
        %s5768 = scalar_lea.vmem %s85, 64
        %v5769 = vld [vmem:[%s5768] sm:$0xf]
        %v5770 = vld [vmem:[%s5768 + $0x4] sm:$0xf]
        %v5771 = vld [vmem:[%s5768 + $0x8] sm:$0xf]
        %v5772 = vld [vmem:[%s5768 + $0xc] sm:$0xf]
        %v5773 = vld [vmem:[%s5768 + $0x10] sm:$0xf]
        %v5774 = vld [vmem:[%s5768 + $0x14] sm:$0xf]
        %v5775 = vld [vmem:[%s5768 + $0x18] sm:$0xf]
        %v5776 = vld [vmem:[%s5768 + $0x1c] sm:$0xf]
        %v5777 = vld [vmem:[%s5768 + $0x20] sm:$0xf]
        %v5778 = vld [vmem:[%s5768 + $0x24] sm:$0xf]
        %v5779 = vld [vmem:[%s5768 + $0x28] sm:$0xf]
        %v5780 = vld [vmem:[%s5768 + $0x2c] sm:$0xf]
        %v5781 = vld [vmem:[%s5768 + $0x30] sm:$0xf]
        %v5782 = vld [vmem:[%s5768 + $0x34] sm:$0xf]
        %v5783 = vld [vmem:[%s5768 + $0x38] sm:$0xf]
        %v5784 = vld [vmem:[%s5768 + $0x3c] sm:$0xf]
        %v5801 = vunpack.c.l.b16 %v5769
        %v5802 = vunpack.c.l.b16 %v5770
        %v5803 = vunpack.c.l.b16 %v5771
        %v5804 = vunpack.c.l.b16 %v5772
        %v5805 = vunpack.c.l.b16 %v5773
        %v5806 = vunpack.c.l.b16 %v5774
        %v5807 = vunpack.c.l.b16 %v5775
        %v5808 = vunpack.c.l.b16 %v5776
        %v5809 = vunpack.c.l.b16 %v5777
        %v5810 = vunpack.c.l.b16 %v5778
        %v5811 = vunpack.c.l.b16 %v5779
        %v5812 = vunpack.c.l.b16 %v5780
        %v5813 = vunpack.c.l.b16 %v5781
        %v5814 = vunpack.c.l.b16 %v5782
        %v5815 = vunpack.c.l.b16 %v5783
        %v5816 = vunpack.c.l.b16 %v5784
        %v5817 = vpack.c.b16 %v5802, %v5801
        %v5818 = vpack.c.b16 %v5804, %v5803
        %v5819 = vpack.c.b16 %v5806, %v5805
        %v5820 = vpack.c.b16 %v5808, %v5807
        %v5821 = vpack.c.b16 %v5810, %v5809
        %v5822 = vpack.c.b16 %v5812, %v5811
        %v5823 = vpack.c.b16 %v5814, %v5813
        %v5824 = vpack.c.b16 %v5816, %v5815
        %5833 = vmatprep.subr.bf16.mxu0 0
        %5834 = vmatpush1.bf16.msra.mxu0 %v5817
        %5835 = vmatprep.subr.bf16.mxu0 0
        %5836 = vmatpush1.bf16.msra.mxu0 %v5818
        %5837 = vmatprep.subr.bf16.mxu0 0
        %5838 = vmatpush1.bf16.msra.mxu0 %v5819
        %5839 = vmatprep.subr.bf16.mxu0 0
        %5840 = vmatpush1.bf16.msra.mxu0 %v5820
        %5841 = vmatprep.subr.bf16.mxu0 0
        %5842 = vmatpush1.bf16.msra.mxu0 %v5821
        %5843 = vmatprep.subr.bf16.mxu0 0
        %5844 = vmatpush1.bf16.msra.mxu0 %v5822
        %5845 = vmatprep.subr.bf16.mxu0 0
        %5846 = vmatpush1.bf16.msra.mxu0 %v5823
        %5847 = vmatprep.subr.bf16.mxu0 0
        %5848 = vmatpush1.bf16.msra.mxu0 %v5824
        %5849 = vmatprep.subr.bf16.mxu0 0
        %5850 = vmatpush1.bf16.msra.mxu0 0
        %5851 = vmatprep.subr.bf16.mxu0 0
        %5852 = vmatpush1.bf16.msra.mxu0 0
        %5853 = vmatprep.subr.bf16.mxu0 0
        %5854 = vmatpush1.bf16.msra.mxu0 0
        %5855 = vmatprep.subr.bf16.mxu0 0
        %5856 = vmatpush1.bf16.msra.mxu0 0
        %5857 = vmatprep.subr.bf16.mxu0 0
        %5858 = vmatpush1.bf16.msra.mxu0 0
        %5859 = vmatprep.subr.bf16.mxu0 0
        %5860 = vmatpush1.bf16.msra.mxu0 0
        %5861 = vmatprep.subr.bf16.mxu0 0
        %5862 = vmatpush1.bf16.msra.mxu0 0
        %5863 = vmatprep.subr.bf16.mxu0 0
        %5864 = vmatpush1.bf16.msra.mxu0 0
        %5865 = vmatprep.mubr.bf16.mxu0 0
        %5866 = vmatmul.mubr.bf16.gmra.mrb[0].mxu0 %v5596
        %v5867 = vpop.f32.mrb[0].mxu0
        %v5868 = vadd.f32 0.0, %v5867
        %v5869 = vpop.f32.mrb[0].mxu0
        %v5870 = vpop.f32.mrb[0].mxu0
        %v5871 = vpop.f32.mrb[0].mxu0
        %5872 = vdwg.mxu0
        %v5889 = vunpack.c.l.b16 %v5752
        %v5890 = vunpack.c.l.b16 %v5753
        %v5891 = vunpack.c.l.b16 %v5754
        %v5892 = vunpack.c.l.b16 %v5755
        %v5893 = vunpack.c.l.b16 %v5756
        %v5894 = vunpack.c.l.b16 %v5757
        %v5895 = vunpack.c.l.b16 %v5758
        %v5896 = vunpack.c.l.b16 %v5759
        %v5897 = vunpack.c.l.b16 %v5760
        %v5898 = vunpack.c.l.b16 %v5761
        %v5899 = vunpack.c.l.b16 %v5762
        %v5900 = vunpack.c.l.b16 %v5763
        %v5901 = vunpack.c.l.b16 %v5764
        %v5902 = vunpack.c.l.b16 %v5765
        %v5903 = vunpack.c.l.b16 %v5766
        %v5904 = vunpack.c.l.b16 %v5767
        %v5905 = vpack.c.b16 %v5890, %v5889
        %v5906 = vpack.c.b16 %v5892, %v5891
        %v5907 = vpack.c.b16 %v5894, %v5893
        %v5908 = vpack.c.b16 %v5896, %v5895
        %v5909 = vpack.c.b16 %v5898, %v5897
        %v5910 = vpack.c.b16 %v5900, %v5899
        %v5911 = vpack.c.b16 %v5902, %v5901
        %v5912 = vpack.c.b16 %v5904, %v5903
        %5921 = vmatprep.subr.bf16.mxu0 0
        %5922 = vmatpush1.bf16.msra.mxu0 %v5905
        %5923 = vmatprep.subr.bf16.mxu0 0
        %5924 = vmatpush1.bf16.msra.mxu0 %v5906
        %5925 = vmatprep.subr.bf16.mxu0 0
        %5926 = vmatpush1.bf16.msra.mxu0 %v5907
        %5927 = vmatprep.subr.bf16.mxu0 0
        %5928 = vmatpush1.bf16.msra.mxu0 %v5908
        %5929 = vmatprep.subr.bf16.mxu0 0
        %5930 = vmatpush1.bf16.msra.mxu0 %v5909
        %5931 = vmatprep.subr.bf16.mxu0 0
        %5932 = vmatpush1.bf16.msra.mxu0 %v5910
        %5933 = vmatprep.subr.bf16.mxu0 0
        %5934 = vmatpush1.bf16.msra.mxu0 %v5911
        %5935 = vmatprep.subr.bf16.mxu0 0
        %5936 = vmatpush1.bf16.msra.mxu0 %v5912
        %5937 = vmatprep.subr.bf16.mxu0 0
        %5938 = vmatpush1.bf16.msra.mxu0 0
        %5939 = vmatprep.subr.bf16.mxu0 0
        %5940 = vmatpush1.bf16.msra.mxu0 0
        %5941 = vmatprep.subr.bf16.mxu0 0
        %5942 = vmatpush1.bf16.msra.mxu0 0
        %5943 = vmatprep.subr.bf16.mxu0 0
        %5944 = vmatpush1.bf16.msra.mxu0 0
        %5945 = vmatprep.subr.bf16.mxu0 0
        %5946 = vmatpush1.bf16.msra.mxu0 0
        %5947 = vmatprep.subr.bf16.mxu0 0
        %5948 = vmatpush1.bf16.msra.mxu0 0
        %5949 = vmatprep.subr.bf16.mxu0 0
        %5950 = vmatpush1.bf16.msra.mxu0 0
        %5951 = vmatprep.subr.bf16.mxu0 0
        %5952 = vmatpush1.bf16.msra.mxu0 0
        %5953 = vmatprep.mubr.bf16.mxu0 0
        %5954 = vmatmul.mubr.bf16.gmra.mrb[0].mxu0 %v5676
        %v5955 = vpop.f32.mrb[0].mxu0
        %v5956 = vadd.f32 %v5868, %v5955
        %v5957 = vpop.f32.mrb[0].mxu0
        %v5958 = vpop.f32.mrb[0].mxu0
        %v5959 = vpop.f32.mrb[0].mxu0
        %5960 = vdwg.mxu0
        %s5961 = scalar_lea.vmem %s85, 128
        %v5962 = vld [vmem:[%s5961] sm:$0xf]
        %v5963 = vld [vmem:[%s5961 + $0x4] sm:$0xf]
        %v5964 = vld [vmem:[%s5961 + $0x8] sm:$0xf]
        %v5965 = vld [vmem:[%s5961 + $0xc] sm:$0xf]
        %v5966 = vld [vmem:[%s5961 + $0x10] sm:$0xf]
        %v5967 = vld [vmem:[%s5961 + $0x14] sm:$0xf]
        %v5968 = vld [vmem:[%s5961 + $0x18] sm:$0xf]
        %v5969 = vld [vmem:[%s5961 + $0x1c] sm:$0xf]
        %v5970 = vld [vmem:[%s5961 + $0x20] sm:$0xf]
        %v5971 = vld [vmem:[%s5961 + $0x24] sm:$0xf]
        %v5972 = vld [vmem:[%s5961 + $0x28] sm:$0xf]
        %v5973 = vld [vmem:[%s5961 + $0x2c] sm:$0xf]
        %v5974 = vld [vmem:[%s5961 + $0x30] sm:$0xf]
        %v5975 = vld [vmem:[%s5961 + $0x34] sm:$0xf]
        %v5976 = vld [vmem:[%s5961 + $0x38] sm:$0xf]
        %v5977 = vld [vmem:[%s5961 + $0x3c] sm:$0xf]
        %v5994 = vunpack.c.l.b16 %v5962
        %v5995 = vunpack.c.l.b16 %v5963
        %v5996 = vunpack.c.l.b16 %v5964
        %v5997 = vunpack.c.l.b16 %v5965
        %v5998 = vunpack.c.l.b16 %v5966
        %v5999 = vunpack.c.l.b16 %v5967
        %v6000 = vunpack.c.l.b16 %v5968
        %v6001 = vunpack.c.l.b16 %v5969
        %v6002 = vunpack.c.l.b16 %v5970
        %v6003 = vunpack.c.l.b16 %v5971
        %v6004 = vunpack.c.l.b16 %v5972
        %v6005 = vunpack.c.l.b16 %v5973
        %v6006 = vunpack.c.l.b16 %v5974
        %v6007 = vunpack.c.l.b16 %v5975
        %v6008 = vunpack.c.l.b16 %v5976
        %v6009 = vunpack.c.l.b16 %v5977
        %v6010 = vpack.c.b16 %v5995, %v5994
        %v6011 = vpack.c.b16 %v5997, %v5996
        %v6012 = vpack.c.b16 %v5999, %v5998
        %v6013 = vpack.c.b16 %v6001, %v6000
        %v6014 = vpack.c.b16 %v6003, %v6002
        %v6015 = vpack.c.b16 %v6005, %v6004
        %v6016 = vpack.c.b16 %v6007, %v6006
        %v6017 = vpack.c.b16 %v6009, %v6008
        %6026 = vmatprep.subr.bf16.mxu0 0
        %6027 = vmatpush1.bf16.msra.mxu0 %v6010
        %6028 = vmatprep.subr.bf16.mxu0 0
        %6029 = vmatpush1.bf16.msra.mxu0 %v6011
        %6030 = vmatprep.subr.bf16.mxu0 0
        %6031 = vmatpush1.bf16.msra.mxu0 %v6012
        %6032 = vmatprep.subr.bf16.mxu0 0
        %6033 = vmatpush1.bf16.msra.mxu0 %v6013
        %6034 = vmatprep.subr.bf16.mxu0 0
        %6035 = vmatpush1.bf16.msra.mxu0 %v6014
        %6036 = vmatprep.subr.bf16.mxu0 0
        %6037 = vmatpush1.bf16.msra.mxu0 %v6015
        %6038 = vmatprep.subr.bf16.mxu0 0
        %6039 = vmatpush1.bf16.msra.mxu0 %v6016
        %6040 = vmatprep.subr.bf16.mxu0 0
        %6041 = vmatpush1.bf16.msra.mxu0 %v6017
        %6042 = vmatprep.subr.bf16.mxu0 0
        %6043 = vmatpush1.bf16.msra.mxu0 0
        %6044 = vmatprep.subr.bf16.mxu0 0
        %6045 = vmatpush1.bf16.msra.mxu0 0
        %6046 = vmatprep.subr.bf16.mxu0 0
        %6047 = vmatpush1.bf16.msra.mxu0 0
        %6048 = vmatprep.subr.bf16.mxu0 0
        %6049 = vmatpush1.bf16.msra.mxu0 0
        %6050 = vmatprep.subr.bf16.mxu0 0
        %6051 = vmatpush1.bf16.msra.mxu0 0
        %6052 = vmatprep.subr.bf16.mxu0 0
        %6053 = vmatpush1.bf16.msra.mxu0 0
        %6054 = vmatprep.subr.bf16.mxu0 0
        %6055 = vmatpush1.bf16.msra.mxu0 0
        %6056 = vmatprep.subr.bf16.mxu0 0
        %6057 = vmatpush1.bf16.msra.mxu0 0
        %6058 = vmatprep.mubr.bf16.mxu0 0
        %6059 = vmatmul.mubr.bf16.gmra.mrb[0].mxu0 %v5751
        %v6060 = vpop.f32.mrb[0].mxu0
        %v6061 = vadd.f32 0.0, %v6060
        %v6062 = vpop.f32.mrb[0].mxu0
        %v6063 = vpop.f32.mrb[0].mxu0
        %v6064 = vpop.f32.mrb[0].mxu0
        %6065 = vdwg.mxu0
        %v6066 = vadd.f32 %v5956, %v6061
        %v6067 = vld [vmem:[%s87] sm:$0x1]
        %v6069 = vlaneseq
        %v6070 = vshrl.u32 %v6069, 7
        %v6071 = vsub.s32 0, %v6070
        %v6072 = vrot.slane %v6067, %v6071
        %v6074 = vadd.f32 %v6066, %v6072
        %v6075 = vadd.f32 %v6074, %v5594
        %v6076 = vmax.f32 %v6075, 0.0
        %v6077 = vld [vmem:[%s89] sm:$0xff]
        %v6079 = vsel %vm5598, %v6077, 0
        %v6082 = vsel %vm5602, %v6076, 0
        %6084 = vmatprep.subr.mxu0 0.0
        %6085 = vmatpush1.msra.mxu0 %v6082
        %6086 = vmatprep.subr.mxu0 0.0
        %6087 = vmatpush1.msra.mxu0 0.0
        %6088 = vmatprep.subr.mxu0 0.0
        %6089 = vmatpush1.msra.mxu0 0.0
        %6090 = vmatprep.subr.mxu0 0.0
        %6091 = vmatpush1.msra.mxu0 0.0
        %6092 = vmatprep.subr.mxu0 0.0
        %6093 = vmatpush1.msra.mxu0 0.0
        %6094 = vmatprep.subr.mxu0 0.0
        %6095 = vmatpush1.msra.mxu0 0.0
        %6096 = vmatprep.subr.mxu0 0.0
        %6097 = vmatpush1.msra.mxu0 0.0
        %6098 = vmatprep.subr.mxu0 0.0
        %6099 = vmatpush1.msra.mxu0 0.0
        %6100 = vmatprep.subr.mxu0 0.0
        %6101 = vmatpush1.msra.mxu0 0.0
        %6102 = vmatprep.subr.mxu0 0.0
        %6103 = vmatpush1.msra.mxu0 0.0
        %6104 = vmatprep.subr.mxu0 0.0
        %6105 = vmatpush1.msra.mxu0 0.0
        %6106 = vmatprep.subr.mxu0 0.0
        %6107 = vmatpush1.msra.mxu0 0.0
        %6108 = vmatprep.subr.mxu0 0.0
        %6109 = vmatpush1.msra.mxu0 0.0
        %6110 = vmatprep.subr.mxu0 0.0
        %6111 = vmatpush1.msra.mxu0 0.0
        %6112 = vmatprep.subr.mxu0 0.0
        %6113 = vmatpush1.msra.mxu0 0.0
        %6114 = vmatprep.subr.mxu0 0.0
        %6115 = vmatpush1.msra.mxu0 0.0
        %6116 = vmatprep.subr.mxu0 0.0
        %6117 = vmatpush1.msra.mxu0 0.0
        %6118 = vmatprep.subr.mxu0 0.0
        %6119 = vmatpush1.msra.mxu0 0.0
        %6120 = vmatprep.subr.mxu0 0.0
        %6121 = vmatpush1.msra.mxu0 0.0
        %6122 = vmatprep.subr.mxu0 0.0
        %6123 = vmatpush1.msra.mxu0 0.0
        %6124 = vmatprep.subr.mxu0 0.0
        %6125 = vmatpush1.msra.mxu0 0.0
        %6126 = vmatprep.subr.mxu0 0.0
        %6127 = vmatpush1.msra.mxu0 0.0
        %6128 = vmatprep.subr.mxu0 0.0
        %6129 = vmatpush1.msra.mxu0 0.0
        %6130 = vmatprep.subr.mxu0 0.0
        %6131 = vmatpush1.msra.mxu0 0.0
        %6132 = vmatprep.subr.mxu0 0.0
        %6133 = vmatpush1.msra.mxu0 0.0
        %6134 = vmatprep.subr.mxu0 0.0
        %6135 = vmatpush1.msra.mxu0 0.0
        %6136 = vmatprep.subr.mxu0 0.0
        %6137 = vmatpush1.msra.mxu0 0.0
        %6138 = vmatprep.subr.mxu0 0.0
        %6139 = vmatpush1.msra.mxu0 0.0
        %6140 = vmatprep.subr.mxu0 0.0
        %6141 = vmatpush1.msra.mxu0 0.0
        %6142 = vmatprep.subr.mxu0 0.0
        %6143 = vmatpush1.msra.mxu0 0.0
        %6144 = vmatprep.subr.mxu0 0.0
        %6145 = vmatpush1.msra.mxu0 0.0
        %6146 = vmatprep.subr.mxu0 0.0
        %6147 = vmatpush1.msra.mxu0 0.0
        %6148 = vmatprep.mubr.f32.mxu0 0.0
        %6149 = vmatmul.mubr.f32.gmra.mrb[0].mxu0 %v6079
        %v6150 = vpop.f32.mrb[0].mxu0
        %v6151 = vadd.f32 0.0, %v6150
        %v6152 = vpop.f32.mrb[0].mxu0
        %6153 = vdwg.mxu0
        %v6154 = vpack.c.bf16 %v6151, %v6151
        %v6155 = vld [vmem:[%s91] sm:$0xf]
        %v6156 = vld [vmem:[%s91 + $0x4] sm:$0xf]
        %v6157 = vld [vmem:[%s91 + $0x8] sm:$0xf]
        %v6158 = vld [vmem:[%s91 + $0xc] sm:$0xf]
        %v6159 = vld [vmem:[%s91 + $0x10] sm:$0xf]
        %v6160 = vld [vmem:[%s91 + $0x14] sm:$0xf]
        %v6161 = vld [vmem:[%s91 + $0x18] sm:$0xf]
        %v6162 = vld [vmem:[%s91 + $0x1c] sm:$0xf]
        %v6163 = vld [vmem:[%s91 + $0x20] sm:$0xf]
        %v6164 = vld [vmem:[%s91 + $0x24] sm:$0xf]
        %v6165 = vld [vmem:[%s91 + $0x28] sm:$0xf]
        %v6166 = vld [vmem:[%s91 + $0x2c] sm:$0xf]
        %v6167 = vld [vmem:[%s91 + $0x30] sm:$0xf]
        %v6168 = vld [vmem:[%s91 + $0x34] sm:$0xf]
        %v6169 = vld [vmem:[%s91 + $0x38] sm:$0xf]
        %v6170 = vld [vmem:[%s91 + $0x3c] sm:$0xf]
        %v6171 = vld [vmem:[%s93] sm:$0x1]
        %v6173 = vlaneseq
        %v6174 = vshrl.u32 %v6173, 7
        %v6175 = vsub.s32 0, %v6174
        %v6176 = vrot.slane %v6171, %v6175
        %v6194 = vunpack.c.l.b16 %v6155
        %v6195 = vunpack.c.l.b16 %v6156
        %v6196 = vunpack.c.l.b16 %v6157
        %v6197 = vunpack.c.l.b16 %v6158
        %v6198 = vunpack.c.l.b16 %v6159
        %v6199 = vunpack.c.l.b16 %v6160
        %v6200 = vunpack.c.l.b16 %v6161
        %v6201 = vunpack.c.l.b16 %v6162
        %v6202 = vunpack.c.l.b16 %v6163
        %v6203 = vunpack.c.l.b16 %v6164
        %v6204 = vunpack.c.l.b16 %v6165
        %v6205 = vunpack.c.l.b16 %v6166
        %v6206 = vunpack.c.l.b16 %v6167
        %v6207 = vunpack.c.l.b16 %v6168
        %v6208 = vunpack.c.l.b16 %v6169
        %v6209 = vunpack.c.l.b16 %v6170
        %v6210 = vpack.c.b16 %v6195, %v6194
        %v6211 = vpack.c.b16 %v6197, %v6196
        %v6212 = vpack.c.b16 %v6199, %v6198
        %v6213 = vpack.c.b16 %v6201, %v6200
        %v6214 = vpack.c.b16 %v6203, %v6202
        %v6215 = vpack.c.b16 %v6205, %v6204
        %v6216 = vpack.c.b16 %v6207, %v6206
        %v6217 = vpack.c.b16 %v6209, %v6208
        %6226 = vmatprep.subr.bf16.mxu0 0
        %6227 = vmatpush1.bf16.msra.mxu0 %v6210
        %6228 = vmatprep.subr.bf16.mxu0 0
        %6229 = vmatpush1.bf16.msra.mxu0 %v6211
        %6230 = vmatprep.subr.bf16.mxu0 0
        %6231 = vmatpush1.bf16.msra.mxu0 %v6212
        %6232 = vmatprep.subr.bf16.mxu0 0
        %6233 = vmatpush1.bf16.msra.mxu0 %v6213
        %6234 = vmatprep.subr.bf16.mxu0 0
        %6235 = vmatpush1.bf16.msra.mxu0 %v6214
        %6236 = vmatprep.subr.bf16.mxu0 0
        %6237 = vmatpush1.bf16.msra.mxu0 %v6215
        %6238 = vmatprep.subr.bf16.mxu0 0
        %6239 = vmatpush1.bf16.msra.mxu0 %v6216
        %6240 = vmatprep.subr.bf16.mxu0 0
        %6241 = vmatpush1.bf16.msra.mxu0 %v6217
        %6242 = vmatprep.subr.bf16.mxu0 0
        %6243 = vmatpush1.bf16.msra.mxu0 0
        %6244 = vmatprep.subr.bf16.mxu0 0
        %6245 = vmatpush1.bf16.msra.mxu0 0
        %6246 = vmatprep.subr.bf16.mxu0 0
        %6247 = vmatpush1.bf16.msra.mxu0 0
        %6248 = vmatprep.subr.bf16.mxu0 0
        %6249 = vmatpush1.bf16.msra.mxu0 0
        %6250 = vmatprep.subr.bf16.mxu0 0
        %6251 = vmatpush1.bf16.msra.mxu0 0
        %6252 = vmatprep.subr.bf16.mxu0 0
        %6253 = vmatpush1.bf16.msra.mxu0 0
        %6254 = vmatprep.subr.bf16.mxu0 0
        %6255 = vmatpush1.bf16.msra.mxu0 0
        %6256 = vmatprep.subr.bf16.mxu0 0
        %6257 = vmatpush1.bf16.msra.mxu0 0
        %6258 = vmatprep.mubr.bf16.mxu0 0
        %6259 = vmatmul.mubr.bf16.gmra.mrb[0].mxu0 %v6154
        %v6260 = vpop.f32.mrb[0].mxu0
        %v6261 = vadd.f32 %v6176, %v6260
        %v6262 = vpop.f32.mrb[0].mxu0
        %v6263 = vpop.f32.mrb[0].mxu0
        %v6264 = vpop.f32.mrb[0].mxu0
        %6265 = vdwg.mxu0
        %v6266 = vmax.f32 %v6261, 0.0
        %v6267 = vpack.c.bf16 %v6266, %v6266
        %v6268 = vld [vmem:[%s95] sm:$0xf]
        %v6269 = vld [vmem:[%s95 + $0x4] sm:$0xf]
        %v6270 = vld [vmem:[%s95 + $0x8] sm:$0xf]
        %v6271 = vld [vmem:[%s95 + $0xc] sm:$0xf]
        %v6272 = vld [vmem:[#allocation2] sm:$0x1]
        %v6274 = vlaneseq
        %v6275 = vshrl.u32 %v6274, 7
        %v6276 = vsub.s32 0, %v6275
        %v6277 = vrot.slane %v6272, %v6276
        %v6283 = vunpack.c.l.b16 %v6268
        %v6284 = vunpack.c.l.b16 %v6269
        %v6285 = vunpack.c.l.b16 %v6270
        %v6286 = vunpack.c.l.b16 %v6271
        %v6287 = vpack.c.b16 %v6284, %v6283
        %v6288 = vpack.c.b16 %v6286, %v6285
        %vm6291 = vcmask 261120
        %v6293 = vsel %vm6291, %v6267, 0
        %6295 = vmatprep.subr.bf16.mxu0 0
        %6296 = vmatpush1.bf16.msra.mxu0 %v6287
        %6297 = vmatprep.subr.bf16.mxu0 0
        %6298 = vmatpush1.bf16.msra.mxu0 %v6288
        %6299 = vmatprep.subr.bf16.mxu0 0
        %6300 = vmatpush1.bf16.msra.mxu0 0
        %6301 = vmatprep.subr.bf16.mxu0 0
        %6302 = vmatpush1.bf16.msra.mxu0 0
        %6303 = vmatprep.subr.bf16.mxu0 0
        %6304 = vmatpush1.bf16.msra.mxu0 0
        %6305 = vmatprep.subr.bf16.mxu0 0
        %6306 = vmatpush1.bf16.msra.mxu0 0
        %6307 = vmatprep.subr.bf16.mxu0 0
        %6308 = vmatpush1.bf16.msra.mxu0 0
        %6309 = vmatprep.subr.bf16.mxu0 0
        %6310 = vmatpush1.bf16.msra.mxu0 0
        %6311 = vmatprep.subr.bf16.mxu0 0
        %6312 = vmatpush1.bf16.msra.mxu0 0
        %6313 = vmatprep.subr.bf16.mxu0 0
        %6314 = vmatpush1.bf16.msra.mxu0 0
        %6315 = vmatprep.subr.bf16.mxu0 0
        %6316 = vmatpush1.bf16.msra.mxu0 0
        %6317 = vmatprep.subr.bf16.mxu0 0
        %6318 = vmatpush1.bf16.msra.mxu0 0
        %6319 = vmatprep.subr.bf16.mxu0 0
        %6320 = vmatpush1.bf16.msra.mxu0 0
        %6321 = vmatprep.subr.bf16.mxu0 0
        %6322 = vmatpush1.bf16.msra.mxu0 0
        %6323 = vmatprep.subr.bf16.mxu0 0
        %6324 = vmatpush1.bf16.msra.mxu0 0
        %6325 = vmatprep.subr.bf16.mxu0 0
        %6326 = vmatpush1.bf16.msra.mxu0 0
        %6327 = vmatprep.mubr.bf16.mxu0 0
        %6328 = vmatmul.mubr.bf16.gmra.mrb[0].mxu0 %v6293
        %v6329 = vpop.f32.mrb[0].mxu0
        %v6330 = vadd.f32 %v6277, %v6329
        %v6331 = vpop.f32.mrb[0].mxu0
        %v6332 = vpop.f32.mrb[0].mxu0
        %v6333 = vpop.f32.mrb[0].mxu0
        %6334 = vdwg.mxu0
        %vm6335 = vcmask 0
        %6336 = vst.msk [vmem:[%s1577] sm:$0x1] %vm6335, %v6330
        %p6337 = scmp.lt.s32.totalorder %s117, 1
        %s6338 = scalar_select %p6337, %s117, 1
        %s6339 = scalar_lea.vmem %s99, %s6338
        // Predicated region
        $region253: #{_lambda_.1} parent=215 // pred_check
          %p6340 = pneg %p1169
        $region254: #{_lambda_.1} parent=215 // pred_check_branch
          %6342 = sbr.rel (%p6340) target = $region256
        $region255: #{_lambda_.1} parent=215 // pred_region
          _
        $region256: #{_lambda_.1} parent=215 // pred_fallthru
          _
      $region216: #{_lambda_.1} parent=5 // pred_fallthru
        _
      %p6343 = scmp.le.s32.totalorder 2, %s112
      // Predicated region
      $region257: #{_lambda_.1} parent=5 // pred_check
        %p6344 = pneg %p6343
      $region258: #{_lambda_.1} parent=5 // pred_check_branch
        %6346 = sbr.rel (%p6344) target = $region260
      $region259: #{_lambda_.1} parent=5 // pred_region
        %s6347 = ssub.s32 %s112, 2
        // Predicated region
        $region261: #{_lambda_.1} parent=259 // pred_check
          %p6348 = pneg %p1175
        $region262: #{_lambda_.1} parent=259 // pred_check_branch
          %6350 = sbr.rel (%p6348) target = $region264
        $region263: #{_lambda_.1} parent=259 // pred_region
          %p6351 = scmp.lt.s32.totalorder %s118, 1
          %s6352 = scalar_select %p6351, %s118, 1
          %s6353 = scalar_lea.vmem %s99, %s6352
        $region264: #{_lambda_.1} parent=259 // pred_fallthru
          _
      $region260: #{_lambda_.1} parent=5 // pred_fallthru
        _
    $region6: #{_lambda_.1} parent=1 // loop_footer
      %s116 = sadd.s32 1, %s112
    $region7: #{_lambda_.1} parent=1 // loop_footer_branch
      %111 = sbr.rel target = $region3
    $region8: #{_lambda_.1} parent=1 // loop_exit
      _
    %6354 = vsyncpa [#allocation4], 1
    %s6355 = scalar_lea.sflag [#allocation4], 1
    %6356 = vsyncpa %s6355, 1
    %6357 = vsyncpa [#allocation6], 1
    %6358 = vsyncpa [#allocation9], 1
    %6359 = vsyncpa [#allocation12], 1
    %6360 = vsyncpa [#allocation15], 1

</llo_original>
